<compile_context>
chip_gen: v5e
topology: v5e:2x2
jax: 0.10.0
libtpu: 0.0.40
codegen_flags: <defaults>
</compile_context>

<pallas_src>
import math

import jax
import jax.numpy as jnp
from jax.experimental import pallas as pl
from jax.experimental.pallas import tpu as pltpu

H = 256            # num_hiddens (fixed by nn.Linear(256, 3))
HEADS = 4
DH = H // HEADS
LAYERS = 2
FFN = 256
NUM_CLASSES = 3
VOCAB = 64
MAX_LEN = 64
LN_EPS = 1e-5      # PyTorch nn.LayerNorm default
NEG_INF = -1e6     # d2l masked_softmax fill value
OUT_PAD = 128      # lane-dense logits width (wrapper slices back to 3)


def _layernorm(z, gamma, beta):
    mean = jnp.mean(z, axis=-1, keepdims=True)
    var = jnp.mean((z - mean) ** 2, axis=-1, keepdims=True)
    return (z - mean) * jax.lax.rsqrt(var + LN_EPS) * gamma + beta


def _bert_kernel(tok_ref, seg_ref, mask_ref,                 # (Bt*S,1), (Bt*S,1), (Bt,S,S)
                 tok_emb_ref, seg_emb_ref, pos_emb_ref,
                 wqkv_ref, bqkv_ref, wo_ref, bo_ref,
                 ln1g_ref, ln1b_ref,
                 w1_ref, b1_ref, w2_ref, b2_ref,
                 ln2g_ref, ln2b_ref,
                 hidw_ref, hidb_ref, outw_ref, outb_ref,
                 o_ref,                                      # (1, Bt, OUT_PAD)
                 ctx_ref):                                   # VMEM scratch (Bt*S, H) f32
    Bt, S, _ = mask_ref.shape
    M = Bt * S                                               # token-slab rows

    # ------------------------- embeddings (tok + seg + pos) -------------------------
    tok_ids = tok_ref[...]                                   # (M, 1) int32
    seg_f = seg_ref[...].astype(jnp.float32)                 # (M, 1) in {0., 1.}
    vocab_iota = jax.lax.broadcasted_iota(jnp.int32, (M, VOCAB), 1)
    onehot = (tok_ids == vocab_iota).astype(jnp.bfloat16)    # exact in bf16
    x = jnp.dot(onehot, tok_emb_ref[...],
                preferred_element_type=jnp.float32)          # (M, H) f32
    x = x + seg_emb_ref[0:1, :] * (1.0 - seg_f) + seg_emb_ref[1:2, :] * seg_f
    x = x + jnp.tile(pos_emb_ref[0:S, :], (Bt, 1))           # per-sequence positions

    keep = mask_ref[...] > 0.5                               # (Bt, S, S) key mask
    scale = 1.0 / math.sqrt(DH)

    # ------------------------------- encoder layers ---------------------------------
    for l in range(LAYERS):
        # Fused Q|K|V projection on the whole slab: (M, H) @ (H, 3H), bf16 MXU, f32 acc.
        qkv = jnp.dot(x.astype(jnp.bfloat16), wqkv_ref[l],
                      preferred_element_type=jnp.float32) + bqkv_ref[l]    # (M, 3H)
        qkv3 = qkv.reshape(Bt, S, 3 * H)                                   # cheap split (S % 8 == 0)

        for h in range(HEADS):                    # per-head attention, batched over Bt
            q = qkv3[:, :, h * DH:(h + 1) * DH].astype(jnp.bfloat16)
            k = qkv3[:, :, H + h * DH:H + (h + 1) * DH].astype(jnp.bfloat16)
            v = qkv3[:, :, 2 * H + h * DH:2 * H + (h + 1) * DH].astype(jnp.bfloat16)
            s = jnp.einsum("bqd,bkd->bqk", q, k,
                           preferred_element_type=jnp.float32) * scale    # (Bt, S, S)
            s = jnp.where(keep, s, NEG_INF)       # d2l masked_softmax
            m = jnp.max(s, axis=-1, keepdims=True)
            p = jnp.exp(s - m)
            p = p * pl.reciprocal(jnp.sum(p, axis=-1, keepdims=True), approx=True)
            ctx = jnp.einsum("bqk,bkd->bqd", p.astype(jnp.bfloat16), v,
                             preferred_element_type=jnp.float32)          # (Bt, S, DH)
            # write head result at its lane slice -> no jnp.concatenate of heads
            ctx_ref[:, h * DH:(h + 1) * DH] = ctx.reshape(M, DH)

        attn = jnp.dot(ctx_ref[...].astype(jnp.bfloat16), wo_ref[l],
                       preferred_element_type=jnp.float32) + bo_ref[l]    # single full-K Wo
        y = _layernorm(x + attn, ln1g_ref[l], ln1b_ref[l])                # AddNorm1

        f = jnp.dot(y.astype(jnp.bfloat16), w1_ref[l],
                    preferred_element_type=jnp.float32) + b1_ref[l]
        f = jnp.maximum(f, 0.0)                                           # ReLU
        f = jnp.dot(f.astype(jnp.bfloat16), w2_ref[l],
                    preferred_element_type=jnp.float32) + b2_ref[l]
        x = _layernorm(y + f, ln2g_ref[l], ln2b_ref[l])                   # AddNorm2

    # ----------------------------- classifier head (CLS) ----------------------------
    cls = x.reshape(Bt, S, H)[:, 0, :]                                    # (Bt, H) CLS rows
    hdn = jnp.tanh(jnp.dot(cls.astype(jnp.bfloat16), hidw_ref[...],
                           preferred_element_type=jnp.float32) + hidb_ref[...])
    logits = jnp.dot(hdn.astype(jnp.bfloat16), outw_ref[...],
                     preferred_element_type=jnp.float32) + outb_ref[...]  # (Bt, 128)
    o_ref[0] = logits


# ------------------------------------------------------------------------ params ----
def init_params(key):
    ks = iter(jax.random.split(key, 32))

    def nrm(shape, scale=0.02):
        return scale * jax.random.normal(next(ks), shape, dtype=jnp.float32)

    def nrm_bf16(shape, scale=0.02):
        return nrm(shape, scale).astype(jnp.bfloat16)

    return {
        # embedding tables: token table bf16 (MXU one-hot gather); seg/pos f32 (VPU adds)
        "tok_emb": nrm_bf16((VOCAB, H)),
        "seg_emb": nrm((2, H)),
        "pos_emb": nrm((MAX_LEN, H)),
        # per-layer weights stacked on a leading layer axis; MXU operands in bf16
        "wqkv": nrm_bf16((LAYERS, H, 3 * H)),          # fused Wq|Wk|Wv
        "bqkv": jnp.zeros((LAYERS, 1, 3 * H), jnp.float32),
        "wo": nrm_bf16((LAYERS, H, H)),
        "bo": jnp.zeros((LAYERS, 1, H), jnp.float32),
        "ln1_g": jnp.ones((LAYERS, 1, H), jnp.float32),
        "ln1_b": jnp.zeros((LAYERS, 1, H), jnp.float32),
        "w1": nrm_bf16((LAYERS, H, FFN)),
        "b1": jnp.zeros((LAYERS, 1, FFN), jnp.float32),
        "w2": nrm_bf16((LAYERS, FFN, H)),
        "b2": jnp.zeros((LAYERS, 1, H), jnp.float32),
        "ln2_g": jnp.ones((LAYERS, 1, H), jnp.float32),
        "ln2_b": jnp.zeros((LAYERS, 1, H), jnp.float32),
        # head
        "hid_w": nrm_bf16((H, H)),
        "hid_b": jnp.zeros((1, H), jnp.float32),
        "out_w": nrm((H, NUM_CLASSES)),                 # padded/cast in the wrapper
        "out_b": jnp.zeros((1, NUM_CLASSES), jnp.float32),
    }


# ----------------------------------------------------------------------- forward ----
def bert_classifier_forward(params, tokens, segments, valid_lens, *, block_batch=None):
    B, S = tokens.shape
    Bt = B if block_batch is None else block_batch
    # Production sizing: pick Bt so Bt*S >= 256 (fills MXU rows on v6e/v7x; >=128 on
    # v5e) and B//Bt is a multiple of 2 on v7x so both TensorCores get grid steps.
    assert B % Bt == 0, "block_batch must divide batch"
    assert (Bt * S) % 8 == 0, "Bt*S must be a multiple of 8 (sublane tiling)"
    assert S <= MAX_LEN
    G = B // Bt

    tok_flat = tokens.astype(jnp.int32).reshape(B * S, 1)
    seg_flat = segments.astype(jnp.int32).reshape(B * S, 1)

    # d2l masked_softmax key mask for 1-D valid_lens (keys >= len masked for all
    # queries). Pure index plumbing (O(B*S^2) compares), not compute hoisting.
    keep = (jnp.arange(S, dtype=jnp.int32)[None, :]
            < valid_lens.astype(jnp.int32)[:, None]).astype(jnp.float32)   # (B, S)
    mask = jnp.broadcast_to(keep[:, None, :], (B, S, S))

    # Lane-dense classifier weights: pad 3 -> 128 output lanes.
    out_w = jnp.pad(params["out_w"],
                    ((0, 0), (0, OUT_PAD - NUM_CLASSES))).astype(jnp.bfloat16)
    out_b = jnp.pad(params["out_b"], ((0, 0), (0, OUT_PAD - NUM_CLASSES)))

    weight_inputs = (
        params["tok_emb"], params["seg_emb"], params["pos_emb"],
        params["wqkv"], params["bqkv"], params["wo"], params["bo"],
        params["ln1_g"], params["ln1_b"],
        params["w1"], params["b1"], params["w2"], params["b2"],
        params["ln2_g"], params["ln2_b"],
        params["hid_w"], params["hid_b"],
        out_w, out_b,
    )

    def _resident(a):                      # full-array VMEM-resident weight block
        nd = a.ndim
        return pl.BlockSpec(a.shape, lambda g, nd=nd: (0,) * nd)

    tok_spec = pl.BlockSpec((Bt * S, 1), lambda g: (g, 0))
    seg_spec = pl.BlockSpec((Bt * S, 1), lambda g: (g, 0))
    mask_spec = pl.BlockSpec((Bt, S, S), lambda g: (g, 0, 0))
    out_spec = pl.BlockSpec((1, Bt, OUT_PAD), lambda g: (g, 0, 0))

    grid_spec = pltpu.PrefetchScalarGridSpec(
        num_scalar_prefetch=0,
        grid=(G,),
        in_specs=[tok_spec, seg_spec, mask_spec] + [_resident(a) for a in weight_inputs],
        out_specs=out_spec,
        scratch_shapes=[pltpu.VMEM((Bt * S, H), jnp.float32)],   # per-head context slab
    )

    out = pl.pallas_call(
        _bert_kernel,
        out_shape=jax.ShapeDtypeStruct((G, Bt, OUT_PAD), jnp.float32),
        grid_spec=grid_spec,
        compiler_params=pltpu.CompilerParams(
            dimension_semantics=("parallel",)),    # batch-block grid -> both v7x TCs
    )(tok_flat, seg_flat, mask, *weight_inputs)
    return out.reshape(B, OUT_PAD)[:, :NUM_CLASSES]


if __name__ == "__main__":
    key = jax.random.PRNGKey(0)
    pkey, tkey = jax.random.split(key)
    params = init_params(pkey)

    B, S = 8, 8
    tokens = jax.random.randint(tkey, (B, S), 0, VOCAB, dtype=jnp.int32)
    segments = jnp.concatenate([jnp.zeros((B, S // 2), jnp.int32),
                                jnp.ones((B, S // 2), jnp.int32)], axis=1)
    valid_lens = jnp.array([8, 5, 8, 3, 6, 8, 4, 7], dtype=jnp.int32)

    fwd = jax.jit(bert_classifier_forward, static_argnames=("block_batch",))
    logits = fwd(params, tokens, segments, valid_lens, block_batch=4)   # grid = (2,)
    jax.block_until_ready(logits)
    assert logits.shape == (B, NUM_CLASSES) and logits.dtype == jnp.float32
    print("KERNEL_OK")
</pallas_src>

<mosaic_0001>
module attributes {stable_mosaic.version = 11 : i64} {
  func.func @_bert_kernel(%arg0: i32, %arg1: memref<32x1xi32, #tpu.memory_space<vmem>>, %arg2: memref<32x1xi32, #tpu.memory_space<vmem>>, %arg3: memref<4x8x8xf32, #tpu.memory_space<vmem>>, %arg4: memref<64x256xbf16, #tpu.memory_space<vmem>>, %arg5: memref<2x256xf32, #tpu.memory_space<vmem>>, %arg6: memref<64x256xf32, #tpu.memory_space<vmem>>, %arg7: memref<2x256x768xbf16, #tpu.memory_space<vmem>>, %arg8: memref<2x1x768xf32, #tpu.memory_space<vmem>>, %arg9: memref<2x256x256xbf16, #tpu.memory_space<vmem>>, %arg10: memref<2x1x256xf32, #tpu.memory_space<vmem>>, %arg11: memref<2x1x256xf32, #tpu.memory_space<vmem>>, %arg12: memref<2x1x256xf32, #tpu.memory_space<vmem>>, %arg13: memref<2x256x256xbf16, #tpu.memory_space<vmem>>, %arg14: memref<2x1x256xf32, #tpu.memory_space<vmem>>, %arg15: memref<2x256x256xbf16, #tpu.memory_space<vmem>>, %arg16: memref<2x1x256xf32, #tpu.memory_space<vmem>>, %arg17: memref<2x1x256xf32, #tpu.memory_space<vmem>>, %arg18: memref<2x1x256xf32, #tpu.memory_space<vmem>>, %arg19: memref<256x256xbf16, #tpu.memory_space<vmem>>, %arg20: memref<1x256xf32, #tpu.memory_space<vmem>>, %arg21: memref<256x128xbf16, #tpu.memory_space<vmem>>, %arg22: memref<1x128xf32, #tpu.memory_space<vmem>>, %arg23: memref<1x4x128xf32, #tpu.memory_space<vmem>>, %arg24: memref<32x256xf32, #tpu.memory_space<vmem>>) attributes {dimension_semantics = [#tpu.dimension_semantics<parallel>], iteration_bounds = array<i64: 2>, scalar_prefetch = 0 : i64, scratch_operands = 1 : i64, tpu.core_type = #tpu.core_type<tc>, window_params = [{transform_indices = @transform_0, window_bounds = array<i64: 32, 1>}, {transform_indices = @transform_1, window_bounds = array<i64: 32, 1>}, {transform_indices = @transform_2, window_bounds = array<i64: 4, 8, 8>}, {pipeline_mode = #tpu.pipeline_mode<synchronous>, transform_indices = @transform_3, window_bounds = array<i64: 64, 256>}, {pipeline_mode = #tpu.pipeline_mode<synchronous>, transform_indices = @transform_4, window_bounds = array<i64: 2, 256>}, {pipeline_mode = #tpu.pipeline_mode<synchronous>, transform_indices = @transform_5, window_bounds = array<i64: 64, 256>}, {pipeline_mode = #tpu.pipeline_mode<synchronous>, transform_indices = @transform_6, window_bounds = array<i64: 2, 256, 768>}, {pipeline_mode = #tpu.pipeline_mode<synchronous>, transform_indices = @transform_7, window_bounds = array<i64: 2, 1, 768>}, {pipeline_mode = #tpu.pipeline_mode<synchronous>, transform_indices = @transform_8, window_bounds = array<i64: 2, 256, 256>}, {pipeline_mode = #tpu.pipeline_mode<synchronous>, transform_indices = @transform_9, window_bounds = array<i64: 2, 1, 256>}, {pipeline_mode = #tpu.pipeline_mode<synchronous>, transform_indices = @transform_10, window_bounds = array<i64: 2, 1, 256>}, {pipeline_mode = #tpu.pipeline_mode<synchronous>, transform_indices = @transform_11, window_bounds = array<i64: 2, 1, 256>}, {pipeline_mode = #tpu.pipeline_mode<synchronous>, transform_indices = @transform_12, window_bounds = array<i64: 2, 256, 256>}, {pipeline_mode = #tpu.pipeline_mode<synchronous>, transform_indices = @transform_13, window_bounds = array<i64: 2, 1, 256>}, {pipeline_mode = #tpu.pipeline_mode<synchronous>, transform_indices = @transform_14, window_bounds = array<i64: 2, 256, 256>}, {pipeline_mode = #tpu.pipeline_mode<synchronous>, transform_indices = @transform_15, window_bounds = array<i64: 2, 1, 256>}, {pipeline_mode = #tpu.pipeline_mode<synchronous>, transform_indices = @transform_16, window_bounds = array<i64: 2, 1, 256>}, {pipeline_mode = #tpu.pipeline_mode<synchronous>, transform_indices = @transform_17, window_bounds = array<i64: 2, 1, 256>}, {pipeline_mode = #tpu.pipeline_mode<synchronous>, transform_indices = @transform_18, window_bounds = array<i64: 256, 256>}, {pipeline_mode = #tpu.pipeline_mode<synchronous>, transform_indices = @transform_19, window_bounds = array<i64: 1, 256>}, {pipeline_mode = #tpu.pipeline_mode<synchronous>, transform_indices = @transform_20, window_bounds = array<i64: 256, 128>}, {pipeline_mode = #tpu.pipeline_mode<synchronous>, transform_indices = @transform_21, window_bounds = array<i64: 1, 128>}, {transform_indices = @transform_22, window_bounds = array<i64: 1, 4, 128>}]} {
    %c0 = arith.constant 0 : index
    %c0_0 = arith.constant 0 : index
    %0 = vector.load %arg1[%c0, %c0_0] : memref<32x1xi32, #tpu.memory_space<vmem>>, vector<32x1xi32>
    %c0_1 = arith.constant 0 : index
    %c0_2 = arith.constant 0 : index
    %1 = vector.load %arg2[%c0_1, %c0_2] : memref<32x1xi32, #tpu.memory_space<vmem>>, vector<32x1xi32>
    %2 = arith.sitofp %1 : vector<32x1xi32> to vector<32x1xf32>
    %3 = tpu.iota {dimensions = array<i32: 1>} : vector<32x64xi32>
    %4 = vector.broadcast %0 : vector<32x1xi32> to vector<32x64xi32>
    %5 = arith.cmpi eq, %4, %3 : vector<32x64xi32>
    %6 = arith.extui %5 : vector<32x64xi1> to vector<32x64xi32>
    %7 = arith.sitofp %6 : vector<32x64xi32> to vector<32x64xf32>
    %8 = arith.truncf %7 : vector<32x64xf32> to vector<32x64xbf16>
    %c0_3 = arith.constant 0 : index
    %c0_4 = arith.constant 0 : index
    %9 = vector.load %arg4[%c0_3, %c0_4] : memref<64x256xbf16, #tpu.memory_space<vmem>>, vector<64x256xbf16>
    %cst = arith.constant dense<0.000000e+00> : vector<32x256xf32>
    %10 = tpu.matmul %8, %9, %cst {dimension_numbers = #tpu.dot_dimension_numbers<[1], [0], [0], [1], [0, 0, 1, 1], [], []>} : vector<32x64xbf16>, vector<64x256xbf16>, vector<32x256xf32> -> vector<32x256xf32>
    %c0_5 = arith.constant 0 : index
    %c0_6 = arith.constant 0 : index
    %11 = vector.load %arg5[%c0_5, %c0_6] : memref<2x256xf32, #tpu.memory_space<vmem>>, vector<1x256xf32>
    %cst_7 = arith.constant 1.000000e+00 : f32
    %12 = vector.broadcast %cst_7 : f32 to vector<32x1xf32>
    %13 = arith.subf %12, %2 : vector<32x1xf32>
    %14 = vector.broadcast %11 : vector<1x256xf32> to vector<32x256xf32>
    %15 = vector.broadcast %13 : vector<32x1xf32> to vector<32x256xf32>
    %16 = arith.mulf %14, %15 : vector<32x256xf32>
    %17 = arith.addf %10, %16 : vector<32x256xf32>
    %c1 = arith.constant 1 : index
    %c0_8 = arith.constant 0 : index
    %18 = vector.load %arg5[%c1, %c0_8] : memref<2x256xf32, #tpu.memory_space<vmem>>, vector<1x256xf32>
    %19 = vector.broadcast %18 : vector<1x256xf32> to vector<32x256xf32>
    %20 = vector.broadcast %2 : vector<32x1xf32> to vector<32x256xf32>
    %21 = arith.mulf %19, %20 : vector<32x256xf32>
    %22 = arith.addf %17, %21 : vector<32x256xf32>
    %c0_9 = arith.constant 0 : index
    %c0_10 = arith.constant 0 : index
    %23 = vector.load %arg6[%c0_9, %c0_10] : memref<64x256xf32, #tpu.memory_space<vmem>>, vector<8x256xf32>
    %24 = tpu.concatenate %23, %23, %23, %23 in 0 : vector<8x256xf32>, vector<8x256xf32>, vector<8x256xf32>, vector<8x256xf32> -> vector<32x256xf32>
    %25 = arith.addf %22, %24 : vector<32x256xf32>
    %c0_11 = arith.constant 0 : index
    %c0_12 = arith.constant 0 : index
    %c0_13 = arith.constant 0 : index
    %26 = vector.load %arg3[%c0_11, %c0_12, %c0_13] : memref<4x8x8xf32, #tpu.memory_space<vmem>>, vector<4x8x8xf32>
    %cst_14 = arith.constant 5.000000e-01 : f32
    %27 = vector.broadcast %cst_14 : f32 to vector<4x8x8xf32>
    %28 = arith.cmpf ogt, %26, %27 : vector<4x8x8xf32>
    %29 = arith.truncf %25 : vector<32x256xf32> to vector<32x256xbf16>
    %c0_15 = arith.constant 0 : index
    %c0_16 = arith.constant 0 : index
    %c0_17 = arith.constant 0 : index
    %30 = vector.load %arg7[%c0_15, %c0_16, %c0_17] : memref<2x256x768xbf16, #tpu.memory_space<vmem>>, vector<1x256x768xbf16>
    %31 = vector.shape_cast %30 : vector<1x256x768xbf16> to vector<256x768xbf16>
    %cst_18 = arith.constant dense<0.000000e+00> : vector<32x768xf32>
    %32 = tpu.matmul %29, %31, %cst_18 {dimension_numbers = #tpu.dot_dimension_numbers<[1], [0], [0], [1], [0, 0, 1, 1], [], []>} : vector<32x256xbf16>, vector<256x768xbf16>, vector<32x768xf32> -> vector<32x768xf32>
    %c0_19 = arith.constant 0 : index
    %c0_20 = arith.constant 0 : index
    %c0_21 = arith.constant 0 : index
    %33 = vector.load %arg8[%c0_19, %c0_20, %c0_21] : memref<2x1x768xf32, #tpu.memory_space<vmem>>, vector<1x1x768xf32>
    %34 = vector.shape_cast %33 : vector<1x1x768xf32> to vector<1x768xf32>
    %35 = vector.broadcast %34 : vector<1x768xf32> to vector<32x768xf32>
    %36 = arith.addf %32, %35 : vector<32x768xf32>
    %37 = vector.shape_cast %36 : vector<32x768xf32> to vector<4x8x768xf32>
    %38 = vector.extract_strided_slice %37 {offsets = [0, 0, 0], sizes = [4, 8, 64], strides = [1, 1, 1]} : vector<4x8x768xf32> to vector<4x8x64xf32>
    %39 = arith.truncf %38 : vector<4x8x64xf32> to vector<4x8x64xbf16>
    %40 = vector.extract_strided_slice %37 {offsets = [0, 0, 256], sizes = [4, 8, 64], strides = [1, 1, 1]} : vector<4x8x768xf32> to vector<4x8x64xf32>
    %41 = arith.truncf %40 : vector<4x8x64xf32> to vector<4x8x64xbf16>
    %42 = vector.extract_strided_slice %37 {offsets = [0, 0, 512], sizes = [4, 8, 64], strides = [1, 1, 1]} : vector<4x8x768xf32> to vector<4x8x64xf32>
    %43 = arith.truncf %42 : vector<4x8x64xf32> to vector<4x8x64xbf16>
    "tpu.trace_start"() <{level = 10 : i32, message = "bqd,bkd->bqk"}> : () -> ()
    %cst_22 = arith.constant dense<0.000000e+00> : vector<4x8x8xf32>
    %44 = tpu.matmul %39, %41, %cst_22 {dimension_numbers = #tpu.dot_dimension_numbers<[2], [2], [1], [1], [0, 0, 0, 1, 1, 1], [0], [0]>} : vector<4x8x64xbf16>, vector<4x8x64xbf16>, vector<4x8x8xf32> -> vector<4x8x8xf32>
    "tpu.trace_stop"() : () -> ()
    %cst_23 = arith.constant 1.250000e-01 : f32
    %45 = vector.broadcast %cst_23 : f32 to vector<4x8x8xf32>
    %46 = arith.mulf %44, %45 : vector<4x8x8xf32>
    %cst_24 = arith.constant -1.000000e+06 : f32
    %47 = vector.broadcast %cst_24 : f32 to vector<4x8x8xf32>
    %48 = arith.select %28, %46, %47 : vector<4x8x8xi1>, vector<4x8x8xf32>
    %cst_25 = arith.constant dense<0xFF800000> : vector<4x8xf32>
    %49 = vector.multi_reduction <maximumf>, %48, %cst_25 [2] : vector<4x8x8xf32> to vector<4x8xf32>
    %50 = vector.shape_cast %49 : vector<4x8xf32> to vector<4x8x1xf32>
    %51 = vector.broadcast %50 : vector<4x8x1xf32> to vector<4x8x8xf32>
    %52 = arith.subf %48, %51 : vector<4x8x8xf32>
    %53 = math.exp %52 : vector<4x8x8xf32>
    %cst_26 = arith.constant dense<0.000000e+00> : vector<4x8xf32>
    %54 = vector.multi_reduction <add>, %53, %cst_26 [2] : vector<4x8x8xf32> to vector<4x8xf32>
    %55 = vector.shape_cast %54 : vector<4x8xf32> to vector<4x8x1xf32>
    %56 = tpu.reciprocal %55 {approx = true} : vector<4x8x1xf32> -> vector<4x8x1xf32>
    %57 = vector.broadcast %56 : vector<4x8x1xf32> to vector<4x8x8xf32>
    %58 = arith.mulf %53, %57 : vector<4x8x8xf32>
    %59 = arith.truncf %58 : vector<4x8x8xf32> to vector<4x8x8xbf16>
    "tpu.trace_start"() <{level = 10 : i32, message = "bqk,bkd->bqd"}> : () -> ()
    %cst_27 = arith.constant dense<0.000000e+00> : vector<4x8x64xf32>
    %60 = tpu.matmul %59, %43, %cst_27 {dimension_numbers = #tpu.dot_dimension_numbers<[2], [1], [1], [2], [0, 0, 0, 1, 1, 2], [0], [0]>} : vector<4x8x8xbf16>, vector<4x8x64xbf16>, vector<4x8x64xf32> -> vector<4x8x64xf32>
    "tpu.trace_stop"() : () -> ()
    %61 = vector.shape_cast %60 : vector<4x8x64xf32> to vector<32x64xf32>
    %c0_28 = arith.constant 0 : index
    %c0_29 = arith.constant 0 : index
    %62 = vector.load %arg24[%c0_28, %c0_29] : memref<32x256xf32, #tpu.memory_space<vmem>>, vector<32x64xf32>
    tpu.vector_store %arg24[%c0_28, %c0_29], %61 {strides = array<i32>} : memref<32x256xf32, #tpu.memory_space<vmem>>, vector<32x64xf32>,
    %63 = vector.extract_strided_slice %37 {offsets = [0, 0, 64], sizes = [4, 8, 64], strides = [1, 1, 1]} : vector<4x8x768xf32> to vector<4x8x64xf32>
    %64 = arith.truncf %63 : vector<4x8x64xf32> to vector<4x8x64xbf16>
    %65 = vector.extract_strided_slice %37 {offsets = [0, 0, 320], sizes = [4, 8, 64], strides = [1, 1, 1]} : vector<4x8x768xf32> to vector<4x8x64xf32>
    %66 = arith.truncf %65 : vector<4x8x64xf32> to vector<4x8x64xbf16>
    %67 = vector.extract_strided_slice %37 {offsets = [0, 0, 576], sizes = [4, 8, 64], strides = [1, 1, 1]} : vector<4x8x768xf32> to vector<4x8x64xf32>
    %68 = arith.truncf %67 : vector<4x8x64xf32> to vector<4x8x64xbf16>
    "tpu.trace_start"() <{level = 10 : i32, message = "bqd,bkd->bqk"}> : () -> ()
    %cst_30 = arith.constant dense<0.000000e+00> : vector<4x8x8xf32>
    %69 = tpu.matmul %64, %66, %cst_30 {dimension_numbers = #tpu.dot_dimension_numbers<[2], [2], [1], [1], [0, 0, 0, 1, 1, 1], [0], [0]>} : vector<4x8x64xbf16>, vector<4x8x64xbf16>, vector<4x8x8xf32> -> vector<4x8x8xf32>
    "tpu.trace_stop"() : () -> ()
    %cst_31 = arith.constant 1.250000e-01 : f32
    %70 = vector.broadcast %cst_31 : f32 to vector<4x8x8xf32>
    %71 = arith.mulf %69, %70 : vector<4x8x8xf32>
    %cst_32 = arith.constant -1.000000e+06 : f32
    %72 = vector.broadcast %cst_32 : f32 to vector<4x8x8xf32>
    %73 = arith.select %28, %71, %72 : vector<4x8x8xi1>, vector<4x8x8xf32>
    %cst_33 = arith.constant dense<0xFF800000> : vector<4x8xf32>
    %74 = vector.multi_reduction <maximumf>, %73, %cst_33 [2] : vector<4x8x8xf32> to vector<4x8xf32>
    %75 = vector.shape_cast %74 : vector<4x8xf32> to vector<4x8x1xf32>
    %76 = vector.broadcast %75 : vector<4x8x1xf32> to vector<4x8x8xf32>
    %77 = arith.subf %73, %76 : vector<4x8x8xf32>
    %78 = math.exp %77 : vector<4x8x8xf32>
    %cst_34 = arith.constant dense<0.000000e+00> : vector<4x8xf32>
    %79 = vector.multi_reduction <add>, %78, %cst_34 [2] : vector<4x8x8xf32> to vector<4x8xf32>
    %80 = vector.shape_cast %79 : vector<4x8xf32> to vector<4x8x1xf32>
    %81 = tpu.reciprocal %80 {approx = true} : vector<4x8x1xf32> -> vector<4x8x1xf32>
    %82 = vector.broadcast %81 : vector<4x8x1xf32> to vector<4x8x8xf32>
    %83 = arith.mulf %78, %82 : vector<4x8x8xf32>
    %84 = arith.truncf %83 : vector<4x8x8xf32> to vector<4x8x8xbf16>
    "tpu.trace_start"() <{level = 10 : i32, message = "bqk,bkd->bqd"}> : () -> ()
    %cst_35 = arith.constant dense<0.000000e+00> : vector<4x8x64xf32>
    %85 = tpu.matmul %84, %68, %cst_35 {dimension_numbers = #tpu.dot_dimension_numbers<[2], [1], [1], [2], [0, 0, 0, 1, 1, 2], [0], [0]>} : vector<4x8x8xbf16>, vector<4x8x64xbf16>, vector<4x8x64xf32> -> vector<4x8x64xf32>
    "tpu.trace_stop"() : () -> ()
    %86 = vector.shape_cast %85 : vector<4x8x64xf32> to vector<32x64xf32>
    %c0_36 = arith.constant 0 : index
    %c64 = arith.constant 64 : index
    %87 = vector.load %arg24[%c0_36, %c64] : memref<32x256xf32, #tpu.memory_space<vmem>>, vector<32x64xf32>
    tpu.vector_store %arg24[%c0_36, %c64], %86 {strides = array<i32>} : memref<32x256xf32, #tpu.memory_space<vmem>>, vector<32x64xf32>,
    %88 = vector.extract_strided_slice %37 {offsets = [0, 0, 128], sizes = [4, 8, 64], strides = [1, 1, 1]} : vector<4x8x768xf32> to vector<4x8x64xf32>
    %89 = arith.truncf %88 : vector<4x8x64xf32> to vector<4x8x64xbf16>
    %90 = vector.extract_strided_slice %37 {offsets = [0, 0, 384], sizes = [4, 8, 64], strides = [1, 1, 1]} : vector<4x8x768xf32> to vector<4x8x64xf32>
    %91 = arith.truncf %90 : vector<4x8x64xf32> to vector<4x8x64xbf16>
    %92 = vector.extract_strided_slice %37 {offsets = [0, 0, 640], sizes = [4, 8, 64], strides = [1, 1, 1]} : vector<4x8x768xf32> to vector<4x8x64xf32>
    %93 = arith.truncf %92 : vector<4x8x64xf32> to vector<4x8x64xbf16>
    "tpu.trace_start"() <{level = 10 : i32, message = "bqd,bkd->bqk"}> : () -> ()
    %cst_37 = arith.constant dense<0.000000e+00> : vector<4x8x8xf32>
    %94 = tpu.matmul %89, %91, %cst_37 {dimension_numbers = #tpu.dot_dimension_numbers<[2], [2], [1], [1], [0, 0, 0, 1, 1, 1], [0], [0]>} : vector<4x8x64xbf16>, vector<4x8x64xbf16>, vector<4x8x8xf32> -> vector<4x8x8xf32>
    "tpu.trace_stop"() : () -> ()
    %cst_38 = arith.constant 1.250000e-01 : f32
    %95 = vector.broadcast %cst_38 : f32 to vector<4x8x8xf32>
    %96 = arith.mulf %94, %95 : vector<4x8x8xf32>
    %cst_39 = arith.constant -1.000000e+06 : f32
    %97 = vector.broadcast %cst_39 : f32 to vector<4x8x8xf32>
    %98 = arith.select %28, %96, %97 : vector<4x8x8xi1>, vector<4x8x8xf32>
    %cst_40 = arith.constant dense<0xFF800000> : vector<4x8xf32>
    %99 = vector.multi_reduction <maximumf>, %98, %cst_40 [2] : vector<4x8x8xf32> to vector<4x8xf32>
    %100 = vector.shape_cast %99 : vector<4x8xf32> to vector<4x8x1xf32>
    %101 = vector.broadcast %100 : vector<4x8x1xf32> to vector<4x8x8xf32>
    %102 = arith.subf %98, %101 : vector<4x8x8xf32>
    %103 = math.exp %102 : vector<4x8x8xf32>
    %cst_41 = arith.constant dense<0.000000e+00> : vector<4x8xf32>
    %104 = vector.multi_reduction <add>, %103, %cst_41 [2] : vector<4x8x8xf32> to vector<4x8xf32>
    %105 = vector.shape_cast %104 : vector<4x8xf32> to vector<4x8x1xf32>
    %106 = tpu.reciprocal %105 {approx = true} : vector<4x8x1xf32> -> vector<4x8x1xf32>
    %107 = vector.broadcast %106 : vector<4x8x1xf32> to vector<4x8x8xf32>
    %108 = arith.mulf %103, %107 : vector<4x8x8xf32>
    %109 = arith.truncf %108 : vector<4x8x8xf32> to vector<4x8x8xbf16>
    "tpu.trace_start"() <{level = 10 : i32, message = "bqk,bkd->bqd"}> : () -> ()
    %cst_42 = arith.constant dense<0.000000e+00> : vector<4x8x64xf32>
    %110 = tpu.matmul %109, %93, %cst_42 {dimension_numbers = #tpu.dot_dimension_numbers<[2], [1], [1], [2], [0, 0, 0, 1, 1, 2], [0], [0]>} : vector<4x8x8xbf16>, vector<4x8x64xbf16>, vector<4x8x64xf32> -> vector<4x8x64xf32>
    "tpu.trace_stop"() : () -> ()
    %111 = vector.shape_cast %110 : vector<4x8x64xf32> to vector<32x64xf32>
    %c0_43 = arith.constant 0 : index
    %c128 = arith.constant 128 : index
    %112 = vector.load %arg24[%c0_43, %c128] : memref<32x256xf32, #tpu.memory_space<vmem>>, vector<32x64xf32>
    tpu.vector_store %arg24[%c0_43, %c128], %111 {strides = array<i32>} : memref<32x256xf32, #tpu.memory_space<vmem>>, vector<32x64xf32>,
    %113 = vector.extract_strided_slice %37 {offsets = [0, 0, 192], sizes = [4, 8, 64], strides = [1, 1, 1]} : vector<4x8x768xf32> to vector<4x8x64xf32>
    %114 = arith.truncf %113 : vector<4x8x64xf32> to vector<4x8x64xbf16>
    %115 = vector.extract_strided_slice %37 {offsets = [0, 0, 448], sizes = [4, 8, 64], strides = [1, 1, 1]} : vector<4x8x768xf32> to vector<4x8x64xf32>
    %116 = arith.truncf %115 : vector<4x8x64xf32> to vector<4x8x64xbf16>
    %117 = vector.extract_strided_slice %37 {offsets = [0, 0, 704], sizes = [4, 8, 64], strides = [1, 1, 1]} : vector<4x8x768xf32> to vector<4x8x64xf32>
    %118 = arith.truncf %117 : vector<4x8x64xf32> to vector<4x8x64xbf16>
    "tpu.trace_start"() <{level = 10 : i32, message = "bqd,bkd->bqk"}> : () -> ()
    %cst_44 = arith.constant dense<0.000000e+00> : vector<4x8x8xf32>
    %119 = tpu.matmul %114, %116, %cst_44 {dimension_numbers = #tpu.dot_dimension_numbers<[2], [2], [1], [1], [0, 0, 0, 1, 1, 1], [0], [0]>} : vector<4x8x64xbf16>, vector<4x8x64xbf16>, vector<4x8x8xf32> -> vector<4x8x8xf32>
    "tpu.trace_stop"() : () -> ()
    %cst_45 = arith.constant 1.250000e-01 : f32
    %120 = vector.broadcast %cst_45 : f32 to vector<4x8x8xf32>
    %121 = arith.mulf %119, %120 : vector<4x8x8xf32>
    %cst_46 = arith.constant -1.000000e+06 : f32
    %122 = vector.broadcast %cst_46 : f32 to vector<4x8x8xf32>
    %123 = arith.select %28, %121, %122 : vector<4x8x8xi1>, vector<4x8x8xf32>
    %cst_47 = arith.constant dense<0xFF800000> : vector<4x8xf32>
    %124 = vector.multi_reduction <maximumf>, %123, %cst_47 [2] : vector<4x8x8xf32> to vector<4x8xf32>
    %125 = vector.shape_cast %124 : vector<4x8xf32> to vector<4x8x1xf32>
    %126 = vector.broadcast %125 : vector<4x8x1xf32> to vector<4x8x8xf32>
    %127 = arith.subf %123, %126 : vector<4x8x8xf32>
    %128 = math.exp %127 : vector<4x8x8xf32>
    %cst_48 = arith.constant dense<0.000000e+00> : vector<4x8xf32>
    %129 = vector.multi_reduction <add>, %128, %cst_48 [2] : vector<4x8x8xf32> to vector<4x8xf32>
    %130 = vector.shape_cast %129 : vector<4x8xf32> to vector<4x8x1xf32>
    %131 = tpu.reciprocal %130 {approx = true} : vector<4x8x1xf32> -> vector<4x8x1xf32>
    %132 = vector.broadcast %131 : vector<4x8x1xf32> to vector<4x8x8xf32>
    %133 = arith.mulf %128, %132 : vector<4x8x8xf32>
    %134 = arith.truncf %133 : vector<4x8x8xf32> to vector<4x8x8xbf16>
    "tpu.trace_start"() <{level = 10 : i32, message = "bqk,bkd->bqd"}> : () -> ()
    %cst_49 = arith.constant dense<0.000000e+00> : vector<4x8x64xf32>
    %135 = tpu.matmul %134, %118, %cst_49 {dimension_numbers = #tpu.dot_dimension_numbers<[2], [1], [1], [2], [0, 0, 0, 1, 1, 2], [0], [0]>} : vector<4x8x8xbf16>, vector<4x8x64xbf16>, vector<4x8x64xf32> -> vector<4x8x64xf32>
    "tpu.trace_stop"() : () -> ()
    %136 = vector.shape_cast %135 : vector<4x8x64xf32> to vector<32x64xf32>
    %c0_50 = arith.constant 0 : index
    %c192 = arith.constant 192 : index
    %137 = vector.load %arg24[%c0_50, %c192] : memref<32x256xf32, #tpu.memory_space<vmem>>, vector<32x64xf32>
    tpu.vector_store %arg24[%c0_50, %c192], %136 {strides = array<i32>} : memref<32x256xf32, #tpu.memory_space<vmem>>, vector<32x64xf32>,
    %c0_51 = arith.constant 0 : index
    %c0_52 = arith.constant 0 : index
    %138 = vector.load %arg24[%c0_51, %c0_52] : memref<32x256xf32, #tpu.memory_space<vmem>>, vector<32x256xf32>
    %139 = arith.truncf %138 : vector<32x256xf32> to vector<32x256xbf16>
    %c0_53 = arith.constant 0 : index
    %c0_54 = arith.constant 0 : index
    %c0_55 = arith.constant 0 : index
    %140 = vector.load %arg9[%c0_53, %c0_54, %c0_55] : memref<2x256x256xbf16, #tpu.memory_space<vmem>>, vector<1x256x256xbf16>
    %141 = vector.shape_cast %140 : vector<1x256x256xbf16> to vector<256x256xbf16>
    %cst_56 = arith.constant dense<0.000000e+00> : vector<32x256xf32>
    %142 = tpu.matmul %139, %141, %cst_56 {dimension_numbers = #tpu.dot_dimension_numbers<[1], [0], [0], [1], [0, 0, 1, 1], [], []>} : vector<32x256xbf16>, vector<256x256xbf16>, vector<32x256xf32> -> vector<32x256xf32>
    %c0_57 = arith.constant 0 : index
    %c0_58 = arith.constant 0 : index
    %c0_59 = arith.constant 0 : index
    %143 = vector.load %arg10[%c0_57, %c0_58, %c0_59] : memref<2x1x256xf32, #tpu.memory_space<vmem>>, vector<1x1x256xf32>
    %144 = vector.shape_cast %143 : vector<1x1x256xf32> to vector<1x256xf32>
    %145 = vector.broadcast %144 : vector<1x256xf32> to vector<32x256xf32>
    %146 = arith.addf %142, %145 : vector<32x256xf32>
    %147 = arith.addf %25, %146 : vector<32x256xf32>
    %c0_60 = arith.constant 0 : index
    %c0_61 = arith.constant 0 : index
    %c0_62 = arith.constant 0 : index
    %148 = vector.load %arg11[%c0_60, %c0_61, %c0_62] : memref<2x1x256xf32, #tpu.memory_space<vmem>>, vector<1x1x256xf32>
    %149 = vector.shape_cast %148 : vector<1x1x256xf32> to vector<1x256xf32>
    %c0_63 = arith.constant 0 : index
    %c0_64 = arith.constant 0 : index
    %c0_65 = arith.constant 0 : index
    %150 = vector.load %arg12[%c0_63, %c0_64, %c0_65] : memref<2x1x256xf32, #tpu.memory_space<vmem>>, vector<1x1x256xf32>
    %151 = vector.shape_cast %150 : vector<1x1x256xf32> to vector<1x256xf32>
    %cst_66 = arith.constant dense<0.000000e+00> : vector<32xf32>
    %152 = vector.multi_reduction <add>, %147, %cst_66 [1] : vector<32x256xf32> to vector<32xf32>
    %153 = vector.shape_cast %152 : vector<32xf32> to vector<32x1xf32>
    %cst_67 = arith.constant 2.560000e+02 : f32
    %154 = vector.broadcast %cst_67 : f32 to vector<32x1xf32>
    %155 = arith.divf %153, %154 : vector<32x1xf32>
    %156 = vector.broadcast %155 : vector<32x1xf32> to vector<32x256xf32>
    %157 = arith.subf %147, %156 : vector<32x256xf32>
    %158 = arith.mulf %157, %157 : vector<32x256xf32>
    %cst_68 = arith.constant dense<0.000000e+00> : vector<32xf32>
    %159 = vector.multi_reduction <add>, %158, %cst_68 [1] : vector<32x256xf32> to vector<32xf32>
    %160 = vector.shape_cast %159 : vector<32xf32> to vector<32x1xf32>
    %cst_69 = arith.constant 2.560000e+02 : f32
    %161 = vector.broadcast %cst_69 : f32 to vector<32x1xf32>
    %162 = arith.divf %160, %161 : vector<32x1xf32>
    %163 = vector.broadcast %155 : vector<32x1xf32> to vector<32x256xf32>
    %164 = arith.subf %147, %163 : vector<32x256xf32>
    %cst_70 = arith.constant 9.99999974E-6 : f32
    %165 = vector.broadcast %cst_70 : f32 to vector<32x1xf32>
    %166 = arith.addf %162, %165 : vector<32x1xf32>
    %167 = math.rsqrt %166 : vector<32x1xf32>
    %168 = vector.broadcast %167 : vector<32x1xf32> to vector<32x256xf32>
    %169 = arith.mulf %164, %168 : vector<32x256xf32>
    %170 = vector.broadcast %149 : vector<1x256xf32> to vector<32x256xf32>
    %171 = arith.mulf %169, %170 : vector<32x256xf32>
    %172 = vector.broadcast %151 : vector<1x256xf32> to vector<32x256xf32>
    %173 = arith.addf %171, %172 : vector<32x256xf32>
    %174 = arith.truncf %173 : vector<32x256xf32> to vector<32x256xbf16>
    %c0_71 = arith.constant 0 : index
    %c0_72 = arith.constant 0 : index
    %c0_73 = arith.constant 0 : index
    %175 = vector.load %arg13[%c0_71, %c0_72, %c0_73] : memref<2x256x256xbf16, #tpu.memory_space<vmem>>, vector<1x256x256xbf16>
    %176 = vector.shape_cast %175 : vector<1x256x256xbf16> to vector<256x256xbf16>
    %cst_74 = arith.constant dense<0.000000e+00> : vector<32x256xf32>
    %177 = tpu.matmul %174, %176, %cst_74 {dimension_numbers = #tpu.dot_dimension_numbers<[1], [0], [0], [1], [0, 0, 1, 1], [], []>} : vector<32x256xbf16>, vector<256x256xbf16>, vector<32x256xf32> -> vector<32x256xf32>
    %c0_75 = arith.constant 0 : index
    %c0_76 = arith.constant 0 : index
    %c0_77 = arith.constant 0 : index
    %178 = vector.load %arg14[%c0_75, %c0_76, %c0_77] : memref<2x1x256xf32, #tpu.memory_space<vmem>>, vector<1x1x256xf32>
    %179 = vector.shape_cast %178 : vector<1x1x256xf32> to vector<1x256xf32>
    %180 = vector.broadcast %179 : vector<1x256xf32> to vector<32x256xf32>
    %181 = arith.addf %177, %180 : vector<32x256xf32>
    %cst_78 = arith.constant 0.000000e+00 : f32
    %182 = vector.broadcast %cst_78 : f32 to vector<32x256xf32>
    %183 = arith.maximumf %181, %182 : vector<32x256xf32>
    %184 = arith.truncf %183 : vector<32x256xf32> to vector<32x256xbf16>
    %c0_79 = arith.constant 0 : index
    %c0_80 = arith.constant 0 : index
    %c0_81 = arith.constant 0 : index
    %185 = vector.load %arg15[%c0_79, %c0_80, %c0_81] : memref<2x256x256xbf16, #tpu.memory_space<vmem>>, vector<1x256x256xbf16>
    %186 = vector.shape_cast %185 : vector<1x256x256xbf16> to vector<256x256xbf16>
    %cst_82 = arith.constant dense<0.000000e+00> : vector<32x256xf32>
    %187 = tpu.matmul %184, %186, %cst_82 {dimension_numbers = #tpu.dot_dimension_numbers<[1], [0], [0], [1], [0, 0, 1, 1], [], []>} : vector<32x256xbf16>, vector<256x256xbf16>, vector<32x256xf32> -> vector<32x256xf32>
    %c0_83 = arith.constant 0 : index
    %c0_84 = arith.constant 0 : index
    %c0_85 = arith.constant 0 : index
    %188 = vector.load %arg16[%c0_83, %c0_84, %c0_85] : memref<2x1x256xf32, #tpu.memory_space<vmem>>, vector<1x1x256xf32>
    %189 = vector.shape_cast %188 : vector<1x1x256xf32> to vector<1x256xf32>
    %190 = vector.broadcast %189 : vector<1x256xf32> to vector<32x256xf32>
    %191 = arith.addf %187, %190 : vector<32x256xf32>
    %192 = arith.addf %173, %191 : vector<32x256xf32>
    %c0_86 = arith.constant 0 : index
    %c0_87 = arith.constant 0 : index
    %c0_88 = arith.constant 0 : index
    %193 = vector.load %arg17[%c0_86, %c0_87, %c0_88] : memref<2x1x256xf32, #tpu.memory_space<vmem>>, vector<1x1x256xf32>
    %194 = vector.shape_cast %193 : vector<1x1x256xf32> to vector<1x256xf32>
    %c0_89 = arith.constant 0 : index
    %c0_90 = arith.constant 0 : index
    %c0_91 = arith.constant 0 : index
    %195 = vector.load %arg18[%c0_89, %c0_90, %c0_91] : memref<2x1x256xf32, #tpu.memory_space<vmem>>, vector<1x1x256xf32>
    %196 = vector.shape_cast %195 : vector<1x1x256xf32> to vector<1x256xf32>
    %cst_92 = arith.constant dense<0.000000e+00> : vector<32xf32>
    %197 = vector.multi_reduction <add>, %192, %cst_92 [1] : vector<32x256xf32> to vector<32xf32>
    %198 = vector.shape_cast %197 : vector<32xf32> to vector<32x1xf32>
    %cst_93 = arith.constant 2.560000e+02 : f32
    %199 = vector.broadcast %cst_93 : f32 to vector<32x1xf32>
    %200 = arith.divf %198, %199 : vector<32x1xf32>
    %201 = vector.broadcast %200 : vector<32x1xf32> to vector<32x256xf32>
    %202 = arith.subf %192, %201 : vector<32x256xf32>
    %203 = arith.mulf %202, %202 : vector<32x256xf32>
    %cst_94 = arith.constant dense<0.000000e+00> : vector<32xf32>
    %204 = vector.multi_reduction <add>, %203, %cst_94 [1] : vector<32x256xf32> to vector<32xf32>
    %205 = vector.shape_cast %204 : vector<32xf32> to vector<32x1xf32>
    %cst_95 = arith.constant 2.560000e+02 : f32
    %206 = vector.broadcast %cst_95 : f32 to vector<32x1xf32>
    %207 = arith.divf %205, %206 : vector<32x1xf32>
    %208 = vector.broadcast %200 : vector<32x1xf32> to vector<32x256xf32>
    %209 = arith.subf %192, %208 : vector<32x256xf32>
    %cst_96 = arith.constant 9.99999974E-6 : f32
    %210 = vector.broadcast %cst_96 : f32 to vector<32x1xf32>
    %211 = arith.addf %207, %210 : vector<32x1xf32>
    %212 = math.rsqrt %211 : vector<32x1xf32>
    %213 = vector.broadcast %212 : vector<32x1xf32> to vector<32x256xf32>
    %214 = arith.mulf %209, %213 : vector<32x256xf32>
    %215 = vector.broadcast %194 : vector<1x256xf32> to vector<32x256xf32>
    %216 = arith.mulf %214, %215 : vector<32x256xf32>
    %217 = vector.broadcast %196 : vector<1x256xf32> to vector<32x256xf32>
    %218 = arith.addf %216, %217 : vector<32x256xf32>
    %219 = arith.truncf %218 : vector<32x256xf32> to vector<32x256xbf16>
    %c1_97 = arith.constant 1 : index
    %c0_98 = arith.constant 0 : index
    %c0_99 = arith.constant 0 : index
    %220 = vector.load %arg7[%c1_97, %c0_98, %c0_99] : memref<2x256x768xbf16, #tpu.memory_space<vmem>>, vector<1x256x768xbf16>
    %221 = vector.shape_cast %220 : vector<1x256x768xbf16> to vector<256x768xbf16>
    %cst_100 = arith.constant dense<0.000000e+00> : vector<32x768xf32>
    %222 = tpu.matmul %219, %221, %cst_100 {dimension_numbers = #tpu.dot_dimension_numbers<[1], [0], [0], [1], [0, 0, 1, 1], [], []>} : vector<32x256xbf16>, vector<256x768xbf16>, vector<32x768xf32> -> vector<32x768xf32>
    %c1_101 = arith.constant 1 : index
    %c0_102 = arith.constant 0 : index
    %c0_103 = arith.constant 0 : index
    %223 = vector.load %arg8[%c1_101, %c0_102, %c0_103] : memref<2x1x768xf32, #tpu.memory_space<vmem>>, vector<1x1x768xf32>
    %224 = vector.shape_cast %223 : vector<1x1x768xf32> to vector<1x768xf32>
    %225 = vector.broadcast %224 : vector<1x768xf32> to vector<32x768xf32>
    %226 = arith.addf %222, %225 : vector<32x768xf32>
    %227 = vector.shape_cast %226 : vector<32x768xf32> to vector<4x8x768xf32>
    %228 = vector.extract_strided_slice %227 {offsets = [0, 0, 0], sizes = [4, 8, 64], strides = [1, 1, 1]} : vector<4x8x768xf32> to vector<4x8x64xf32>
    %229 = arith.truncf %228 : vector<4x8x64xf32> to vector<4x8x64xbf16>
    %230 = vector.extract_strided_slice %227 {offsets = [0, 0, 256], sizes = [4, 8, 64], strides = [1, 1, 1]} : vector<4x8x768xf32> to vector<4x8x64xf32>
    %231 = arith.truncf %230 : vector<4x8x64xf32> to vector<4x8x64xbf16>
    %232 = vector.extract_strided_slice %227 {offsets = [0, 0, 512], sizes = [4, 8, 64], strides = [1, 1, 1]} : vector<4x8x768xf32> to vector<4x8x64xf32>
    %233 = arith.truncf %232 : vector<4x8x64xf32> to vector<4x8x64xbf16>
    "tpu.trace_start"() <{level = 10 : i32, message = "bqd,bkd->bqk"}> : () -> ()
    %cst_104 = arith.constant dense<0.000000e+00> : vector<4x8x8xf32>
    %234 = tpu.matmul %229, %231, %cst_104 {dimension_numbers = #tpu.dot_dimension_numbers<[2], [2], [1], [1], [0, 0, 0, 1, 1, 1], [0], [0]>} : vector<4x8x64xbf16>, vector<4x8x64xbf16>, vector<4x8x8xf32> -> vector<4x8x8xf32>
    "tpu.trace_stop"() : () -> ()
    %cst_105 = arith.constant 1.250000e-01 : f32
    %235 = vector.broadcast %cst_105 : f32 to vector<4x8x8xf32>
    %236 = arith.mulf %234, %235 : vector<4x8x8xf32>
    %cst_106 = arith.constant -1.000000e+06 : f32
    %237 = vector.broadcast %cst_106 : f32 to vector<4x8x8xf32>
    %238 = arith.select %28, %236, %237 : vector<4x8x8xi1>, vector<4x8x8xf32>
    %cst_107 = arith.constant dense<0xFF800000> : vector<4x8xf32>
    %239 = vector.multi_reduction <maximumf>, %238, %cst_107 [2] : vector<4x8x8xf32> to vector<4x8xf32>
    %240 = vector.shape_cast %239 : vector<4x8xf32> to vector<4x8x1xf32>
    %241 = vector.broadcast %240 : vector<4x8x1xf32> to vector<4x8x8xf32>
    %242 = arith.subf %238, %241 : vector<4x8x8xf32>
    %243 = math.exp %242 : vector<4x8x8xf32>
    %cst_108 = arith.constant dense<0.000000e+00> : vector<4x8xf32>
    %244 = vector.multi_reduction <add>, %243, %cst_108 [2] : vector<4x8x8xf32> to vector<4x8xf32>
    %245 = vector.shape_cast %244 : vector<4x8xf32> to vector<4x8x1xf32>
    %246 = tpu.reciprocal %245 {approx = true} : vector<4x8x1xf32> -> vector<4x8x1xf32>
    %247 = vector.broadcast %246 : vector<4x8x1xf32> to vector<4x8x8xf32>
    %248 = arith.mulf %243, %247 : vector<4x8x8xf32>
    %249 = arith.truncf %248 : vector<4x8x8xf32> to vector<4x8x8xbf16>
    "tpu.trace_start"() <{level = 10 : i32, message = "bqk,bkd->bqd"}> : () -> ()
    %cst_109 = arith.constant dense<0.000000e+00> : vector<4x8x64xf32>
    %250 = tpu.matmul %249, %233, %cst_109 {dimension_numbers = #tpu.dot_dimension_numbers<[2], [1], [1], [2], [0, 0, 0, 1, 1, 2], [0], [0]>} : vector<4x8x8xbf16>, vector<4x8x64xbf16>, vector<4x8x64xf32> -> vector<4x8x64xf32>
    "tpu.trace_stop"() : () -> ()
    %251 = vector.shape_cast %250 : vector<4x8x64xf32> to vector<32x64xf32>
    %c0_110 = arith.constant 0 : index
    %c0_111 = arith.constant 0 : index
    %252 = vector.load %arg24[%c0_110, %c0_111] : memref<32x256xf32, #tpu.memory_space<vmem>>, vector<32x64xf32>
    tpu.vector_store %arg24[%c0_110, %c0_111], %251 {strides = array<i32>} : memref<32x256xf32, #tpu.memory_space<vmem>>, vector<32x64xf32>,
    %253 = vector.extract_strided_slice %227 {offsets = [0, 0, 64], sizes = [4, 8, 64], strides = [1, 1, 1]} : vector<4x8x768xf32> to vector<4x8x64xf32>
    %254 = arith.truncf %253 : vector<4x8x64xf32> to vector<4x8x64xbf16>
    %255 = vector.extract_strided_slice %227 {offsets = [0, 0, 320], sizes = [4, 8, 64], strides = [1, 1, 1]} : vector<4x8x768xf32> to vector<4x8x64xf32>
    %256 = arith.truncf %255 : vector<4x8x64xf32> to vector<4x8x64xbf16>
    %257 = vector.extract_strided_slice %227 {offsets = [0, 0, 576], sizes = [4, 8, 64], strides = [1, 1, 1]} : vector<4x8x768xf32> to vector<4x8x64xf32>
    %258 = arith.truncf %257 : vector<4x8x64xf32> to vector<4x8x64xbf16>
    "tpu.trace_start"() <{level = 10 : i32, message = "bqd,bkd->bqk"}> : () -> ()
    %cst_112 = arith.constant dense<0.000000e+00> : vector<4x8x8xf32>
    %259 = tpu.matmul %254, %256, %cst_112 {dimension_numbers = #tpu.dot_dimension_numbers<[2], [2], [1], [1], [0, 0, 0, 1, 1, 1], [0], [0]>} : vector<4x8x64xbf16>, vector<4x8x64xbf16>, vector<4x8x8xf32> -> vector<4x8x8xf32>
    "tpu.trace_stop"() : () -> ()
    %cst_113 = arith.constant 1.250000e-01 : f32
    %260 = vector.broadcast %cst_113 : f32 to vector<4x8x8xf32>
    %261 = arith.mulf %259, %260 : vector<4x8x8xf32>
    %cst_114 = arith.constant -1.000000e+06 : f32
    %262 = vector.broadcast %cst_114 : f32 to vector<4x8x8xf32>
    %263 = arith.select %28, %261, %262 : vector<4x8x8xi1>, vector<4x8x8xf32>
    %cst_115 = arith.constant dense<0xFF800000> : vector<4x8xf32>
    %264 = vector.multi_reduction <maximumf>, %263, %cst_115 [2] : vector<4x8x8xf32> to vector<4x8xf32>
    %265 = vector.shape_cast %264 : vector<4x8xf32> to vector<4x8x1xf32>
    %266 = vector.broadcast %265 : vector<4x8x1xf32> to vector<4x8x8xf32>
    %267 = arith.subf %263, %266 : vector<4x8x8xf32>
    %268 = math.exp %267 : vector<4x8x8xf32>
    %cst_116 = arith.constant dense<0.000000e+00> : vector<4x8xf32>
    %269 = vector.multi_reduction <add>, %268, %cst_116 [2] : vector<4x8x8xf32> to vector<4x8xf32>
    %270 = vector.shape_cast %269 : vector<4x8xf32> to vector<4x8x1xf32>
    %271 = tpu.reciprocal %270 {approx = true} : vector<4x8x1xf32> -> vector<4x8x1xf32>
    %272 = vector.broadcast %271 : vector<4x8x1xf32> to vector<4x8x8xf32>
    %273 = arith.mulf %268, %272 : vector<4x8x8xf32>
    %274 = arith.truncf %273 : vector<4x8x8xf32> to vector<4x8x8xbf16>
    "tpu.trace_start"() <{level = 10 : i32, message = "bqk,bkd->bqd"}> : () -> ()
    %cst_117 = arith.constant dense<0.000000e+00> : vector<4x8x64xf32>
    %275 = tpu.matmul %274, %258, %cst_117 {dimension_numbers = #tpu.dot_dimension_numbers<[2], [1], [1], [2], [0, 0, 0, 1, 1, 2], [0], [0]>} : vector<4x8x8xbf16>, vector<4x8x64xbf16>, vector<4x8x64xf32> -> vector<4x8x64xf32>
    "tpu.trace_stop"() : () -> ()
    %276 = vector.shape_cast %275 : vector<4x8x64xf32> to vector<32x64xf32>
    %c0_118 = arith.constant 0 : index
    %c64_119 = arith.constant 64 : index
    %277 = vector.load %arg24[%c0_118, %c64_119] : memref<32x256xf32, #tpu.memory_space<vmem>>, vector<32x64xf32>
    tpu.vector_store %arg24[%c0_118, %c64_119], %276 {strides = array<i32>} : memref<32x256xf32, #tpu.memory_space<vmem>>, vector<32x64xf32>,
    %278 = vector.extract_strided_slice %227 {offsets = [0, 0, 128], sizes = [4, 8, 64], strides = [1, 1, 1]} : vector<4x8x768xf32> to vector<4x8x64xf32>
    %279 = arith.truncf %278 : vector<4x8x64xf32> to vector<4x8x64xbf16>
    %280 = vector.extract_strided_slice %227 {offsets = [0, 0, 384], sizes = [4, 8, 64], strides = [1, 1, 1]} : vector<4x8x768xf32> to vector<4x8x64xf32>
    %281 = arith.truncf %280 : vector<4x8x64xf32> to vector<4x8x64xbf16>
    %282 = vector.extract_strided_slice %227 {offsets = [0, 0, 640], sizes = [4, 8, 64], strides = [1, 1, 1]} : vector<4x8x768xf32> to vector<4x8x64xf32>
    %283 = arith.truncf %282 : vector<4x8x64xf32> to vector<4x8x64xbf16>
    "tpu.trace_start"() <{level = 10 : i32, message = "bqd,bkd->bqk"}> : () -> ()
    %cst_120 = arith.constant dense<0.000000e+00> : vector<4x8x8xf32>
    %284 = tpu.matmul %279, %281, %cst_120 {dimension_numbers = #tpu.dot_dimension_numbers<[2], [2], [1], [1], [0, 0, 0, 1, 1, 1], [0], [0]>} : vector<4x8x64xbf16>, vector<4x8x64xbf16>, vector<4x8x8xf32> -> vector<4x8x8xf32>
    "tpu.trace_stop"() : () -> ()
    %cst_121 = arith.constant 1.250000e-01 : f32
    %285 = vector.broadcast %cst_121 : f32 to vector<4x8x8xf32>
    %286 = arith.mulf %284, %285 : vector<4x8x8xf32>
    %cst_122 = arith.constant -1.000000e+06 : f32
    %287 = vector.broadcast %cst_122 : f32 to vector<4x8x8xf32>
    %288 = arith.select %28, %286, %287 : vector<4x8x8xi1>, vector<4x8x8xf32>
    %cst_123 = arith.constant dense<0xFF800000> : vector<4x8xf32>
    %289 = vector.multi_reduction <maximumf>, %288, %cst_123 [2] : vector<4x8x8xf32> to vector<4x8xf32>
    %290 = vector.shape_cast %289 : vector<4x8xf32> to vector<4x8x1xf32>
    %291 = vector.broadcast %290 : vector<4x8x1xf32> to vector<4x8x8xf32>
    %292 = arith.subf %288, %291 : vector<4x8x8xf32>
    %293 = math.exp %292 : vector<4x8x8xf32>
    %cst_124 = arith.constant dense<0.000000e+00> : vector<4x8xf32>
    %294 = vector.multi_reduction <add>, %293, %cst_124 [2] : vector<4x8x8xf32> to vector<4x8xf32>
    %295 = vector.shape_cast %294 : vector<4x8xf32> to vector<4x8x1xf32>
    %296 = tpu.reciprocal %295 {approx = true} : vector<4x8x1xf32> -> vector<4x8x1xf32>
    %297 = vector.broadcast %296 : vector<4x8x1xf32> to vector<4x8x8xf32>
    %298 = arith.mulf %293, %297 : vector<4x8x8xf32>
    %299 = arith.truncf %298 : vector<4x8x8xf32> to vector<4x8x8xbf16>
    "tpu.trace_start"() <{level = 10 : i32, message = "bqk,bkd->bqd"}> : () -> ()
    %cst_125 = arith.constant dense<0.000000e+00> : vector<4x8x64xf32>
    %300 = tpu.matmul %299, %283, %cst_125 {dimension_numbers = #tpu.dot_dimension_numbers<[2], [1], [1], [2], [0, 0, 0, 1, 1, 2], [0], [0]>} : vector<4x8x8xbf16>, vector<4x8x64xbf16>, vector<4x8x64xf32> -> vector<4x8x64xf32>
    "tpu.trace_stop"() : () -> ()
    %301 = vector.shape_cast %300 : vector<4x8x64xf32> to vector<32x64xf32>
    %c0_126 = arith.constant 0 : index
    %c128_127 = arith.constant 128 : index
    %302 = vector.load %arg24[%c0_126, %c128_127] : memref<32x256xf32, #tpu.memory_space<vmem>>, vector<32x64xf32>
    tpu.vector_store %arg24[%c0_126, %c128_127], %301 {strides = array<i32>} : memref<32x256xf32, #tpu.memory_space<vmem>>, vector<32x64xf32>,
    %303 = vector.extract_strided_slice %227 {offsets = [0, 0, 192], sizes = [4, 8, 64], strides = [1, 1, 1]} : vector<4x8x768xf32> to vector<4x8x64xf32>
    %304 = arith.truncf %303 : vector<4x8x64xf32> to vector<4x8x64xbf16>
    %305 = vector.extract_strided_slice %227 {offsets = [0, 0, 448], sizes = [4, 8, 64], strides = [1, 1, 1]} : vector<4x8x768xf32> to vector<4x8x64xf32>
    %306 = arith.truncf %305 : vector<4x8x64xf32> to vector<4x8x64xbf16>
    %307 = vector.extract_strided_slice %227 {offsets = [0, 0, 704], sizes = [4, 8, 64], strides = [1, 1, 1]} : vector<4x8x768xf32> to vector<4x8x64xf32>
    %308 = arith.truncf %307 : vector<4x8x64xf32> to vector<4x8x64xbf16>
    "tpu.trace_start"() <{level = 10 : i32, message = "bqd,bkd->bqk"}> : () -> ()
    %cst_128 = arith.constant dense<0.000000e+00> : vector<4x8x8xf32>
    %309 = tpu.matmul %304, %306, %cst_128 {dimension_numbers = #tpu.dot_dimension_numbers<[2], [2], [1], [1], [0, 0, 0, 1, 1, 1], [0], [0]>} : vector<4x8x64xbf16>, vector<4x8x64xbf16>, vector<4x8x8xf32> -> vector<4x8x8xf32>
    "tpu.trace_stop"() : () -> ()
    %cst_129 = arith.constant 1.250000e-01 : f32
    %310 = vector.broadcast %cst_129 : f32 to vector<4x8x8xf32>
    %311 = arith.mulf %309, %310 : vector<4x8x8xf32>
    %cst_130 = arith.constant -1.000000e+06 : f32
    %312 = vector.broadcast %cst_130 : f32 to vector<4x8x8xf32>
    %313 = arith.select %28, %311, %312 : vector<4x8x8xi1>, vector<4x8x8xf32>
    %cst_131 = arith.constant dense<0xFF800000> : vector<4x8xf32>
    %314 = vector.multi_reduction <maximumf>, %313, %cst_131 [2] : vector<4x8x8xf32> to vector<4x8xf32>
    %315 = vector.shape_cast %314 : vector<4x8xf32> to vector<4x8x1xf32>
    %316 = vector.broadcast %315 : vector<4x8x1xf32> to vector<4x8x8xf32>
    %317 = arith.subf %313, %316 : vector<4x8x8xf32>
    %318 = math.exp %317 : vector<4x8x8xf32>
    %cst_132 = arith.constant dense<0.000000e+00> : vector<4x8xf32>
    %319 = vector.multi_reduction <add>, %318, %cst_132 [2] : vector<4x8x8xf32> to vector<4x8xf32>
    %320 = vector.shape_cast %319 : vector<4x8xf32> to vector<4x8x1xf32>
    %321 = tpu.reciprocal %320 {approx = true} : vector<4x8x1xf32> -> vector<4x8x1xf32>
    %322 = vector.broadcast %321 : vector<4x8x1xf32> to vector<4x8x8xf32>
    %323 = arith.mulf %318, %322 : vector<4x8x8xf32>
    %324 = arith.truncf %323 : vector<4x8x8xf32> to vector<4x8x8xbf16>
    "tpu.trace_start"() <{level = 10 : i32, message = "bqk,bkd->bqd"}> : () -> ()
    %cst_133 = arith.constant dense<0.000000e+00> : vector<4x8x64xf32>
    %325 = tpu.matmul %324, %308, %cst_133 {dimension_numbers = #tpu.dot_dimension_numbers<[2], [1], [1], [2], [0, 0, 0, 1, 1, 2], [0], [0]>} : vector<4x8x8xbf16>, vector<4x8x64xbf16>, vector<4x8x64xf32> -> vector<4x8x64xf32>
    "tpu.trace_stop"() : () -> ()
    %326 = vector.shape_cast %325 : vector<4x8x64xf32> to vector<32x64xf32>
    %c0_134 = arith.constant 0 : index
    %c192_135 = arith.constant 192 : index
    %327 = vector.load %arg24[%c0_134, %c192_135] : memref<32x256xf32, #tpu.memory_space<vmem>>, vector<32x64xf32>
    tpu.vector_store %arg24[%c0_134, %c192_135], %326 {strides = array<i32>} : memref<32x256xf32, #tpu.memory_space<vmem>>, vector<32x64xf32>,
    %c0_136 = arith.constant 0 : index
    %c0_137 = arith.constant 0 : index
    %328 = vector.load %arg24[%c0_136, %c0_137] : memref<32x256xf32, #tpu.memory_space<vmem>>, vector<32x256xf32>
    %329 = arith.truncf %328 : vector<32x256xf32> to vector<32x256xbf16>
    %c1_138 = arith.constant 1 : index
    %c0_139 = arith.constant 0 : index
    %c0_140 = arith.constant 0 : index
    %330 = vector.load %arg9[%c1_138, %c0_139, %c0_140] : memref<2x256x256xbf16, #tpu.memory_space<vmem>>, vector<1x256x256xbf16>
    %331 = vector.shape_cast %330 : vector<1x256x256xbf16> to vector<256x256xbf16>
    %cst_141 = arith.constant dense<0.000000e+00> : vector<32x256xf32>
    %332 = tpu.matmul %329, %331, %cst_141 {dimension_numbers = #tpu.dot_dimension_numbers<[1], [0], [0], [1], [0, 0, 1, 1], [], []>} : vector<32x256xbf16>, vector<256x256xbf16>, vector<32x256xf32> -> vector<32x256xf32>
    %c1_142 = arith.constant 1 : index
    %c0_143 = arith.constant 0 : index
    %c0_144 = arith.constant 0 : index
    %333 = vector.load %arg10[%c1_142, %c0_143, %c0_144] : memref<2x1x256xf32, #tpu.memory_space<vmem>>, vector<1x1x256xf32>
    %334 = vector.shape_cast %333 : vector<1x1x256xf32> to vector<1x256xf32>
    %335 = vector.broadcast %334 : vector<1x256xf32> to vector<32x256xf32>
    %336 = arith.addf %332, %335 : vector<32x256xf32>
    %337 = arith.addf %218, %336 : vector<32x256xf32>
    %c1_145 = arith.constant 1 : index
    %c0_146 = arith.constant 0 : index
    %c0_147 = arith.constant 0 : index
    %338 = vector.load %arg11[%c1_145, %c0_146, %c0_147] : memref<2x1x256xf32, #tpu.memory_space<vmem>>, vector<1x1x256xf32>
    %339 = vector.shape_cast %338 : vector<1x1x256xf32> to vector<1x256xf32>
    %c1_148 = arith.constant 1 : index
    %c0_149 = arith.constant 0 : index
    %c0_150 = arith.constant 0 : index
    %340 = vector.load %arg12[%c1_148, %c0_149, %c0_150] : memref<2x1x256xf32, #tpu.memory_space<vmem>>, vector<1x1x256xf32>
    %341 = vector.shape_cast %340 : vector<1x1x256xf32> to vector<1x256xf32>
    %cst_151 = arith.constant dense<0.000000e+00> : vector<32xf32>
    %342 = vector.multi_reduction <add>, %337, %cst_151 [1] : vector<32x256xf32> to vector<32xf32>
    %343 = vector.shape_cast %342 : vector<32xf32> to vector<32x1xf32>
    %cst_152 = arith.constant 2.560000e+02 : f32
    %344 = vector.broadcast %cst_152 : f32 to vector<32x1xf32>
    %345 = arith.divf %343, %344 : vector<32x1xf32>
    %346 = vector.broadcast %345 : vector<32x1xf32> to vector<32x256xf32>
    %347 = arith.subf %337, %346 : vector<32x256xf32>
    %348 = arith.mulf %347, %347 : vector<32x256xf32>
    %cst_153 = arith.constant dense<0.000000e+00> : vector<32xf32>
    %349 = vector.multi_reduction <add>, %348, %cst_153 [1] : vector<32x256xf32> to vector<32xf32>
    %350 = vector.shape_cast %349 : vector<32xf32> to vector<32x1xf32>
    %cst_154 = arith.constant 2.560000e+02 : f32
    %351 = vector.broadcast %cst_154 : f32 to vector<32x1xf32>
    %352 = arith.divf %350, %351 : vector<32x1xf32>
    %353 = vector.broadcast %345 : vector<32x1xf32> to vector<32x256xf32>
    %354 = arith.subf %337, %353 : vector<32x256xf32>
    %cst_155 = arith.constant 9.99999974E-6 : f32
    %355 = vector.broadcast %cst_155 : f32 to vector<32x1xf32>
    %356 = arith.addf %352, %355 : vector<32x1xf32>
    %357 = math.rsqrt %356 : vector<32x1xf32>
    %358 = vector.broadcast %357 : vector<32x1xf32> to vector<32x256xf32>
    %359 = arith.mulf %354, %358 : vector<32x256xf32>
    %360 = vector.broadcast %339 : vector<1x256xf32> to vector<32x256xf32>
    %361 = arith.mulf %359, %360 : vector<32x256xf32>
    %362 = vector.broadcast %341 : vector<1x256xf32> to vector<32x256xf32>
    %363 = arith.addf %361, %362 : vector<32x256xf32>
    %364 = arith.truncf %363 : vector<32x256xf32> to vector<32x256xbf16>
    %c1_156 = arith.constant 1 : index
    %c0_157 = arith.constant 0 : index
    %c0_158 = arith.constant 0 : index
    %365 = vector.load %arg13[%c1_156, %c0_157, %c0_158] : memref<2x256x256xbf16, #tpu.memory_space<vmem>>, vector<1x256x256xbf16>
    %366 = vector.shape_cast %365 : vector<1x256x256xbf16> to vector<256x256xbf16>
    %cst_159 = arith.constant dense<0.000000e+00> : vector<32x256xf32>
    %367 = tpu.matmul %364, %366, %cst_159 {dimension_numbers = #tpu.dot_dimension_numbers<[1], [0], [0], [1], [0, 0, 1, 1], [], []>} : vector<32x256xbf16>, vector<256x256xbf16>, vector<32x256xf32> -> vector<32x256xf32>
    %c1_160 = arith.constant 1 : index
    %c0_161 = arith.constant 0 : index
    %c0_162 = arith.constant 0 : index
    %368 = vector.load %arg14[%c1_160, %c0_161, %c0_162] : memref<2x1x256xf32, #tpu.memory_space<vmem>>, vector<1x1x256xf32>
    %369 = vector.shape_cast %368 : vector<1x1x256xf32> to vector<1x256xf32>
    %370 = vector.broadcast %369 : vector<1x256xf32> to vector<32x256xf32>
    %371 = arith.addf %367, %370 : vector<32x256xf32>
    %cst_163 = arith.constant 0.000000e+00 : f32
    %372 = vector.broadcast %cst_163 : f32 to vector<32x256xf32>
    %373 = arith.maximumf %371, %372 : vector<32x256xf32>
    %374 = arith.truncf %373 : vector<32x256xf32> to vector<32x256xbf16>
    %c1_164 = arith.constant 1 : index
    %c0_165 = arith.constant 0 : index
    %c0_166 = arith.constant 0 : index
    %375 = vector.load %arg15[%c1_164, %c0_165, %c0_166] : memref<2x256x256xbf16, #tpu.memory_space<vmem>>, vector<1x256x256xbf16>
    %376 = vector.shape_cast %375 : vector<1x256x256xbf16> to vector<256x256xbf16>
    %cst_167 = arith.constant dense<0.000000e+00> : vector<32x256xf32>
    %377 = tpu.matmul %374, %376, %cst_167 {dimension_numbers = #tpu.dot_dimension_numbers<[1], [0], [0], [1], [0, 0, 1, 1], [], []>} : vector<32x256xbf16>, vector<256x256xbf16>, vector<32x256xf32> -> vector<32x256xf32>
    %c1_168 = arith.constant 1 : index
    %c0_169 = arith.constant 0 : index
    %c0_170 = arith.constant 0 : index
    %378 = vector.load %arg16[%c1_168, %c0_169, %c0_170] : memref<2x1x256xf32, #tpu.memory_space<vmem>>, vector<1x1x256xf32>
    %379 = vector.shape_cast %378 : vector<1x1x256xf32> to vector<1x256xf32>
    %380 = vector.broadcast %379 : vector<1x256xf32> to vector<32x256xf32>
    %381 = arith.addf %377, %380 : vector<32x256xf32>
    %382 = arith.addf %363, %381 : vector<32x256xf32>
    %c1_171 = arith.constant 1 : index
    %c0_172 = arith.constant 0 : index
    %c0_173 = arith.constant 0 : index
    %383 = vector.load %arg17[%c1_171, %c0_172, %c0_173] : memref<2x1x256xf32, #tpu.memory_space<vmem>>, vector<1x1x256xf32>
    %384 = vector.shape_cast %383 : vector<1x1x256xf32> to vector<1x256xf32>
    %c1_174 = arith.constant 1 : index
    %c0_175 = arith.constant 0 : index
    %c0_176 = arith.constant 0 : index
    %385 = vector.load %arg18[%c1_174, %c0_175, %c0_176] : memref<2x1x256xf32, #tpu.memory_space<vmem>>, vector<1x1x256xf32>
    %386 = vector.shape_cast %385 : vector<1x1x256xf32> to vector<1x256xf32>
    %cst_177 = arith.constant dense<0.000000e+00> : vector<32xf32>
    %387 = vector.multi_reduction <add>, %382, %cst_177 [1] : vector<32x256xf32> to vector<32xf32>
    %388 = vector.shape_cast %387 : vector<32xf32> to vector<32x1xf32>
    %cst_178 = arith.constant 2.560000e+02 : f32
    %389 = vector.broadcast %cst_178 : f32 to vector<32x1xf32>
    %390 = arith.divf %388, %389 : vector<32x1xf32>
    %391 = vector.broadcast %390 : vector<32x1xf32> to vector<32x256xf32>
    %392 = arith.subf %382, %391 : vector<32x256xf32>
    %393 = arith.mulf %392, %392 : vector<32x256xf32>
    %cst_179 = arith.constant dense<0.000000e+00> : vector<32xf32>
    %394 = vector.multi_reduction <add>, %393, %cst_179 [1] : vector<32x256xf32> to vector<32xf32>
    %395 = vector.shape_cast %394 : vector<32xf32> to vector<32x1xf32>
    %cst_180 = arith.constant 2.560000e+02 : f32
    %396 = vector.broadcast %cst_180 : f32 to vector<32x1xf32>
    %397 = arith.divf %395, %396 : vector<32x1xf32>
    %398 = vector.broadcast %390 : vector<32x1xf32> to vector<32x256xf32>
    %399 = arith.subf %382, %398 : vector<32x256xf32>
    %cst_181 = arith.constant 9.99999974E-6 : f32
    %400 = vector.broadcast %cst_181 : f32 to vector<32x1xf32>
    %401 = arith.addf %397, %400 : vector<32x1xf32>
    %402 = math.rsqrt %401 : vector<32x1xf32>
    %403 = vector.broadcast %402 : vector<32x1xf32> to vector<32x256xf32>
    %404 = arith.mulf %399, %403 : vector<32x256xf32>
    %405 = vector.broadcast %384 : vector<1x256xf32> to vector<32x256xf32>
    %406 = arith.mulf %404, %405 : vector<32x256xf32>
    %407 = vector.broadcast %386 : vector<1x256xf32> to vector<32x256xf32>
    %408 = arith.addf %406, %407 : vector<32x256xf32>
    %409 = vector.shape_cast %408 : vector<32x256xf32> to vector<4x8x256xf32>
    %410 = vector.extract_strided_slice %409 {offsets = [0, 0, 0], sizes = [4, 1, 256], strides = [1, 1, 1]} : vector<4x8x256xf32> to vector<4x1x256xf32>
    %411 = vector.shape_cast %410 : vector<4x1x256xf32> to vector<4x256xf32>
    %412 = arith.truncf %411 : vector<4x256xf32> to vector<4x256xbf16>
    %c0_182 = arith.constant 0 : index
    %c0_183 = arith.constant 0 : index
    %413 = vector.load %arg19[%c0_182, %c0_183] : memref<256x256xbf16, #tpu.memory_space<vmem>>, vector<256x256xbf16>
    %cst_184 = arith.constant dense<0.000000e+00> : vector<4x256xf32>
    %414 = tpu.matmul %412, %413, %cst_184 {dimension_numbers = #tpu.dot_dimension_numbers<[1], [0], [0], [1], [0, 0, 1, 1], [], []>} : vector<4x256xbf16>, vector<256x256xbf16>, vector<4x256xf32> -> vector<4x256xf32>
    %c0_185 = arith.constant 0 : index
    %c0_186 = arith.constant 0 : index
    %415 = vector.load %arg20[%c0_185, %c0_186] : memref<1x256xf32, #tpu.memory_space<vmem>>, vector<1x256xf32>
    %416 = vector.broadcast %415 : vector<1x256xf32> to vector<4x256xf32>
    %417 = arith.addf %414, %416 : vector<4x256xf32>
    %418 = math.tanh %417 : vector<4x256xf32>
    %419 = arith.truncf %418 : vector<4x256xf32> to vector<4x256xbf16>
    %c0_187 = arith.constant 0 : index
    %c0_188 = arith.constant 0 : index
    %420 = vector.load %arg21[%c0_187, %c0_188] : memref<256x128xbf16, #tpu.memory_space<vmem>>, vector<256x128xbf16>
    %cst_189 = arith.constant dense<0.000000e+00> : vector<4x128xf32>
    %421 = tpu.matmul %419, %420, %cst_189 {dimension_numbers = #tpu.dot_dimension_numbers<[1], [0], [0], [1], [0, 0, 1, 1], [], []>} : vector<4x256xbf16>, vector<256x128xbf16>, vector<4x128xf32> -> vector<4x128xf32>
    %c0_190 = arith.constant 0 : index
    %c0_191 = arith.constant 0 : index
    %422 = vector.load %arg22[%c0_190, %c0_191] : memref<1x128xf32, #tpu.memory_space<vmem>>, vector<1x128xf32>
    %423 = vector.broadcast %422 : vector<1x128xf32> to vector<4x128xf32>
    %424 = arith.addf %421, %423 : vector<4x128xf32>
    %c0_192 = arith.constant 0 : index
    %c0_193 = arith.constant 0 : index
    %c0_194 = arith.constant 0 : index
    %425 = vector.load %arg23[%c0_192, %c0_193, %c0_194] : memref<1x4x128xf32, #tpu.memory_space<vmem>>, vector<1x4x128xf32>
    %426 = vector.shape_cast %425 : vector<1x4x128xf32> to vector<4x128xf32>
    %427 = vector.shape_cast %424 : vector<4x128xf32> to vector<1x4x128xf32>
    tpu.vector_store %arg23[%c0_192, %c0_193, %c0_194], %427 {strides = array<i32>} : memref<1x4x128xf32, #tpu.memory_space<vmem>>, vector<1x4x128xf32>,
    return
  }
  func.func @transform_0(%arg0: i32) -> (i32, i32) {
    %c0_i32 = arith.constant 0 : i32
    %c0_i32_0 = arith.constant 0 : i32
    return %arg0, %c0_i32 : i32, i32
  }
  func.func @transform_1(%arg0: i32) -> (i32, i32) {
    %c0_i32 = arith.constant 0 : i32
    %c0_i32_0 = arith.constant 0 : i32
    return %arg0, %c0_i32 : i32, i32
  }
  func.func @transform_2(%arg0: i32) -> (i32, i32, i32) {
    %c0_i32 = arith.constant 0 : i32
    %c0_i32_0 = arith.constant 0 : i32
    %c0_i32_1 = arith.constant 0 : i32
    return %arg0, %c0_i32, %c0_i32_0 : i32, i32, i32
  }
  func.func @transform_3(%arg0: i32) -> (i32, i32) {
    %c0_i32 = arith.constant 0 : i32
    %c0_i32_0 = arith.constant 0 : i32
    %c0_i32_1 = arith.constant 0 : i32
    return %c0_i32, %c0_i32_0 : i32, i32
  }
  func.func @transform_4(%arg0: i32) -> (i32, i32) {
    %c0_i32 = arith.constant 0 : i32
    %c0_i32_0 = arith.constant 0 : i32
    %c0_i32_1 = arith.constant 0 : i32
    return %c0_i32, %c0_i32_0 : i32, i32
  }
  func.func @transform_5(%arg0: i32) -> (i32, i32) {
    %c0_i32 = arith.constant 0 : i32
    %c0_i32_0 = arith.constant 0 : i32
    %c0_i32_1 = arith.constant 0 : i32
    return %c0_i32, %c0_i32_0 : i32, i32
  }
  func.func @transform_6(%arg0: i32) -> (i32, i32, i32) {
    %c0_i32 = arith.constant 0 : i32
    %c0_i32_0 = arith.constant 0 : i32
    %c0_i32_1 = arith.constant 0 : i32
    %c0_i32_2 = arith.constant 0 : i32
    return %c0_i32, %c0_i32_0, %c0_i32_1 : i32, i32, i32
  }
  func.func @transform_7(%arg0: i32) -> (i32, i32, i32) {
    %c0_i32 = arith.constant 0 : i32
    %c0_i32_0 = arith.constant 0 : i32
    %c0_i32_1 = arith.constant 0 : i32
    %c0_i32_2 = arith.constant 0 : i32
    return %c0_i32, %c0_i32_0, %c0_i32_1 : i32, i32, i32
  }
  func.func @transform_8(%arg0: i32) -> (i32, i32, i32) {
    %c0_i32 = arith.constant 0 : i32
    %c0_i32_0 = arith.constant 0 : i32
    %c0_i32_1 = arith.constant 0 : i32
    %c0_i32_2 = arith.constant 0 : i32
    return %c0_i32, %c0_i32_0, %c0_i32_1 : i32, i32, i32
  }
  func.func @transform_9(%arg0: i32) -> (i32, i32, i32) {
    %c0_i32 = arith.constant 0 : i32
    %c0_i32_0 = arith.constant 0 : i32
    %c0_i32_1 = arith.constant 0 : i32
    %c0_i32_2 = arith.constant 0 : i32
    return %c0_i32, %c0_i32_0, %c0_i32_1 : i32, i32, i32
  }
  func.func @transform_10(%arg0: i32) -> (i32, i32, i32) {
    %c0_i32 = arith.constant 0 : i32
    %c0_i32_0 = arith.constant 0 : i32
    %c0_i32_1 = arith.constant 0 : i32
    %c0_i32_2 = arith.constant 0 : i32
    return %c0_i32, %c0_i32_0, %c0_i32_1 : i32, i32, i32
  }
  func.func @transform_11(%arg0: i32) -> (i32, i32, i32) {
    %c0_i32 = arith.constant 0 : i32
    %c0_i32_0 = arith.constant 0 : i32
    %c0_i32_1 = arith.constant 0 : i32
    %c0_i32_2 = arith.constant 0 : i32
    return %c0_i32, %c0_i32_0, %c0_i32_1 : i32, i32, i32
  }
  func.func @transform_12(%arg0: i32) -> (i32, i32, i32) {
    %c0_i32 = arith.constant 0 : i32
    %c0_i32_0 = arith.constant 0 : i32
    %c0_i32_1 = arith.constant 0 : i32
    %c0_i32_2 = arith.constant 0 : i32
    return %c0_i32, %c0_i32_0, %c0_i32_1 : i32, i32, i32
  }
  func.func @transform_13(%arg0: i32) -> (i32, i32, i32) {
    %c0_i32 = arith.constant 0 : i32
    %c0_i32_0 = arith.constant 0 : i32
    %c0_i32_1 = arith.constant 0 : i32
    %c0_i32_2 = arith.constant 0 : i32
    return %c0_i32, %c0_i32_0, %c0_i32_1 : i32, i32, i32
  }
  func.func @transform_14(%arg0: i32) -> (i32, i32, i32) {
    %c0_i32 = arith.constant 0 : i32
    %c0_i32_0 = arith.constant 0 : i32
    %c0_i32_1 = arith.constant 0 : i32
    %c0_i32_2 = arith.constant 0 : i32
    return %c0_i32, %c0_i32_0, %c0_i32_1 : i32, i32, i32
  }
  func.func @transform_15(%arg0: i32) -> (i32, i32, i32) {
    %c0_i32 = arith.constant 0 : i32
    %c0_i32_0 = arith.constant 0 : i32
    %c0_i32_1 = arith.constant 0 : i32
    %c0_i32_2 = arith.constant 0 : i32
    return %c0_i32, %c0_i32_0, %c0_i32_1 : i32, i32, i32
  }
  func.func @transform_16(%arg0: i32) -> (i32, i32, i32) {
    %c0_i32 = arith.constant 0 : i32
    %c0_i32_0 = arith.constant 0 : i32
    %c0_i32_1 = arith.constant 0 : i32
    %c0_i32_2 = arith.constant 0 : i32
    return %c0_i32, %c0_i32_0, %c0_i32_1 : i32, i32, i32
  }
  func.func @transform_17(%arg0: i32) -> (i32, i32, i32) {
    %c0_i32 = arith.constant 0 : i32
    %c0_i32_0 = arith.constant 0 : i32
    %c0_i32_1 = arith.constant 0 : i32
    %c0_i32_2 = arith.constant 0 : i32
    return %c0_i32, %c0_i32_0, %c0_i32_1 : i32, i32, i32
  }
  func.func @transform_18(%arg0: i32) -> (i32, i32) {
    %c0_i32 = arith.constant 0 : i32
    %c0_i32_0 = arith.constant 0 : i32
    %c0_i32_1 = arith.constant 0 : i32
    return %c0_i32, %c0_i32_0 : i32, i32
  }
  func.func @transform_19(%arg0: i32) -> (i32, i32) {
    %c0_i32 = arith.constant 0 : i32
    %c0_i32_0 = arith.constant 0 : i32
    %c0_i32_1 = arith.constant 0 : i32
    return %c0_i32, %c0_i32_0 : i32, i32
  }
  func.func @transform_20(%arg0: i32) -> (i32, i32) {
    %c0_i32 = arith.constant 0 : i32
    %c0_i32_0 = arith.constant 0 : i32
    %c0_i32_1 = arith.constant 0 : i32
    return %c0_i32, %c0_i32_0 : i32, i32
  }
  func.func @transform_21(%arg0: i32) -> (i32, i32) {
    %c0_i32 = arith.constant 0 : i32
    %c0_i32_0 = arith.constant 0 : i32
    %c0_i32_1 = arith.constant 0 : i32
    return %c0_i32, %c0_i32_0 : i32, i32
  }
  func.func @transform_22(%arg0: i32) -> (i32, i32, i32) {
    %c0_i32 = arith.constant 0 : i32
    %c0_i32_0 = arith.constant 0 : i32
    %c0_i32_1 = arith.constant 0 : i32
    return %arg0, %c0_i32, %c0_i32_0 : i32, i32, i32
  }
}

</mosaic_0001>

<llo_original>
// kernel: bert_classifier_forward.1
$region0: #{bert_classifier_forward.1}
  #allocation0 [shape = 'u32[]', space=smem, size = 0x4, offset = 0x4, fixed_abs, tag = 'smem constant byte address 0x4 - core index']
  #allocation1 [shape = 'u32[72,128]{1,0:T(1,128)}', space=vmem, size = 0x9000, scoped, tag = 'internal scratch']
  #allocation2 [shape = 'f32[32,256]{1,0:T(8,128)}', space=vmem, size = 0x8000, scoped, tag = 'scratch operand']
  %s0 = inlined_call_operand.vmem [shape: s32[64,1], index: 0, kind: input, shape index: {}]
  %s1 = inlined_call_operand.vmem [shape: s32[64,1], index: 1, kind: input, shape index: {}]
  %s2 = inlined_call_operand.vmem [shape: f32[8,8,8], index: 2, kind: input, shape index: {}]
  %s3 = inlined_call_operand.vmem [shape: bf16[64,256], index: 3, kind: input, shape index: {}]
  %s4 = inlined_call_operand.vmem [shape: f32[2,256], index: 4, kind: input, shape index: {}]
  %s5 = inlined_call_operand.vmem [shape: f32[64,256], index: 5, kind: input, shape index: {}]
  %s6 = inlined_call_operand.hbm [shape: bf16[2,256,768], index: 6, kind: input, shape index: {}]
  %s7 = inlined_call_operand.vmem [shape: f32[2,1,768], index: 7, kind: input, shape index: {}]
  %s8 = inlined_call_operand.hbm [shape: bf16[2,256,256], index: 8, kind: input, shape index: {}]
  %s9 = inlined_call_operand.vmem [shape: f32[2,1,256], index: 9, kind: input, shape index: {}]
  %s10 = inlined_call_operand.vmem [shape: f32[2,1,256], index: 10, kind: input, shape index: {}]
  %s11 = inlined_call_operand.vmem [shape: f32[2,1,256], index: 11, kind: input, shape index: {}]
  %s12 = inlined_call_operand.hbm [shape: bf16[2,256,256], index: 12, kind: input, shape index: {}]
  %s13 = inlined_call_operand.vmem [shape: f32[2,1,256], index: 13, kind: input, shape index: {}]
  %s14 = inlined_call_operand.hbm [shape: bf16[2,256,256], index: 14, kind: input, shape index: {}]
  %s15 = inlined_call_operand.vmem [shape: f32[2,1,256], index: 15, kind: input, shape index: {}]
  %s16 = inlined_call_operand.vmem [shape: f32[2,1,256], index: 16, kind: input, shape index: {}]
  %s17 = inlined_call_operand.vmem [shape: f32[2,1,256], index: 17, kind: input, shape index: {}]
  %s18 = inlined_call_operand.vmem [shape: bf16[256,256], index: 18, kind: input, shape index: {}]
  %s19 = inlined_call_operand.vmem [shape: f32[1,256], index: 19, kind: input, shape index: {}]
  %s20 = inlined_call_operand.vmem [shape: bf16[256,128], index: 20, kind: input, shape index: {}]
  %s21 = inlined_call_operand.vmem [shape: f32[1,128], index: 21, kind: input, shape index: {}]
  %s22 = inlined_call_operand.vmem [shape: f32[2,4,128], index: 22, kind: output, shape index: {}]
  %s23 = sld [smem:[#allocation0]]
  $region137: #{bert_classifier_forward.1} parent=0
    _
  %s25 = ssub.s32 1, %s23
  %s26 = scalar_select 0, %s25, %s23
  $region1: #{bert_classifier_forward.1} parent=0
    #allocation3 [shape = 'u8[786432]{0}', space=vmem, size = 0xc0000, scoped, tag = 'input window, operand 6, single buffered']
    #allocation4 [shape = 's32[2]{0}', space=sflag, size = 0x8, scoped, tag = 'scoped memory for bert_classifier_forward.1']
    #allocation5 [shape = 'u8[262144]{0}', space=vmem, size = 0x40000, scoped, tag = 'input window, operand 8, single buffered']
    #allocation6 [shape = 's32[1]{0}', space=sflag, size = 0x4, scoped, tag = 'scoped memory for bert_classifier_forward.1']
    #allocation7 [shape = 'u8[262144]{0}', space=vmem, size = 0x40000, scoped, tag = 'input window, operand 12, single buffered']
    #allocation8 [shape = 'u8[262144]{0}', space=vmem, size = 0x40000, scoped, tag = 'input window, operand 14, single buffered']
    #allocation9 [shape = 's32[1]{0}', space=sflag, size = 0x4, scoped, tag = 'scoped memory for bert_classifier_forward.1']
    %27 = vsyncpa [#allocation4], 0
    %28 = vsyncpa [#allocation6], 0
    %29 = vsyncpa [#allocation9], 0
    loop: start=0, step=1, limit=4
    $region2: #{bert_classifier_forward.1} parent=1 // loop_pre_header
      _
    $region3: #{bert_classifier_forward.1} parent=1 // loop_header
      %s31 = sphi 0, %s35
      %p32 = scmp.ge.s32.totalorder %s31, 4
      %s41 = sphi 0, %s43
      %s44 = sphi 0, %s41
      %s45 = sphi 0, %s44
      %s61 = sphi 0, %s45
      %s67 = sphi 0, %s69
      %s70 = sphi 0, %s67
      %s71 = sphi 0, %s70
      %s87 = sphi 0, %s71
      %s93 = sphi 0, %s95
      %s96 = sphi 0, %s93
      %s97 = sphi 0, %s96
      %s113 = sphi 0, %s97
      %s117 = sphi 0, %s117
      %s119 = sphi 0, %s117
      %s120 = sphi 0, %s119
      %s134 = sphi 0, %s120
      %s138 = sphi 0, %s138
      %s140 = sphi 0, %s138
      %s141 = sphi 0, %s140
      %s155 = sphi 0, %s141
      %s159 = sphi 0, %s159
      %s161 = sphi 0, %s159
      %s162 = sphi 0, %s161
      %s176 = sphi 0, %s162
      %s180 = sphi 0, %s180
      %s182 = sphi 0, %s180
      %s183 = sphi 0, %s182
      %s197 = sphi 0, %s183
      %s201 = sphi 0, %s201
      %s203 = sphi 0, %s201
      %s204 = sphi 0, %s203
      %s218 = sphi 0, %s204
      %s222 = sphi 0, %s222
      %s224 = sphi 0, %s222
      %s225 = sphi 0, %s224
      %s239 = sphi 0, %s225
      %s243 = sphi 0, %s243
      %s245 = sphi 0, %s243
      %s246 = sphi 0, %s245
      %s260 = sphi 0, %s246
      %s264 = sphi 0, %s264
      %s266 = sphi 0, %s264
      %s267 = sphi 0, %s266
      %s281 = sphi 0, %s267
      %s285 = sphi 0, %s285
      %s287 = sphi 0, %s285
      %s288 = sphi 0, %s287
      %s302 = sphi 0, %s288
      %s306 = sphi 0, %s306
      %s308 = sphi 0, %s306
      %s309 = sphi 0, %s308
      %s323 = sphi 0, %s309
      %s327 = sphi 0, %s327
      %s329 = sphi 0, %s327
      %s330 = sphi 0, %s329
      %s344 = sphi 0, %s330
      %s348 = sphi 0, %s348
      %s350 = sphi 0, %s348
      %s351 = sphi 0, %s350
      %s365 = sphi 0, %s351
      %s369 = sphi 0, %s369
      %s371 = sphi 0, %s369
      %s372 = sphi 0, %s371
      %s386 = sphi 0, %s372
      %s390 = sphi 0, %s390
      %s392 = sphi 0, %s390
      %s393 = sphi 0, %s392
      %s407 = sphi 0, %s393
      %s411 = sphi 0, %s411
      %s413 = sphi 0, %s411
      %s414 = sphi 0, %s413
      %s428 = sphi 0, %s414
      %s432 = sphi 0, %s432
      %s434 = sphi 0, %s432
      %s435 = sphi 0, %s434
      %s449 = sphi 0, %s435
      %s453 = sphi 0, %s453
      %s455 = sphi 0, %s453
      %s456 = sphi 0, %s455
      %s470 = sphi 0, %s456
      %s474 = sphi 0, %s474
      %s476 = sphi 0, %s474
      %s477 = sphi 0, %s476
      %s491 = sphi 0, %s477
      %s495 = sphi 0, %s495
      %s497 = sphi 0, %s495
      %s498 = sphi 0, %s497
      %s512 = sphi 0, %s498
      %s518 = sphi 0, %s520
      %s521 = sphi 0, %s518
      %s522 = sphi 0, %s521
      %s538 = sphi 0, %s522
    $region4: #{bert_classifier_forward.1} parent=1 // loop_header_branch
      %34 = sbr.rel (%p32) target = $region8
    $region5: #{bert_classifier_forward.1} parent=1 // loop_body
      %s36 = ssub.s32 %s31, 1
      %s37 = ssub.s32 %s31, 2
      %s38 = sadd.s32 %s31, 1
      %s39 = ssub.s32 %s31, %s38
      %p40 = scmp.eq.s32.totalorder %s39, 0
      %s42 = sadd.s32 %s41, 1
      %s43 = scalar_select %p40, %s41, %s42
      %p46 = pneg %p40
      %p47 = scmp.eq.s32.totalorder %s31, 1
      %p48 = por %p46, %p47
      %p49 = scmp.ne.s32.totalorder %s41, %s44
      %p50 = scmp.eq.s32.totalorder %s31, 0
      %p51 = por %p49, %p50
      %p52 = scmp.ne.s32.totalorder %s41, %s44
      %p53 = scmp.eq.s32.totalorder %s36, 1
      %p54 = por %p52, %p53
      %p55 = scmp.ne.s32.totalorder %s44, %s45
      %p56 = scmp.eq.s32.totalorder %s36, 0
      %p57 = por %p55, %p56
      %p58 = scmp.ne.s32.totalorder %s44, %s45
      %p59 = scmp.eq.s32.totalorder %s37, 1
      %p60 = por %p58, %p59
      %p62 = scmp.ne.s32.totalorder %s45, %s61
      %p63 = scmp.eq.s32.totalorder %s37, 0
      %p64 = por %p62, %p63
      %s65 = ssub.s32 %s31, %s38
      %p66 = scmp.eq.s32.totalorder %s65, 0
      %s68 = sadd.s32 %s67, 1
      %s69 = scalar_select %p66, %s67, %s68
      %p72 = pneg %p66
      %p73 = scmp.eq.s32.totalorder %s31, 1
      %p74 = por %p72, %p73
      %p75 = scmp.ne.s32.totalorder %s67, %s70
      %p76 = scmp.eq.s32.totalorder %s31, 0
      %p77 = por %p75, %p76
      %p78 = scmp.ne.s32.totalorder %s67, %s70
      %p79 = scmp.eq.s32.totalorder %s36, 1
      %p80 = por %p78, %p79
      %p81 = scmp.ne.s32.totalorder %s70, %s71
      %p82 = scmp.eq.s32.totalorder %s36, 0
      %p83 = por %p81, %p82
      %p84 = scmp.ne.s32.totalorder %s70, %s71
      %p85 = scmp.eq.s32.totalorder %s37, 1
      %p86 = por %p84, %p85
      %p88 = scmp.ne.s32.totalorder %s71, %s87
      %p89 = scmp.eq.s32.totalorder %s37, 0
      %p90 = por %p88, %p89
      %s91 = ssub.s32 %s31, %s38
      %p92 = scmp.eq.s32.totalorder %s91, 0
      %s94 = sadd.s32 %s93, 1
      %s95 = scalar_select %p92, %s93, %s94
      %p98 = pneg %p92
      %p99 = scmp.eq.s32.totalorder %s31, 1
      %p100 = por %p98, %p99
      %p101 = scmp.ne.s32.totalorder %s93, %s96
      %p102 = scmp.eq.s32.totalorder %s31, 0
      %p103 = por %p101, %p102
      %p104 = scmp.ne.s32.totalorder %s93, %s96
      %p105 = scmp.eq.s32.totalorder %s36, 1
      %p106 = por %p104, %p105
      %p107 = scmp.ne.s32.totalorder %s96, %s97
      %p108 = scmp.eq.s32.totalorder %s36, 0
      %p109 = por %p107, %p108
      %p110 = scmp.ne.s32.totalorder %s96, %s97
      %p111 = scmp.eq.s32.totalorder %s37, 1
      %p112 = por %p110, %p111
      %p114 = scmp.ne.s32.totalorder %s97, %s113
      %p115 = scmp.eq.s32.totalorder %s37, 0
      %p116 = por %p114, %p115
      %s118 = sadd.s32 %s117, 1
      %p121 = scmp.eq.s32.totalorder %s31, 1
      %p122 = scmp.ne.s32.totalorder %s117, %s119
      %p123 = scmp.eq.s32.totalorder %s31, 0
      %p124 = por %p122, %p123
      %p125 = scmp.ne.s32.totalorder %s117, %s119
      %p126 = scmp.eq.s32.totalorder %s36, 1
      %p127 = por %p125, %p126
      %p128 = scmp.ne.s32.totalorder %s119, %s120
      %p129 = scmp.eq.s32.totalorder %s36, 0
      %p130 = por %p128, %p129
      %p131 = scmp.ne.s32.totalorder %s119, %s120
      %p132 = scmp.eq.s32.totalorder %s37, 1
      %p133 = por %p131, %p132
      %p135 = scmp.ne.s32.totalorder %s120, %s134
      %p136 = scmp.eq.s32.totalorder %s37, 0
      %p137 = por %p135, %p136
      %s139 = sadd.s32 %s138, 1
      %p142 = scmp.eq.s32.totalorder %s31, 1
      %p143 = scmp.ne.s32.totalorder %s138, %s140
      %p144 = scmp.eq.s32.totalorder %s31, 0
      %p145 = por %p143, %p144
      %p146 = scmp.ne.s32.totalorder %s138, %s140
      %p147 = scmp.eq.s32.totalorder %s36, 1
      %p148 = por %p146, %p147
      %p149 = scmp.ne.s32.totalorder %s140, %s141
      %p150 = scmp.eq.s32.totalorder %s36, 0
      %p151 = por %p149, %p150
      %p152 = scmp.ne.s32.totalorder %s140, %s141
      %p153 = scmp.eq.s32.totalorder %s37, 1
      %p154 = por %p152, %p153
      %p156 = scmp.ne.s32.totalorder %s141, %s155
      %p157 = scmp.eq.s32.totalorder %s37, 0
      %p158 = por %p156, %p157
      %s160 = sadd.s32 %s159, 1
      %p163 = scmp.eq.s32.totalorder %s31, 1
      %p164 = scmp.ne.s32.totalorder %s159, %s161
      %p165 = scmp.eq.s32.totalorder %s31, 0
      %p166 = por %p164, %p165
      %p167 = scmp.ne.s32.totalorder %s159, %s161
      %p168 = scmp.eq.s32.totalorder %s36, 1
      %p169 = por %p167, %p168
      %p170 = scmp.ne.s32.totalorder %s161, %s162
      %p171 = scmp.eq.s32.totalorder %s36, 0
      %p172 = por %p170, %p171
      %p173 = scmp.ne.s32.totalorder %s161, %s162
      %p174 = scmp.eq.s32.totalorder %s37, 1
      %p175 = por %p173, %p174
      %p177 = scmp.ne.s32.totalorder %s162, %s176
      %p178 = scmp.eq.s32.totalorder %s37, 0
      %p179 = por %p177, %p178
      %s181 = sadd.s32 %s180, 1
      %p184 = scmp.eq.s32.totalorder %s31, 1
      %p185 = scmp.ne.s32.totalorder %s180, %s182
      %p186 = scmp.eq.s32.totalorder %s31, 0
      %p187 = por %p185, %p186
      %p188 = scmp.ne.s32.totalorder %s180, %s182
      %p189 = scmp.eq.s32.totalorder %s36, 1
      %p190 = por %p188, %p189
      %p191 = scmp.ne.s32.totalorder %s182, %s183
      %p192 = scmp.eq.s32.totalorder %s36, 0
      %p193 = por %p191, %p192
      %p194 = scmp.ne.s32.totalorder %s182, %s183
      %p195 = scmp.eq.s32.totalorder %s37, 1
      %p196 = por %p194, %p195
      %p198 = scmp.ne.s32.totalorder %s183, %s197
      %p199 = scmp.eq.s32.totalorder %s37, 0
      %p200 = por %p198, %p199
      %s202 = sadd.s32 %s201, 1
      %p205 = scmp.eq.s32.totalorder %s31, 1
      %p206 = scmp.ne.s32.totalorder %s201, %s203
      %p207 = scmp.eq.s32.totalorder %s31, 0
      %p208 = por %p206, %p207
      %p209 = scmp.ne.s32.totalorder %s201, %s203
      %p210 = scmp.eq.s32.totalorder %s36, 1
      %p211 = por %p209, %p210
      %p212 = scmp.ne.s32.totalorder %s203, %s204
      %p213 = scmp.eq.s32.totalorder %s36, 0
      %p214 = por %p212, %p213
      %p215 = scmp.ne.s32.totalorder %s203, %s204
      %p216 = scmp.eq.s32.totalorder %s37, 1
      %p217 = por %p215, %p216
      %p219 = scmp.ne.s32.totalorder %s204, %s218
      %p220 = scmp.eq.s32.totalorder %s37, 0
      %p221 = por %p219, %p220
      %s223 = sadd.s32 %s222, 1
      %p226 = scmp.eq.s32.totalorder %s31, 1
      %p227 = scmp.ne.s32.totalorder %s222, %s224
      %p228 = scmp.eq.s32.totalorder %s31, 0
      %p229 = por %p227, %p228
      %p230 = scmp.ne.s32.totalorder %s222, %s224
      %p231 = scmp.eq.s32.totalorder %s36, 1
      %p232 = por %p230, %p231
      %p233 = scmp.ne.s32.totalorder %s224, %s225
      %p234 = scmp.eq.s32.totalorder %s36, 0
      %p235 = por %p233, %p234
      %p236 = scmp.ne.s32.totalorder %s224, %s225
      %p237 = scmp.eq.s32.totalorder %s37, 1
      %p238 = por %p236, %p237
      %p240 = scmp.ne.s32.totalorder %s225, %s239
      %p241 = scmp.eq.s32.totalorder %s37, 0
      %p242 = por %p240, %p241
      %s244 = sadd.s32 %s243, 1
      %p247 = scmp.eq.s32.totalorder %s31, 1
      %p248 = scmp.ne.s32.totalorder %s243, %s245
      %p249 = scmp.eq.s32.totalorder %s31, 0
      %p250 = por %p248, %p249
      %p251 = scmp.ne.s32.totalorder %s243, %s245
      %p252 = scmp.eq.s32.totalorder %s36, 1
      %p253 = por %p251, %p252
      %p254 = scmp.ne.s32.totalorder %s245, %s246
      %p255 = scmp.eq.s32.totalorder %s36, 0
      %p256 = por %p254, %p255
      %p257 = scmp.ne.s32.totalorder %s245, %s246
      %p258 = scmp.eq.s32.totalorder %s37, 1
      %p259 = por %p257, %p258
      %p261 = scmp.ne.s32.totalorder %s246, %s260
      %p262 = scmp.eq.s32.totalorder %s37, 0
      %p263 = por %p261, %p262
      %s265 = sadd.s32 %s264, 1
      %p268 = scmp.eq.s32.totalorder %s31, 1
      %p269 = scmp.ne.s32.totalorder %s264, %s266
      %p270 = scmp.eq.s32.totalorder %s31, 0
      %p271 = por %p269, %p270
      %p272 = scmp.ne.s32.totalorder %s264, %s266
      %p273 = scmp.eq.s32.totalorder %s36, 1
      %p274 = por %p272, %p273
      %p275 = scmp.ne.s32.totalorder %s266, %s267
      %p276 = scmp.eq.s32.totalorder %s36, 0
      %p277 = por %p275, %p276
      %p278 = scmp.ne.s32.totalorder %s266, %s267
      %p279 = scmp.eq.s32.totalorder %s37, 1
      %p280 = por %p278, %p279
      %p282 = scmp.ne.s32.totalorder %s267, %s281
      %p283 = scmp.eq.s32.totalorder %s37, 0
      %p284 = por %p282, %p283
      %s286 = sadd.s32 %s285, 1
      %p289 = scmp.eq.s32.totalorder %s31, 1
      %p290 = scmp.ne.s32.totalorder %s285, %s287
      %p291 = scmp.eq.s32.totalorder %s31, 0
      %p292 = por %p290, %p291
      %p293 = scmp.ne.s32.totalorder %s285, %s287
      %p294 = scmp.eq.s32.totalorder %s36, 1
      %p295 = por %p293, %p294
      %p296 = scmp.ne.s32.totalorder %s287, %s288
      %p297 = scmp.eq.s32.totalorder %s36, 0
      %p298 = por %p296, %p297
      %p299 = scmp.ne.s32.totalorder %s287, %s288
      %p300 = scmp.eq.s32.totalorder %s37, 1
      %p301 = por %p299, %p300
      %p303 = scmp.ne.s32.totalorder %s288, %s302
      %p304 = scmp.eq.s32.totalorder %s37, 0
      %p305 = por %p303, %p304
      %s307 = sadd.s32 %s306, 1
      %p310 = scmp.eq.s32.totalorder %s31, 1
      %p311 = scmp.ne.s32.totalorder %s306, %s308
      %p312 = scmp.eq.s32.totalorder %s31, 0
      %p313 = por %p311, %p312
      %p314 = scmp.ne.s32.totalorder %s306, %s308
      %p315 = scmp.eq.s32.totalorder %s36, 1
      %p316 = por %p314, %p315
      %p317 = scmp.ne.s32.totalorder %s308, %s309
      %p318 = scmp.eq.s32.totalorder %s36, 0
      %p319 = por %p317, %p318
      %p320 = scmp.ne.s32.totalorder %s308, %s309
      %p321 = scmp.eq.s32.totalorder %s37, 1
      %p322 = por %p320, %p321
      %p324 = scmp.ne.s32.totalorder %s309, %s323
      %p325 = scmp.eq.s32.totalorder %s37, 0
      %p326 = por %p324, %p325
      %s328 = sadd.s32 %s327, 1
      %p331 = scmp.eq.s32.totalorder %s31, 1
      %p332 = scmp.ne.s32.totalorder %s327, %s329
      %p333 = scmp.eq.s32.totalorder %s31, 0
      %p334 = por %p332, %p333
      %p335 = scmp.ne.s32.totalorder %s327, %s329
      %p336 = scmp.eq.s32.totalorder %s36, 1
      %p337 = por %p335, %p336
      %p338 = scmp.ne.s32.totalorder %s329, %s330
      %p339 = scmp.eq.s32.totalorder %s36, 0
      %p340 = por %p338, %p339
      %p341 = scmp.ne.s32.totalorder %s329, %s330
      %p342 = scmp.eq.s32.totalorder %s37, 1
      %p343 = por %p341, %p342
      %p345 = scmp.ne.s32.totalorder %s330, %s344
      %p346 = scmp.eq.s32.totalorder %s37, 0
      %p347 = por %p345, %p346
      %s349 = sadd.s32 %s348, 1
      %p352 = scmp.eq.s32.totalorder %s31, 1
      %p353 = scmp.ne.s32.totalorder %s348, %s350
      %p354 = scmp.eq.s32.totalorder %s31, 0
      %p355 = por %p353, %p354
      %p356 = scmp.ne.s32.totalorder %s348, %s350
      %p357 = scmp.eq.s32.totalorder %s36, 1
      %p358 = por %p356, %p357
      %p359 = scmp.ne.s32.totalorder %s350, %s351
      %p360 = scmp.eq.s32.totalorder %s36, 0
      %p361 = por %p359, %p360
      %p362 = scmp.ne.s32.totalorder %s350, %s351
      %p363 = scmp.eq.s32.totalorder %s37, 1
      %p364 = por %p362, %p363
      %p366 = scmp.ne.s32.totalorder %s351, %s365
      %p367 = scmp.eq.s32.totalorder %s37, 0
      %p368 = por %p366, %p367
      %s370 = sadd.s32 %s369, 1
      %p373 = scmp.eq.s32.totalorder %s31, 1
      %p374 = scmp.ne.s32.totalorder %s369, %s371
      %p375 = scmp.eq.s32.totalorder %s31, 0
      %p376 = por %p374, %p375
      %p377 = scmp.ne.s32.totalorder %s369, %s371
      %p378 = scmp.eq.s32.totalorder %s36, 1
      %p379 = por %p377, %p378
      %p380 = scmp.ne.s32.totalorder %s371, %s372
      %p381 = scmp.eq.s32.totalorder %s36, 0
      %p382 = por %p380, %p381
      %p383 = scmp.ne.s32.totalorder %s371, %s372
      %p384 = scmp.eq.s32.totalorder %s37, 1
      %p385 = por %p383, %p384
      %p387 = scmp.ne.s32.totalorder %s372, %s386
      %p388 = scmp.eq.s32.totalorder %s37, 0
      %p389 = por %p387, %p388
      %s391 = sadd.s32 %s390, 1
      %p394 = scmp.eq.s32.totalorder %s31, 1
      %p395 = scmp.ne.s32.totalorder %s390, %s392
      %p396 = scmp.eq.s32.totalorder %s31, 0
      %p397 = por %p395, %p396
      %p398 = scmp.ne.s32.totalorder %s390, %s392
      %p399 = scmp.eq.s32.totalorder %s36, 1
      %p400 = por %p398, %p399
      %p401 = scmp.ne.s32.totalorder %s392, %s393
      %p402 = scmp.eq.s32.totalorder %s36, 0
      %p403 = por %p401, %p402
      %p404 = scmp.ne.s32.totalorder %s392, %s393
      %p405 = scmp.eq.s32.totalorder %s37, 1
      %p406 = por %p404, %p405
      %p408 = scmp.ne.s32.totalorder %s393, %s407
      %p409 = scmp.eq.s32.totalorder %s37, 0
      %p410 = por %p408, %p409
      %s412 = sadd.s32 %s411, 1
      %p415 = scmp.eq.s32.totalorder %s31, 1
      %p416 = scmp.ne.s32.totalorder %s411, %s413
      %p417 = scmp.eq.s32.totalorder %s31, 0
      %p418 = por %p416, %p417
      %p419 = scmp.ne.s32.totalorder %s411, %s413
      %p420 = scmp.eq.s32.totalorder %s36, 1
      %p421 = por %p419, %p420
      %p422 = scmp.ne.s32.totalorder %s413, %s414
      %p423 = scmp.eq.s32.totalorder %s36, 0
      %p424 = por %p422, %p423
      %p425 = scmp.ne.s32.totalorder %s413, %s414
      %p426 = scmp.eq.s32.totalorder %s37, 1
      %p427 = por %p425, %p426
      %p429 = scmp.ne.s32.totalorder %s414, %s428
      %p430 = scmp.eq.s32.totalorder %s37, 0
      %p431 = por %p429, %p430
      %s433 = sadd.s32 %s432, 1
      %p436 = scmp.eq.s32.totalorder %s31, 1
      %p437 = scmp.ne.s32.totalorder %s432, %s434
      %p438 = scmp.eq.s32.totalorder %s31, 0
      %p439 = por %p437, %p438
      %p440 = scmp.ne.s32.totalorder %s432, %s434
      %p441 = scmp.eq.s32.totalorder %s36, 1
      %p442 = por %p440, %p441
      %p443 = scmp.ne.s32.totalorder %s434, %s435
      %p444 = scmp.eq.s32.totalorder %s36, 0
      %p445 = por %p443, %p444
      %p446 = scmp.ne.s32.totalorder %s434, %s435
      %p447 = scmp.eq.s32.totalorder %s37, 1
      %p448 = por %p446, %p447
      %p450 = scmp.ne.s32.totalorder %s435, %s449
      %p451 = scmp.eq.s32.totalorder %s37, 0
      %p452 = por %p450, %p451
      %s454 = sadd.s32 %s453, 1
      %p457 = scmp.eq.s32.totalorder %s31, 1
      %p458 = scmp.ne.s32.totalorder %s453, %s455
      %p459 = scmp.eq.s32.totalorder %s31, 0
      %p460 = por %p458, %p459
      %p461 = scmp.ne.s32.totalorder %s453, %s455
      %p462 = scmp.eq.s32.totalorder %s36, 1
      %p463 = por %p461, %p462
      %p464 = scmp.ne.s32.totalorder %s455, %s456
      %p465 = scmp.eq.s32.totalorder %s36, 0
      %p466 = por %p464, %p465
      %p467 = scmp.ne.s32.totalorder %s455, %s456
      %p468 = scmp.eq.s32.totalorder %s37, 1
      %p469 = por %p467, %p468
      %p471 = scmp.ne.s32.totalorder %s456, %s470
      %p472 = scmp.eq.s32.totalorder %s37, 0
      %p473 = por %p471, %p472
      %s475 = sadd.s32 %s474, 1
      %p478 = scmp.eq.s32.totalorder %s31, 1
      %p479 = scmp.ne.s32.totalorder %s474, %s476
      %p480 = scmp.eq.s32.totalorder %s31, 0
      %p481 = por %p479, %p480
      %p482 = scmp.ne.s32.totalorder %s474, %s476
      %p483 = scmp.eq.s32.totalorder %s36, 1
      %p484 = por %p482, %p483
      %p485 = scmp.ne.s32.totalorder %s476, %s477
      %p486 = scmp.eq.s32.totalorder %s36, 0
      %p487 = por %p485, %p486
      %p488 = scmp.ne.s32.totalorder %s476, %s477
      %p489 = scmp.eq.s32.totalorder %s37, 1
      %p490 = por %p488, %p489
      %p492 = scmp.ne.s32.totalorder %s477, %s491
      %p493 = scmp.eq.s32.totalorder %s37, 0
      %p494 = por %p492, %p493
      %s496 = sadd.s32 %s495, 1
      %p499 = scmp.eq.s32.totalorder %s31, 1
      %p500 = scmp.ne.s32.totalorder %s495, %s497
      %p501 = scmp.eq.s32.totalorder %s31, 0
      %p502 = por %p500, %p501
      %p503 = scmp.ne.s32.totalorder %s495, %s497
      %p504 = scmp.eq.s32.totalorder %s36, 1
      %p505 = por %p503, %p504
      %p506 = scmp.ne.s32.totalorder %s497, %s498
      %p507 = scmp.eq.s32.totalorder %s36, 0
      %p508 = por %p506, %p507
      %p509 = scmp.ne.s32.totalorder %s497, %s498
      %p510 = scmp.eq.s32.totalorder %s37, 1
      %p511 = por %p509, %p510
      %p513 = scmp.ne.s32.totalorder %s498, %s512
      %p514 = scmp.eq.s32.totalorder %s37, 0
      %p515 = por %p513, %p514
      %s516 = ssub.s32 %s31, %s38
      %p517 = scmp.eq.s32.totalorder %s516, 0
      %s519 = sadd.s32 %s518, 1
      %s520 = scalar_select %p517, %s518, %s519
      %p523 = pneg %p517
      %p524 = scmp.eq.s32.totalorder %s31, 1
      %p525 = por %p523, %p524
      %p526 = scmp.ne.s32.totalorder %s518, %s521
      %p527 = scmp.eq.s32.totalorder %s31, 0
      %p528 = por %p526, %p527
      %p529 = scmp.ne.s32.totalorder %s518, %s521
      %p530 = scmp.eq.s32.totalorder %s36, 1
      %p531 = por %p529, %p530
      %p532 = scmp.ne.s32.totalorder %s521, %s522
      %p533 = scmp.eq.s32.totalorder %s36, 0
      %p534 = por %p532, %p533
      %p535 = scmp.ne.s32.totalorder %s521, %s522
      %p536 = scmp.eq.s32.totalorder %s37, 1
      %p537 = por %p535, %p536
      %p539 = scmp.ne.s32.totalorder %s522, %s538
      %p540 = scmp.eq.s32.totalorder %s37, 0
      %p541 = por %p539, %p540
      %p542 = scmp.le.s32.totalorder 1, %s31
      %p543 = scmp.lt.s32.totalorder %s31, 3
      %p544 = pnand %p542, %p543
      %p545 = pneg %p544
      // Predicated region
      $region9: #{bert_classifier_forward.1} parent=5 // pred_check
        _
      $region10: #{bert_classifier_forward.1} parent=5 // pred_check_branch
        %547 = sbr.rel (%p544) target = $region12
      $region11: #{bert_classifier_forward.1} parent=5 // pred_region
        %s548 = ssub.s32 %s31, 1
        // Predicated region
        $region13: #{bert_classifier_forward.1} parent=11 // pred_check
          %p549 = pneg %p130
        $region14: #{bert_classifier_forward.1} parent=11 // pred_check_branch
          %551 = sbr.rel (%p549) target = $region16
        $region15: #{bert_classifier_forward.1} parent=11 // pred_region
          _
        $region16: #{bert_classifier_forward.1} parent=11 // pred_fallthru
          _
        // Predicated region
        $region17: #{bert_classifier_forward.1} parent=11 // pred_check
          %p552 = pneg %p151
        $region18: #{bert_classifier_forward.1} parent=11 // pred_check_branch
          %554 = sbr.rel (%p552) target = $region20
        $region19: #{bert_classifier_forward.1} parent=11 // pred_region
          _
        $region20: #{bert_classifier_forward.1} parent=11 // pred_fallthru
          _
        // Predicated region
        $region21: #{bert_classifier_forward.1} parent=11 // pred_check
          %p555 = pneg %p172
        $region22: #{bert_classifier_forward.1} parent=11 // pred_check_branch
          %557 = sbr.rel (%p555) target = $region24
        $region23: #{bert_classifier_forward.1} parent=11 // pred_region
          _
        $region24: #{bert_classifier_forward.1} parent=11 // pred_fallthru
          _
        // Predicated region
        $region25: #{bert_classifier_forward.1} parent=11 // pred_check
          %p558 = pneg %p193
        $region26: #{bert_classifier_forward.1} parent=11 // pred_check_branch
          %560 = sbr.rel (%p558) target = $region28
        $region27: #{bert_classifier_forward.1} parent=11 // pred_region
          %562 = vsyncadd [#allocation4], 0
          %s563 = sshll.u32 %s6, 4
          %s564 = int_to_ptr.hbm [resolvable:$true] %s563
          %s565 = sshll.u32 [#allocation3], 4
          %s566 = int_to_ptr.vmem [resolvable:$true] %s565
          %571 = dma.hbm_to_vmem [thread:$0]  %s564, 24576, %s566, [#allocation4], 384, 384, 24
        $region28: #{bert_classifier_forward.1} parent=11 // pred_fallthru
          _
        // Predicated region
        $region29: #{bert_classifier_forward.1} parent=11 // pred_check
          %p572 = pneg %p214
        $region30: #{bert_classifier_forward.1} parent=11 // pred_check_branch
          %574 = sbr.rel (%p572) target = $region32
        $region31: #{bert_classifier_forward.1} parent=11 // pred_region
          _
        $region32: #{bert_classifier_forward.1} parent=11 // pred_fallthru
          _
        // Predicated region
        $region33: #{bert_classifier_forward.1} parent=11 // pred_check
          %p575 = pneg %p235
        $region34: #{bert_classifier_forward.1} parent=11 // pred_check_branch
          %577 = sbr.rel (%p575) target = $region36
        $region35: #{bert_classifier_forward.1} parent=11 // pred_region
          %579 = vsyncadd [#allocation6], 0
          %s580 = sshll.u32 %s8, 4
          %s581 = int_to_ptr.hbm [resolvable:$true] %s580
          %s582 = sshll.u32 [#allocation5], 4
          %s583 = int_to_ptr.vmem [resolvable:$true] %s582
          %588 = dma.hbm_to_vmem [thread:$0]  %s581, 8192, %s583, [#allocation6], 128, 128, 8
        $region36: #{bert_classifier_forward.1} parent=11 // pred_fallthru
          _
        // Predicated region
        $region37: #{bert_classifier_forward.1} parent=11 // pred_check
          %p589 = pneg %p256
        $region38: #{bert_classifier_forward.1} parent=11 // pred_check_branch
          %591 = sbr.rel (%p589) target = $region40
        $region39: #{bert_classifier_forward.1} parent=11 // pred_region
          _
        $region40: #{bert_classifier_forward.1} parent=11 // pred_fallthru
          _
        // Predicated region
        $region41: #{bert_classifier_forward.1} parent=11 // pred_check
          %p592 = pneg %p277
        $region42: #{bert_classifier_forward.1} parent=11 // pred_check_branch
          %594 = sbr.rel (%p592) target = $region44
        $region43: #{bert_classifier_forward.1} parent=11 // pred_region
          _
        $region44: #{bert_classifier_forward.1} parent=11 // pred_fallthru
          _
        // Predicated region
        $region45: #{bert_classifier_forward.1} parent=11 // pred_check
          %p595 = pneg %p298
        $region46: #{bert_classifier_forward.1} parent=11 // pred_check_branch
          %597 = sbr.rel (%p595) target = $region48
        $region47: #{bert_classifier_forward.1} parent=11 // pred_region
          _
        $region48: #{bert_classifier_forward.1} parent=11 // pred_fallthru
          _
        // Predicated region
        $region49: #{bert_classifier_forward.1} parent=11 // pred_check
          %p598 = pneg %p319
        $region50: #{bert_classifier_forward.1} parent=11 // pred_check_branch
          %600 = sbr.rel (%p598) target = $region52
        $region51: #{bert_classifier_forward.1} parent=11 // pred_region
          %602 = vsyncadd [#allocation6], 0
          %s603 = sshll.u32 %s12, 4
          %s604 = int_to_ptr.hbm [resolvable:$true] %s603
          %s605 = sshll.u32 [#allocation7], 4
          %s606 = int_to_ptr.vmem [resolvable:$true] %s605
          %611 = dma.hbm_to_vmem [thread:$0]  %s604, 8192, %s606, [#allocation6], 128, 128, 8
        $region52: #{bert_classifier_forward.1} parent=11 // pred_fallthru
          _
        // Predicated region
        $region53: #{bert_classifier_forward.1} parent=11 // pred_check
          %p612 = pneg %p340
        $region54: #{bert_classifier_forward.1} parent=11 // pred_check_branch
          %614 = sbr.rel (%p612) target = $region56
        $region55: #{bert_classifier_forward.1} parent=11 // pred_region
          _
        $region56: #{bert_classifier_forward.1} parent=11 // pred_fallthru
          _
        // Predicated region
        $region57: #{bert_classifier_forward.1} parent=11 // pred_check
          %p615 = pneg %p361
        $region58: #{bert_classifier_forward.1} parent=11 // pred_check_branch
          %617 = sbr.rel (%p615) target = $region60
        $region59: #{bert_classifier_forward.1} parent=11 // pred_region
          %619 = vsyncadd [#allocation9], 0
          %s620 = sshll.u32 %s14, 4
          %s621 = int_to_ptr.hbm [resolvable:$true] %s620
          %s622 = sshll.u32 [#allocation8], 4
          %s623 = int_to_ptr.vmem [resolvable:$true] %s622
          %628 = dma.hbm_to_vmem [thread:$0]  %s621, 8192, %s623, [#allocation9], 128, 128, 8
        $region60: #{bert_classifier_forward.1} parent=11 // pred_fallthru
          _
        // Predicated region
        $region61: #{bert_classifier_forward.1} parent=11 // pred_check
          %p629 = pneg %p382
        $region62: #{bert_classifier_forward.1} parent=11 // pred_check_branch
          %631 = sbr.rel (%p629) target = $region64
        $region63: #{bert_classifier_forward.1} parent=11 // pred_region
          _
        $region64: #{bert_classifier_forward.1} parent=11 // pred_fallthru
          _
        // Predicated region
        $region65: #{bert_classifier_forward.1} parent=11 // pred_check
          %p632 = pneg %p403
        $region66: #{bert_classifier_forward.1} parent=11 // pred_check_branch
          %634 = sbr.rel (%p632) target = $region68
        $region67: #{bert_classifier_forward.1} parent=11 // pred_region
          _
        $region68: #{bert_classifier_forward.1} parent=11 // pred_fallthru
          _
        // Predicated region
        $region69: #{bert_classifier_forward.1} parent=11 // pred_check
          %p635 = pneg %p424
        $region70: #{bert_classifier_forward.1} parent=11 // pred_check_branch
          %637 = sbr.rel (%p635) target = $region72
        $region71: #{bert_classifier_forward.1} parent=11 // pred_region
          _
        $region72: #{bert_classifier_forward.1} parent=11 // pred_fallthru
          _
        // Predicated region
        $region73: #{bert_classifier_forward.1} parent=11 // pred_check
          %p638 = pneg %p445
        $region74: #{bert_classifier_forward.1} parent=11 // pred_check_branch
          %640 = sbr.rel (%p638) target = $region76
        $region75: #{bert_classifier_forward.1} parent=11 // pred_region
          _
        $region76: #{bert_classifier_forward.1} parent=11 // pred_fallthru
          _
        // Predicated region
        $region77: #{bert_classifier_forward.1} parent=11 // pred_check
          %p641 = pneg %p466
        $region78: #{bert_classifier_forward.1} parent=11 // pred_check_branch
          %643 = sbr.rel (%p641) target = $region80
        $region79: #{bert_classifier_forward.1} parent=11 // pred_region
          _
        $region80: #{bert_classifier_forward.1} parent=11 // pred_fallthru
          _
        // Predicated region
        $region81: #{bert_classifier_forward.1} parent=11 // pred_check
          %p644 = pneg %p487
        $region82: #{bert_classifier_forward.1} parent=11 // pred_check_branch
          %646 = sbr.rel (%p644) target = $region84
        $region83: #{bert_classifier_forward.1} parent=11 // pred_region
          _
        $region84: #{bert_classifier_forward.1} parent=11 // pred_fallthru
          _
        // Predicated region
        $region85: #{bert_classifier_forward.1} parent=11 // pred_check
          %p647 = pneg %p508
        $region86: #{bert_classifier_forward.1} parent=11 // pred_check_branch
          %649 = sbr.rel (%p647) target = $region88
        $region87: #{bert_classifier_forward.1} parent=11 // pred_region
          _
        $region88: #{bert_classifier_forward.1} parent=11 // pred_fallthru
          _
      $region12: #{bert_classifier_forward.1} parent=5 // pred_fallthru
        _
      %p650 = scmp.lt.s32.totalorder %s31, 2
      // Predicated region
      $region89: #{bert_classifier_forward.1} parent=5 // pred_check
        %p651 = pneg %p650
      $region90: #{bert_classifier_forward.1} parent=5 // pred_check_branch
        %653 = sbr.rel (%p651) target = $region92
      $region91: #{bert_classifier_forward.1} parent=5 // pred_region
        // Predicated region
        $region93: #{bert_classifier_forward.1} parent=91 // pred_check
          %p654 = pneg %p51
        $region94: #{bert_classifier_forward.1} parent=91 // pred_check_branch
          %656 = sbr.rel (%p654) target = $region96
        $region95: #{bert_classifier_forward.1} parent=91 // pred_region
          %s657 = smul.u32 4, %s31
          %p658 = scmp.lt.s32.totalorder %s657, 7
          %s659 = scalar_select %p658, %s657, 7
          %s660 = smul.addr %s659, 8
          %s661 = scalar_lea.vmem %s0, %s660
          %s662 = smul.u32 4, %s31
        $region96: #{bert_classifier_forward.1} parent=91 // pred_fallthru
          _
        // Predicated region
        $region97: #{bert_classifier_forward.1} parent=91 // pred_check
          %p663 = pneg %p77
        $region98: #{bert_classifier_forward.1} parent=91 // pred_check_branch
          %665 = sbr.rel (%p663) target = $region100
        $region99: #{bert_classifier_forward.1} parent=91 // pred_region
          %s666 = smul.u32 4, %s31
          %p667 = scmp.lt.s32.totalorder %s666, 7
          %s668 = scalar_select %p667, %s666, 7
          %s669 = smul.addr %s668, 8
          %s670 = scalar_lea.vmem %s1, %s669
          %s671 = smul.u32 4, %s31
        $region100: #{bert_classifier_forward.1} parent=91 // pred_fallthru
          _
        // Predicated region
        $region101: #{bert_classifier_forward.1} parent=91 // pred_check
          %p672 = pneg %p103
        $region102: #{bert_classifier_forward.1} parent=91 // pred_check_branch
          %674 = sbr.rel (%p672) target = $region104
        $region103: #{bert_classifier_forward.1} parent=91 // pred_region
          %s675 = smul.u32 4, %s31
          %p676 = scmp.lt.s32.totalorder %s675, 7
          %s677 = scalar_select %p676, %s675, 7
          %s678 = smul.addr %s677, 8
          %s679 = scalar_lea.vmem %s2, %s678
          %s680 = smul.u32 4, %s31
        $region104: #{bert_classifier_forward.1} parent=91 // pred_fallthru
          _
      $region92: #{bert_classifier_forward.1} parent=5 // pred_fallthru
        _
      %p681 = scmp.le.s32.totalorder 1, %s31
      %p682 = scmp.lt.s32.totalorder %s31, 3
      %p683 = pnand %p681, %p682
      %p684 = pneg %p683
      // Predicated region
      $region105: #{bert_classifier_forward.1} parent=5 // pred_check
        _
      $region106: #{bert_classifier_forward.1} parent=5 // pred_check_branch
        %686 = sbr.rel (%p683) target = $region108
      $region107: #{bert_classifier_forward.1} parent=5 // pred_region
        %s687 = ssub.s32 %s31, 1
        // Predicated region
        $region109: #{bert_classifier_forward.1} parent=107 // pred_check
          %p688 = pneg %p193
        $region110: #{bert_classifier_forward.1} parent=107 // pred_check_branch
          %690 = sbr.rel (%p688) target = $region112
        $region111: #{bert_classifier_forward.1} parent=107 // pred_region
          %692 = dma.done [#allocation4], 24576
        $region112: #{bert_classifier_forward.1} parent=107 // pred_fallthru
          _
        // Predicated region
        $region113: #{bert_classifier_forward.1} parent=107 // pred_check
          %p693 = pneg %p235
        $region114: #{bert_classifier_forward.1} parent=107 // pred_check_branch
          %695 = sbr.rel (%p693) target = $region116
        $region115: #{bert_classifier_forward.1} parent=107 // pred_region
          %697 = dma.done [#allocation6], 8192
        $region116: #{bert_classifier_forward.1} parent=107 // pred_fallthru
          _
        // Predicated region
        $region117: #{bert_classifier_forward.1} parent=107 // pred_check
          %p698 = pneg %p319
        $region118: #{bert_classifier_forward.1} parent=107 // pred_check_branch
          %700 = sbr.rel (%p698) target = $region120
        $region119: #{bert_classifier_forward.1} parent=107 // pred_region
          %702 = dma.done [#allocation6], 8192
        $region120: #{bert_classifier_forward.1} parent=107 // pred_fallthru
          _
        // Predicated region
        $region121: #{bert_classifier_forward.1} parent=107 // pred_check
          %p703 = pneg %p361
        $region122: #{bert_classifier_forward.1} parent=107 // pred_check_branch
          %705 = sbr.rel (%p703) target = $region124
        $region123: #{bert_classifier_forward.1} parent=107 // pred_region
          %707 = dma.done [#allocation9], 8192
        $region124: #{bert_classifier_forward.1} parent=107 // pred_fallthru
          _
        %s708 = smul.u32 4, %s36
        %p709 = scmp.lt.s32.totalorder %s708, 7
        %s710 = scalar_select %p709, %s708, 7
        %s711 = smul.addr %s710, 8
        %s712 = scalar_lea.vmem %s0, %s711
        %p713 = pneg %p57
        %p714 = pneg %p54
        %s715 = smul.u32 4, %s36
        %p716 = scmp.lt.s32.totalorder %s715, 7
        %s717 = scalar_select %p716, %s715, 7
        %s718 = smul.addr %s717, 8
        %s719 = scalar_lea.vmem %s1, %s718
        %p720 = pneg %p83
        %p721 = pneg %p80
        %s722 = smul.u32 4, %s36
        %p723 = scmp.lt.s32.totalorder %s722, 7
        %s724 = scalar_select %p723, %s722, 7
        %s725 = smul.addr %s724, 8
        %s726 = scalar_lea.vmem %s2, %s725
        %p727 = pneg %p109
        %p728 = pneg %p106
        %p729 = pneg %p130
        %p730 = pneg %p127
        %p731 = pneg %p151
        %p732 = pneg %p148
        %p733 = pneg %p172
        %p734 = pneg %p169
        %p735 = pneg %p193
        %p736 = pneg %p190
        %p737 = pneg %p214
        %p738 = pneg %p211
        %p739 = pneg %p235
        %p740 = pneg %p232
        %p741 = pneg %p256
        %p742 = pneg %p253
        %p743 = pneg %p277
        %p744 = pneg %p274
        %p745 = pneg %p298
        %p746 = pneg %p295
        %p747 = pneg %p319
        %p748 = pneg %p316
        %p749 = pneg %p340
        %p750 = pneg %p337
        %p751 = pneg %p361
        %p752 = pneg %p358
        %p753 = pneg %p382
        %p754 = pneg %p379
        %p755 = pneg %p403
        %p756 = pneg %p400
        %p757 = pneg %p424
        %p758 = pneg %p421
        %p759 = pneg %p445
        %p760 = pneg %p442
        %p761 = pneg %p466
        %p762 = pneg %p463
        %p763 = pneg %p487
        %p764 = pneg %p484
        %p765 = pneg %p508
        %p766 = pneg %p505
        %p767 = pneg %p534
        %p768 = pneg %p531
        %p769 = scmp.lt.s32.totalorder %s36, 1
        %s770 = scalar_select %p769, %s36, 1
        %s771 = smul.addr %s770, 4
        %s772 = scalar_lea.vmem %s22, %s771
        %s773 = smul.u32 4, %s36
        %p774 = scmp.lt.s32.totalorder %s773, 7
        %s775 = scalar_select %p774, %s773, 7
        %s776 = smul.addr %s775, 8
        %s777 = scalar_lea.vmem %s0, %s776
        %s778 = smul.u32 4, %s36
        %s779 = smul.u32 4, %s36
        %p780 = scmp.lt.s32.totalorder %s779, 7
        %s781 = scalar_select %p780, %s779, 7
        %s782 = smul.addr %s781, 8
        %s783 = scalar_lea.vmem %s1, %s782
        %s784 = smul.u32 4, %s36
        %s785 = smul.u32 4, %s36
        %p786 = scmp.lt.s32.totalorder %s785, 7
        %s787 = scalar_select %p786, %s785, 7
        %s788 = smul.addr %s787, 8
        %s789 = scalar_lea.vmem %s2, %s788
        %s790 = smul.u32 4, %s36
        %p791 = scmp.lt.s32.totalorder %s36, 1
        %s792 = scalar_select %p791, %s36, 1
        %s793 = smul.addr %s792, 4
        %s794 = scalar_lea.vmem %s22, %s793
        %v796 = vld [vmem:[%s777] sm:$0xff]
        %v797 = vld [vmem:[%s777 + $0x8] sm:$0xff]
        %v798 = vld [vmem:[%s777 + $0x10] sm:$0xff]
        %v799 = vld [vmem:[%s777 + $0x18] sm:$0xff]
        %v800 = vld [vmem:[%s783] sm:$0xff]
        %v801 = vld [vmem:[%s783 + $0x8] sm:$0xff]
        %v802 = vld [vmem:[%s783 + $0x10] sm:$0xff]
        %v803 = vld [vmem:[%s783 + $0x18] sm:$0xff]
        %v804 = vcvt.s32.f32 %v800
        %v805 = vcvt.s32.f32 %v801
        %v806 = vcvt.s32.f32 %v802
        %v807 = vcvt.s32.f32 %v803
        %v808 = vlaneseq
        %v809 = vand.u32 %v808, 127
        %810 = vset.pattern.permute.xlu0 0
        %811 = vperm.xlu0 %810, %v796
        %v812 = vpop.permute.xlu0 %811
        %813 = vset.pattern.permute.xlu0 0
        %814 = vperm.xlu0 %813, %v797
        %v815 = vpop.permute.xlu0 %814
        %816 = vset.pattern.permute.xlu0 0
        %817 = vperm.xlu0 %816, %v798
        %v818 = vpop.permute.xlu0 %817
        %819 = vset.pattern.permute.xlu0 0
        %820 = vperm.xlu0 %819, %v799
        %v821 = vpop.permute.xlu0 %820
        %vm822 = vcmp.eq.s32.totalorder %v812, %v809
        %vm823 = vcmp.eq.s32.totalorder %v815, %v809
        %vm824 = vcmp.eq.s32.totalorder %v818, %v809
        %vm825 = vcmp.eq.s32.totalorder %v821, %v809
        %v826 = vsel %vm822, 1, 0
        %v827 = vsel %vm823, 1, 0
        %v828 = vsel %vm824, 1, 0
        %v829 = vsel %vm825, 1, 0
        %v830 = vcvt.s32.f32 %v826
        %v831 = vcvt.s32.f32 %v827
        %v832 = vcvt.s32.f32 %v828
        %v833 = vcvt.s32.f32 %v829
        %v834 = vpack.c.bf16 %v831, %v830
        %v835 = vpack.c.bf16 %v833, %v832
        %v836 = vld [vmem:[%s3] sm:$0xff]
        %v837 = vld [vmem:[%s3 + $0x8] sm:$0xff]
        %v838 = vld [vmem:[%s3 + $0x10] sm:$0xff]
        %v839 = vld [vmem:[%s3 + $0x18] sm:$0xff]
        %v840 = vld [vmem:[%s3 + $0x20] sm:$0xff]
        %v841 = vld [vmem:[%s3 + $0x28] sm:$0xff]
        %v842 = vld [vmem:[%s3 + $0x30] sm:$0xff]
        %v843 = vld [vmem:[%s3 + $0x38] sm:$0xff]
        %v844 = vld [vmem:[%s4] ss:$2 sm:$0x3]
        %v845 = vsub.f32 1.0, %v804
        %v846 = vsub.f32 1.0, %v805
        %v847 = vsub.f32 1.0, %v806
        %v848 = vsub.f32 1.0, %v807
        %v850 = vperm.slane %v844, 0
        %v851 = vperm.slane %v844, 1
        %855 = vset.pattern.permute.xlu0 0
        %856 = vperm.xlu0 %855, %v845
        %v857 = vpop.permute.xlu0 %856
        %860 = vset.pattern.permute.xlu0 0
        %861 = vperm.xlu0 %860, %v846
        %v862 = vpop.permute.xlu0 %861
        %865 = vset.pattern.permute.xlu0 0
        %866 = vperm.xlu0 %865, %v847
        %v867 = vpop.permute.xlu0 %866
        %870 = vset.pattern.permute.xlu0 0
        %871 = vperm.xlu0 %870, %v848
        %v872 = vpop.permute.xlu0 %871
        %v874 = vmul.f32 %v850, %v857
        %v875 = vmul.f32 %v851, %v857
        %v876 = vmul.f32 %v850, %v862
        %v877 = vmul.f32 %v851, %v862
        %v878 = vmul.f32 %v850, %v867
        %v879 = vmul.f32 %v851, %v867
        %v880 = vmul.f32 %v850, %v872
        %v881 = vmul.f32 %v851, %v872
        %v890 = vunpack.c.l.b16 %v836
        %v891 = vunpack.c.h.b16 %v836
        %v892 = vunpack.c.l.b16 %v837
        %v893 = vunpack.c.h.b16 %v837
        %v894 = vunpack.c.l.b16 %v838
        %v895 = vunpack.c.h.b16 %v838
        %v896 = vunpack.c.l.b16 %v839
        %v897 = vunpack.c.h.b16 %v839
        %v898 = vunpack.c.l.b16 %v840
        %v899 = vunpack.c.h.b16 %v840
        %v900 = vunpack.c.l.b16 %v841
        %v901 = vunpack.c.h.b16 %v841
        %v902 = vunpack.c.l.b16 %v842
        %v903 = vunpack.c.h.b16 %v842
        %v904 = vunpack.c.l.b16 %v843
        %v905 = vunpack.c.h.b16 %v843
        %v906 = vpack.c.b16 %v892, %v890
        %v907 = vpack.c.b16 %v893, %v891
        %v908 = vpack.c.b16 %v896, %v894
        %v909 = vpack.c.b16 %v897, %v895
        %v910 = vpack.c.b16 %v900, %v898
        %v911 = vpack.c.b16 %v901, %v899
        %v912 = vpack.c.b16 %v904, %v902
        %v913 = vpack.c.b16 %v905, %v903
        %vm922 = vcmask 523264
        %v924 = vsel %vm922, %v834, 0
        %v927 = vsel %vm922, %v835, 0
        %929 = vmatpush.bf16.msra.mxu0 0
        %930 = vmatpush.bf16.msra.mxu0 0
        %931 = vmatpush.bf16.msra.mxu0 0
        %932 = vmatpush.bf16.msra.mxu0 0
        %933 = vmatpush.bf16.msra.mxu0 %v912
        %934 = vmatpush.bf16.msra.mxu0 %v910
        %935 = vmatpush.bf16.msra.mxu0 %v908
        %936 = vmatpush.bf16.msra.mxu0 %v906
        %937 = vmatmul.bf16.gmra.mxu0 %v924
        %v938 = vpop.f32.mrf.mxu0
        %v939 = vadd.f32 %v874, %v938
        %v940 = vpop.f32.mrf.mxu0
        %v941 = vadd.f32 %v876, %v940
        %942 = vmatmul.bf16.gmra.mxu0 %v927
        %v943 = vpop.f32.mrf.mxu0
        %v944 = vadd.f32 %v878, %v943
        %v945 = vpop.f32.mrf.mxu0
        %v946 = vadd.f32 %v880, %v945
        %947 = vdwg.mxu0
        %948 = vmatpush.bf16.msra.mxu0 0
        %949 = vmatpush.bf16.msra.mxu0 0
        %950 = vmatpush.bf16.msra.mxu0 0
        %951 = vmatpush.bf16.msra.mxu0 0
        %952 = vmatpush.bf16.msra.mxu0 %v913
        %953 = vmatpush.bf16.msra.mxu0 %v911
        %954 = vmatpush.bf16.msra.mxu0 %v909
        %955 = vmatpush.bf16.msra.mxu0 %v907
        %956 = vmatmul.bf16.gmra.mxu0 %v924
        %v957 = vpop.f32.mrf.mxu0
        %v958 = vadd.f32 %v875, %v957
        %v959 = vpop.f32.mrf.mxu0
        %v960 = vadd.f32 %v877, %v959
        %961 = vmatmul.bf16.gmra.mxu0 %v927
        %v962 = vpop.f32.mrf.mxu0
        %v963 = vadd.f32 %v879, %v962
        %v964 = vpop.f32.mrf.mxu0
        %v965 = vadd.f32 %v881, %v964
        %966 = vdwg.mxu0
        %s967 = scalar_lea.vmem %s4, 1
        %v968 = vld [vmem:[%s967] ss:$2 sm:$0x3]
        %v970 = vperm.slane %v968, 0
        %v971 = vperm.slane %v968, 1
        %975 = vset.pattern.permute.xlu0 0
        %976 = vperm.xlu0 %975, %v804
        %v977 = vpop.permute.xlu0 %976
        %980 = vset.pattern.permute.xlu0 0
        %981 = vperm.xlu0 %980, %v805
        %v982 = vpop.permute.xlu0 %981
        %985 = vset.pattern.permute.xlu0 0
        %986 = vperm.xlu0 %985, %v806
        %v987 = vpop.permute.xlu0 %986
        %990 = vset.pattern.permute.xlu0 0
        %991 = vperm.xlu0 %990, %v807
        %v992 = vpop.permute.xlu0 %991
        %v994 = vmul.f32 %v970, %v977
        %v995 = vmul.f32 %v971, %v977
        %v996 = vmul.f32 %v970, %v982
        %v997 = vmul.f32 %v971, %v982
        %v998 = vmul.f32 %v970, %v987
        %v999 = vmul.f32 %v971, %v987
        %v1000 = vmul.f32 %v970, %v992
        %v1001 = vmul.f32 %v971, %v992
        %v1002 = vadd.f32 %v939, %v994
        %v1003 = vadd.f32 %v958, %v995
        %v1004 = vadd.f32 %v941, %v996
        %v1005 = vadd.f32 %v960, %v997
        %v1006 = vadd.f32 %v944, %v998
        %v1007 = vadd.f32 %v963, %v999
        %v1008 = vadd.f32 %v946, %v1000
        %v1009 = vadd.f32 %v965, %v1001
        %v1010 = vld [vmem:[%s5] sm:$0xff]
        %v1011 = vld [vmem:[%s5 + $0x8] sm:$0xff]
        %v1012 = vadd.f32 %v1002, %v1010
        %v1013 = vadd.f32 %v1003, %v1011
        %v1014 = vadd.f32 %v1004, %v1010
        %v1015 = vadd.f32 %v1005, %v1011
        %v1016 = vadd.f32 %v1006, %v1010
        %v1017 = vadd.f32 %v1007, %v1011
        %v1018 = vadd.f32 %v1008, %v1010
        %v1019 = vadd.f32 %v1009, %v1011
        %v1020 = vld [vmem:[%s789] sm:$0xff]
        %v1021 = vld [vmem:[%s789 + $0x8] sm:$0xff]
        %v1022 = vld [vmem:[%s789 + $0x10] sm:$0xff]
        %v1023 = vld [vmem:[%s789 + $0x18] sm:$0xff]
        %vm1024 = vcmp.gt.f32.partialorder %v1020, 0.5
        %vm1025 = vcmp.gt.f32.partialorder %v1021, 0.5
        %vm1026 = vcmp.gt.f32.partialorder %v1022, 0.5
        %vm1027 = vcmp.gt.f32.partialorder %v1023, 0.5
        %v1028 = vpack.c.bf16 %v1014, %v1012
        %v1029 = vpack.c.bf16 %v1015, %v1013
        %v1030 = vpack.c.bf16 %v1018, %v1016
        %v1031 = vpack.c.bf16 %v1019, %v1017
        %v1032 = vld [vmem:[#allocation3] sm:$0xff]
        %v1033 = vld [vmem:[#allocation3 + $0x8] sm:$0xff]
        %v1034 = vld [vmem:[#allocation3 + $0x10] sm:$0xff]
        %v1035 = vld [vmem:[#allocation3 + $0x18] sm:$0xff]
        %v1036 = vld [vmem:[#allocation3 + $0x20] sm:$0xff]
        %v1037 = vld [vmem:[#allocation3 + $0x28] sm:$0xff]
        %v1038 = vld [vmem:[#allocation3 + $0x30] sm:$0xff]
        %v1039 = vld [vmem:[#allocation3 + $0x38] sm:$0xff]
        %v1040 = vld [vmem:[#allocation3 + $0x40] sm:$0xff]
        %v1041 = vld [vmem:[#allocation3 + $0x48] sm:$0xff]
        %v1042 = vld [vmem:[#allocation3 + $0x50] sm:$0xff]
        %v1043 = vld [vmem:[#allocation3 + $0x58] sm:$0xff]
        %v1044 = vld [vmem:[#allocation3 + $0x60] sm:$0xff]
        %v1045 = vld [vmem:[#allocation3 + $0x68] sm:$0xff]
        %v1046 = vld [vmem:[#allocation3 + $0x70] sm:$0xff]
        %v1047 = vld [vmem:[#allocation3 + $0x78] sm:$0xff]
        %v1048 = vld [vmem:[#allocation3 + $0x80] sm:$0xff]
        %v1049 = vld [vmem:[#allocation3 + $0x88] sm:$0xff]
        %v1050 = vld [vmem:[#allocation3 + $0x90] sm:$0xff]
        %v1051 = vld [vmem:[#allocation3 + $0x98] sm:$0xff]
        %v1052 = vld [vmem:[#allocation3 + $0xa0] sm:$0xff]
        %v1053 = vld [vmem:[#allocation3 + $0xa8] sm:$0xff]
        %v1054 = vld [vmem:[#allocation3 + $0xb0] sm:$0xff]
        %v1055 = vld [vmem:[#allocation3 + $0xb8] sm:$0xff]
        %v1056 = vld [vmem:[#allocation3 + $0xc0] sm:$0xff]
        %v1057 = vld [vmem:[#allocation3 + $0xc8] sm:$0xff]
        %v1058 = vld [vmem:[#allocation3 + $0xd0] sm:$0xff]
        %v1059 = vld [vmem:[#allocation3 + $0xd8] sm:$0xff]
        %v1060 = vld [vmem:[#allocation3 + $0xe0] sm:$0xff]
        %v1061 = vld [vmem:[#allocation3 + $0xe8] sm:$0xff]
        %v1062 = vld [vmem:[#allocation3 + $0xf0] sm:$0xff]
        %v1063 = vld [vmem:[#allocation3 + $0xf8] sm:$0xff]
        %v1064 = vld [vmem:[#allocation3 + $0x100] sm:$0xff]
        %v1065 = vld [vmem:[#allocation3 + $0x108] sm:$0xff]
        %v1066 = vld [vmem:[#allocation3 + $0x110] sm:$0xff]
        %v1067 = vld [vmem:[#allocation3 + $0x118] sm:$0xff]
        %v1068 = vld [vmem:[#allocation3 + $0x120] sm:$0xff]
        %v1069 = vld [vmem:[#allocation3 + $0x128] sm:$0xff]
        %v1070 = vld [vmem:[#allocation3 + $0x130] sm:$0xff]
        %v1071 = vld [vmem:[#allocation3 + $0x138] sm:$0xff]
        %v1072 = vld [vmem:[#allocation3 + $0x140] sm:$0xff]
        %v1073 = vld [vmem:[#allocation3 + $0x148] sm:$0xff]
        %v1074 = vld [vmem:[#allocation3 + $0x150] sm:$0xff]
        %v1075 = vld [vmem:[#allocation3 + $0x158] sm:$0xff]
        %v1076 = vld [vmem:[#allocation3 + $0x160] sm:$0xff]
        %v1077 = vld [vmem:[#allocation3 + $0x168] sm:$0xff]
        %v1078 = vld [vmem:[#allocation3 + $0x170] sm:$0xff]
        %v1079 = vld [vmem:[#allocation3 + $0x178] sm:$0xff]
        %v1080 = vld [vmem:[#allocation3 + $0x180] sm:$0xff]
        %v1081 = vld [vmem:[#allocation3 + $0x188] sm:$0xff]
        %v1082 = vld [vmem:[#allocation3 + $0x190] sm:$0xff]
        %v1083 = vld [vmem:[#allocation3 + $0x198] sm:$0xff]
        %v1084 = vld [vmem:[#allocation3 + $0x1a0] sm:$0xff]
        %v1085 = vld [vmem:[#allocation3 + $0x1a8] sm:$0xff]
        %v1086 = vld [vmem:[#allocation3 + $0x1b0] sm:$0xff]
        %v1087 = vld [vmem:[#allocation3 + $0x1b8] sm:$0xff]
        %v1088 = vld [vmem:[#allocation3 + $0x1c0] sm:$0xff]
        %v1089 = vld [vmem:[#allocation3 + $0x1c8] sm:$0xff]
        %v1090 = vld [vmem:[#allocation3 + $0x1d0] sm:$0xff]
        %v1091 = vld [vmem:[#allocation3 + $0x1d8] sm:$0xff]
        %v1092 = vld [vmem:[#allocation3 + $0x1e0] sm:$0xff]
        %v1093 = vld [vmem:[#allocation3 + $0x1e8] sm:$0xff]
        %v1094 = vld [vmem:[#allocation3 + $0x1f0] sm:$0xff]
        %v1095 = vld [vmem:[#allocation3 + $0x1f8] sm:$0xff]
        %v1096 = vld [vmem:[#allocation3 + $0x200] sm:$0xff]
        %v1097 = vld [vmem:[#allocation3 + $0x208] sm:$0xff]
        %v1098 = vld [vmem:[#allocation3 + $0x210] sm:$0xff]
        %v1099 = vld [vmem:[#allocation3 + $0x218] sm:$0xff]
        %v1100 = vld [vmem:[#allocation3 + $0x220] sm:$0xff]
        %v1101 = vld [vmem:[#allocation3 + $0x228] sm:$0xff]
        %v1102 = vld [vmem:[#allocation3 + $0x230] sm:$0xff]
        %v1103 = vld [vmem:[#allocation3 + $0x238] sm:$0xff]
        %v1104 = vld [vmem:[#allocation3 + $0x240] sm:$0xff]
        %v1105 = vld [vmem:[#allocation3 + $0x248] sm:$0xff]
        %v1106 = vld [vmem:[#allocation3 + $0x250] sm:$0xff]
        %v1107 = vld [vmem:[#allocation3 + $0x258] sm:$0xff]
        %v1108 = vld [vmem:[#allocation3 + $0x260] sm:$0xff]
        %v1109 = vld [vmem:[#allocation3 + $0x268] sm:$0xff]
        %v1110 = vld [vmem:[#allocation3 + $0x270] sm:$0xff]
        %v1111 = vld [vmem:[#allocation3 + $0x278] sm:$0xff]
        %v1112 = vld [vmem:[#allocation3 + $0x280] sm:$0xff]
        %v1113 = vld [vmem:[#allocation3 + $0x288] sm:$0xff]
        %v1114 = vld [vmem:[#allocation3 + $0x290] sm:$0xff]
        %v1115 = vld [vmem:[#allocation3 + $0x298] sm:$0xff]
        %v1116 = vld [vmem:[#allocation3 + $0x2a0] sm:$0xff]
        %v1117 = vld [vmem:[#allocation3 + $0x2a8] sm:$0xff]
        %v1118 = vld [vmem:[#allocation3 + $0x2b0] sm:$0xff]
        %v1119 = vld [vmem:[#allocation3 + $0x2b8] sm:$0xff]
        %v1120 = vld [vmem:[#allocation3 + $0x2c0] sm:$0xff]
        %v1121 = vld [vmem:[#allocation3 + $0x2c8] sm:$0xff]
        %v1122 = vld [vmem:[#allocation3 + $0x2d0] sm:$0xff]
        %v1123 = vld [vmem:[#allocation3 + $0x2d8] sm:$0xff]
        %v1124 = vld [vmem:[#allocation3 + $0x2e0] sm:$0xff]
        %v1125 = vld [vmem:[#allocation3 + $0x2e8] sm:$0xff]
        %v1126 = vld [vmem:[#allocation3 + $0x2f0] sm:$0xff]
        %v1127 = vld [vmem:[#allocation3 + $0x2f8] sm:$0xff]
        %v1128 = vld [vmem:[%s7] sm:$0x3f]
        %v1130 = vperm.slane %v1128, 0
        %v1131 = vperm.slane %v1128, 1
        %v1132 = vperm.slane %v1128, 2
        %v1133 = vperm.slane %v1128, 3
        %v1134 = vperm.slane %v1128, 4
        %v1135 = vperm.slane %v1128, 5
        %v1238 = vunpack.c.l.b16 %v1032
        %v1239 = vunpack.c.h.b16 %v1032
        %v1240 = vunpack.c.l.b16 %v1033
        %v1241 = vunpack.c.h.b16 %v1033
        %v1242 = vunpack.c.l.b16 %v1034
        %v1243 = vunpack.c.h.b16 %v1034
        %v1244 = vunpack.c.l.b16 %v1035
        %v1245 = vunpack.c.h.b16 %v1035
        %v1246 = vunpack.c.l.b16 %v1036
        %v1247 = vunpack.c.h.b16 %v1036
        %v1248 = vunpack.c.l.b16 %v1037
        %v1249 = vunpack.c.h.b16 %v1037
        %v1250 = vunpack.c.l.b16 %v1038
        %v1251 = vunpack.c.h.b16 %v1038
        %v1252 = vunpack.c.l.b16 %v1039
        %v1253 = vunpack.c.h.b16 %v1039
        %v1254 = vunpack.c.l.b16 %v1040
        %v1255 = vunpack.c.h.b16 %v1040
        %v1256 = vunpack.c.l.b16 %v1041
        %v1257 = vunpack.c.h.b16 %v1041
        %v1258 = vunpack.c.l.b16 %v1042
        %v1259 = vunpack.c.h.b16 %v1042
        %v1260 = vunpack.c.l.b16 %v1043
        %v1261 = vunpack.c.h.b16 %v1043
        %v1262 = vunpack.c.l.b16 %v1044
        %v1263 = vunpack.c.h.b16 %v1044
        %v1264 = vunpack.c.l.b16 %v1045
        %v1265 = vunpack.c.h.b16 %v1045
        %v1266 = vunpack.c.l.b16 %v1046
        %v1267 = vunpack.c.h.b16 %v1046
        %v1268 = vunpack.c.l.b16 %v1047
        %v1269 = vunpack.c.h.b16 %v1047
        %v1270 = vunpack.c.l.b16 %v1048
        %v1271 = vunpack.c.h.b16 %v1048
        %v1272 = vunpack.c.l.b16 %v1049
        %v1273 = vunpack.c.h.b16 %v1049
        %v1274 = vunpack.c.l.b16 %v1050
        %v1275 = vunpack.c.h.b16 %v1050
        %v1276 = vunpack.c.l.b16 %v1051
        %v1277 = vunpack.c.h.b16 %v1051
        %v1278 = vunpack.c.l.b16 %v1052
        %v1279 = vunpack.c.h.b16 %v1052
        %v1280 = vunpack.c.l.b16 %v1053
        %v1281 = vunpack.c.h.b16 %v1053
        %v1282 = vunpack.c.l.b16 %v1054
        %v1283 = vunpack.c.h.b16 %v1054
        %v1284 = vunpack.c.l.b16 %v1055
        %v1285 = vunpack.c.h.b16 %v1055
        %v1286 = vunpack.c.l.b16 %v1056
        %v1287 = vunpack.c.h.b16 %v1056
        %v1288 = vunpack.c.l.b16 %v1057
        %v1289 = vunpack.c.h.b16 %v1057
        %v1290 = vunpack.c.l.b16 %v1058
        %v1291 = vunpack.c.h.b16 %v1058
        %v1292 = vunpack.c.l.b16 %v1059
        %v1293 = vunpack.c.h.b16 %v1059
        %v1294 = vunpack.c.l.b16 %v1060
        %v1295 = vunpack.c.h.b16 %v1060
        %v1296 = vunpack.c.l.b16 %v1061
        %v1297 = vunpack.c.h.b16 %v1061
        %v1298 = vunpack.c.l.b16 %v1062
        %v1299 = vunpack.c.h.b16 %v1062
        %v1300 = vunpack.c.l.b16 %v1063
        %v1301 = vunpack.c.h.b16 %v1063
        %v1302 = vunpack.c.l.b16 %v1064
        %v1303 = vunpack.c.h.b16 %v1064
        %v1304 = vunpack.c.l.b16 %v1065
        %v1305 = vunpack.c.h.b16 %v1065
        %v1306 = vunpack.c.l.b16 %v1066
        %v1307 = vunpack.c.h.b16 %v1066
        %v1308 = vunpack.c.l.b16 %v1067
        %v1309 = vunpack.c.h.b16 %v1067
        %v1310 = vunpack.c.l.b16 %v1068
        %v1311 = vunpack.c.h.b16 %v1068
        %v1312 = vunpack.c.l.b16 %v1069
        %v1313 = vunpack.c.h.b16 %v1069
        %v1314 = vunpack.c.l.b16 %v1070
        %v1315 = vunpack.c.h.b16 %v1070
        %v1316 = vunpack.c.l.b16 %v1071
        %v1317 = vunpack.c.h.b16 %v1071
        %v1318 = vunpack.c.l.b16 %v1072
        %v1319 = vunpack.c.h.b16 %v1072
        %v1320 = vunpack.c.l.b16 %v1073
        %v1321 = vunpack.c.h.b16 %v1073
        %v1322 = vunpack.c.l.b16 %v1074
        %v1323 = vunpack.c.h.b16 %v1074
        %v1324 = vunpack.c.l.b16 %v1075
        %v1325 = vunpack.c.h.b16 %v1075
        %v1326 = vunpack.c.l.b16 %v1076
        %v1327 = vunpack.c.h.b16 %v1076
        %v1328 = vunpack.c.l.b16 %v1077
        %v1329 = vunpack.c.h.b16 %v1077
        %v1330 = vunpack.c.l.b16 %v1078
        %v1331 = vunpack.c.h.b16 %v1078
        %v1332 = vunpack.c.l.b16 %v1079
        %v1333 = vunpack.c.h.b16 %v1079
        %v1334 = vunpack.c.l.b16 %v1080
        %v1335 = vunpack.c.h.b16 %v1080
        %v1336 = vunpack.c.l.b16 %v1081
        %v1337 = vunpack.c.h.b16 %v1081
        %v1338 = vunpack.c.l.b16 %v1082
        %v1339 = vunpack.c.h.b16 %v1082
        %v1340 = vunpack.c.l.b16 %v1083
        %v1341 = vunpack.c.h.b16 %v1083
        %v1342 = vunpack.c.l.b16 %v1084
        %v1343 = vunpack.c.h.b16 %v1084
        %v1344 = vunpack.c.l.b16 %v1085
        %v1345 = vunpack.c.h.b16 %v1085
        %v1346 = vunpack.c.l.b16 %v1086
        %v1347 = vunpack.c.h.b16 %v1086
        %v1348 = vunpack.c.l.b16 %v1087
        %v1349 = vunpack.c.h.b16 %v1087
        %v1350 = vunpack.c.l.b16 %v1088
        %v1351 = vunpack.c.h.b16 %v1088
        %v1352 = vunpack.c.l.b16 %v1089
        %v1353 = vunpack.c.h.b16 %v1089
        %v1354 = vunpack.c.l.b16 %v1090
        %v1355 = vunpack.c.h.b16 %v1090
        %v1356 = vunpack.c.l.b16 %v1091
        %v1357 = vunpack.c.h.b16 %v1091
        %v1358 = vunpack.c.l.b16 %v1092
        %v1359 = vunpack.c.h.b16 %v1092
        %v1360 = vunpack.c.l.b16 %v1093
        %v1361 = vunpack.c.h.b16 %v1093
        %v1362 = vunpack.c.l.b16 %v1094
        %v1363 = vunpack.c.h.b16 %v1094
        %v1364 = vunpack.c.l.b16 %v1095
        %v1365 = vunpack.c.h.b16 %v1095
        %v1366 = vunpack.c.l.b16 %v1096
        %v1367 = vunpack.c.h.b16 %v1096
        %v1368 = vunpack.c.l.b16 %v1097
        %v1369 = vunpack.c.h.b16 %v1097
        %v1370 = vunpack.c.l.b16 %v1098
        %v1371 = vunpack.c.h.b16 %v1098
        %v1372 = vunpack.c.l.b16 %v1099
        %v1373 = vunpack.c.h.b16 %v1099
        %v1374 = vunpack.c.l.b16 %v1100
        %v1375 = vunpack.c.h.b16 %v1100
        %v1376 = vunpack.c.l.b16 %v1101
        %v1377 = vunpack.c.h.b16 %v1101
        %v1378 = vunpack.c.l.b16 %v1102
        %v1379 = vunpack.c.h.b16 %v1102
        %v1380 = vunpack.c.l.b16 %v1103
        %v1381 = vunpack.c.h.b16 %v1103
        %v1382 = vunpack.c.l.b16 %v1104
        %v1383 = vunpack.c.h.b16 %v1104
        %v1384 = vunpack.c.l.b16 %v1105
        %v1385 = vunpack.c.h.b16 %v1105
        %v1386 = vunpack.c.l.b16 %v1106
        %v1387 = vunpack.c.h.b16 %v1106
        %v1388 = vunpack.c.l.b16 %v1107
        %v1389 = vunpack.c.h.b16 %v1107
        %v1390 = vunpack.c.l.b16 %v1108
        %v1391 = vunpack.c.h.b16 %v1108
        %v1392 = vunpack.c.l.b16 %v1109
        %v1393 = vunpack.c.h.b16 %v1109
        %v1394 = vunpack.c.l.b16 %v1110
        %v1395 = vunpack.c.h.b16 %v1110
        %v1396 = vunpack.c.l.b16 %v1111
        %v1397 = vunpack.c.h.b16 %v1111
        %v1398 = vunpack.c.l.b16 %v1112
        %v1399 = vunpack.c.h.b16 %v1112
        %v1400 = vunpack.c.l.b16 %v1113
        %v1401 = vunpack.c.h.b16 %v1113
        %v1402 = vunpack.c.l.b16 %v1114
        %v1403 = vunpack.c.h.b16 %v1114
        %v1404 = vunpack.c.l.b16 %v1115
        %v1405 = vunpack.c.h.b16 %v1115
        %v1406 = vunpack.c.l.b16 %v1116
        %v1407 = vunpack.c.h.b16 %v1116
        %v1408 = vunpack.c.l.b16 %v1117
        %v1409 = vunpack.c.h.b16 %v1117
        %v1410 = vunpack.c.l.b16 %v1118
        %v1411 = vunpack.c.h.b16 %v1118
        %v1412 = vunpack.c.l.b16 %v1119
        %v1413 = vunpack.c.h.b16 %v1119
        %v1414 = vunpack.c.l.b16 %v1120
        %v1415 = vunpack.c.h.b16 %v1120
        %v1416 = vunpack.c.l.b16 %v1121
        %v1417 = vunpack.c.h.b16 %v1121
        %v1418 = vunpack.c.l.b16 %v1122
        %v1419 = vunpack.c.h.b16 %v1122
        %v1420 = vunpack.c.l.b16 %v1123
        %v1421 = vunpack.c.h.b16 %v1123
        %v1422 = vunpack.c.l.b16 %v1124
        %v1423 = vunpack.c.h.b16 %v1124
        %v1424 = vunpack.c.l.b16 %v1125
        %v1425 = vunpack.c.h.b16 %v1125
        %v1426 = vunpack.c.l.b16 %v1126
        %v1427 = vunpack.c.h.b16 %v1126
        %v1428 = vunpack.c.l.b16 %v1127
        %v1429 = vunpack.c.h.b16 %v1127
        %v1430 = vpack.c.b16 %v1244, %v1238
        %v1431 = vpack.c.b16 %v1245, %v1239
        %v1432 = vpack.c.b16 %v1246, %v1240
        %v1433 = vpack.c.b16 %v1247, %v1241
        %v1434 = vpack.c.b16 %v1248, %v1242
        %v1435 = vpack.c.b16 %v1249, %v1243
        %v1436 = vpack.c.b16 %v1256, %v1250
        %v1437 = vpack.c.b16 %v1257, %v1251
        %v1438 = vpack.c.b16 %v1258, %v1252
        %v1439 = vpack.c.b16 %v1259, %v1253
        %v1440 = vpack.c.b16 %v1260, %v1254
        %v1441 = vpack.c.b16 %v1261, %v1255
        %v1442 = vpack.c.b16 %v1268, %v1262
        %v1443 = vpack.c.b16 %v1269, %v1263
        %v1444 = vpack.c.b16 %v1270, %v1264
        %v1445 = vpack.c.b16 %v1271, %v1265
        %v1446 = vpack.c.b16 %v1272, %v1266
        %v1447 = vpack.c.b16 %v1273, %v1267
        %v1448 = vpack.c.b16 %v1280, %v1274
        %v1449 = vpack.c.b16 %v1281, %v1275
        %v1450 = vpack.c.b16 %v1282, %v1276
        %v1451 = vpack.c.b16 %v1283, %v1277
        %v1452 = vpack.c.b16 %v1284, %v1278
        %v1453 = vpack.c.b16 %v1285, %v1279
        %v1454 = vpack.c.b16 %v1292, %v1286
        %v1455 = vpack.c.b16 %v1293, %v1287
        %v1456 = vpack.c.b16 %v1294, %v1288
        %v1457 = vpack.c.b16 %v1295, %v1289
        %v1458 = vpack.c.b16 %v1296, %v1290
        %v1459 = vpack.c.b16 %v1297, %v1291
        %v1460 = vpack.c.b16 %v1304, %v1298
        %v1461 = vpack.c.b16 %v1305, %v1299
        %v1462 = vpack.c.b16 %v1306, %v1300
        %v1463 = vpack.c.b16 %v1307, %v1301
        %v1464 = vpack.c.b16 %v1308, %v1302
        %v1465 = vpack.c.b16 %v1309, %v1303
        %v1466 = vpack.c.b16 %v1316, %v1310
        %v1467 = vpack.c.b16 %v1317, %v1311
        %v1468 = vpack.c.b16 %v1318, %v1312
        %v1469 = vpack.c.b16 %v1319, %v1313
        %v1470 = vpack.c.b16 %v1320, %v1314
        %v1471 = vpack.c.b16 %v1321, %v1315
        %v1472 = vpack.c.b16 %v1328, %v1322
        %v1473 = vpack.c.b16 %v1329, %v1323
        %v1474 = vpack.c.b16 %v1330, %v1324
        %v1475 = vpack.c.b16 %v1331, %v1325
        %v1476 = vpack.c.b16 %v1332, %v1326
        %v1477 = vpack.c.b16 %v1333, %v1327
        %v1478 = vpack.c.b16 %v1340, %v1334
        %v1479 = vpack.c.b16 %v1341, %v1335
        %v1480 = vpack.c.b16 %v1342, %v1336
        %v1481 = vpack.c.b16 %v1343, %v1337
        %v1482 = vpack.c.b16 %v1344, %v1338
        %v1483 = vpack.c.b16 %v1345, %v1339
        %v1484 = vpack.c.b16 %v1352, %v1346
        %v1485 = vpack.c.b16 %v1353, %v1347
        %v1486 = vpack.c.b16 %v1354, %v1348
        %v1487 = vpack.c.b16 %v1355, %v1349
        %v1488 = vpack.c.b16 %v1356, %v1350
        %v1489 = vpack.c.b16 %v1357, %v1351
        %v1490 = vpack.c.b16 %v1364, %v1358
        %v1491 = vpack.c.b16 %v1365, %v1359
        %v1492 = vpack.c.b16 %v1366, %v1360
        %v1493 = vpack.c.b16 %v1367, %v1361
        %v1494 = vpack.c.b16 %v1368, %v1362
        %v1495 = vpack.c.b16 %v1369, %v1363
        %v1496 = vpack.c.b16 %v1376, %v1370
        %v1497 = vpack.c.b16 %v1377, %v1371
        %v1498 = vpack.c.b16 %v1378, %v1372
        %v1499 = vpack.c.b16 %v1379, %v1373
        %v1500 = vpack.c.b16 %v1380, %v1374
        %v1501 = vpack.c.b16 %v1381, %v1375
        %v1502 = vpack.c.b16 %v1388, %v1382
        %v1503 = vpack.c.b16 %v1389, %v1383
        %v1504 = vpack.c.b16 %v1390, %v1384
        %v1505 = vpack.c.b16 %v1391, %v1385
        %v1506 = vpack.c.b16 %v1392, %v1386
        %v1507 = vpack.c.b16 %v1393, %v1387
        %v1508 = vpack.c.b16 %v1400, %v1394
        %v1509 = vpack.c.b16 %v1401, %v1395
        %v1510 = vpack.c.b16 %v1402, %v1396
        %v1511 = vpack.c.b16 %v1403, %v1397
        %v1512 = vpack.c.b16 %v1404, %v1398
        %v1513 = vpack.c.b16 %v1405, %v1399
        %v1514 = vpack.c.b16 %v1412, %v1406
        %v1515 = vpack.c.b16 %v1413, %v1407
        %v1516 = vpack.c.b16 %v1414, %v1408
        %v1517 = vpack.c.b16 %v1415, %v1409
        %v1518 = vpack.c.b16 %v1416, %v1410
        %v1519 = vpack.c.b16 %v1417, %v1411
        %v1520 = vpack.c.b16 %v1424, %v1418
        %v1521 = vpack.c.b16 %v1425, %v1419
        %v1522 = vpack.c.b16 %v1426, %v1420
        %v1523 = vpack.c.b16 %v1427, %v1421
        %v1524 = vpack.c.b16 %v1428, %v1422
        %v1525 = vpack.c.b16 %v1429, %v1423
        %1622 = vmatpush.bf16.msra.mxu0 %v1472
        %1623 = vmatpush.bf16.msra.mxu0 %v1466
        %1624 = vmatpush.bf16.msra.mxu0 %v1460
        %1625 = vmatpush.bf16.msra.mxu0 %v1454
        %1626 = vmatpush.bf16.msra.mxu0 %v1448
        %1627 = vmatpush.bf16.msra.mxu0 %v1442
        %1628 = vmatpush.bf16.msra.mxu0 %v1436
        %1629 = vmatpush.bf16.msra.mxu0 %v1430
        %1630 = vmatmul.bf16.gmra.mxu0 %v1028
        %v1631 = vpop.f32.mrf.mxu0
        %v1632 = vadd.f32 %v1130, %v1631
        %v1633 = vpop.f32.mrf.mxu0
        %v1634 = vadd.f32 %v1130, %v1633
        %1635 = vmatmul.bf16.gmra.mxu0 %v1030
        %v1636 = vpop.f32.mrf.mxu0
        %v1637 = vadd.f32 %v1130, %v1636
        %v1638 = vpop.f32.mrf.mxu0
        %v1639 = vadd.f32 %v1130, %v1638
        %1640 = vdwg.mxu0
        %1641 = vmatpush.bf16.msra.mxu0 %v1520
        %1642 = vmatpush.bf16.msra.mxu0 %v1514
        %1643 = vmatpush.bf16.msra.mxu0 %v1508
        %1644 = vmatpush.bf16.msra.mxu0 %v1502
        %1645 = vmatpush.bf16.msra.mxu0 %v1496
        %1646 = vmatpush.bf16.msra.mxu0 %v1490
        %1647 = vmatpush.bf16.msra.mxu0 %v1484
        %1648 = vmatpush.bf16.msra.mxu0 %v1478
        %1649 = vmatmul.bf16.gmra.mxu0 %v1029
        %v1650 = vpop.f32.mrf.mxu0
        %v1651 = vadd.f32 %v1632, %v1650
        %v1652 = vpop.f32.mrf.mxu0
        %v1653 = vadd.f32 %v1634, %v1652
        %1654 = vmatmul.bf16.gmra.mxu0 %v1031
        %v1655 = vpop.f32.mrf.mxu0
        %v1656 = vadd.f32 %v1637, %v1655
        %v1657 = vpop.f32.mrf.mxu0
        %v1658 = vadd.f32 %v1639, %v1657
        %1659 = vdwg.mxu0
        %1660 = vmatpush.bf16.msra.mxu0 %v1473
        %1661 = vmatpush.bf16.msra.mxu0 %v1467
        %1662 = vmatpush.bf16.msra.mxu0 %v1461
        %1663 = vmatpush.bf16.msra.mxu0 %v1455
        %1664 = vmatpush.bf16.msra.mxu0 %v1449
        %1665 = vmatpush.bf16.msra.mxu0 %v1443
        %1666 = vmatpush.bf16.msra.mxu0 %v1437
        %1667 = vmatpush.bf16.msra.mxu0 %v1431
        %1668 = vmatmul.bf16.gmra.mxu0 %v1028
        %v1669 = vpop.f32.mrf.mxu0
        %v1670 = vadd.f32 %v1131, %v1669
        %v1671 = vpop.f32.mrf.mxu0
        %v1672 = vadd.f32 %v1131, %v1671
        %1673 = vmatmul.bf16.gmra.mxu0 %v1030
        %v1674 = vpop.f32.mrf.mxu0
        %v1675 = vadd.f32 %v1131, %v1674
        %v1676 = vpop.f32.mrf.mxu0
        %v1677 = vadd.f32 %v1131, %v1676
        %1678 = vdwg.mxu0
        %1679 = vmatpush.bf16.msra.mxu0 %v1521
        %1680 = vmatpush.bf16.msra.mxu0 %v1515
        %1681 = vmatpush.bf16.msra.mxu0 %v1509
        %1682 = vmatpush.bf16.msra.mxu0 %v1503
        %1683 = vmatpush.bf16.msra.mxu0 %v1497
        %1684 = vmatpush.bf16.msra.mxu0 %v1491
        %1685 = vmatpush.bf16.msra.mxu0 %v1485
        %1686 = vmatpush.bf16.msra.mxu0 %v1479
        %1687 = vmatmul.bf16.gmra.mxu0 %v1029
        %v1688 = vpop.f32.mrf.mxu0
        %v1689 = vadd.f32 %v1670, %v1688
        %v1690 = vpop.f32.mrf.mxu0
        %v1691 = vadd.f32 %v1672, %v1690
        %1692 = vmatmul.bf16.gmra.mxu0 %v1031
        %v1693 = vpop.f32.mrf.mxu0
        %v1694 = vadd.f32 %v1675, %v1693
        %v1695 = vpop.f32.mrf.mxu0
        %v1696 = vadd.f32 %v1677, %v1695
        %1697 = vdwg.mxu0
        %1698 = vmatpush.bf16.msra.mxu0 %v1474
        %1699 = vmatpush.bf16.msra.mxu0 %v1468
        %1700 = vmatpush.bf16.msra.mxu0 %v1462
        %1701 = vmatpush.bf16.msra.mxu0 %v1456
        %1702 = vmatpush.bf16.msra.mxu0 %v1450
        %1703 = vmatpush.bf16.msra.mxu0 %v1444
        %1704 = vmatpush.bf16.msra.mxu0 %v1438
        %1705 = vmatpush.bf16.msra.mxu0 %v1432
        %1706 = vmatmul.bf16.gmra.mxu0 %v1028
        %v1707 = vpop.f32.mrf.mxu0
        %v1708 = vadd.f32 %v1132, %v1707
        %v1709 = vpop.f32.mrf.mxu0
        %v1710 = vadd.f32 %v1132, %v1709
        %1711 = vmatmul.bf16.gmra.mxu0 %v1030
        %v1712 = vpop.f32.mrf.mxu0
        %v1713 = vadd.f32 %v1132, %v1712
        %v1714 = vpop.f32.mrf.mxu0
        %v1715 = vadd.f32 %v1132, %v1714
        %1716 = vdwg.mxu0
        %1717 = vmatpush.bf16.msra.mxu0 %v1522
        %1718 = vmatpush.bf16.msra.mxu0 %v1516
        %1719 = vmatpush.bf16.msra.mxu0 %v1510
        %1720 = vmatpush.bf16.msra.mxu0 %v1504
        %1721 = vmatpush.bf16.msra.mxu0 %v1498
        %1722 = vmatpush.bf16.msra.mxu0 %v1492
        %1723 = vmatpush.bf16.msra.mxu0 %v1486
        %1724 = vmatpush.bf16.msra.mxu0 %v1480
        %1725 = vmatmul.bf16.gmra.mxu0 %v1029
        %v1726 = vpop.f32.mrf.mxu0
        %v1727 = vadd.f32 %v1708, %v1726
        %v1728 = vpop.f32.mrf.mxu0
        %v1729 = vadd.f32 %v1710, %v1728
        %1730 = vmatmul.bf16.gmra.mxu0 %v1031
        %v1731 = vpop.f32.mrf.mxu0
        %v1732 = vadd.f32 %v1713, %v1731
        %v1733 = vpop.f32.mrf.mxu0
        %v1734 = vadd.f32 %v1715, %v1733
        %1735 = vdwg.mxu0
        %1736 = vmatpush.bf16.msra.mxu0 %v1475
        %1737 = vmatpush.bf16.msra.mxu0 %v1469
        %1738 = vmatpush.bf16.msra.mxu0 %v1463
        %1739 = vmatpush.bf16.msra.mxu0 %v1457
        %1740 = vmatpush.bf16.msra.mxu0 %v1451
        %1741 = vmatpush.bf16.msra.mxu0 %v1445
        %1742 = vmatpush.bf16.msra.mxu0 %v1439
        %1743 = vmatpush.bf16.msra.mxu0 %v1433
        %1744 = vmatmul.bf16.gmra.mxu0 %v1028
        %v1745 = vpop.f32.mrf.mxu0
        %v1746 = vadd.f32 %v1133, %v1745
        %v1747 = vpop.f32.mrf.mxu0
        %v1748 = vadd.f32 %v1133, %v1747
        %1749 = vmatmul.bf16.gmra.mxu0 %v1030
        %v1750 = vpop.f32.mrf.mxu0
        %v1751 = vadd.f32 %v1133, %v1750
        %v1752 = vpop.f32.mrf.mxu0
        %v1753 = vadd.f32 %v1133, %v1752
        %1754 = vdwg.mxu0
        %1755 = vmatpush.bf16.msra.mxu0 %v1523
        %1756 = vmatpush.bf16.msra.mxu0 %v1517
        %1757 = vmatpush.bf16.msra.mxu0 %v1511
        %1758 = vmatpush.bf16.msra.mxu0 %v1505
        %1759 = vmatpush.bf16.msra.mxu0 %v1499
        %1760 = vmatpush.bf16.msra.mxu0 %v1493
        %1761 = vmatpush.bf16.msra.mxu0 %v1487
        %1762 = vmatpush.bf16.msra.mxu0 %v1481
        %1763 = vmatmul.bf16.gmra.mxu0 %v1029
        %v1764 = vpop.f32.mrf.mxu0
        %v1765 = vadd.f32 %v1746, %v1764
        %v1766 = vpop.f32.mrf.mxu0
        %v1767 = vadd.f32 %v1748, %v1766
        %1768 = vmatmul.bf16.gmra.mxu0 %v1031
        %v1769 = vpop.f32.mrf.mxu0
        %v1770 = vadd.f32 %v1751, %v1769
        %v1771 = vpop.f32.mrf.mxu0
        %v1772 = vadd.f32 %v1753, %v1771
        %1773 = vdwg.mxu0
        %1774 = vmatpush.bf16.msra.mxu0 %v1476
        %1775 = vmatpush.bf16.msra.mxu0 %v1470
        %1776 = vmatpush.bf16.msra.mxu0 %v1464
        %1777 = vmatpush.bf16.msra.mxu0 %v1458
        %1778 = vmatpush.bf16.msra.mxu0 %v1452
        %1779 = vmatpush.bf16.msra.mxu0 %v1446
        %1780 = vmatpush.bf16.msra.mxu0 %v1440
        %1781 = vmatpush.bf16.msra.mxu0 %v1434
        %1782 = vmatmul.bf16.gmra.mxu0 %v1028
        %v1783 = vpop.f32.mrf.mxu0
        %v1784 = vadd.f32 %v1134, %v1783
        %v1785 = vpop.f32.mrf.mxu0
        %v1786 = vadd.f32 %v1134, %v1785
        %1787 = vmatmul.bf16.gmra.mxu0 %v1030
        %v1788 = vpop.f32.mrf.mxu0
        %v1789 = vadd.f32 %v1134, %v1788
        %v1790 = vpop.f32.mrf.mxu0
        %v1791 = vadd.f32 %v1134, %v1790
        %1792 = vdwg.mxu0
        %1793 = vmatpush.bf16.msra.mxu0 %v1524
        %1794 = vmatpush.bf16.msra.mxu0 %v1518
        %1795 = vmatpush.bf16.msra.mxu0 %v1512
        %1796 = vmatpush.bf16.msra.mxu0 %v1506
        %1797 = vmatpush.bf16.msra.mxu0 %v1500
        %1798 = vmatpush.bf16.msra.mxu0 %v1494
        %1799 = vmatpush.bf16.msra.mxu0 %v1488
        %1800 = vmatpush.bf16.msra.mxu0 %v1482
        %1801 = vmatmul.bf16.gmra.mxu0 %v1029
        %v1802 = vpop.f32.mrf.mxu0
        %v1803 = vadd.f32 %v1784, %v1802
        %v1804 = vpop.f32.mrf.mxu0
        %v1805 = vadd.f32 %v1786, %v1804
        %1806 = vmatmul.bf16.gmra.mxu0 %v1031
        %v1807 = vpop.f32.mrf.mxu0
        %v1808 = vadd.f32 %v1789, %v1807
        %v1809 = vpop.f32.mrf.mxu0
        %v1810 = vadd.f32 %v1791, %v1809
        %1811 = vdwg.mxu0
        %1812 = vmatpush.bf16.msra.mxu0 %v1477
        %1813 = vmatpush.bf16.msra.mxu0 %v1471
        %1814 = vmatpush.bf16.msra.mxu0 %v1465
        %1815 = vmatpush.bf16.msra.mxu0 %v1459
        %1816 = vmatpush.bf16.msra.mxu0 %v1453
        %1817 = vmatpush.bf16.msra.mxu0 %v1447
        %1818 = vmatpush.bf16.msra.mxu0 %v1441
        %1819 = vmatpush.bf16.msra.mxu0 %v1435
        %1820 = vmatmul.bf16.gmra.mxu0 %v1028
        %v1821 = vpop.f32.mrf.mxu0
        %v1822 = vadd.f32 %v1135, %v1821
        %v1823 = vpop.f32.mrf.mxu0
        %v1824 = vadd.f32 %v1135, %v1823
        %1825 = vmatmul.bf16.gmra.mxu0 %v1030
        %v1826 = vpop.f32.mrf.mxu0
        %v1827 = vadd.f32 %v1135, %v1826
        %v1828 = vpop.f32.mrf.mxu0
        %v1829 = vadd.f32 %v1135, %v1828
        %1830 = vdwg.mxu0
        %1831 = vmatpush.bf16.msra.mxu0 %v1525
        %1832 = vmatpush.bf16.msra.mxu0 %v1519
        %1833 = vmatpush.bf16.msra.mxu0 %v1513
        %1834 = vmatpush.bf16.msra.mxu0 %v1507
        %1835 = vmatpush.bf16.msra.mxu0 %v1501
        %1836 = vmatpush.bf16.msra.mxu0 %v1495
        %1837 = vmatpush.bf16.msra.mxu0 %v1489
        %1838 = vmatpush.bf16.msra.mxu0 %v1483
        %1839 = vmatmul.bf16.gmra.mxu0 %v1029
        %v1840 = vpop.f32.mrf.mxu0
        %v1841 = vadd.f32 %v1822, %v1840
        %v1842 = vpop.f32.mrf.mxu0
        %v1843 = vadd.f32 %v1824, %v1842
        %1844 = vmatmul.bf16.gmra.mxu0 %v1031
        %v1845 = vpop.f32.mrf.mxu0
        %v1846 = vadd.f32 %v1827, %v1845
        %v1847 = vpop.f32.mrf.mxu0
        %v1848 = vadd.f32 %v1829, %v1847
        %1849 = vdwg.mxu0
        %v1850 = vpack.c.bf16 %v1651, %v1651
        %v1851 = vpack.c.bf16 %v1653, %v1653
        %v1852 = vpack.c.bf16 %v1656, %v1656
        %v1853 = vpack.c.bf16 %v1658, %v1658
        %v1854 = vpack.c.bf16 %v1727, %v1727
        %v1855 = vpack.c.bf16 %v1729, %v1729
        %v1856 = vpack.c.bf16 %v1732, %v1732
        %v1857 = vpack.c.bf16 %v1734, %v1734
        %v1858 = vpack.c.bf16 %v1803, %v1803
        %v1859 = vpack.c.bf16 %v1805, %v1805
        %v1860 = vpack.c.bf16 %v1808, %v1808
        %v1861 = vpack.c.bf16 %v1810, %v1810
        %v1863 = vsel %vm922, %v1850, 0
        %v1866 = vsel %vm922, %v1854, 0
        %1868 = vmatpush.bf16.xpose.msra.mxu0 0
        %1869 = vmatpush.bf16.xpose.msra.mxu0 0
        %1870 = vmatpush.bf16.xpose.msra.mxu0 0
        %1871 = vmatpush.bf16.xpose.msra.mxu0 0
        %1872 = vmatpush.bf16.xpose.msra.mxu0 0
        %1873 = vmatpush.bf16.xpose.msra.mxu0 0
        %1874 = vmatpush.bf16.xpose.msra.mxu0 0
        %1875 = vmatpush.bf16.xpose.msra.mxu0 %v1866
        %1876 = vmatmul.bf16.gmra.mxu0 %v1863
        %v1877 = vpop.f32.mrf.mxu0
        %v1878 = vadd.f32 0.0, %v1877
        %v1879 = vpop.f32.mrf.mxu0
        %1880 = vdwg.mxu0
        %v1882 = vsel %vm922, %v1851, 0
        %v1885 = vsel %vm922, %v1855, 0
        %1887 = vmatpush.bf16.xpose.msra.mxu0 0
        %1888 = vmatpush.bf16.xpose.msra.mxu0 0
        %1889 = vmatpush.bf16.xpose.msra.mxu0 0
        %1890 = vmatpush.bf16.xpose.msra.mxu0 0
        %1891 = vmatpush.bf16.xpose.msra.mxu0 0
        %1892 = vmatpush.bf16.xpose.msra.mxu0 0
        %1893 = vmatpush.bf16.xpose.msra.mxu0 0
        %1894 = vmatpush.bf16.xpose.msra.mxu0 %v1885
        %1895 = vmatmul.bf16.gmra.mxu0 %v1882
        %v1896 = vpop.f32.mrf.mxu0
        %v1897 = vadd.f32 0.0, %v1896
        %v1898 = vpop.f32.mrf.mxu0
        %1899 = vdwg.mxu0
        %v1901 = vsel %vm922, %v1852, 0
        %v1904 = vsel %vm922, %v1856, 0
        %1906 = vmatpush.bf16.xpose.msra.mxu0 0
        %1907 = vmatpush.bf16.xpose.msra.mxu0 0
        %1908 = vmatpush.bf16.xpose.msra.mxu0 0
        %1909 = vmatpush.bf16.xpose.msra.mxu0 0
        %1910 = vmatpush.bf16.xpose.msra.mxu0 0
        %1911 = vmatpush.bf16.xpose.msra.mxu0 0
        %1912 = vmatpush.bf16.xpose.msra.mxu0 0
        %1913 = vmatpush.bf16.xpose.msra.mxu0 %v1904
        %1914 = vmatmul.bf16.gmra.mxu0 %v1901
        %v1915 = vpop.f32.mrf.mxu0
        %v1916 = vadd.f32 0.0, %v1915
        %v1917 = vpop.f32.mrf.mxu0
        %1918 = vdwg.mxu0
        %v1920 = vsel %vm922, %v1853, 0
        %v1923 = vsel %vm922, %v1857, 0
        %1925 = vmatpush.bf16.xpose.msra.mxu0 0
        %1926 = vmatpush.bf16.xpose.msra.mxu0 0
        %1927 = vmatpush.bf16.xpose.msra.mxu0 0
        %1928 = vmatpush.bf16.xpose.msra.mxu0 0
        %1929 = vmatpush.bf16.xpose.msra.mxu0 0
        %1930 = vmatpush.bf16.xpose.msra.mxu0 0
        %1931 = vmatpush.bf16.xpose.msra.mxu0 0
        %1932 = vmatpush.bf16.xpose.msra.mxu0 %v1923
        %1933 = vmatmul.bf16.gmra.mxu0 %v1920
        %v1934 = vpop.f32.mrf.mxu0
        %v1935 = vadd.f32 0.0, %v1934
        %v1936 = vpop.f32.mrf.mxu0
        %1937 = vdwg.mxu0
        %v1938 = vmul.f32 %v1878, 0.125
        %v1939 = vmul.f32 %v1897, 0.125
        %v1940 = vmul.f32 %v1916, 0.125
        %v1941 = vmul.f32 %v1935, 0.125
        %v1942 = vsel %vm1024, %v1938, -1000000.0
        %v1943 = vsel %vm1025, %v1939, -1000000.0
        %v1944 = vsel %vm1026, %v1940, -1000000.0
        %v1945 = vsel %vm1027, %v1941, -1000000.0
        %vm1946 = vcmask 64512
        %v1947 = vsel %vm1946, %v1942, -inf
        %1948 = vmax.xlane.f32.xlu0 %v1947
        %v1949 = vpop.xlane.xlu0 %1948
        %v1950 = vsel %vm1946, %v1943, -inf
        %1951 = vmax.xlane.f32.xlu0 %v1950
        %v1952 = vpop.xlane.xlu0 %1951
        %v1953 = vsel %vm1946, %v1944, -inf
        %1954 = vmax.xlane.f32.xlu0 %v1953
        %v1955 = vpop.xlane.xlu0 %1954
        %v1956 = vsel %vm1946, %v1945, -inf
        %1957 = vmax.xlane.f32.xlu0 %v1956
        %v1958 = vpop.xlane.xlu0 %1957
        %v1959 = vsub.f32 %v1942, %v1949
        %v1960 = vsub.f32 %v1943, %v1952
        %v1961 = vsub.f32 %v1944, %v1955
        %v1962 = vsub.f32 %v1945, %v1958
        %v1963 = vmul.f32 %v1959, 1.442695
        %v1964 = vpow.pop %v1963
        %v1965 = vmul.f32 %v1960, 1.442695
        %v1966 = vpow.pop %v1965
        %v1967 = vmul.f32 %v1961, 1.442695
        %v1968 = vpow.pop %v1967
        %v1969 = vmul.f32 %v1962, 1.442695
        %v1970 = vpow.pop %v1969
        %v1971 = vsel %vm1946, %v1964, 0.0
        %1972 = vadd.xlane.f32.xlu0 %v1971
        %v1973 = vpop.xlane.xlu0 %1972
        %v1974 = vsel %vm1946, %v1966, 0.0
        %1975 = vadd.xlane.f32.xlu0 %v1974
        %v1976 = vpop.xlane.xlu0 %1975
        %v1977 = vsel %vm1946, %v1968, 0.0
        %1978 = vadd.xlane.f32.xlu0 %v1977
        %v1979 = vpop.xlane.xlu0 %1978
        %v1980 = vsel %vm1946, %v1970, 0.0
        %1981 = vadd.xlane.f32.xlu0 %v1980
        %v1982 = vpop.xlane.xlu0 %1981
        %v1983 = vrcp.pop %v1973
        %v1984 = vrcp.pop %v1976
        %v1985 = vrcp.pop %v1979
        %v1986 = vrcp.pop %v1982
        %v1987 = vmul.f32 %v1964, %v1983
        %v1988 = vmul.f32 %v1966, %v1984
        %v1989 = vmul.f32 %v1968, %v1985
        %v1990 = vmul.f32 %v1970, %v1986
        %v1991 = vpack.c.bf16 %v1987, %v1987
        %v1992 = vpack.c.bf16 %v1988, %v1988
        %v1993 = vpack.c.bf16 %v1989, %v1989
        %v1994 = vpack.c.bf16 %v1990, %v1990
        %v1996 = vsel %vm1946, %v1991, 0
        %vm1998 = vcmask 1043456
        %v2000 = vsel %vm1998, %v1858, 0
        %2002 = vmatpush.bf16.msra.mxu0 0
        %2003 = vmatpush.bf16.msra.mxu0 0
        %2004 = vmatpush.bf16.msra.mxu0 0
        %2005 = vmatpush.bf16.msra.mxu0 0
        %2006 = vmatpush.bf16.msra.mxu0 0
        %2007 = vmatpush.bf16.msra.mxu0 0
        %2008 = vmatpush.bf16.msra.mxu0 0
        %2009 = vmatpush.bf16.msra.mxu0 %v2000
        %2010 = vmatmul.bf16.gmra.mxu0 %v1996
        %v2011 = vpop.f32.mrf.mxu0
        %v2012 = vadd.f32 0.0, %v2011
        %v2013 = vpop.f32.mrf.mxu0
        %2014 = vdwg.mxu0
        %v2016 = vsel %vm1946, %v1992, 0
        %v2019 = vsel %vm1998, %v1859, 0
        %2021 = vmatpush.bf16.msra.mxu0 0
        %2022 = vmatpush.bf16.msra.mxu0 0
        %2023 = vmatpush.bf16.msra.mxu0 0
        %2024 = vmatpush.bf16.msra.mxu0 0
        %2025 = vmatpush.bf16.msra.mxu0 0
        %2026 = vmatpush.bf16.msra.mxu0 0
        %2027 = vmatpush.bf16.msra.mxu0 0
        %2028 = vmatpush.bf16.msra.mxu0 %v2019
        %2029 = vmatmul.bf16.gmra.mxu0 %v2016
        %v2030 = vpop.f32.mrf.mxu0
        %v2031 = vadd.f32 0.0, %v2030
        %v2032 = vpop.f32.mrf.mxu0
        %2033 = vdwg.mxu0
        %v2035 = vsel %vm1946, %v1993, 0
        %v2038 = vsel %vm1998, %v1860, 0
        %2040 = vmatpush.bf16.msra.mxu0 0
        %2041 = vmatpush.bf16.msra.mxu0 0
        %2042 = vmatpush.bf16.msra.mxu0 0
        %2043 = vmatpush.bf16.msra.mxu0 0
        %2044 = vmatpush.bf16.msra.mxu0 0
        %2045 = vmatpush.bf16.msra.mxu0 0
        %2046 = vmatpush.bf16.msra.mxu0 0
        %2047 = vmatpush.bf16.msra.mxu0 %v2038
        %2048 = vmatmul.bf16.gmra.mxu0 %v2035
        %v2049 = vpop.f32.mrf.mxu0
        %v2050 = vadd.f32 0.0, %v2049
        %v2051 = vpop.f32.mrf.mxu0
        %2052 = vdwg.mxu0
        %v2054 = vsel %vm1946, %v1994, 0
        %v2057 = vsel %vm1998, %v1861, 0
        %2059 = vmatpush.bf16.msra.mxu0 0
        %2060 = vmatpush.bf16.msra.mxu0 0
        %2061 = vmatpush.bf16.msra.mxu0 0
        %2062 = vmatpush.bf16.msra.mxu0 0
        %2063 = vmatpush.bf16.msra.mxu0 0
        %2064 = vmatpush.bf16.msra.mxu0 0
        %2065 = vmatpush.bf16.msra.mxu0 0
        %2066 = vmatpush.bf16.msra.mxu0 %v2057
        %2067 = vmatmul.bf16.gmra.mxu0 %v2054
        %v2068 = vpop.f32.mrf.mxu0
        %v2069 = vadd.f32 0.0, %v2068
        %v2070 = vpop.f32.mrf.mxu0
        %2071 = vdwg.mxu0
        %2072 = vst.msk [vmem:[#allocation2] sm:$0xff] %vm922, %v2012
        %2073 = vst.msk [vmem:[#allocation2 + $0x10] sm:$0xff] %vm922, %v2031
        %2074 = vst.msk [vmem:[#allocation2 + $0x20] sm:$0xff] %vm922, %v2050
        %2075 = vst.msk [vmem:[#allocation2 + $0x30] sm:$0xff] %vm922, %v2069
        %v2077 = vunpack.c.l.b16 %v1850
        %v2078 = vpack.c.b16 %v2077, %v2077
        %2079 = vrot.lane.b32.xlu0 %v2078, 64
        %v2080 = vpop.permute.xlu0 %2079
        %v2082 = vunpack.c.l.b16 %v1854
        %v2083 = vpack.c.b16 %v2082, %v2082
        %2084 = vrot.lane.b32.xlu0 %v2083, 64
        %v2085 = vpop.permute.xlu0 %2084
        %v2087 = vsel %vm922, %v2080, 0
        %v2090 = vsel %vm922, %v2085, 0
        %2092 = vmatpush.bf16.xpose.msra.mxu0 0
        %2093 = vmatpush.bf16.xpose.msra.mxu0 0
        %2094 = vmatpush.bf16.xpose.msra.mxu0 0
        %2095 = vmatpush.bf16.xpose.msra.mxu0 0
        %2096 = vmatpush.bf16.xpose.msra.mxu0 0
        %2097 = vmatpush.bf16.xpose.msra.mxu0 0
        %2098 = vmatpush.bf16.xpose.msra.mxu0 0
        %2099 = vmatpush.bf16.xpose.msra.mxu0 %v2090
        %2100 = vmatmul.bf16.gmra.mxu0 %v2087
        %v2101 = vpop.f32.mrf.mxu0
        %v2102 = vadd.f32 0.0, %v2101
        %v2103 = vpop.f32.mrf.mxu0
        %2104 = vdwg.mxu0
        %v2106 = vunpack.c.l.b16 %v1851
        %v2107 = vpack.c.b16 %v2106, %v2106
        %2108 = vrot.lane.b32.xlu0 %v2107, 64
        %v2109 = vpop.permute.xlu0 %2108
        %v2111 = vunpack.c.l.b16 %v1855
        %v2112 = vpack.c.b16 %v2111, %v2111
        %2113 = vrot.lane.b32.xlu0 %v2112, 64
        %v2114 = vpop.permute.xlu0 %2113
        %v2116 = vsel %vm922, %v2109, 0
        %v2119 = vsel %vm922, %v2114, 0
        %2121 = vmatpush.bf16.xpose.msra.mxu0 0
        %2122 = vmatpush.bf16.xpose.msra.mxu0 0
        %2123 = vmatpush.bf16.xpose.msra.mxu0 0
        %2124 = vmatpush.bf16.xpose.msra.mxu0 0
        %2125 = vmatpush.bf16.xpose.msra.mxu0 0
        %2126 = vmatpush.bf16.xpose.msra.mxu0 0
        %2127 = vmatpush.bf16.xpose.msra.mxu0 0
        %2128 = vmatpush.bf16.xpose.msra.mxu0 %v2119
        %2129 = vmatmul.bf16.gmra.mxu0 %v2116
        %v2130 = vpop.f32.mrf.mxu0
        %v2131 = vadd.f32 0.0, %v2130
        %v2132 = vpop.f32.mrf.mxu0
        %2133 = vdwg.mxu0
        %v2135 = vunpack.c.l.b16 %v1852
        %v2136 = vpack.c.b16 %v2135, %v2135
        %2137 = vrot.lane.b32.xlu0 %v2136, 64
        %v2138 = vpop.permute.xlu0 %2137
        %v2140 = vunpack.c.l.b16 %v1856
        %v2141 = vpack.c.b16 %v2140, %v2140
        %2142 = vrot.lane.b32.xlu0 %v2141, 64
        %v2143 = vpop.permute.xlu0 %2142
        %v2145 = vsel %vm922, %v2138, 0
        %v2148 = vsel %vm922, %v2143, 0
        %2150 = vmatpush.bf16.xpose.msra.mxu0 0
        %2151 = vmatpush.bf16.xpose.msra.mxu0 0
        %2152 = vmatpush.bf16.xpose.msra.mxu0 0
        %2153 = vmatpush.bf16.xpose.msra.mxu0 0
        %2154 = vmatpush.bf16.xpose.msra.mxu0 0
        %2155 = vmatpush.bf16.xpose.msra.mxu0 0
        %2156 = vmatpush.bf16.xpose.msra.mxu0 0
        %2157 = vmatpush.bf16.xpose.msra.mxu0 %v2148
        %2158 = vmatmul.bf16.gmra.mxu0 %v2145
        %v2159 = vpop.f32.mrf.mxu0
        %v2160 = vadd.f32 0.0, %v2159
        %v2161 = vpop.f32.mrf.mxu0
        %2162 = vdwg.mxu0
        %v2164 = vunpack.c.l.b16 %v1853
        %v2165 = vpack.c.b16 %v2164, %v2164
        %2166 = vrot.lane.b32.xlu0 %v2165, 64
        %v2167 = vpop.permute.xlu0 %2166
        %v2169 = vunpack.c.l.b16 %v1857
        %v2170 = vpack.c.b16 %v2169, %v2169
        %2171 = vrot.lane.b32.xlu0 %v2170, 64
        %v2172 = vpop.permute.xlu0 %2171
        %v2174 = vsel %vm922, %v2167, 0
        %v2177 = vsel %vm922, %v2172, 0
        %2179 = vmatpush.bf16.xpose.msra.mxu0 0
        %2180 = vmatpush.bf16.xpose.msra.mxu0 0
        %2181 = vmatpush.bf16.xpose.msra.mxu0 0
        %2182 = vmatpush.bf16.xpose.msra.mxu0 0
        %2183 = vmatpush.bf16.xpose.msra.mxu0 0
        %2184 = vmatpush.bf16.xpose.msra.mxu0 0
        %2185 = vmatpush.bf16.xpose.msra.mxu0 0
        %2186 = vmatpush.bf16.xpose.msra.mxu0 %v2177
        %2187 = vmatmul.bf16.gmra.mxu0 %v2174
        %v2188 = vpop.f32.mrf.mxu0
        %v2189 = vadd.f32 0.0, %v2188
        %v2190 = vpop.f32.mrf.mxu0
        %2191 = vdwg.mxu0
        %v2192 = vmul.f32 %v2102, 0.125
        %v2193 = vmul.f32 %v2131, 0.125
        %v2194 = vmul.f32 %v2160, 0.125
        %v2195 = vmul.f32 %v2189, 0.125
        %v2196 = vsel %vm1024, %v2192, -1000000.0
        %v2197 = vsel %vm1025, %v2193, -1000000.0
        %v2198 = vsel %vm1026, %v2194, -1000000.0
        %v2199 = vsel %vm1027, %v2195, -1000000.0
        %v2200 = vsel %vm1946, %v2196, -inf
        %2201 = vmax.xlane.f32.xlu0 %v2200
        %v2202 = vpop.xlane.xlu0 %2201
        %v2203 = vsel %vm1946, %v2197, -inf
        %2204 = vmax.xlane.f32.xlu0 %v2203
        %v2205 = vpop.xlane.xlu0 %2204
        %v2206 = vsel %vm1946, %v2198, -inf
        %2207 = vmax.xlane.f32.xlu0 %v2206
        %v2208 = vpop.xlane.xlu0 %2207
        %v2209 = vsel %vm1946, %v2199, -inf
        %2210 = vmax.xlane.f32.xlu0 %v2209
        %v2211 = vpop.xlane.xlu0 %2210
        %v2212 = vsub.f32 %v2196, %v2202
        %v2213 = vsub.f32 %v2197, %v2205
        %v2214 = vsub.f32 %v2198, %v2208
        %v2215 = vsub.f32 %v2199, %v2211
        %v2216 = vmul.f32 %v2212, 1.442695
        %v2217 = vpow.pop %v2216
        %v2218 = vmul.f32 %v2213, 1.442695
        %v2219 = vpow.pop %v2218
        %v2220 = vmul.f32 %v2214, 1.442695
        %v2221 = vpow.pop %v2220
        %v2222 = vmul.f32 %v2215, 1.442695
        %v2223 = vpow.pop %v2222
        %v2224 = vsel %vm1946, %v2217, 0.0
        %2225 = vadd.xlane.f32.xlu0 %v2224
        %v2226 = vpop.xlane.xlu0 %2225
        %v2227 = vsel %vm1946, %v2219, 0.0
        %2228 = vadd.xlane.f32.xlu0 %v2227
        %v2229 = vpop.xlane.xlu0 %2228
        %v2230 = vsel %vm1946, %v2221, 0.0
        %2231 = vadd.xlane.f32.xlu0 %v2230
        %v2232 = vpop.xlane.xlu0 %2231
        %v2233 = vsel %vm1946, %v2223, 0.0
        %2234 = vadd.xlane.f32.xlu0 %v2233
        %v2235 = vpop.xlane.xlu0 %2234
        %v2236 = vrcp.pop %v2226
        %v2237 = vrcp.pop %v2229
        %v2238 = vrcp.pop %v2232
        %v2239 = vrcp.pop %v2235
        %v2240 = vmul.f32 %v2217, %v2236
        %v2241 = vmul.f32 %v2219, %v2237
        %v2242 = vmul.f32 %v2221, %v2238
        %v2243 = vmul.f32 %v2223, %v2239
        %v2244 = vpack.c.bf16 %v2240, %v2240
        %v2245 = vpack.c.bf16 %v2241, %v2241
        %v2246 = vpack.c.bf16 %v2242, %v2242
        %v2247 = vpack.c.bf16 %v2243, %v2243
        %v2249 = vunpack.c.l.b16 %v1858
        %v2250 = vpack.c.b16 %v2249, %v2249
        %2251 = vrot.lane.b32.xlu0 %v2250, 64
        %v2252 = vpop.permute.xlu0 %2251
        %v2254 = vsel %vm1946, %v2244, 0
        %v2257 = vsel %vm1998, %v2252, 0
        %2259 = vmatpush.bf16.msra.mxu0 0
        %2260 = vmatpush.bf16.msra.mxu0 0
        %2261 = vmatpush.bf16.msra.mxu0 0
        %2262 = vmatpush.bf16.msra.mxu0 0
        %2263 = vmatpush.bf16.msra.mxu0 0
        %2264 = vmatpush.bf16.msra.mxu0 0
        %2265 = vmatpush.bf16.msra.mxu0 0
        %2266 = vmatpush.bf16.msra.mxu0 %v2257
        %2267 = vmatmul.bf16.gmra.mxu0 %v2254
        %v2268 = vpop.f32.mrf.mxu0
        %v2269 = vadd.f32 0.0, %v2268
        %v2270 = vpop.f32.mrf.mxu0
        %2271 = vdwg.mxu0
        %v2273 = vunpack.c.l.b16 %v1859
        %v2274 = vpack.c.b16 %v2273, %v2273
        %2275 = vrot.lane.b32.xlu0 %v2274, 64
        %v2276 = vpop.permute.xlu0 %2275
        %v2278 = vsel %vm1946, %v2245, 0
        %v2281 = vsel %vm1998, %v2276, 0
        %2283 = vmatpush.bf16.msra.mxu0 0
        %2284 = vmatpush.bf16.msra.mxu0 0
        %2285 = vmatpush.bf16.msra.mxu0 0
        %2286 = vmatpush.bf16.msra.mxu0 0
        %2287 = vmatpush.bf16.msra.mxu0 0
        %2288 = vmatpush.bf16.msra.mxu0 0
        %2289 = vmatpush.bf16.msra.mxu0 0
        %2290 = vmatpush.bf16.msra.mxu0 %v2281
        %2291 = vmatmul.bf16.gmra.mxu0 %v2278
        %v2292 = vpop.f32.mrf.mxu0
        %v2293 = vadd.f32 0.0, %v2292
        %v2294 = vpop.f32.mrf.mxu0
        %2295 = vdwg.mxu0
        %v2297 = vunpack.c.l.b16 %v1860
        %v2298 = vpack.c.b16 %v2297, %v2297
        %2299 = vrot.lane.b32.xlu0 %v2298, 64
        %v2300 = vpop.permute.xlu0 %2299
        %v2302 = vsel %vm1946, %v2246, 0
        %v2305 = vsel %vm1998, %v2300, 0
        %2307 = vmatpush.bf16.msra.mxu0 0
        %2308 = vmatpush.bf16.msra.mxu0 0
        %2309 = vmatpush.bf16.msra.mxu0 0
        %2310 = vmatpush.bf16.msra.mxu0 0
        %2311 = vmatpush.bf16.msra.mxu0 0
        %2312 = vmatpush.bf16.msra.mxu0 0
        %2313 = vmatpush.bf16.msra.mxu0 0
        %2314 = vmatpush.bf16.msra.mxu0 %v2305
        %2315 = vmatmul.bf16.gmra.mxu0 %v2302
        %v2316 = vpop.f32.mrf.mxu0
        %v2317 = vadd.f32 0.0, %v2316
        %v2318 = vpop.f32.mrf.mxu0
        %2319 = vdwg.mxu0
        %v2321 = vunpack.c.l.b16 %v1861
        %v2322 = vpack.c.b16 %v2321, %v2321
        %2323 = vrot.lane.b32.xlu0 %v2322, 64
        %v2324 = vpop.permute.xlu0 %2323
        %v2326 = vsel %vm1946, %v2247, 0
        %v2329 = vsel %vm1998, %v2324, 0
        %2331 = vmatpush.bf16.msra.mxu0 0
        %2332 = vmatpush.bf16.msra.mxu0 0
        %2333 = vmatpush.bf16.msra.mxu0 0
        %2334 = vmatpush.bf16.msra.mxu0 0
        %2335 = vmatpush.bf16.msra.mxu0 0
        %2336 = vmatpush.bf16.msra.mxu0 0
        %2337 = vmatpush.bf16.msra.mxu0 0
        %2338 = vmatpush.bf16.msra.mxu0 %v2329
        %2339 = vmatmul.bf16.gmra.mxu0 %v2326
        %v2340 = vpop.f32.mrf.mxu0
        %v2341 = vadd.f32 0.0, %v2340
        %v2342 = vpop.f32.mrf.mxu0
        %2343 = vdwg.mxu0
        %2348 = vrot.lane.b32.xlu0 %v2269, 64
        %v2349 = vpop.permute.xlu0 %2348
        %2350 = vrot.lane.b32.xlu0 %v2293, 64
        %v2351 = vpop.permute.xlu0 %2350
        %2352 = vrot.lane.b32.xlu0 %v2317, 64
        %v2353 = vpop.permute.xlu0 %2352
        %2354 = vrot.lane.b32.xlu0 %v2341, 64
        %v2355 = vpop.permute.xlu0 %2354
        %vm2360 = vcmask 1048064
        %2361 = vst.msk [vmem:[#allocation2] sm:$0xff] %vm2360, %v2349
        %2362 = vst.msk [vmem:[#allocation2 + $0x10] sm:$0xff] %vm2360, %v2351
        %2363 = vst.msk [vmem:[#allocation2 + $0x20] sm:$0xff] %vm2360, %v2353
        %2364 = vst.msk [vmem:[#allocation2 + $0x30] sm:$0xff] %vm2360, %v2355
        %v2365 = vpack.c.bf16 %v1689, %v1689
        %v2366 = vpack.c.bf16 %v1691, %v1691
        %v2367 = vpack.c.bf16 %v1694, %v1694
        %v2368 = vpack.c.bf16 %v1696, %v1696
        %v2369 = vpack.c.bf16 %v1765, %v1765
        %v2370 = vpack.c.bf16 %v1767, %v1767
        %v2371 = vpack.c.bf16 %v1770, %v1770
        %v2372 = vpack.c.bf16 %v1772, %v1772
        %v2373 = vpack.c.bf16 %v1841, %v1841
        %v2374 = vpack.c.bf16 %v1843, %v1843
        %v2375 = vpack.c.bf16 %v1846, %v1846
        %v2376 = vpack.c.bf16 %v1848, %v1848
        %v2378 = vsel %vm922, %v2365, 0
        %v2381 = vsel %vm922, %v2369, 0
        %2383 = vmatpush.bf16.xpose.msra.mxu0 0
        %2384 = vmatpush.bf16.xpose.msra.mxu0 0
        %2385 = vmatpush.bf16.xpose.msra.mxu0 0
        %2386 = vmatpush.bf16.xpose.msra.mxu0 0
        %2387 = vmatpush.bf16.xpose.msra.mxu0 0
        %2388 = vmatpush.bf16.xpose.msra.mxu0 0
        %2389 = vmatpush.bf16.xpose.msra.mxu0 0
        %2390 = vmatpush.bf16.xpose.msra.mxu0 %v2381
        %2391 = vmatmul.bf16.gmra.mxu0 %v2378
        %v2392 = vpop.f32.mrf.mxu0
        %v2393 = vadd.f32 0.0, %v2392
        %v2394 = vpop.f32.mrf.mxu0
        %2395 = vdwg.mxu0
        %v2397 = vsel %vm922, %v2366, 0
        %v2400 = vsel %vm922, %v2370, 0
        %2402 = vmatpush.bf16.xpose.msra.mxu0 0
        %2403 = vmatpush.bf16.xpose.msra.mxu0 0
        %2404 = vmatpush.bf16.xpose.msra.mxu0 0
        %2405 = vmatpush.bf16.xpose.msra.mxu0 0
        %2406 = vmatpush.bf16.xpose.msra.mxu0 0
        %2407 = vmatpush.bf16.xpose.msra.mxu0 0
        %2408 = vmatpush.bf16.xpose.msra.mxu0 0
        %2409 = vmatpush.bf16.xpose.msra.mxu0 %v2400
        %2410 = vmatmul.bf16.gmra.mxu0 %v2397
        %v2411 = vpop.f32.mrf.mxu0
        %v2412 = vadd.f32 0.0, %v2411
        %v2413 = vpop.f32.mrf.mxu0
        %2414 = vdwg.mxu0
        %v2416 = vsel %vm922, %v2367, 0
        %v2419 = vsel %vm922, %v2371, 0
        %2421 = vmatpush.bf16.xpose.msra.mxu0 0
        %2422 = vmatpush.bf16.xpose.msra.mxu0 0
        %2423 = vmatpush.bf16.xpose.msra.mxu0 0
        %2424 = vmatpush.bf16.xpose.msra.mxu0 0
        %2425 = vmatpush.bf16.xpose.msra.mxu0 0
        %2426 = vmatpush.bf16.xpose.msra.mxu0 0
        %2427 = vmatpush.bf16.xpose.msra.mxu0 0
        %2428 = vmatpush.bf16.xpose.msra.mxu0 %v2419
        %2429 = vmatmul.bf16.gmra.mxu0 %v2416
        %v2430 = vpop.f32.mrf.mxu0
        %v2431 = vadd.f32 0.0, %v2430
        %v2432 = vpop.f32.mrf.mxu0
        %2433 = vdwg.mxu0
        %v2435 = vsel %vm922, %v2368, 0
        %v2438 = vsel %vm922, %v2372, 0
        %2440 = vmatpush.bf16.xpose.msra.mxu0 0
        %2441 = vmatpush.bf16.xpose.msra.mxu0 0
        %2442 = vmatpush.bf16.xpose.msra.mxu0 0
        %2443 = vmatpush.bf16.xpose.msra.mxu0 0
        %2444 = vmatpush.bf16.xpose.msra.mxu0 0
        %2445 = vmatpush.bf16.xpose.msra.mxu0 0
        %2446 = vmatpush.bf16.xpose.msra.mxu0 0
        %2447 = vmatpush.bf16.xpose.msra.mxu0 %v2438
        %2448 = vmatmul.bf16.gmra.mxu0 %v2435
        %v2449 = vpop.f32.mrf.mxu0
        %v2450 = vadd.f32 0.0, %v2449
        %v2451 = vpop.f32.mrf.mxu0
        %2452 = vdwg.mxu0
        %v2453 = vmul.f32 %v2393, 0.125
        %v2454 = vmul.f32 %v2412, 0.125
        %v2455 = vmul.f32 %v2431, 0.125
        %v2456 = vmul.f32 %v2450, 0.125
        %v2457 = vsel %vm1024, %v2453, -1000000.0
        %v2458 = vsel %vm1025, %v2454, -1000000.0
        %v2459 = vsel %vm1026, %v2455, -1000000.0
        %v2460 = vsel %vm1027, %v2456, -1000000.0
        %v2461 = vsel %vm1946, %v2457, -inf
        %2462 = vmax.xlane.f32.xlu0 %v2461
        %v2463 = vpop.xlane.xlu0 %2462
        %v2464 = vsel %vm1946, %v2458, -inf
        %2465 = vmax.xlane.f32.xlu0 %v2464
        %v2466 = vpop.xlane.xlu0 %2465
        %v2467 = vsel %vm1946, %v2459, -inf
        %2468 = vmax.xlane.f32.xlu0 %v2467
        %v2469 = vpop.xlane.xlu0 %2468
        %v2470 = vsel %vm1946, %v2460, -inf
        %2471 = vmax.xlane.f32.xlu0 %v2470
        %v2472 = vpop.xlane.xlu0 %2471
        %v2473 = vsub.f32 %v2457, %v2463
        %v2474 = vsub.f32 %v2458, %v2466
        %v2475 = vsub.f32 %v2459, %v2469
        %v2476 = vsub.f32 %v2460, %v2472
        %v2477 = vmul.f32 %v2473, 1.442695
        %v2478 = vpow.pop %v2477
        %v2479 = vmul.f32 %v2474, 1.442695
        %v2480 = vpow.pop %v2479
        %v2481 = vmul.f32 %v2475, 1.442695
        %v2482 = vpow.pop %v2481
        %v2483 = vmul.f32 %v2476, 1.442695
        %v2484 = vpow.pop %v2483
        %v2485 = vsel %vm1946, %v2478, 0.0
        %2486 = vadd.xlane.f32.xlu0 %v2485
        %v2487 = vpop.xlane.xlu0 %2486
        %v2488 = vsel %vm1946, %v2480, 0.0
        %2489 = vadd.xlane.f32.xlu0 %v2488
        %v2490 = vpop.xlane.xlu0 %2489
        %v2491 = vsel %vm1946, %v2482, 0.0
        %2492 = vadd.xlane.f32.xlu0 %v2491
        %v2493 = vpop.xlane.xlu0 %2492
        %v2494 = vsel %vm1946, %v2484, 0.0
        %2495 = vadd.xlane.f32.xlu0 %v2494
        %v2496 = vpop.xlane.xlu0 %2495
        %v2497 = vrcp.pop %v2487
        %v2498 = vrcp.pop %v2490
        %v2499 = vrcp.pop %v2493
        %v2500 = vrcp.pop %v2496
        %v2501 = vmul.f32 %v2478, %v2497
        %v2502 = vmul.f32 %v2480, %v2498
        %v2503 = vmul.f32 %v2482, %v2499
        %v2504 = vmul.f32 %v2484, %v2500
        %v2505 = vpack.c.bf16 %v2501, %v2501
        %v2506 = vpack.c.bf16 %v2502, %v2502
        %v2507 = vpack.c.bf16 %v2503, %v2503
        %v2508 = vpack.c.bf16 %v2504, %v2504
        %v2510 = vsel %vm1946, %v2505, 0
        %v2513 = vsel %vm1998, %v2373, 0
        %2515 = vmatpush.bf16.msra.mxu0 0
        %2516 = vmatpush.bf16.msra.mxu0 0
        %2517 = vmatpush.bf16.msra.mxu0 0
        %2518 = vmatpush.bf16.msra.mxu0 0
        %2519 = vmatpush.bf16.msra.mxu0 0
        %2520 = vmatpush.bf16.msra.mxu0 0
        %2521 = vmatpush.bf16.msra.mxu0 0
        %2522 = vmatpush.bf16.msra.mxu0 %v2513
        %2523 = vmatmul.bf16.gmra.mxu0 %v2510
        %v2524 = vpop.f32.mrf.mxu0
        %v2525 = vadd.f32 0.0, %v2524
        %v2526 = vpop.f32.mrf.mxu0
        %2527 = vdwg.mxu0
        %v2529 = vsel %vm1946, %v2506, 0
        %v2532 = vsel %vm1998, %v2374, 0
        %2534 = vmatpush.bf16.msra.mxu0 0
        %2535 = vmatpush.bf16.msra.mxu0 0
        %2536 = vmatpush.bf16.msra.mxu0 0
        %2537 = vmatpush.bf16.msra.mxu0 0
        %2538 = vmatpush.bf16.msra.mxu0 0
        %2539 = vmatpush.bf16.msra.mxu0 0
        %2540 = vmatpush.bf16.msra.mxu0 0
        %2541 = vmatpush.bf16.msra.mxu0 %v2532
        %2542 = vmatmul.bf16.gmra.mxu0 %v2529
        %v2543 = vpop.f32.mrf.mxu0
        %v2544 = vadd.f32 0.0, %v2543
        %v2545 = vpop.f32.mrf.mxu0
        %2546 = vdwg.mxu0
        %v2548 = vsel %vm1946, %v2507, 0
        %v2551 = vsel %vm1998, %v2375, 0
        %2553 = vmatpush.bf16.msra.mxu0 0
        %2554 = vmatpush.bf16.msra.mxu0 0
        %2555 = vmatpush.bf16.msra.mxu0 0
        %2556 = vmatpush.bf16.msra.mxu0 0
        %2557 = vmatpush.bf16.msra.mxu0 0
        %2558 = vmatpush.bf16.msra.mxu0 0
        %2559 = vmatpush.bf16.msra.mxu0 0
        %2560 = vmatpush.bf16.msra.mxu0 %v2551
        %2561 = vmatmul.bf16.gmra.mxu0 %v2548
        %v2562 = vpop.f32.mrf.mxu0
        %v2563 = vadd.f32 0.0, %v2562
        %v2564 = vpop.f32.mrf.mxu0
        %2565 = vdwg.mxu0
        %v2567 = vsel %vm1946, %v2508, 0
        %v2570 = vsel %vm1998, %v2376, 0
        %2572 = vmatpush.bf16.msra.mxu0 0
        %2573 = vmatpush.bf16.msra.mxu0 0
        %2574 = vmatpush.bf16.msra.mxu0 0
        %2575 = vmatpush.bf16.msra.mxu0 0
        %2576 = vmatpush.bf16.msra.mxu0 0
        %2577 = vmatpush.bf16.msra.mxu0 0
        %2578 = vmatpush.bf16.msra.mxu0 0
        %2579 = vmatpush.bf16.msra.mxu0 %v2570
        %2580 = vmatmul.bf16.gmra.mxu0 %v2567
        %v2581 = vpop.f32.mrf.mxu0
        %v2582 = vadd.f32 0.0, %v2581
        %v2583 = vpop.f32.mrf.mxu0
        %2584 = vdwg.mxu0
        %2585 = vst.msk [vmem:[#allocation2 + $0x8] sm:$0xff] %vm922, %v2525
        %2586 = vst.msk [vmem:[#allocation2 + $0x18] sm:$0xff] %vm922, %v2544
        %2587 = vst.msk [vmem:[#allocation2 + $0x28] sm:$0xff] %vm922, %v2563
        %2588 = vst.msk [vmem:[#allocation2 + $0x38] sm:$0xff] %vm922, %v2582
        %v2590 = vunpack.c.l.b16 %v2365
        %v2591 = vpack.c.b16 %v2590, %v2590
        %2592 = vrot.lane.b32.xlu0 %v2591, 64
        %v2593 = vpop.permute.xlu0 %2592
        %v2595 = vunpack.c.l.b16 %v2369
        %v2596 = vpack.c.b16 %v2595, %v2595
        %2597 = vrot.lane.b32.xlu0 %v2596, 64
        %v2598 = vpop.permute.xlu0 %2597
        %v2600 = vsel %vm922, %v2593, 0
        %v2603 = vsel %vm922, %v2598, 0
        %2605 = vmatpush.bf16.xpose.msra.mxu0 0
        %2606 = vmatpush.bf16.xpose.msra.mxu0 0
        %2607 = vmatpush.bf16.xpose.msra.mxu0 0
        %2608 = vmatpush.bf16.xpose.msra.mxu0 0
        %2609 = vmatpush.bf16.xpose.msra.mxu0 0
        %2610 = vmatpush.bf16.xpose.msra.mxu0 0
        %2611 = vmatpush.bf16.xpose.msra.mxu0 0
        %2612 = vmatpush.bf16.xpose.msra.mxu0 %v2603
        %2613 = vmatmul.bf16.gmra.mxu0 %v2600
        %v2614 = vpop.f32.mrf.mxu0
        %v2615 = vadd.f32 0.0, %v2614
        %v2616 = vpop.f32.mrf.mxu0
        %2617 = vdwg.mxu0
        %v2619 = vunpack.c.l.b16 %v2366
        %v2620 = vpack.c.b16 %v2619, %v2619
        %2621 = vrot.lane.b32.xlu0 %v2620, 64
        %v2622 = vpop.permute.xlu0 %2621
        %v2624 = vunpack.c.l.b16 %v2370
        %v2625 = vpack.c.b16 %v2624, %v2624
        %2626 = vrot.lane.b32.xlu0 %v2625, 64
        %v2627 = vpop.permute.xlu0 %2626
        %v2629 = vsel %vm922, %v2622, 0
        %v2632 = vsel %vm922, %v2627, 0
        %2634 = vmatpush.bf16.xpose.msra.mxu0 0
        %2635 = vmatpush.bf16.xpose.msra.mxu0 0
        %2636 = vmatpush.bf16.xpose.msra.mxu0 0
        %2637 = vmatpush.bf16.xpose.msra.mxu0 0
        %2638 = vmatpush.bf16.xpose.msra.mxu0 0
        %2639 = vmatpush.bf16.xpose.msra.mxu0 0
        %2640 = vmatpush.bf16.xpose.msra.mxu0 0
        %2641 = vmatpush.bf16.xpose.msra.mxu0 %v2632
        %2642 = vmatmul.bf16.gmra.mxu0 %v2629
        %v2643 = vpop.f32.mrf.mxu0
        %v2644 = vadd.f32 0.0, %v2643
        %v2645 = vpop.f32.mrf.mxu0
        %2646 = vdwg.mxu0
        %v2648 = vunpack.c.l.b16 %v2367
        %v2649 = vpack.c.b16 %v2648, %v2648
        %2650 = vrot.lane.b32.xlu0 %v2649, 64
        %v2651 = vpop.permute.xlu0 %2650
        %v2653 = vunpack.c.l.b16 %v2371
        %v2654 = vpack.c.b16 %v2653, %v2653
        %2655 = vrot.lane.b32.xlu0 %v2654, 64
        %v2656 = vpop.permute.xlu0 %2655
        %v2658 = vsel %vm922, %v2651, 0
        %v2661 = vsel %vm922, %v2656, 0
        %2663 = vmatpush.bf16.xpose.msra.mxu0 0
        %2664 = vmatpush.bf16.xpose.msra.mxu0 0
        %2665 = vmatpush.bf16.xpose.msra.mxu0 0
        %2666 = vmatpush.bf16.xpose.msra.mxu0 0
        %2667 = vmatpush.bf16.xpose.msra.mxu0 0
        %2668 = vmatpush.bf16.xpose.msra.mxu0 0
        %2669 = vmatpush.bf16.xpose.msra.mxu0 0
        %2670 = vmatpush.bf16.xpose.msra.mxu0 %v2661
        %2671 = vmatmul.bf16.gmra.mxu0 %v2658
        %v2672 = vpop.f32.mrf.mxu0
        %v2673 = vadd.f32 0.0, %v2672
        %v2674 = vpop.f32.mrf.mxu0
        %2675 = vdwg.mxu0
        %v2677 = vunpack.c.l.b16 %v2368
        %v2678 = vpack.c.b16 %v2677, %v2677
        %2679 = vrot.lane.b32.xlu0 %v2678, 64
        %v2680 = vpop.permute.xlu0 %2679
        %v2682 = vunpack.c.l.b16 %v2372
        %v2683 = vpack.c.b16 %v2682, %v2682
        %2684 = vrot.lane.b32.xlu0 %v2683, 64
        %v2685 = vpop.permute.xlu0 %2684
        %v2687 = vsel %vm922, %v2680, 0
        %v2690 = vsel %vm922, %v2685, 0
        %2692 = vmatpush.bf16.xpose.msra.mxu0 0
        %2693 = vmatpush.bf16.xpose.msra.mxu0 0
        %2694 = vmatpush.bf16.xpose.msra.mxu0 0
        %2695 = vmatpush.bf16.xpose.msra.mxu0 0
        %2696 = vmatpush.bf16.xpose.msra.mxu0 0
        %2697 = vmatpush.bf16.xpose.msra.mxu0 0
        %2698 = vmatpush.bf16.xpose.msra.mxu0 0
        %2699 = vmatpush.bf16.xpose.msra.mxu0 %v2690
        %2700 = vmatmul.bf16.gmra.mxu0 %v2687
        %v2701 = vpop.f32.mrf.mxu0
        %v2702 = vadd.f32 0.0, %v2701
        %v2703 = vpop.f32.mrf.mxu0
        %2704 = vdwg.mxu0
        %v2705 = vmul.f32 %v2615, 0.125
        %v2706 = vmul.f32 %v2644, 0.125
        %v2707 = vmul.f32 %v2673, 0.125
        %v2708 = vmul.f32 %v2702, 0.125
        %v2709 = vsel %vm1024, %v2705, -1000000.0
        %v2710 = vsel %vm1025, %v2706, -1000000.0
        %v2711 = vsel %vm1026, %v2707, -1000000.0
        %v2712 = vsel %vm1027, %v2708, -1000000.0
        %v2713 = vsel %vm1946, %v2709, -inf
        %2714 = vmax.xlane.f32.xlu0 %v2713
        %v2715 = vpop.xlane.xlu0 %2714
        %v2716 = vsel %vm1946, %v2710, -inf
        %2717 = vmax.xlane.f32.xlu0 %v2716
        %v2718 = vpop.xlane.xlu0 %2717
        %v2719 = vsel %vm1946, %v2711, -inf
        %2720 = vmax.xlane.f32.xlu0 %v2719
        %v2721 = vpop.xlane.xlu0 %2720
        %v2722 = vsel %vm1946, %v2712, -inf
        %2723 = vmax.xlane.f32.xlu0 %v2722
        %v2724 = vpop.xlane.xlu0 %2723
        %v2725 = vsub.f32 %v2709, %v2715
        %v2726 = vsub.f32 %v2710, %v2718
        %v2727 = vsub.f32 %v2711, %v2721
        %v2728 = vsub.f32 %v2712, %v2724
        %v2729 = vmul.f32 %v2725, 1.442695
        %v2730 = vpow.pop %v2729
        %v2731 = vmul.f32 %v2726, 1.442695
        %v2732 = vpow.pop %v2731
        %v2733 = vmul.f32 %v2727, 1.442695
        %v2734 = vpow.pop %v2733
        %v2735 = vmul.f32 %v2728, 1.442695
        %v2736 = vpow.pop %v2735
        %v2737 = vsel %vm1946, %v2730, 0.0
        %2738 = vadd.xlane.f32.xlu0 %v2737
        %v2739 = vpop.xlane.xlu0 %2738
        %v2740 = vsel %vm1946, %v2732, 0.0
        %2741 = vadd.xlane.f32.xlu0 %v2740
        %v2742 = vpop.xlane.xlu0 %2741
        %v2743 = vsel %vm1946, %v2734, 0.0
        %2744 = vadd.xlane.f32.xlu0 %v2743
        %v2745 = vpop.xlane.xlu0 %2744
        %v2746 = vsel %vm1946, %v2736, 0.0
        %2747 = vadd.xlane.f32.xlu0 %v2746
        %v2748 = vpop.xlane.xlu0 %2747
        %v2749 = vrcp.pop %v2739
        %v2750 = vrcp.pop %v2742
        %v2751 = vrcp.pop %v2745
        %v2752 = vrcp.pop %v2748
        %v2753 = vmul.f32 %v2730, %v2749
        %v2754 = vmul.f32 %v2732, %v2750
        %v2755 = vmul.f32 %v2734, %v2751
        %v2756 = vmul.f32 %v2736, %v2752
        %v2757 = vpack.c.bf16 %v2753, %v2753
        %v2758 = vpack.c.bf16 %v2754, %v2754
        %v2759 = vpack.c.bf16 %v2755, %v2755
        %v2760 = vpack.c.bf16 %v2756, %v2756
        %v2762 = vunpack.c.l.b16 %v2373
        %v2763 = vpack.c.b16 %v2762, %v2762
        %2764 = vrot.lane.b32.xlu0 %v2763, 64
        %v2765 = vpop.permute.xlu0 %2764
        %v2767 = vsel %vm1946, %v2757, 0
        %v2770 = vsel %vm1998, %v2765, 0
        %2772 = vmatpush.bf16.msra.mxu0 0
        %2773 = vmatpush.bf16.msra.mxu0 0
        %2774 = vmatpush.bf16.msra.mxu0 0
        %2775 = vmatpush.bf16.msra.mxu0 0
        %2776 = vmatpush.bf16.msra.mxu0 0
        %2777 = vmatpush.bf16.msra.mxu0 0
        %2778 = vmatpush.bf16.msra.mxu0 0
        %2779 = vmatpush.bf16.msra.mxu0 %v2770
        %2780 = vmatmul.bf16.gmra.mxu0 %v2767
        %v2781 = vpop.f32.mrf.mxu0
        %v2782 = vadd.f32 0.0, %v2781
        %v2783 = vpop.f32.mrf.mxu0
        %2784 = vdwg.mxu0
        %v2786 = vunpack.c.l.b16 %v2374
        %v2787 = vpack.c.b16 %v2786, %v2786
        %2788 = vrot.lane.b32.xlu0 %v2787, 64
        %v2789 = vpop.permute.xlu0 %2788
        %v2791 = vsel %vm1946, %v2758, 0
        %v2794 = vsel %vm1998, %v2789, 0
        %2796 = vmatpush.bf16.msra.mxu0 0
        %2797 = vmatpush.bf16.msra.mxu0 0
        %2798 = vmatpush.bf16.msra.mxu0 0
        %2799 = vmatpush.bf16.msra.mxu0 0
        %2800 = vmatpush.bf16.msra.mxu0 0
        %2801 = vmatpush.bf16.msra.mxu0 0
        %2802 = vmatpush.bf16.msra.mxu0 0
        %2803 = vmatpush.bf16.msra.mxu0 %v2794
        %2804 = vmatmul.bf16.gmra.mxu0 %v2791
        %v2805 = vpop.f32.mrf.mxu0
        %v2806 = vadd.f32 0.0, %v2805
        %v2807 = vpop.f32.mrf.mxu0
        %2808 = vdwg.mxu0
        %v2810 = vunpack.c.l.b16 %v2375
        %v2811 = vpack.c.b16 %v2810, %v2810
        %2812 = vrot.lane.b32.xlu0 %v2811, 64
        %v2813 = vpop.permute.xlu0 %2812
        %v2815 = vsel %vm1946, %v2759, 0
        %v2818 = vsel %vm1998, %v2813, 0
        %2820 = vmatpush.bf16.msra.mxu0 0
        %2821 = vmatpush.bf16.msra.mxu0 0
        %2822 = vmatpush.bf16.msra.mxu0 0
        %2823 = vmatpush.bf16.msra.mxu0 0
        %2824 = vmatpush.bf16.msra.mxu0 0
        %2825 = vmatpush.bf16.msra.mxu0 0
        %2826 = vmatpush.bf16.msra.mxu0 0
        %2827 = vmatpush.bf16.msra.mxu0 %v2818
        %2828 = vmatmul.bf16.gmra.mxu0 %v2815
        %v2829 = vpop.f32.mrf.mxu0
        %v2830 = vadd.f32 0.0, %v2829
        %v2831 = vpop.f32.mrf.mxu0
        %2832 = vdwg.mxu0
        %v2834 = vunpack.c.l.b16 %v2376
        %v2835 = vpack.c.b16 %v2834, %v2834
        %2836 = vrot.lane.b32.xlu0 %v2835, 64
        %v2837 = vpop.permute.xlu0 %2836
        %v2839 = vsel %vm1946, %v2760, 0
        %v2842 = vsel %vm1998, %v2837, 0
        %2844 = vmatpush.bf16.msra.mxu0 0
        %2845 = vmatpush.bf16.msra.mxu0 0
        %2846 = vmatpush.bf16.msra.mxu0 0
        %2847 = vmatpush.bf16.msra.mxu0 0
        %2848 = vmatpush.bf16.msra.mxu0 0
        %2849 = vmatpush.bf16.msra.mxu0 0
        %2850 = vmatpush.bf16.msra.mxu0 0
        %2851 = vmatpush.bf16.msra.mxu0 %v2842
        %2852 = vmatmul.bf16.gmra.mxu0 %v2839
        %v2853 = vpop.f32.mrf.mxu0
        %v2854 = vadd.f32 0.0, %v2853
        %v2855 = vpop.f32.mrf.mxu0
        %2856 = vdwg.mxu0
        %2861 = vrot.lane.b32.xlu0 %v2782, 64
        %v2862 = vpop.permute.xlu0 %2861
        %2863 = vrot.lane.b32.xlu0 %v2806, 64
        %v2864 = vpop.permute.xlu0 %2863
        %2865 = vrot.lane.b32.xlu0 %v2830, 64
        %v2866 = vpop.permute.xlu0 %2865
        %2867 = vrot.lane.b32.xlu0 %v2854, 64
        %v2868 = vpop.permute.xlu0 %2867
        %2873 = vst.msk [vmem:[#allocation2 + $0x8] sm:$0xff] %vm2360, %v2862
        %2874 = vst.msk [vmem:[#allocation2 + $0x18] sm:$0xff] %vm2360, %v2864
        %2875 = vst.msk [vmem:[#allocation2 + $0x28] sm:$0xff] %vm2360, %v2866
        %2876 = vst.msk [vmem:[#allocation2 + $0x38] sm:$0xff] %vm2360, %v2868
        %v2877 = vld [vmem:[#allocation2] sm:$0xff]
        %v2878 = vld [vmem:[#allocation2 + $0x8] sm:$0xff]
        %v2879 = vld [vmem:[#allocation2 + $0x10] sm:$0xff]
        %v2880 = vld [vmem:[#allocation2 + $0x18] sm:$0xff]
        %v2881 = vld [vmem:[#allocation2 + $0x20] sm:$0xff]
        %v2882 = vld [vmem:[#allocation2 + $0x28] sm:$0xff]
        %v2883 = vld [vmem:[#allocation2 + $0x30] sm:$0xff]
        %v2884 = vld [vmem:[#allocation2 + $0x38] sm:$0xff]
        %v2885 = vpack.c.bf16 %v2879, %v2877
        %v2886 = vpack.c.bf16 %v2880, %v2878
        %v2887 = vpack.c.bf16 %v2883, %v2881
        %v2888 = vpack.c.bf16 %v2884, %v2882
        %v2889 = vld [vmem:[#allocation5] sm:$0xff]
        %v2890 = vld [vmem:[#allocation5 + $0x8] sm:$0xff]
        %v2891 = vld [vmem:[#allocation5 + $0x10] sm:$0xff]
        %v2892 = vld [vmem:[#allocation5 + $0x18] sm:$0xff]
        %v2893 = vld [vmem:[#allocation5 + $0x20] sm:$0xff]
        %v2894 = vld [vmem:[#allocation5 + $0x28] sm:$0xff]
        %v2895 = vld [vmem:[#allocation5 + $0x30] sm:$0xff]
        %v2896 = vld [vmem:[#allocation5 + $0x38] sm:$0xff]
        %v2897 = vld [vmem:[#allocation5 + $0x40] sm:$0xff]
        %v2898 = vld [vmem:[#allocation5 + $0x48] sm:$0xff]
        %v2899 = vld [vmem:[#allocation5 + $0x50] sm:$0xff]
        %v2900 = vld [vmem:[#allocation5 + $0x58] sm:$0xff]
        %v2901 = vld [vmem:[#allocation5 + $0x60] sm:$0xff]
        %v2902 = vld [vmem:[#allocation5 + $0x68] sm:$0xff]
        %v2903 = vld [vmem:[#allocation5 + $0x70] sm:$0xff]
        %v2904 = vld [vmem:[#allocation5 + $0x78] sm:$0xff]
        %v2905 = vld [vmem:[#allocation5 + $0x80] sm:$0xff]
        %v2906 = vld [vmem:[#allocation5 + $0x88] sm:$0xff]
        %v2907 = vld [vmem:[#allocation5 + $0x90] sm:$0xff]
        %v2908 = vld [vmem:[#allocation5 + $0x98] sm:$0xff]
        %v2909 = vld [vmem:[#allocation5 + $0xa0] sm:$0xff]
        %v2910 = vld [vmem:[#allocation5 + $0xa8] sm:$0xff]
        %v2911 = vld [vmem:[#allocation5 + $0xb0] sm:$0xff]
        %v2912 = vld [vmem:[#allocation5 + $0xb8] sm:$0xff]
        %v2913 = vld [vmem:[#allocation5 + $0xc0] sm:$0xff]
        %v2914 = vld [vmem:[#allocation5 + $0xc8] sm:$0xff]
        %v2915 = vld [vmem:[#allocation5 + $0xd0] sm:$0xff]
        %v2916 = vld [vmem:[#allocation5 + $0xd8] sm:$0xff]
        %v2917 = vld [vmem:[#allocation5 + $0xe0] sm:$0xff]
        %v2918 = vld [vmem:[#allocation5 + $0xe8] sm:$0xff]
        %v2919 = vld [vmem:[#allocation5 + $0xf0] sm:$0xff]
        %v2920 = vld [vmem:[#allocation5 + $0xf8] sm:$0xff]
        %v2921 = vld [vmem:[%s9] sm:$0x3]
        %v2923 = vperm.slane %v2921, 0
        %v2924 = vperm.slane %v2921, 1
        %v2959 = vunpack.c.l.b16 %v2889
        %v2960 = vunpack.c.h.b16 %v2889
        %v2961 = vunpack.c.l.b16 %v2890
        %v2962 = vunpack.c.h.b16 %v2890
        %v2963 = vunpack.c.l.b16 %v2891
        %v2964 = vunpack.c.h.b16 %v2891
        %v2965 = vunpack.c.l.b16 %v2892
        %v2966 = vunpack.c.h.b16 %v2892
        %v2967 = vunpack.c.l.b16 %v2893
        %v2968 = vunpack.c.h.b16 %v2893
        %v2969 = vunpack.c.l.b16 %v2894
        %v2970 = vunpack.c.h.b16 %v2894
        %v2971 = vunpack.c.l.b16 %v2895
        %v2972 = vunpack.c.h.b16 %v2895
        %v2973 = vunpack.c.l.b16 %v2896
        %v2974 = vunpack.c.h.b16 %v2896
        %v2975 = vunpack.c.l.b16 %v2897
        %v2976 = vunpack.c.h.b16 %v2897
        %v2977 = vunpack.c.l.b16 %v2898
        %v2978 = vunpack.c.h.b16 %v2898
        %v2979 = vunpack.c.l.b16 %v2899
        %v2980 = vunpack.c.h.b16 %v2899
        %v2981 = vunpack.c.l.b16 %v2900
        %v2982 = vunpack.c.h.b16 %v2900
        %v2983 = vunpack.c.l.b16 %v2901
        %v2984 = vunpack.c.h.b16 %v2901
        %v2985 = vunpack.c.l.b16 %v2902
        %v2986 = vunpack.c.h.b16 %v2902
        %v2987 = vunpack.c.l.b16 %v2903
        %v2988 = vunpack.c.h.b16 %v2903
        %v2989 = vunpack.c.l.b16 %v2904
        %v2990 = vunpack.c.h.b16 %v2904
        %v2991 = vunpack.c.l.b16 %v2905
        %v2992 = vunpack.c.h.b16 %v2905
        %v2993 = vunpack.c.l.b16 %v2906
        %v2994 = vunpack.c.h.b16 %v2906
        %v2995 = vunpack.c.l.b16 %v2907
        %v2996 = vunpack.c.h.b16 %v2907
        %v2997 = vunpack.c.l.b16 %v2908
        %v2998 = vunpack.c.h.b16 %v2908
        %v2999 = vunpack.c.l.b16 %v2909
        %v3000 = vunpack.c.h.b16 %v2909
        %v3001 = vunpack.c.l.b16 %v2910
        %v3002 = vunpack.c.h.b16 %v2910
        %v3003 = vunpack.c.l.b16 %v2911
        %v3004 = vunpack.c.h.b16 %v2911
        %v3005 = vunpack.c.l.b16 %v2912
        %v3006 = vunpack.c.h.b16 %v2912
        %v3007 = vunpack.c.l.b16 %v2913
        %v3008 = vunpack.c.h.b16 %v2913
        %v3009 = vunpack.c.l.b16 %v2914
        %v3010 = vunpack.c.h.b16 %v2914
        %v3011 = vunpack.c.l.b16 %v2915
        %v3012 = vunpack.c.h.b16 %v2915
        %v3013 = vunpack.c.l.b16 %v2916
        %v3014 = vunpack.c.h.b16 %v2916
        %v3015 = vunpack.c.l.b16 %v2917
        %v3016 = vunpack.c.h.b16 %v2917
        %v3017 = vunpack.c.l.b16 %v2918
        %v3018 = vunpack.c.h.b16 %v2918
        %v3019 = vunpack.c.l.b16 %v2919
        %v3020 = vunpack.c.h.b16 %v2919
        %v3021 = vunpack.c.l.b16 %v2920
        %v3022 = vunpack.c.h.b16 %v2920
        %v3023 = vpack.c.b16 %v2961, %v2959
        %v3024 = vpack.c.b16 %v2962, %v2960
        %v3025 = vpack.c.b16 %v2965, %v2963
        %v3026 = vpack.c.b16 %v2966, %v2964
        %v3027 = vpack.c.b16 %v2969, %v2967
        %v3028 = vpack.c.b16 %v2970, %v2968
        %v3029 = vpack.c.b16 %v2973, %v2971
        %v3030 = vpack.c.b16 %v2974, %v2972
        %v3031 = vpack.c.b16 %v2977, %v2975
        %v3032 = vpack.c.b16 %v2978, %v2976
        %v3033 = vpack.c.b16 %v2981, %v2979
        %v3034 = vpack.c.b16 %v2982, %v2980
        %v3035 = vpack.c.b16 %v2985, %v2983
        %v3036 = vpack.c.b16 %v2986, %v2984
        %v3037 = vpack.c.b16 %v2989, %v2987
        %v3038 = vpack.c.b16 %v2990, %v2988
        %v3039 = vpack.c.b16 %v2993, %v2991
        %v3040 = vpack.c.b16 %v2994, %v2992
        %v3041 = vpack.c.b16 %v2997, %v2995
        %v3042 = vpack.c.b16 %v2998, %v2996
        %v3043 = vpack.c.b16 %v3001, %v2999
        %v3044 = vpack.c.b16 %v3002, %v3000
        %v3045 = vpack.c.b16 %v3005, %v3003
        %v3046 = vpack.c.b16 %v3006, %v3004
        %v3047 = vpack.c.b16 %v3009, %v3007
        %v3048 = vpack.c.b16 %v3010, %v3008
        %v3049 = vpack.c.b16 %v3013, %v3011
        %v3050 = vpack.c.b16 %v3014, %v3012
        %v3051 = vpack.c.b16 %v3017, %v3015
        %v3052 = vpack.c.b16 %v3018, %v3016
        %v3053 = vpack.c.b16 %v3021, %v3019
        %v3054 = vpack.c.b16 %v3022, %v3020
        %3087 = vmatpush.bf16.msra.mxu0 %v3037
        %3088 = vmatpush.bf16.msra.mxu0 %v3035
        %3089 = vmatpush.bf16.msra.mxu0 %v3033
        %3090 = vmatpush.bf16.msra.mxu0 %v3031
        %3091 = vmatpush.bf16.msra.mxu0 %v3029
        %3092 = vmatpush.bf16.msra.mxu0 %v3027
        %3093 = vmatpush.bf16.msra.mxu0 %v3025
        %3094 = vmatpush.bf16.msra.mxu0 %v3023
        %3095 = vmatmul.bf16.gmra.mxu0 %v2885
        %v3096 = vpop.f32.mrf.mxu0
        %v3097 = vadd.f32 %v2923, %v3096
        %v3098 = vpop.f32.mrf.mxu0
        %v3099 = vadd.f32 %v2923, %v3098
        %3100 = vmatmul.bf16.gmra.mxu0 %v2887
        %v3101 = vpop.f32.mrf.mxu0
        %v3102 = vadd.f32 %v2923, %v3101
        %v3103 = vpop.f32.mrf.mxu0
        %v3104 = vadd.f32 %v2923, %v3103
        %3105 = vdwg.mxu0
        %3106 = vmatpush.bf16.msra.mxu0 %v3053
        %3107 = vmatpush.bf16.msra.mxu0 %v3051
        %3108 = vmatpush.bf16.msra.mxu0 %v3049
        %3109 = vmatpush.bf16.msra.mxu0 %v3047
        %3110 = vmatpush.bf16.msra.mxu0 %v3045
        %3111 = vmatpush.bf16.msra.mxu0 %v3043
        %3112 = vmatpush.bf16.msra.mxu0 %v3041
        %3113 = vmatpush.bf16.msra.mxu0 %v3039
        %3114 = vmatmul.bf16.gmra.mxu0 %v2886
        %v3115 = vpop.f32.mrf.mxu0
        %v3116 = vadd.f32 %v3097, %v3115
        %v3117 = vpop.f32.mrf.mxu0
        %v3118 = vadd.f32 %v3099, %v3117
        %3119 = vmatmul.bf16.gmra.mxu0 %v2888
        %v3120 = vpop.f32.mrf.mxu0
        %v3121 = vadd.f32 %v3102, %v3120
        %v3122 = vpop.f32.mrf.mxu0
        %v3123 = vadd.f32 %v3104, %v3122
        %3124 = vdwg.mxu0
        %3125 = vmatpush.bf16.msra.mxu0 %v3038
        %3126 = vmatpush.bf16.msra.mxu0 %v3036
        %3127 = vmatpush.bf16.msra.mxu0 %v3034
        %3128 = vmatpush.bf16.msra.mxu0 %v3032
        %3129 = vmatpush.bf16.msra.mxu0 %v3030
        %3130 = vmatpush.bf16.msra.mxu0 %v3028
        %3131 = vmatpush.bf16.msra.mxu0 %v3026
        %3132 = vmatpush.bf16.msra.mxu0 %v3024
        %3133 = vmatmul.bf16.gmra.mxu0 %v2885
        %v3134 = vpop.f32.mrf.mxu0
        %v3135 = vadd.f32 %v2924, %v3134
        %v3136 = vpop.f32.mrf.mxu0
        %v3137 = vadd.f32 %v2924, %v3136
        %3138 = vmatmul.bf16.gmra.mxu0 %v2887
        %v3139 = vpop.f32.mrf.mxu0
        %v3140 = vadd.f32 %v2924, %v3139
        %v3141 = vpop.f32.mrf.mxu0
        %v3142 = vadd.f32 %v2924, %v3141
        %3143 = vdwg.mxu0
        %3144 = vmatpush.bf16.msra.mxu0 %v3054
        %3145 = vmatpush.bf16.msra.mxu0 %v3052
        %3146 = vmatpush.bf16.msra.mxu0 %v3050
        %3147 = vmatpush.bf16.msra.mxu0 %v3048
        %3148 = vmatpush.bf16.msra.mxu0 %v3046
        %3149 = vmatpush.bf16.msra.mxu0 %v3044
        %3150 = vmatpush.bf16.msra.mxu0 %v3042
        %3151 = vmatpush.bf16.msra.mxu0 %v3040
        %3152 = vmatmul.bf16.gmra.mxu0 %v2886
        %v3153 = vpop.f32.mrf.mxu0
        %v3154 = vadd.f32 %v3135, %v3153
        %v3155 = vpop.f32.mrf.mxu0
        %v3156 = vadd.f32 %v3137, %v3155
        %3157 = vmatmul.bf16.gmra.mxu0 %v2888
        %v3158 = vpop.f32.mrf.mxu0
        %v3159 = vadd.f32 %v3140, %v3158
        %v3160 = vpop.f32.mrf.mxu0
        %v3161 = vadd.f32 %v3142, %v3160
        %3162 = vdwg.mxu0
        %v3163 = vadd.f32 %v1012, %v3116
        %v3164 = vadd.f32 %v1013, %v3154
        %v3165 = vadd.f32 %v1014, %v3118
        %v3166 = vadd.f32 %v1015, %v3156
        %v3167 = vadd.f32 %v1016, %v3121
        %v3168 = vadd.f32 %v1017, %v3159
        %v3169 = vadd.f32 %v1018, %v3123
        %v3170 = vadd.f32 %v1019, %v3161
        %v3171 = vld [vmem:[%s10] sm:$0x3]
        %v3172 = vld [vmem:[%s11] sm:$0x3]
        %v3173 = vadd.f32 %v3163, %v3164
        %3174 = vadd.xlane.f32.xlu0 %v3173
        %v3175 = vpop.xlane.xlu0 %3174
        %v3176 = vadd.f32 %v3165, %v3166
        %3177 = vadd.xlane.f32.xlu0 %v3176
        %v3178 = vpop.xlane.xlu0 %3177
        %v3179 = vadd.f32 %v3167, %v3168
        %3180 = vadd.xlane.f32.xlu0 %v3179
        %v3181 = vpop.xlane.xlu0 %3180
        %v3182 = vadd.f32 %v3169, %v3170
        %3183 = vadd.xlane.f32.xlu0 %v3182
        %v3184 = vpop.xlane.xlu0 %3183
        %v3185 = vrcp.pop 256.0
        %v3186 = vmul.f32 256.0, %v3185
        %v3187 = vsub.f32 1.0, %v3186
        %v3188 = vmul.f32 %v3185, %v3187
        %v3189 = vadd.f32 %v3185, %v3188
        %vm3190 = vweird.f32 %v3185
        %v3191 = vsel %vm3190, %v3185, %v3189
        %v3192 = vmul.f32 %v3175, %v3191
        %v3193 = vmul.f32 %v3178, %v3191
        %v3194 = vmul.f32 %v3181, %v3191
        %v3195 = vmul.f32 %v3184, %v3191
        %v3196 = vsub.f32 %v3163, %v3192
        %v3197 = vsub.f32 %v3164, %v3192
        %v3198 = vsub.f32 %v3165, %v3193
        %v3199 = vsub.f32 %v3166, %v3193
        %v3200 = vsub.f32 %v3167, %v3194
        %v3201 = vsub.f32 %v3168, %v3194
        %v3202 = vsub.f32 %v3169, %v3195
        %v3203 = vsub.f32 %v3170, %v3195
        %v3204 = vmul.f32 %v3196, %v3196
        %v3205 = vmul.f32 %v3197, %v3197
        %v3206 = vmul.f32 %v3198, %v3198
        %v3207 = vmul.f32 %v3199, %v3199
        %v3208 = vmul.f32 %v3200, %v3200
        %v3209 = vmul.f32 %v3201, %v3201
        %v3210 = vmul.f32 %v3202, %v3202
        %v3211 = vmul.f32 %v3203, %v3203
        %v3212 = vadd.f32 %v3204, %v3205
        %3213 = vadd.xlane.f32.xlu0 %v3212
        %v3214 = vpop.xlane.xlu0 %3213
        %v3215 = vadd.f32 %v3206, %v3207
        %3216 = vadd.xlane.f32.xlu0 %v3215
        %v3217 = vpop.xlane.xlu0 %3216
        %v3218 = vadd.f32 %v3208, %v3209
        %3219 = vadd.xlane.f32.xlu0 %v3218
        %v3220 = vpop.xlane.xlu0 %3219
        %v3221 = vadd.f32 %v3210, %v3211
        %3222 = vadd.xlane.f32.xlu0 %v3221
        %v3223 = vpop.xlane.xlu0 %3222
        %v3224 = vmul.f32 %v3214, %v3191
        %v3225 = vmul.f32 %v3217, %v3191
        %v3226 = vmul.f32 %v3220, %v3191
        %v3227 = vmul.f32 %v3223, %v3191
        %v3228 = vadd.f32 %v3224, 1e-05
        %v3229 = vadd.f32 %v3225, 1e-05
        %v3230 = vadd.f32 %v3226, 1e-05
        %v3231 = vadd.f32 %v3227, 1e-05
        %v3232 = vrsqrt.pop %v3228
        %v3233 = vmul.f32 %v3232, %v3228
        %v3234 = vmul.f32 %v3233, %v3232
        %v3235 = vmul.f32 0.5, %v3234
        %v3236 = vsub.f32 1.5, %v3235
        %v3237 = vmul.f32 %v3232, %v3236
        %vm3238 = vweird.f32 %v3228
        %vm3239 = vweird.f32 %v3232
        %vm3240 = vmor %vm3238, %vm3239
        %v3241 = vsel %vm3240, %v3232, %v3237
        %v3242 = vrsqrt.pop %v3229
        %v3243 = vmul.f32 %v3242, %v3229
        %v3244 = vmul.f32 %v3243, %v3242
        %v3245 = vmul.f32 0.5, %v3244
        %v3246 = vsub.f32 1.5, %v3245
        %v3247 = vmul.f32 %v3242, %v3246
        %vm3248 = vweird.f32 %v3229
        %vm3249 = vweird.f32 %v3242
        %vm3250 = vmor %vm3248, %vm3249
        %v3251 = vsel %vm3250, %v3242, %v3247
        %v3252 = vrsqrt.pop %v3230
        %v3253 = vmul.f32 %v3252, %v3230
        %v3254 = vmul.f32 %v3253, %v3252
        %v3255 = vmul.f32 0.5, %v3254
        %v3256 = vsub.f32 1.5, %v3255
        %v3257 = vmul.f32 %v3252, %v3256
        %vm3258 = vweird.f32 %v3230
        %vm3259 = vweird.f32 %v3252
        %vm3260 = vmor %vm3258, %vm3259
        %v3261 = vsel %vm3260, %v3252, %v3257
        %v3262 = vrsqrt.pop %v3231
        %v3263 = vmul.f32 %v3262, %v3231
        %v3264 = vmul.f32 %v3263, %v3262
        %v3265 = vmul.f32 0.5, %v3264
        %v3266 = vsub.f32 1.5, %v3265
        %v3267 = vmul.f32 %v3262, %v3266
        %vm3268 = vweird.f32 %v3231
        %vm3269 = vweird.f32 %v3262
        %vm3270 = vmor %vm3268, %vm3269
        %v3271 = vsel %vm3270, %v3262, %v3267
        %v3272 = vmul.f32 %v3196, %v3241
        %v3273 = vmul.f32 %v3197, %v3241
        %v3274 = vmul.f32 %v3198, %v3251
        %v3275 = vmul.f32 %v3199, %v3251
        %v3276 = vmul.f32 %v3200, %v3261
        %v3277 = vmul.f32 %v3201, %v3261
        %v3278 = vmul.f32 %v3202, %v3271
        %v3279 = vmul.f32 %v3203, %v3271
        %v3281 = vperm.slane %v3171, 0
        %v3282 = vperm.slane %v3171, 1
        %v3285 = vmul.f32 %v3272, %v3281
        %v3286 = vmul.f32 %v3273, %v3282
        %v3287 = vmul.f32 %v3274, %v3281
        %v3288 = vmul.f32 %v3275, %v3282
        %v3289 = vmul.f32 %v3276, %v3281
        %v3290 = vmul.f32 %v3277, %v3282
        %v3291 = vmul.f32 %v3278, %v3281
        %v3292 = vmul.f32 %v3279, %v3282
        %v3294 = vperm.slane %v3172, 0
        %v3295 = vperm.slane %v3172, 1
        %v3298 = vadd.f32 %v3285, %v3294
        %v3299 = vadd.f32 %v3286, %v3295
        %v3300 = vadd.f32 %v3287, %v3294
        %v3301 = vadd.f32 %v3288, %v3295
        %v3302 = vadd.f32 %v3289, %v3294
        %v3303 = vadd.f32 %v3290, %v3295
        %v3304 = vadd.f32 %v3291, %v3294
        %v3305 = vadd.f32 %v3292, %v3295
        %v3306 = vpack.c.bf16 %v3300, %v3298
        %v3307 = vpack.c.bf16 %v3301, %v3299
        %v3308 = vpack.c.bf16 %v3304, %v3302
        %v3309 = vpack.c.bf16 %v3305, %v3303
        %v3310 = vld [vmem:[#allocation7] sm:$0xff]
        %v3311 = vld [vmem:[#allocation7 + $0x8] sm:$0xff]
        %v3312 = vld [vmem:[#allocation7 + $0x10] sm:$0xff]
        %v3313 = vld [vmem:[#allocation7 + $0x18] sm:$0xff]
        %v3314 = vld [vmem:[#allocation7 + $0x20] sm:$0xff]
        %v3315 = vld [vmem:[#allocation7 + $0x28] sm:$0xff]
        %v3316 = vld [vmem:[#allocation7 + $0x30] sm:$0xff]
        %v3317 = vld [vmem:[#allocation7 + $0x38] sm:$0xff]
        %v3318 = vld [vmem:[#allocation7 + $0x40] sm:$0xff]
        %v3319 = vld [vmem:[#allocation7 + $0x48] sm:$0xff]
        %v3320 = vld [vmem:[#allocation7 + $0x50] sm:$0xff]
        %v3321 = vld [vmem:[#allocation7 + $0x58] sm:$0xff]
        %v3322 = vld [vmem:[#allocation7 + $0x60] sm:$0xff]
        %v3323 = vld [vmem:[#allocation7 + $0x68] sm:$0xff]
        %v3324 = vld [vmem:[#allocation7 + $0x70] sm:$0xff]
        %v3325 = vld [vmem:[#allocation7 + $0x78] sm:$0xff]
        %v3326 = vld [vmem:[#allocation7 + $0x80] sm:$0xff]
        %v3327 = vld [vmem:[#allocation7 + $0x88] sm:$0xff]
        %v3328 = vld [vmem:[#allocation7 + $0x90] sm:$0xff]
        %v3329 = vld [vmem:[#allocation7 + $0x98] sm:$0xff]
        %v3330 = vld [vmem:[#allocation7 + $0xa0] sm:$0xff]
        %v3331 = vld [vmem:[#allocation7 + $0xa8] sm:$0xff]
        %v3332 = vld [vmem:[#allocation7 + $0xb0] sm:$0xff]
        %v3333 = vld [vmem:[#allocation7 + $0xb8] sm:$0xff]
        %v3334 = vld [vmem:[#allocation7 + $0xc0] sm:$0xff]
        %v3335 = vld [vmem:[#allocation7 + $0xc8] sm:$0xff]
        %v3336 = vld [vmem:[#allocation7 + $0xd0] sm:$0xff]
        %v3337 = vld [vmem:[#allocation7 + $0xd8] sm:$0xff]
        %v3338 = vld [vmem:[#allocation7 + $0xe0] sm:$0xff]
        %v3339 = vld [vmem:[#allocation7 + $0xe8] sm:$0xff]
        %v3340 = vld [vmem:[#allocation7 + $0xf0] sm:$0xff]
        %v3341 = vld [vmem:[#allocation7 + $0xf8] sm:$0xff]
        %v3342 = vld [vmem:[%s13] sm:$0x3]
        %v3344 = vperm.slane %v3342, 0
        %v3345 = vperm.slane %v3342, 1
        %v3380 = vunpack.c.l.b16 %v3310
        %v3381 = vunpack.c.h.b16 %v3310
        %v3382 = vunpack.c.l.b16 %v3311
        %v3383 = vunpack.c.h.b16 %v3311
        %v3384 = vunpack.c.l.b16 %v3312
        %v3385 = vunpack.c.h.b16 %v3312
        %v3386 = vunpack.c.l.b16 %v3313
        %v3387 = vunpack.c.h.b16 %v3313
        %v3388 = vunpack.c.l.b16 %v3314
        %v3389 = vunpack.c.h.b16 %v3314
        %v3390 = vunpack.c.l.b16 %v3315
        %v3391 = vunpack.c.h.b16 %v3315
        %v3392 = vunpack.c.l.b16 %v3316
        %v3393 = vunpack.c.h.b16 %v3316
        %v3394 = vunpack.c.l.b16 %v3317
        %v3395 = vunpack.c.h.b16 %v3317
        %v3396 = vunpack.c.l.b16 %v3318
        %v3397 = vunpack.c.h.b16 %v3318
        %v3398 = vunpack.c.l.b16 %v3319
        %v3399 = vunpack.c.h.b16 %v3319
        %v3400 = vunpack.c.l.b16 %v3320
        %v3401 = vunpack.c.h.b16 %v3320
        %v3402 = vunpack.c.l.b16 %v3321
        %v3403 = vunpack.c.h.b16 %v3321
        %v3404 = vunpack.c.l.b16 %v3322
        %v3405 = vunpack.c.h.b16 %v3322
        %v3406 = vunpack.c.l.b16 %v3323
        %v3407 = vunpack.c.h.b16 %v3323
        %v3408 = vunpack.c.l.b16 %v3324
        %v3409 = vunpack.c.h.b16 %v3324
        %v3410 = vunpack.c.l.b16 %v3325
        %v3411 = vunpack.c.h.b16 %v3325
        %v3412 = vunpack.c.l.b16 %v3326
        %v3413 = vunpack.c.h.b16 %v3326
        %v3414 = vunpack.c.l.b16 %v3327
        %v3415 = vunpack.c.h.b16 %v3327
        %v3416 = vunpack.c.l.b16 %v3328
        %v3417 = vunpack.c.h.b16 %v3328
        %v3418 = vunpack.c.l.b16 %v3329
        %v3419 = vunpack.c.h.b16 %v3329
        %v3420 = vunpack.c.l.b16 %v3330
        %v3421 = vunpack.c.h.b16 %v3330
        %v3422 = vunpack.c.l.b16 %v3331
        %v3423 = vunpack.c.h.b16 %v3331
        %v3424 = vunpack.c.l.b16 %v3332
        %v3425 = vunpack.c.h.b16 %v3332
        %v3426 = vunpack.c.l.b16 %v3333
        %v3427 = vunpack.c.h.b16 %v3333
        %v3428 = vunpack.c.l.b16 %v3334
        %v3429 = vunpack.c.h.b16 %v3334
        %v3430 = vunpack.c.l.b16 %v3335
        %v3431 = vunpack.c.h.b16 %v3335
        %v3432 = vunpack.c.l.b16 %v3336
        %v3433 = vunpack.c.h.b16 %v3336
        %v3434 = vunpack.c.l.b16 %v3337
        %v3435 = vunpack.c.h.b16 %v3337
        %v3436 = vunpack.c.l.b16 %v3338
        %v3437 = vunpack.c.h.b16 %v3338
        %v3438 = vunpack.c.l.b16 %v3339
        %v3439 = vunpack.c.h.b16 %v3339
        %v3440 = vunpack.c.l.b16 %v3340
        %v3441 = vunpack.c.h.b16 %v3340
        %v3442 = vunpack.c.l.b16 %v3341
        %v3443 = vunpack.c.h.b16 %v3341
        %v3444 = vpack.c.b16 %v3382, %v3380
        %v3445 = vpack.c.b16 %v3383, %v3381
        %v3446 = vpack.c.b16 %v3386, %v3384
        %v3447 = vpack.c.b16 %v3387, %v3385
        %v3448 = vpack.c.b16 %v3390, %v3388
        %v3449 = vpack.c.b16 %v3391, %v3389
        %v3450 = vpack.c.b16 %v3394, %v3392
        %v3451 = vpack.c.b16 %v3395, %v3393
        %v3452 = vpack.c.b16 %v3398, %v3396
        %v3453 = vpack.c.b16 %v3399, %v3397
        %v3454 = vpack.c.b16 %v3402, %v3400
        %v3455 = vpack.c.b16 %v3403, %v3401
        %v3456 = vpack.c.b16 %v3406, %v3404
        %v3457 = vpack.c.b16 %v3407, %v3405
        %v3458 = vpack.c.b16 %v3410, %v3408
        %v3459 = vpack.c.b16 %v3411, %v3409
        %v3460 = vpack.c.b16 %v3414, %v3412
        %v3461 = vpack.c.b16 %v3415, %v3413
        %v3462 = vpack.c.b16 %v3418, %v3416
        %v3463 = vpack.c.b16 %v3419, %v3417
        %v3464 = vpack.c.b16 %v3422, %v3420
        %v3465 = vpack.c.b16 %v3423, %v3421
        %v3466 = vpack.c.b16 %v3426, %v3424
        %v3467 = vpack.c.b16 %v3427, %v3425
        %v3468 = vpack.c.b16 %v3430, %v3428
        %v3469 = vpack.c.b16 %v3431, %v3429
        %v3470 = vpack.c.b16 %v3434, %v3432
        %v3471 = vpack.c.b16 %v3435, %v3433
        %v3472 = vpack.c.b16 %v3438, %v3436
        %v3473 = vpack.c.b16 %v3439, %v3437
        %v3474 = vpack.c.b16 %v3442, %v3440
        %v3475 = vpack.c.b16 %v3443, %v3441
        %3508 = vmatpush.bf16.msra.mxu0 %v3458
        %3509 = vmatpush.bf16.msra.mxu0 %v3456
        %3510 = vmatpush.bf16.msra.mxu0 %v3454
        %3511 = vmatpush.bf16.msra.mxu0 %v3452
        %3512 = vmatpush.bf16.msra.mxu0 %v3450
        %3513 = vmatpush.bf16.msra.mxu0 %v3448
        %3514 = vmatpush.bf16.msra.mxu0 %v3446
        %3515 = vmatpush.bf16.msra.mxu0 %v3444
        %3516 = vmatmul.bf16.gmra.mxu0 %v3306
        %v3517 = vpop.f32.mrf.mxu0
        %v3518 = vadd.f32 %v3344, %v3517
        %v3519 = vpop.f32.mrf.mxu0
        %v3520 = vadd.f32 %v3344, %v3519
        %3521 = vmatmul.bf16.gmra.mxu0 %v3308
        %v3522 = vpop.f32.mrf.mxu0
        %v3523 = vadd.f32 %v3344, %v3522
        %v3524 = vpop.f32.mrf.mxu0
        %v3525 = vadd.f32 %v3344, %v3524
        %3526 = vdwg.mxu0
        %3527 = vmatpush.bf16.msra.mxu0 %v3474
        %3528 = vmatpush.bf16.msra.mxu0 %v3472
        %3529 = vmatpush.bf16.msra.mxu0 %v3470
        %3530 = vmatpush.bf16.msra.mxu0 %v3468
        %3531 = vmatpush.bf16.msra.mxu0 %v3466
        %3532 = vmatpush.bf16.msra.mxu0 %v3464
        %3533 = vmatpush.bf16.msra.mxu0 %v3462
        %3534 = vmatpush.bf16.msra.mxu0 %v3460
        %3535 = vmatmul.bf16.gmra.mxu0 %v3307
        %v3536 = vpop.f32.mrf.mxu0
        %v3537 = vadd.f32 %v3518, %v3536
        %v3538 = vpop.f32.mrf.mxu0
        %v3539 = vadd.f32 %v3520, %v3538
        %3540 = vmatmul.bf16.gmra.mxu0 %v3309
        %v3541 = vpop.f32.mrf.mxu0
        %v3542 = vadd.f32 %v3523, %v3541
        %v3543 = vpop.f32.mrf.mxu0
        %v3544 = vadd.f32 %v3525, %v3543
        %3545 = vdwg.mxu0
        %3546 = vmatpush.bf16.msra.mxu0 %v3459
        %3547 = vmatpush.bf16.msra.mxu0 %v3457
        %3548 = vmatpush.bf16.msra.mxu0 %v3455
        %3549 = vmatpush.bf16.msra.mxu0 %v3453
        %3550 = vmatpush.bf16.msra.mxu0 %v3451
        %3551 = vmatpush.bf16.msra.mxu0 %v3449
        %3552 = vmatpush.bf16.msra.mxu0 %v3447
        %3553 = vmatpush.bf16.msra.mxu0 %v3445
        %3554 = vmatmul.bf16.gmra.mxu0 %v3306
        %v3555 = vpop.f32.mrf.mxu0
        %v3556 = vadd.f32 %v3345, %v3555
        %v3557 = vpop.f32.mrf.mxu0
        %v3558 = vadd.f32 %v3345, %v3557
        %3559 = vmatmul.bf16.gmra.mxu0 %v3308
        %v3560 = vpop.f32.mrf.mxu0
        %v3561 = vadd.f32 %v3345, %v3560
        %v3562 = vpop.f32.mrf.mxu0
        %v3563 = vadd.f32 %v3345, %v3562
        %3564 = vdwg.mxu0
        %3565 = vmatpush.bf16.msra.mxu0 %v3475
        %3566 = vmatpush.bf16.msra.mxu0 %v3473
        %3567 = vmatpush.bf16.msra.mxu0 %v3471
        %3568 = vmatpush.bf16.msra.mxu0 %v3469
        %3569 = vmatpush.bf16.msra.mxu0 %v3467
        %3570 = vmatpush.bf16.msra.mxu0 %v3465
        %3571 = vmatpush.bf16.msra.mxu0 %v3463
        %3572 = vmatpush.bf16.msra.mxu0 %v3461
        %3573 = vmatmul.bf16.gmra.mxu0 %v3307
        %v3574 = vpop.f32.mrf.mxu0
        %v3575 = vadd.f32 %v3556, %v3574
        %v3576 = vpop.f32.mrf.mxu0
        %v3577 = vadd.f32 %v3558, %v3576
        %3578 = vmatmul.bf16.gmra.mxu0 %v3309
        %v3579 = vpop.f32.mrf.mxu0
        %v3580 = vadd.f32 %v3561, %v3579
        %v3581 = vpop.f32.mrf.mxu0
        %v3582 = vadd.f32 %v3563, %v3581
        %3583 = vdwg.mxu0
        %v3584 = vmax.f32 %v3537, 0.0
        %v3585 = vmax.f32 %v3575, 0.0
        %v3586 = vmax.f32 %v3539, 0.0
        %v3587 = vmax.f32 %v3577, 0.0
        %v3588 = vmax.f32 %v3542, 0.0
        %v3589 = vmax.f32 %v3580, 0.0
        %v3590 = vmax.f32 %v3544, 0.0
        %v3591 = vmax.f32 %v3582, 0.0
        %v3592 = vpack.c.bf16 %v3586, %v3584
        %v3593 = vpack.c.bf16 %v3587, %v3585
        %v3594 = vpack.c.bf16 %v3590, %v3588
        %v3595 = vpack.c.bf16 %v3591, %v3589
        %v3596 = vld [vmem:[#allocation8] sm:$0xff]
        %v3597 = vld [vmem:[#allocation8 + $0x8] sm:$0xff]
        %v3598 = vld [vmem:[#allocation8 + $0x10] sm:$0xff]
        %v3599 = vld [vmem:[#allocation8 + $0x18] sm:$0xff]
        %v3600 = vld [vmem:[#allocation8 + $0x20] sm:$0xff]
        %v3601 = vld [vmem:[#allocation8 + $0x28] sm:$0xff]
        %v3602 = vld [vmem:[#allocation8 + $0x30] sm:$0xff]
        %v3603 = vld [vmem:[#allocation8 + $0x38] sm:$0xff]
        %v3604 = vld [vmem:[#allocation8 + $0x40] sm:$0xff]
        %v3605 = vld [vmem:[#allocation8 + $0x48] sm:$0xff]
        %v3606 = vld [vmem:[#allocation8 + $0x50] sm:$0xff]
        %v3607 = vld [vmem:[#allocation8 + $0x58] sm:$0xff]
        %v3608 = vld [vmem:[#allocation8 + $0x60] sm:$0xff]
        %v3609 = vld [vmem:[#allocation8 + $0x68] sm:$0xff]
        %v3610 = vld [vmem:[#allocation8 + $0x70] sm:$0xff]
        %v3611 = vld [vmem:[#allocation8 + $0x78] sm:$0xff]
        %v3612 = vld [vmem:[#allocation8 + $0x80] sm:$0xff]
        %v3613 = vld [vmem:[#allocation8 + $0x88] sm:$0xff]
        %v3614 = vld [vmem:[#allocation8 + $0x90] sm:$0xff]
        %v3615 = vld [vmem:[#allocation8 + $0x98] sm:$0xff]
        %v3616 = vld [vmem:[#allocation8 + $0xa0] sm:$0xff]
        %v3617 = vld [vmem:[#allocation8 + $0xa8] sm:$0xff]
        %v3618 = vld [vmem:[#allocation8 + $0xb0] sm:$0xff]
        %v3619 = vld [vmem:[#allocation8 + $0xb8] sm:$0xff]
        %v3620 = vld [vmem:[#allocation8 + $0xc0] sm:$0xff]
        %v3621 = vld [vmem:[#allocation8 + $0xc8] sm:$0xff]
        %v3622 = vld [vmem:[#allocation8 + $0xd0] sm:$0xff]
        %v3623 = vld [vmem:[#allocation8 + $0xd8] sm:$0xff]
        %v3624 = vld [vmem:[#allocation8 + $0xe0] sm:$0xff]
        %v3625 = vld [vmem:[#allocation8 + $0xe8] sm:$0xff]
        %v3626 = vld [vmem:[#allocation8 + $0xf0] sm:$0xff]
        %v3627 = vld [vmem:[#allocation8 + $0xf8] sm:$0xff]
        %v3628 = vld [vmem:[%s15] sm:$0x3]
        %v3630 = vperm.slane %v3628, 0
        %v3631 = vperm.slane %v3628, 1
        %v3666 = vunpack.c.l.b16 %v3596
        %v3667 = vunpack.c.h.b16 %v3596
        %v3668 = vunpack.c.l.b16 %v3597
        %v3669 = vunpack.c.h.b16 %v3597
        %v3670 = vunpack.c.l.b16 %v3598
        %v3671 = vunpack.c.h.b16 %v3598
        %v3672 = vunpack.c.l.b16 %v3599
        %v3673 = vunpack.c.h.b16 %v3599
        %v3674 = vunpack.c.l.b16 %v3600
        %v3675 = vunpack.c.h.b16 %v3600
        %v3676 = vunpack.c.l.b16 %v3601
        %v3677 = vunpack.c.h.b16 %v3601
        %v3678 = vunpack.c.l.b16 %v3602
        %v3679 = vunpack.c.h.b16 %v3602
        %v3680 = vunpack.c.l.b16 %v3603
        %v3681 = vunpack.c.h.b16 %v3603
        %v3682 = vunpack.c.l.b16 %v3604
        %v3683 = vunpack.c.h.b16 %v3604
        %v3684 = vunpack.c.l.b16 %v3605
        %v3685 = vunpack.c.h.b16 %v3605
        %v3686 = vunpack.c.l.b16 %v3606
        %v3687 = vunpack.c.h.b16 %v3606
        %v3688 = vunpack.c.l.b16 %v3607
        %v3689 = vunpack.c.h.b16 %v3607
        %v3690 = vunpack.c.l.b16 %v3608
        %v3691 = vunpack.c.h.b16 %v3608
        %v3692 = vunpack.c.l.b16 %v3609
        %v3693 = vunpack.c.h.b16 %v3609
        %v3694 = vunpack.c.l.b16 %v3610
        %v3695 = vunpack.c.h.b16 %v3610
        %v3696 = vunpack.c.l.b16 %v3611
        %v3697 = vunpack.c.h.b16 %v3611
        %v3698 = vunpack.c.l.b16 %v3612
        %v3699 = vunpack.c.h.b16 %v3612
        %v3700 = vunpack.c.l.b16 %v3613
        %v3701 = vunpack.c.h.b16 %v3613
        %v3702 = vunpack.c.l.b16 %v3614
        %v3703 = vunpack.c.h.b16 %v3614
        %v3704 = vunpack.c.l.b16 %v3615
        %v3705 = vunpack.c.h.b16 %v3615
        %v3706 = vunpack.c.l.b16 %v3616
        %v3707 = vunpack.c.h.b16 %v3616
        %v3708 = vunpack.c.l.b16 %v3617
        %v3709 = vunpack.c.h.b16 %v3617
        %v3710 = vunpack.c.l.b16 %v3618
        %v3711 = vunpack.c.h.b16 %v3618
        %v3712 = vunpack.c.l.b16 %v3619
        %v3713 = vunpack.c.h.b16 %v3619
        %v3714 = vunpack.c.l.b16 %v3620
        %v3715 = vunpack.c.h.b16 %v3620
        %v3716 = vunpack.c.l.b16 %v3621
        %v3717 = vunpack.c.h.b16 %v3621
        %v3718 = vunpack.c.l.b16 %v3622
        %v3719 = vunpack.c.h.b16 %v3622
        %v3720 = vunpack.c.l.b16 %v3623
        %v3721 = vunpack.c.h.b16 %v3623
        %v3722 = vunpack.c.l.b16 %v3624
        %v3723 = vunpack.c.h.b16 %v3624
        %v3724 = vunpack.c.l.b16 %v3625
        %v3725 = vunpack.c.h.b16 %v3625
        %v3726 = vunpack.c.l.b16 %v3626
        %v3727 = vunpack.c.h.b16 %v3626
        %v3728 = vunpack.c.l.b16 %v3627
        %v3729 = vunpack.c.h.b16 %v3627
        %v3730 = vpack.c.b16 %v3668, %v3666
        %v3731 = vpack.c.b16 %v3669, %v3667
        %v3732 = vpack.c.b16 %v3672, %v3670
        %v3733 = vpack.c.b16 %v3673, %v3671
        %v3734 = vpack.c.b16 %v3676, %v3674
        %v3735 = vpack.c.b16 %v3677, %v3675
        %v3736 = vpack.c.b16 %v3680, %v3678
        %v3737 = vpack.c.b16 %v3681, %v3679
        %v3738 = vpack.c.b16 %v3684, %v3682
        %v3739 = vpack.c.b16 %v3685, %v3683
        %v3740 = vpack.c.b16 %v3688, %v3686
        %v3741 = vpack.c.b16 %v3689, %v3687
        %v3742 = vpack.c.b16 %v3692, %v3690
        %v3743 = vpack.c.b16 %v3693, %v3691
        %v3744 = vpack.c.b16 %v3696, %v3694
        %v3745 = vpack.c.b16 %v3697, %v3695
        %v3746 = vpack.c.b16 %v3700, %v3698
        %v3747 = vpack.c.b16 %v3701, %v3699
        %v3748 = vpack.c.b16 %v3704, %v3702
        %v3749 = vpack.c.b16 %v3705, %v3703
        %v3750 = vpack.c.b16 %v3708, %v3706
        %v3751 = vpack.c.b16 %v3709, %v3707
        %v3752 = vpack.c.b16 %v3712, %v3710
        %v3753 = vpack.c.b16 %v3713, %v3711
        %v3754 = vpack.c.b16 %v3716, %v3714
        %v3755 = vpack.c.b16 %v3717, %v3715
        %v3756 = vpack.c.b16 %v3720, %v3718
        %v3757 = vpack.c.b16 %v3721, %v3719
        %v3758 = vpack.c.b16 %v3724, %v3722
        %v3759 = vpack.c.b16 %v3725, %v3723
        %v3760 = vpack.c.b16 %v3728, %v3726
        %v3761 = vpack.c.b16 %v3729, %v3727
        %3794 = vmatpush.bf16.msra.mxu0 %v3744
        %3795 = vmatpush.bf16.msra.mxu0 %v3742
        %3796 = vmatpush.bf16.msra.mxu0 %v3740
        %3797 = vmatpush.bf16.msra.mxu0 %v3738
        %3798 = vmatpush.bf16.msra.mxu0 %v3736
        %3799 = vmatpush.bf16.msra.mxu0 %v3734
        %3800 = vmatpush.bf16.msra.mxu0 %v3732
        %3801 = vmatpush.bf16.msra.mxu0 %v3730
        %3802 = vmatmul.bf16.gmra.mxu0 %v3592
        %v3803 = vpop.f32.mrf.mxu0
        %v3804 = vadd.f32 %v3630, %v3803
        %v3805 = vpop.f32.mrf.mxu0
        %v3806 = vadd.f32 %v3630, %v3805
        %3807 = vmatmul.bf16.gmra.mxu0 %v3594
        %v3808 = vpop.f32.mrf.mxu0
        %v3809 = vadd.f32 %v3630, %v3808
        %v3810 = vpop.f32.mrf.mxu0
        %v3811 = vadd.f32 %v3630, %v3810
        %3812 = vdwg.mxu0
        %3813 = vmatpush.bf16.msra.mxu0 %v3760
        %3814 = vmatpush.bf16.msra.mxu0 %v3758
        %3815 = vmatpush.bf16.msra.mxu0 %v3756
        %3816 = vmatpush.bf16.msra.mxu0 %v3754
        %3817 = vmatpush.bf16.msra.mxu0 %v3752
        %3818 = vmatpush.bf16.msra.mxu0 %v3750
        %3819 = vmatpush.bf16.msra.mxu0 %v3748
        %3820 = vmatpush.bf16.msra.mxu0 %v3746
        %3821 = vmatmul.bf16.gmra.mxu0 %v3593
        %v3822 = vpop.f32.mrf.mxu0
        %v3823 = vadd.f32 %v3804, %v3822
        %v3824 = vpop.f32.mrf.mxu0
        %v3825 = vadd.f32 %v3806, %v3824
        %3826 = vmatmul.bf16.gmra.mxu0 %v3595
        %v3827 = vpop.f32.mrf.mxu0
        %v3828 = vadd.f32 %v3809, %v3827
        %v3829 = vpop.f32.mrf.mxu0
        %v3830 = vadd.f32 %v3811, %v3829
        %3831 = vdwg.mxu0
        %3832 = vmatpush.bf16.msra.mxu0 %v3745
        %3833 = vmatpush.bf16.msra.mxu0 %v3743
        %3834 = vmatpush.bf16.msra.mxu0 %v3741
        %3835 = vmatpush.bf16.msra.mxu0 %v3739
        %3836 = vmatpush.bf16.msra.mxu0 %v3737
        %3837 = vmatpush.bf16.msra.mxu0 %v3735
        %3838 = vmatpush.bf16.msra.mxu0 %v3733
        %3839 = vmatpush.bf16.msra.mxu0 %v3731
        %3840 = vmatmul.bf16.gmra.mxu0 %v3592
        %v3841 = vpop.f32.mrf.mxu0
        %v3842 = vadd.f32 %v3631, %v3841
        %v3843 = vpop.f32.mrf.mxu0
        %v3844 = vadd.f32 %v3631, %v3843
        %3845 = vmatmul.bf16.gmra.mxu0 %v3594
        %v3846 = vpop.f32.mrf.mxu0
        %v3847 = vadd.f32 %v3631, %v3846
        %v3848 = vpop.f32.mrf.mxu0
        %v3849 = vadd.f32 %v3631, %v3848
        %3850 = vdwg.mxu0
        %3851 = vmatpush.bf16.msra.mxu0 %v3761
        %3852 = vmatpush.bf16.msra.mxu0 %v3759
        %3853 = vmatpush.bf16.msra.mxu0 %v3757
        %3854 = vmatpush.bf16.msra.mxu0 %v3755
        %3855 = vmatpush.bf16.msra.mxu0 %v3753
        %3856 = vmatpush.bf16.msra.mxu0 %v3751
        %3857 = vmatpush.bf16.msra.mxu0 %v3749
        %3858 = vmatpush.bf16.msra.mxu0 %v3747
        %3859 = vmatmul.bf16.gmra.mxu0 %v3593
        %v3860 = vpop.f32.mrf.mxu0
        %v3861 = vadd.f32 %v3842, %v3860
        %v3862 = vpop.f32.mrf.mxu0
        %v3863 = vadd.f32 %v3844, %v3862
        %3864 = vmatmul.bf16.gmra.mxu0 %v3595
        %v3865 = vpop.f32.mrf.mxu0
        %v3866 = vadd.f32 %v3847, %v3865
        %v3867 = vpop.f32.mrf.mxu0
        %v3868 = vadd.f32 %v3849, %v3867
        %3869 = vdwg.mxu0
        %v3870 = vadd.f32 %v3298, %v3823
        %v3871 = vadd.f32 %v3299, %v3861
        %v3872 = vadd.f32 %v3300, %v3825
        %v3873 = vadd.f32 %v3301, %v3863
        %v3874 = vadd.f32 %v3302, %v3828
        %v3875 = vadd.f32 %v3303, %v3866
        %v3876 = vadd.f32 %v3304, %v3830
        %v3877 = vadd.f32 %v3305, %v3868
        %v3878 = vld [vmem:[%s16] sm:$0x3]
        %v3879 = vld [vmem:[%s17] sm:$0x3]
        %v3880 = vadd.f32 %v3870, %v3871
        %3881 = vadd.xlane.f32.xlu0 %v3880
        %v3882 = vpop.xlane.xlu0 %3881
        %v3883 = vadd.f32 %v3872, %v3873
        %3884 = vadd.xlane.f32.xlu0 %v3883
        %v3885 = vpop.xlane.xlu0 %3884
        %v3886 = vadd.f32 %v3874, %v3875
        %3887 = vadd.xlane.f32.xlu0 %v3886
        %v3888 = vpop.xlane.xlu0 %3887
        %v3889 = vadd.f32 %v3876, %v3877
        %3890 = vadd.xlane.f32.xlu0 %v3889
        %v3891 = vpop.xlane.xlu0 %3890
        %v3892 = vmul.f32 %v3882, %v3191
        %v3893 = vmul.f32 %v3885, %v3191
        %v3894 = vmul.f32 %v3888, %v3191
        %v3895 = vmul.f32 %v3891, %v3191
        %v3896 = vsub.f32 %v3870, %v3892
        %v3897 = vsub.f32 %v3871, %v3892
        %v3898 = vsub.f32 %v3872, %v3893
        %v3899 = vsub.f32 %v3873, %v3893
        %v3900 = vsub.f32 %v3874, %v3894
        %v3901 = vsub.f32 %v3875, %v3894
        %v3902 = vsub.f32 %v3876, %v3895
        %v3903 = vsub.f32 %v3877, %v3895
        %v3904 = vmul.f32 %v3896, %v3896
        %v3905 = vmul.f32 %v3897, %v3897
        %v3906 = vmul.f32 %v3898, %v3898
        %v3907 = vmul.f32 %v3899, %v3899
        %v3908 = vmul.f32 %v3900, %v3900
        %v3909 = vmul.f32 %v3901, %v3901
        %v3910 = vmul.f32 %v3902, %v3902
        %v3911 = vmul.f32 %v3903, %v3903
        %v3912 = vadd.f32 %v3904, %v3905
        %3913 = vadd.xlane.f32.xlu0 %v3912
        %v3914 = vpop.xlane.xlu0 %3913
        %v3915 = vadd.f32 %v3906, %v3907
        %3916 = vadd.xlane.f32.xlu0 %v3915
        %v3917 = vpop.xlane.xlu0 %3916
        %v3918 = vadd.f32 %v3908, %v3909
        %3919 = vadd.xlane.f32.xlu0 %v3918
        %v3920 = vpop.xlane.xlu0 %3919
        %v3921 = vadd.f32 %v3910, %v3911
        %3922 = vadd.xlane.f32.xlu0 %v3921
        %v3923 = vpop.xlane.xlu0 %3922
        %v3924 = vmul.f32 %v3914, %v3191
        %v3925 = vmul.f32 %v3917, %v3191
        %v3926 = vmul.f32 %v3920, %v3191
        %v3927 = vmul.f32 %v3923, %v3191
        %v3928 = vadd.f32 %v3924, 1e-05
        %v3929 = vadd.f32 %v3925, 1e-05
        %v3930 = vadd.f32 %v3926, 1e-05
        %v3931 = vadd.f32 %v3927, 1e-05
        %v3932 = vrsqrt.pop %v3928
        %v3933 = vmul.f32 %v3932, %v3928
        %v3934 = vmul.f32 %v3933, %v3932
        %v3935 = vmul.f32 0.5, %v3934
        %v3936 = vsub.f32 1.5, %v3935
        %v3937 = vmul.f32 %v3932, %v3936
        %vm3938 = vweird.f32 %v3928
        %vm3939 = vweird.f32 %v3932
        %vm3940 = vmor %vm3938, %vm3939
        %v3941 = vsel %vm3940, %v3932, %v3937
        %v3942 = vrsqrt.pop %v3929
        %v3943 = vmul.f32 %v3942, %v3929
        %v3944 = vmul.f32 %v3943, %v3942
        %v3945 = vmul.f32 0.5, %v3944
        %v3946 = vsub.f32 1.5, %v3945
        %v3947 = vmul.f32 %v3942, %v3946
        %vm3948 = vweird.f32 %v3929
        %vm3949 = vweird.f32 %v3942
        %vm3950 = vmor %vm3948, %vm3949
        %v3951 = vsel %vm3950, %v3942, %v3947
        %v3952 = vrsqrt.pop %v3930
        %v3953 = vmul.f32 %v3952, %v3930
        %v3954 = vmul.f32 %v3953, %v3952
        %v3955 = vmul.f32 0.5, %v3954
        %v3956 = vsub.f32 1.5, %v3955
        %v3957 = vmul.f32 %v3952, %v3956
        %vm3958 = vweird.f32 %v3930
        %vm3959 = vweird.f32 %v3952
        %vm3960 = vmor %vm3958, %vm3959
        %v3961 = vsel %vm3960, %v3952, %v3957
        %v3962 = vrsqrt.pop %v3931
        %v3963 = vmul.f32 %v3962, %v3931
        %v3964 = vmul.f32 %v3963, %v3962
        %v3965 = vmul.f32 0.5, %v3964
        %v3966 = vsub.f32 1.5, %v3965
        %v3967 = vmul.f32 %v3962, %v3966
        %vm3968 = vweird.f32 %v3931
        %vm3969 = vweird.f32 %v3962
        %vm3970 = vmor %vm3968, %vm3969
        %v3971 = vsel %vm3970, %v3962, %v3967
        %v3972 = vmul.f32 %v3896, %v3941
        %v3973 = vmul.f32 %v3897, %v3941
        %v3974 = vmul.f32 %v3898, %v3951
        %v3975 = vmul.f32 %v3899, %v3951
        %v3976 = vmul.f32 %v3900, %v3961
        %v3977 = vmul.f32 %v3901, %v3961
        %v3978 = vmul.f32 %v3902, %v3971
        %v3979 = vmul.f32 %v3903, %v3971
        %v3981 = vperm.slane %v3878, 0
        %v3982 = vperm.slane %v3878, 1
        %v3985 = vmul.f32 %v3972, %v3981
        %v3986 = vmul.f32 %v3973, %v3982
        %v3987 = vmul.f32 %v3974, %v3981
        %v3988 = vmul.f32 %v3975, %v3982
        %v3989 = vmul.f32 %v3976, %v3981
        %v3990 = vmul.f32 %v3977, %v3982
        %v3991 = vmul.f32 %v3978, %v3981
        %v3992 = vmul.f32 %v3979, %v3982
        %v3994 = vperm.slane %v3879, 0
        %v3995 = vperm.slane %v3879, 1
        %v3998 = vadd.f32 %v3985, %v3994
        %v3999 = vadd.f32 %v3986, %v3995
        %v4000 = vadd.f32 %v3987, %v3994
        %v4001 = vadd.f32 %v3988, %v3995
        %v4002 = vadd.f32 %v3989, %v3994
        %v4003 = vadd.f32 %v3990, %v3995
        %v4004 = vadd.f32 %v3991, %v3994
        %v4005 = vadd.f32 %v3992, %v3995
        %v4006 = vpack.c.bf16 %v4000, %v3998
        %v4007 = vpack.c.bf16 %v4001, %v3999
        %v4008 = vpack.c.bf16 %v4004, %v4002
        %v4009 = vpack.c.bf16 %v4005, %v4003
        %s4010 = scalar_lea.vmem [#allocation3], 768
        %v4011 = vld [vmem:[%s4010] sm:$0xff]
        %v4012 = vld [vmem:[%s4010 + $0x8] sm:$0xff]
        %v4013 = vld [vmem:[%s4010 + $0x10] sm:$0xff]
        %v4014 = vld [vmem:[%s4010 + $0x18] sm:$0xff]
        %v4015 = vld [vmem:[%s4010 + $0x20] sm:$0xff]
        %v4016 = vld [vmem:[%s4010 + $0x28] sm:$0xff]
        %v4017 = vld [vmem:[%s4010 + $0x30] sm:$0xff]
        %v4018 = vld [vmem:[%s4010 + $0x38] sm:$0xff]
        %v4019 = vld [vmem:[%s4010 + $0x40] sm:$0xff]
        %v4020 = vld [vmem:[%s4010 + $0x48] sm:$0xff]
        %v4021 = vld [vmem:[%s4010 + $0x50] sm:$0xff]
        %v4022 = vld [vmem:[%s4010 + $0x58] sm:$0xff]
        %v4023 = vld [vmem:[%s4010 + $0x60] sm:$0xff]
        %v4024 = vld [vmem:[%s4010 + $0x68] sm:$0xff]
        %v4025 = vld [vmem:[%s4010 + $0x70] sm:$0xff]
        %v4026 = vld [vmem:[%s4010 + $0x78] sm:$0xff]
        %v4027 = vld [vmem:[%s4010 + $0x80] sm:$0xff]
        %v4028 = vld [vmem:[%s4010 + $0x88] sm:$0xff]
        %v4029 = vld [vmem:[%s4010 + $0x90] sm:$0xff]
        %v4030 = vld [vmem:[%s4010 + $0x98] sm:$0xff]
        %v4031 = vld [vmem:[%s4010 + $0xa0] sm:$0xff]
        %v4032 = vld [vmem:[%s4010 + $0xa8] sm:$0xff]
        %v4033 = vld [vmem:[%s4010 + $0xb0] sm:$0xff]
        %v4034 = vld [vmem:[%s4010 + $0xb8] sm:$0xff]
        %v4035 = vld [vmem:[%s4010 + $0xc0] sm:$0xff]
        %v4036 = vld [vmem:[%s4010 + $0xc8] sm:$0xff]
        %v4037 = vld [vmem:[%s4010 + $0xd0] sm:$0xff]
        %v4038 = vld [vmem:[%s4010 + $0xd8] sm:$0xff]
        %v4039 = vld [vmem:[%s4010 + $0xe0] sm:$0xff]
        %v4040 = vld [vmem:[%s4010 + $0xe8] sm:$0xff]
        %v4041 = vld [vmem:[%s4010 + $0xf0] sm:$0xff]
        %v4042 = vld [vmem:[%s4010 + $0xf8] sm:$0xff]
        %v4043 = vld [vmem:[%s4010 + $0x100] sm:$0xff]
        %v4044 = vld [vmem:[%s4010 + $0x108] sm:$0xff]
        %v4045 = vld [vmem:[%s4010 + $0x110] sm:$0xff]
        %v4046 = vld [vmem:[%s4010 + $0x118] sm:$0xff]
        %v4047 = vld [vmem:[%s4010 + $0x120] sm:$0xff]
        %v4048 = vld [vmem:[%s4010 + $0x128] sm:$0xff]
        %v4049 = vld [vmem:[%s4010 + $0x130] sm:$0xff]
        %v4050 = vld [vmem:[%s4010 + $0x138] sm:$0xff]
        %v4051 = vld [vmem:[%s4010 + $0x140] sm:$0xff]
        %v4052 = vld [vmem:[%s4010 + $0x148] sm:$0xff]
        %v4053 = vld [vmem:[%s4010 + $0x150] sm:$0xff]
        %v4054 = vld [vmem:[%s4010 + $0x158] sm:$0xff]
        %v4055 = vld [vmem:[%s4010 + $0x160] sm:$0xff]
        %v4056 = vld [vmem:[%s4010 + $0x168] sm:$0xff]
        %v4057 = vld [vmem:[%s4010 + $0x170] sm:$0xff]
        %v4058 = vld [vmem:[%s4010 + $0x178] sm:$0xff]
        %v4059 = vld [vmem:[%s4010 + $0x180] sm:$0xff]
        %v4060 = vld [vmem:[%s4010 + $0x188] sm:$0xff]
        %v4061 = vld [vmem:[%s4010 + $0x190] sm:$0xff]
        %v4062 = vld [vmem:[%s4010 + $0x198] sm:$0xff]
        %v4063 = vld [vmem:[%s4010 + $0x1a0] sm:$0xff]
        %v4064 = vld [vmem:[%s4010 + $0x1a8] sm:$0xff]
        %v4065 = vld [vmem:[%s4010 + $0x1b0] sm:$0xff]
        %v4066 = vld [vmem:[%s4010 + $0x1b8] sm:$0xff]
        %v4067 = vld [vmem:[%s4010 + $0x1c0] sm:$0xff]
        %v4068 = vld [vmem:[%s4010 + $0x1c8] sm:$0xff]
        %v4069 = vld [vmem:[%s4010 + $0x1d0] sm:$0xff]
        %v4070 = vld [vmem:[%s4010 + $0x1d8] sm:$0xff]
        %v4071 = vld [vmem:[%s4010 + $0x1e0] sm:$0xff]
        %v4072 = vld [vmem:[%s4010 + $0x1e8] sm:$0xff]
        %v4073 = vld [vmem:[%s4010 + $0x1f0] sm:$0xff]
        %v4074 = vld [vmem:[%s4010 + $0x1f8] sm:$0xff]
        %v4075 = vld [vmem:[%s4010 + $0x200] sm:$0xff]
        %v4076 = vld [vmem:[%s4010 + $0x208] sm:$0xff]
        %v4077 = vld [vmem:[%s4010 + $0x210] sm:$0xff]
        %v4078 = vld [vmem:[%s4010 + $0x218] sm:$0xff]
        %v4079 = vld [vmem:[%s4010 + $0x220] sm:$0xff]
        %v4080 = vld [vmem:[%s4010 + $0x228] sm:$0xff]
        %v4081 = vld [vmem:[%s4010 + $0x230] sm:$0xff]
        %v4082 = vld [vmem:[%s4010 + $0x238] sm:$0xff]
        %v4083 = vld [vmem:[%s4010 + $0x240] sm:$0xff]
        %v4084 = vld [vmem:[%s4010 + $0x248] sm:$0xff]
        %v4085 = vld [vmem:[%s4010 + $0x250] sm:$0xff]
        %v4086 = vld [vmem:[%s4010 + $0x258] sm:$0xff]
        %v4087 = vld [vmem:[%s4010 + $0x260] sm:$0xff]
        %v4088 = vld [vmem:[%s4010 + $0x268] sm:$0xff]
        %v4089 = vld [vmem:[%s4010 + $0x270] sm:$0xff]
        %v4090 = vld [vmem:[%s4010 + $0x278] sm:$0xff]
        %v4091 = vld [vmem:[%s4010 + $0x280] sm:$0xff]
        %v4092 = vld [vmem:[%s4010 + $0x288] sm:$0xff]
        %v4093 = vld [vmem:[%s4010 + $0x290] sm:$0xff]
        %v4094 = vld [vmem:[%s4010 + $0x298] sm:$0xff]
        %v4095 = vld [vmem:[%s4010 + $0x2a0] sm:$0xff]
        %v4096 = vld [vmem:[%s4010 + $0x2a8] sm:$0xff]
        %v4097 = vld [vmem:[%s4010 + $0x2b0] sm:$0xff]
        %v4098 = vld [vmem:[%s4010 + $0x2b8] sm:$0xff]
        %v4099 = vld [vmem:[%s4010 + $0x2c0] sm:$0xff]
        %v4100 = vld [vmem:[%s4010 + $0x2c8] sm:$0xff]
        %v4101 = vld [vmem:[%s4010 + $0x2d0] sm:$0xff]
        %v4102 = vld [vmem:[%s4010 + $0x2d8] sm:$0xff]
        %v4103 = vld [vmem:[%s4010 + $0x2e0] sm:$0xff]
        %v4104 = vld [vmem:[%s4010 + $0x2e8] sm:$0xff]
        %v4105 = vld [vmem:[%s4010 + $0x2f0] sm:$0xff]
        %v4106 = vld [vmem:[%s4010 + $0x2f8] sm:$0xff]
        %s4107 = scalar_lea.vmem %s7, 6
        %v4108 = vld [vmem:[%s4107] sm:$0x3f]
        %v4110 = vperm.slane %v4108, 0
        %v4111 = vperm.slane %v4108, 1
        %v4112 = vperm.slane %v4108, 2
        %v4113 = vperm.slane %v4108, 3
        %v4114 = vperm.slane %v4108, 4
        %v4115 = vperm.slane %v4108, 5
        %v4218 = vunpack.c.l.b16 %v4011
        %v4219 = vunpack.c.h.b16 %v4011
        %v4220 = vunpack.c.l.b16 %v4012
        %v4221 = vunpack.c.h.b16 %v4012
        %v4222 = vunpack.c.l.b16 %v4013
        %v4223 = vunpack.c.h.b16 %v4013
        %v4224 = vunpack.c.l.b16 %v4014
        %v4225 = vunpack.c.h.b16 %v4014
        %v4226 = vunpack.c.l.b16 %v4015
        %v4227 = vunpack.c.h.b16 %v4015
        %v4228 = vunpack.c.l.b16 %v4016
        %v4229 = vunpack.c.h.b16 %v4016
        %v4230 = vunpack.c.l.b16 %v4017
        %v4231 = vunpack.c.h.b16 %v4017
        %v4232 = vunpack.c.l.b16 %v4018
        %v4233 = vunpack.c.h.b16 %v4018
        %v4234 = vunpack.c.l.b16 %v4019
        %v4235 = vunpack.c.h.b16 %v4019
        %v4236 = vunpack.c.l.b16 %v4020
        %v4237 = vunpack.c.h.b16 %v4020
        %v4238 = vunpack.c.l.b16 %v4021
        %v4239 = vunpack.c.h.b16 %v4021
        %v4240 = vunpack.c.l.b16 %v4022
        %v4241 = vunpack.c.h.b16 %v4022
        %v4242 = vunpack.c.l.b16 %v4023
        %v4243 = vunpack.c.h.b16 %v4023
        %v4244 = vunpack.c.l.b16 %v4024
        %v4245 = vunpack.c.h.b16 %v4024
        %v4246 = vunpack.c.l.b16 %v4025
        %v4247 = vunpack.c.h.b16 %v4025
        %v4248 = vunpack.c.l.b16 %v4026
        %v4249 = vunpack.c.h.b16 %v4026
        %v4250 = vunpack.c.l.b16 %v4027
        %v4251 = vunpack.c.h.b16 %v4027
        %v4252 = vunpack.c.l.b16 %v4028
        %v4253 = vunpack.c.h.b16 %v4028
        %v4254 = vunpack.c.l.b16 %v4029
        %v4255 = vunpack.c.h.b16 %v4029
        %v4256 = vunpack.c.l.b16 %v4030
        %v4257 = vunpack.c.h.b16 %v4030
        %v4258 = vunpack.c.l.b16 %v4031
        %v4259 = vunpack.c.h.b16 %v4031
        %v4260 = vunpack.c.l.b16 %v4032
        %v4261 = vunpack.c.h.b16 %v4032
        %v4262 = vunpack.c.l.b16 %v4033
        %v4263 = vunpack.c.h.b16 %v4033
        %v4264 = vunpack.c.l.b16 %v4034
        %v4265 = vunpack.c.h.b16 %v4034
        %v4266 = vunpack.c.l.b16 %v4035
        %v4267 = vunpack.c.h.b16 %v4035
        %v4268 = vunpack.c.l.b16 %v4036
        %v4269 = vunpack.c.h.b16 %v4036
        %v4270 = vunpack.c.l.b16 %v4037
        %v4271 = vunpack.c.h.b16 %v4037
        %v4272 = vunpack.c.l.b16 %v4038
        %v4273 = vunpack.c.h.b16 %v4038
        %v4274 = vunpack.c.l.b16 %v4039
        %v4275 = vunpack.c.h.b16 %v4039
        %v4276 = vunpack.c.l.b16 %v4040
        %v4277 = vunpack.c.h.b16 %v4040
        %v4278 = vunpack.c.l.b16 %v4041
        %v4279 = vunpack.c.h.b16 %v4041
        %v4280 = vunpack.c.l.b16 %v4042
        %v4281 = vunpack.c.h.b16 %v4042
        %v4282 = vunpack.c.l.b16 %v4043
        %v4283 = vunpack.c.h.b16 %v4043
        %v4284 = vunpack.c.l.b16 %v4044
        %v4285 = vunpack.c.h.b16 %v4044
        %v4286 = vunpack.c.l.b16 %v4045
        %v4287 = vunpack.c.h.b16 %v4045
        %v4288 = vunpack.c.l.b16 %v4046
        %v4289 = vunpack.c.h.b16 %v4046
        %v4290 = vunpack.c.l.b16 %v4047
        %v4291 = vunpack.c.h.b16 %v4047
        %v4292 = vunpack.c.l.b16 %v4048
        %v4293 = vunpack.c.h.b16 %v4048
        %v4294 = vunpack.c.l.b16 %v4049
        %v4295 = vunpack.c.h.b16 %v4049
        %v4296 = vunpack.c.l.b16 %v4050
        %v4297 = vunpack.c.h.b16 %v4050
        %v4298 = vunpack.c.l.b16 %v4051
        %v4299 = vunpack.c.h.b16 %v4051
        %v4300 = vunpack.c.l.b16 %v4052
        %v4301 = vunpack.c.h.b16 %v4052
        %v4302 = vunpack.c.l.b16 %v4053
        %v4303 = vunpack.c.h.b16 %v4053
        %v4304 = vunpack.c.l.b16 %v4054
        %v4305 = vunpack.c.h.b16 %v4054
        %v4306 = vunpack.c.l.b16 %v4055
        %v4307 = vunpack.c.h.b16 %v4055
        %v4308 = vunpack.c.l.b16 %v4056
        %v4309 = vunpack.c.h.b16 %v4056
        %v4310 = vunpack.c.l.b16 %v4057
        %v4311 = vunpack.c.h.b16 %v4057
        %v4312 = vunpack.c.l.b16 %v4058
        %v4313 = vunpack.c.h.b16 %v4058
        %v4314 = vunpack.c.l.b16 %v4059
        %v4315 = vunpack.c.h.b16 %v4059
        %v4316 = vunpack.c.l.b16 %v4060
        %v4317 = vunpack.c.h.b16 %v4060
        %v4318 = vunpack.c.l.b16 %v4061
        %v4319 = vunpack.c.h.b16 %v4061
        %v4320 = vunpack.c.l.b16 %v4062
        %v4321 = vunpack.c.h.b16 %v4062
        %v4322 = vunpack.c.l.b16 %v4063
        %v4323 = vunpack.c.h.b16 %v4063
        %v4324 = vunpack.c.l.b16 %v4064
        %v4325 = vunpack.c.h.b16 %v4064
        %v4326 = vunpack.c.l.b16 %v4065
        %v4327 = vunpack.c.h.b16 %v4065
        %v4328 = vunpack.c.l.b16 %v4066
        %v4329 = vunpack.c.h.b16 %v4066
        %v4330 = vunpack.c.l.b16 %v4067
        %v4331 = vunpack.c.h.b16 %v4067
        %v4332 = vunpack.c.l.b16 %v4068
        %v4333 = vunpack.c.h.b16 %v4068
        %v4334 = vunpack.c.l.b16 %v4069
        %v4335 = vunpack.c.h.b16 %v4069
        %v4336 = vunpack.c.l.b16 %v4070
        %v4337 = vunpack.c.h.b16 %v4070
        %v4338 = vunpack.c.l.b16 %v4071
        %v4339 = vunpack.c.h.b16 %v4071
        %v4340 = vunpack.c.l.b16 %v4072
        %v4341 = vunpack.c.h.b16 %v4072
        %v4342 = vunpack.c.l.b16 %v4073
        %v4343 = vunpack.c.h.b16 %v4073
        %v4344 = vunpack.c.l.b16 %v4074
        %v4345 = vunpack.c.h.b16 %v4074
        %v4346 = vunpack.c.l.b16 %v4075
        %v4347 = vunpack.c.h.b16 %v4075
        %v4348 = vunpack.c.l.b16 %v4076
        %v4349 = vunpack.c.h.b16 %v4076
        %v4350 = vunpack.c.l.b16 %v4077
        %v4351 = vunpack.c.h.b16 %v4077
        %v4352 = vunpack.c.l.b16 %v4078
        %v4353 = vunpack.c.h.b16 %v4078
        %v4354 = vunpack.c.l.b16 %v4079
        %v4355 = vunpack.c.h.b16 %v4079
        %v4356 = vunpack.c.l.b16 %v4080
        %v4357 = vunpack.c.h.b16 %v4080
        %v4358 = vunpack.c.l.b16 %v4081
        %v4359 = vunpack.c.h.b16 %v4081
        %v4360 = vunpack.c.l.b16 %v4082
        %v4361 = vunpack.c.h.b16 %v4082
        %v4362 = vunpack.c.l.b16 %v4083
        %v4363 = vunpack.c.h.b16 %v4083
        %v4364 = vunpack.c.l.b16 %v4084
        %v4365 = vunpack.c.h.b16 %v4084
        %v4366 = vunpack.c.l.b16 %v4085
        %v4367 = vunpack.c.h.b16 %v4085
        %v4368 = vunpack.c.l.b16 %v4086
        %v4369 = vunpack.c.h.b16 %v4086
        %v4370 = vunpack.c.l.b16 %v4087
        %v4371 = vunpack.c.h.b16 %v4087
        %v4372 = vunpack.c.l.b16 %v4088
        %v4373 = vunpack.c.h.b16 %v4088
        %v4374 = vunpack.c.l.b16 %v4089
        %v4375 = vunpack.c.h.b16 %v4089
        %v4376 = vunpack.c.l.b16 %v4090
        %v4377 = vunpack.c.h.b16 %v4090
        %v4378 = vunpack.c.l.b16 %v4091
        %v4379 = vunpack.c.h.b16 %v4091
        %v4380 = vunpack.c.l.b16 %v4092
        %v4381 = vunpack.c.h.b16 %v4092
        %v4382 = vunpack.c.l.b16 %v4093
        %v4383 = vunpack.c.h.b16 %v4093
        %v4384 = vunpack.c.l.b16 %v4094
        %v4385 = vunpack.c.h.b16 %v4094
        %v4386 = vunpack.c.l.b16 %v4095
        %v4387 = vunpack.c.h.b16 %v4095
        %v4388 = vunpack.c.l.b16 %v4096
        %v4389 = vunpack.c.h.b16 %v4096
        %v4390 = vunpack.c.l.b16 %v4097
        %v4391 = vunpack.c.h.b16 %v4097
        %v4392 = vunpack.c.l.b16 %v4098
        %v4393 = vunpack.c.h.b16 %v4098
        %v4394 = vunpack.c.l.b16 %v4099
        %v4395 = vunpack.c.h.b16 %v4099
        %v4396 = vunpack.c.l.b16 %v4100
        %v4397 = vunpack.c.h.b16 %v4100
        %v4398 = vunpack.c.l.b16 %v4101
        %v4399 = vunpack.c.h.b16 %v4101
        %v4400 = vunpack.c.l.b16 %v4102
        %v4401 = vunpack.c.h.b16 %v4102
        %v4402 = vunpack.c.l.b16 %v4103
        %v4403 = vunpack.c.h.b16 %v4103
        %v4404 = vunpack.c.l.b16 %v4104
        %v4405 = vunpack.c.h.b16 %v4104
        %v4406 = vunpack.c.l.b16 %v4105
        %v4407 = vunpack.c.h.b16 %v4105
        %v4408 = vunpack.c.l.b16 %v4106
        %v4409 = vunpack.c.h.b16 %v4106
        %v4410 = vpack.c.b16 %v4224, %v4218
        %v4411 = vpack.c.b16 %v4225, %v4219
        %v4412 = vpack.c.b16 %v4226, %v4220
        %v4413 = vpack.c.b16 %v4227, %v4221
        %v4414 = vpack.c.b16 %v4228, %v4222
        %v4415 = vpack.c.b16 %v4229, %v4223
        %v4416 = vpack.c.b16 %v4236, %v4230
        %v4417 = vpack.c.b16 %v4237, %v4231
        %v4418 = vpack.c.b16 %v4238, %v4232
        %v4419 = vpack.c.b16 %v4239, %v4233
        %v4420 = vpack.c.b16 %v4240, %v4234
        %v4421 = vpack.c.b16 %v4241, %v4235
        %v4422 = vpack.c.b16 %v4248, %v4242
        %v4423 = vpack.c.b16 %v4249, %v4243
        %v4424 = vpack.c.b16 %v4250, %v4244
        %v4425 = vpack.c.b16 %v4251, %v4245
        %v4426 = vpack.c.b16 %v4252, %v4246
        %v4427 = vpack.c.b16 %v4253, %v4247
        %v4428 = vpack.c.b16 %v4260, %v4254
        %v4429 = vpack.c.b16 %v4261, %v4255
        %v4430 = vpack.c.b16 %v4262, %v4256
        %v4431 = vpack.c.b16 %v4263, %v4257
        %v4432 = vpack.c.b16 %v4264, %v4258
        %v4433 = vpack.c.b16 %v4265, %v4259
        %v4434 = vpack.c.b16 %v4272, %v4266
        %v4435 = vpack.c.b16 %v4273, %v4267
        %v4436 = vpack.c.b16 %v4274, %v4268
        %v4437 = vpack.c.b16 %v4275, %v4269
        %v4438 = vpack.c.b16 %v4276, %v4270
        %v4439 = vpack.c.b16 %v4277, %v4271
        %v4440 = vpack.c.b16 %v4284, %v4278
        %v4441 = vpack.c.b16 %v4285, %v4279
        %v4442 = vpack.c.b16 %v4286, %v4280
        %v4443 = vpack.c.b16 %v4287, %v4281
        %v4444 = vpack.c.b16 %v4288, %v4282
        %v4445 = vpack.c.b16 %v4289, %v4283
        %v4446 = vpack.c.b16 %v4296, %v4290
        %v4447 = vpack.c.b16 %v4297, %v4291
        %v4448 = vpack.c.b16 %v4298, %v4292
        %v4449 = vpack.c.b16 %v4299, %v4293
        %v4450 = vpack.c.b16 %v4300, %v4294
        %v4451 = vpack.c.b16 %v4301, %v4295
        %v4452 = vpack.c.b16 %v4308, %v4302
        %v4453 = vpack.c.b16 %v4309, %v4303
        %v4454 = vpack.c.b16 %v4310, %v4304
        %v4455 = vpack.c.b16 %v4311, %v4305
        %v4456 = vpack.c.b16 %v4312, %v4306
        %v4457 = vpack.c.b16 %v4313, %v4307
        %v4458 = vpack.c.b16 %v4320, %v4314
        %v4459 = vpack.c.b16 %v4321, %v4315
        %v4460 = vpack.c.b16 %v4322, %v4316
        %v4461 = vpack.c.b16 %v4323, %v4317
        %v4462 = vpack.c.b16 %v4324, %v4318
        %v4463 = vpack.c.b16 %v4325, %v4319
        %v4464 = vpack.c.b16 %v4332, %v4326
        %v4465 = vpack.c.b16 %v4333, %v4327
        %v4466 = vpack.c.b16 %v4334, %v4328
        %v4467 = vpack.c.b16 %v4335, %v4329
        %v4468 = vpack.c.b16 %v4336, %v4330
        %v4469 = vpack.c.b16 %v4337, %v4331
        %v4470 = vpack.c.b16 %v4344, %v4338
        %v4471 = vpack.c.b16 %v4345, %v4339
        %v4472 = vpack.c.b16 %v4346, %v4340
        %v4473 = vpack.c.b16 %v4347, %v4341
        %v4474 = vpack.c.b16 %v4348, %v4342
        %v4475 = vpack.c.b16 %v4349, %v4343
        %v4476 = vpack.c.b16 %v4356, %v4350
        %v4477 = vpack.c.b16 %v4357, %v4351
        %v4478 = vpack.c.b16 %v4358, %v4352
        %v4479 = vpack.c.b16 %v4359, %v4353
        %v4480 = vpack.c.b16 %v4360, %v4354
        %v4481 = vpack.c.b16 %v4361, %v4355
        %v4482 = vpack.c.b16 %v4368, %v4362
        %v4483 = vpack.c.b16 %v4369, %v4363
        %v4484 = vpack.c.b16 %v4370, %v4364
        %v4485 = vpack.c.b16 %v4371, %v4365
        %v4486 = vpack.c.b16 %v4372, %v4366
        %v4487 = vpack.c.b16 %v4373, %v4367
        %v4488 = vpack.c.b16 %v4380, %v4374
        %v4489 = vpack.c.b16 %v4381, %v4375
        %v4490 = vpack.c.b16 %v4382, %v4376
        %v4491 = vpack.c.b16 %v4383, %v4377
        %v4492 = vpack.c.b16 %v4384, %v4378
        %v4493 = vpack.c.b16 %v4385, %v4379
        %v4494 = vpack.c.b16 %v4392, %v4386
        %v4495 = vpack.c.b16 %v4393, %v4387
        %v4496 = vpack.c.b16 %v4394, %v4388
        %v4497 = vpack.c.b16 %v4395, %v4389
        %v4498 = vpack.c.b16 %v4396, %v4390
        %v4499 = vpack.c.b16 %v4397, %v4391
        %v4500 = vpack.c.b16 %v4404, %v4398
        %v4501 = vpack.c.b16 %v4405, %v4399
        %v4502 = vpack.c.b16 %v4406, %v4400
        %v4503 = vpack.c.b16 %v4407, %v4401
        %v4504 = vpack.c.b16 %v4408, %v4402
        %v4505 = vpack.c.b16 %v4409, %v4403
        %4602 = vmatpush.bf16.msra.mxu0 %v4452
        %4603 = vmatpush.bf16.msra.mxu0 %v4446
        %4604 = vmatpush.bf16.msra.mxu0 %v4440
        %4605 = vmatpush.bf16.msra.mxu0 %v4434
        %4606 = vmatpush.bf16.msra.mxu0 %v4428
        %4607 = vmatpush.bf16.msra.mxu0 %v4422
        %4608 = vmatpush.bf16.msra.mxu0 %v4416
        %4609 = vmatpush.bf16.msra.mxu0 %v4410
        %4610 = vmatmul.bf16.gmra.mxu0 %v4006
        %v4611 = vpop.f32.mrf.mxu0
        %v4612 = vadd.f32 %v4110, %v4611
        %v4613 = vpop.f32.mrf.mxu0
        %v4614 = vadd.f32 %v4110, %v4613
        %4615 = vmatmul.bf16.gmra.mxu0 %v4008
        %v4616 = vpop.f32.mrf.mxu0
        %v4617 = vadd.f32 %v4110, %v4616
        %v4618 = vpop.f32.mrf.mxu0
        %v4619 = vadd.f32 %v4110, %v4618
        %4620 = vdwg.mxu0
        %4621 = vmatpush.bf16.msra.mxu0 %v4500
        %4622 = vmatpush.bf16.msra.mxu0 %v4494
        %4623 = vmatpush.bf16.msra.mxu0 %v4488
        %4624 = vmatpush.bf16.msra.mxu0 %v4482
        %4625 = vmatpush.bf16.msra.mxu0 %v4476
        %4626 = vmatpush.bf16.msra.mxu0 %v4470
        %4627 = vmatpush.bf16.msra.mxu0 %v4464
        %4628 = vmatpush.bf16.msra.mxu0 %v4458
        %4629 = vmatmul.bf16.gmra.mxu0 %v4007
        %v4630 = vpop.f32.mrf.mxu0
        %v4631 = vadd.f32 %v4612, %v4630
        %v4632 = vpop.f32.mrf.mxu0
        %v4633 = vadd.f32 %v4614, %v4632
        %4634 = vmatmul.bf16.gmra.mxu0 %v4009
        %v4635 = vpop.f32.mrf.mxu0
        %v4636 = vadd.f32 %v4617, %v4635
        %v4637 = vpop.f32.mrf.mxu0
        %v4638 = vadd.f32 %v4619, %v4637
        %4639 = vdwg.mxu0
        %4640 = vmatpush.bf16.msra.mxu0 %v4453
        %4641 = vmatpush.bf16.msra.mxu0 %v4447
        %4642 = vmatpush.bf16.msra.mxu0 %v4441
        %4643 = vmatpush.bf16.msra.mxu0 %v4435
        %4644 = vmatpush.bf16.msra.mxu0 %v4429
        %4645 = vmatpush.bf16.msra.mxu0 %v4423
        %4646 = vmatpush.bf16.msra.mxu0 %v4417
        %4647 = vmatpush.bf16.msra.mxu0 %v4411
        %4648 = vmatmul.bf16.gmra.mxu0 %v4006
        %v4649 = vpop.f32.mrf.mxu0
        %v4650 = vadd.f32 %v4111, %v4649
        %v4651 = vpop.f32.mrf.mxu0
        %v4652 = vadd.f32 %v4111, %v4651
        %4653 = vmatmul.bf16.gmra.mxu0 %v4008
        %v4654 = vpop.f32.mrf.mxu0
        %v4655 = vadd.f32 %v4111, %v4654
        %v4656 = vpop.f32.mrf.mxu0
        %v4657 = vadd.f32 %v4111, %v4656
        %4658 = vdwg.mxu0
        %4659 = vmatpush.bf16.msra.mxu0 %v4501
        %4660 = vmatpush.bf16.msra.mxu0 %v4495
        %4661 = vmatpush.bf16.msra.mxu0 %v4489
        %4662 = vmatpush.bf16.msra.mxu0 %v4483
        %4663 = vmatpush.bf16.msra.mxu0 %v4477
        %4664 = vmatpush.bf16.msra.mxu0 %v4471
        %4665 = vmatpush.bf16.msra.mxu0 %v4465
        %4666 = vmatpush.bf16.msra.mxu0 %v4459
        %4667 = vmatmul.bf16.gmra.mxu0 %v4007
        %v4668 = vpop.f32.mrf.mxu0
        %v4669 = vadd.f32 %v4650, %v4668
        %v4670 = vpop.f32.mrf.mxu0
        %v4671 = vadd.f32 %v4652, %v4670
        %4672 = vmatmul.bf16.gmra.mxu0 %v4009
        %v4673 = vpop.f32.mrf.mxu0
        %v4674 = vadd.f32 %v4655, %v4673
        %v4675 = vpop.f32.mrf.mxu0
        %v4676 = vadd.f32 %v4657, %v4675
        %4677 = vdwg.mxu0
        %4678 = vmatpush.bf16.msra.mxu0 %v4454
        %4679 = vmatpush.bf16.msra.mxu0 %v4448
        %4680 = vmatpush.bf16.msra.mxu0 %v4442
        %4681 = vmatpush.bf16.msra.mxu0 %v4436
        %4682 = vmatpush.bf16.msra.mxu0 %v4430
        %4683 = vmatpush.bf16.msra.mxu0 %v4424
        %4684 = vmatpush.bf16.msra.mxu0 %v4418
        %4685 = vmatpush.bf16.msra.mxu0 %v4412
        %4686 = vmatmul.bf16.gmra.mxu0 %v4006
        %v4687 = vpop.f32.mrf.mxu0
        %v4688 = vadd.f32 %v4112, %v4687
        %v4689 = vpop.f32.mrf.mxu0
        %v4690 = vadd.f32 %v4112, %v4689
        %4691 = vmatmul.bf16.gmra.mxu0 %v4008
        %v4692 = vpop.f32.mrf.mxu0
        %v4693 = vadd.f32 %v4112, %v4692
        %v4694 = vpop.f32.mrf.mxu0
        %v4695 = vadd.f32 %v4112, %v4694
        %4696 = vdwg.mxu0
        %4697 = vmatpush.bf16.msra.mxu0 %v4502
        %4698 = vmatpush.bf16.msra.mxu0 %v4496
        %4699 = vmatpush.bf16.msra.mxu0 %v4490
        %4700 = vmatpush.bf16.msra.mxu0 %v4484
        %4701 = vmatpush.bf16.msra.mxu0 %v4478
        %4702 = vmatpush.bf16.msra.mxu0 %v4472
        %4703 = vmatpush.bf16.msra.mxu0 %v4466
        %4704 = vmatpush.bf16.msra.mxu0 %v4460
        %4705 = vmatmul.bf16.gmra.mxu0 %v4007
        %v4706 = vpop.f32.mrf.mxu0
        %v4707 = vadd.f32 %v4688, %v4706
        %v4708 = vpop.f32.mrf.mxu0
        %v4709 = vadd.f32 %v4690, %v4708
        %4710 = vmatmul.bf16.gmra.mxu0 %v4009
        %v4711 = vpop.f32.mrf.mxu0
        %v4712 = vadd.f32 %v4693, %v4711
        %v4713 = vpop.f32.mrf.mxu0
        %v4714 = vadd.f32 %v4695, %v4713
        %4715 = vdwg.mxu0
        %4716 = vmatpush.bf16.msra.mxu0 %v4455
        %4717 = vmatpush.bf16.msra.mxu0 %v4449
        %4718 = vmatpush.bf16.msra.mxu0 %v4443
        %4719 = vmatpush.bf16.msra.mxu0 %v4437
        %4720 = vmatpush.bf16.msra.mxu0 %v4431
        %4721 = vmatpush.bf16.msra.mxu0 %v4425
        %4722 = vmatpush.bf16.msra.mxu0 %v4419
        %4723 = vmatpush.bf16.msra.mxu0 %v4413
        %4724 = vmatmul.bf16.gmra.mxu0 %v4006
        %v4725 = vpop.f32.mrf.mxu0
        %v4726 = vadd.f32 %v4113, %v4725
        %v4727 = vpop.f32.mrf.mxu0
        %v4728 = vadd.f32 %v4113, %v4727
        %4729 = vmatmul.bf16.gmra.mxu0 %v4008
        %v4730 = vpop.f32.mrf.mxu0
        %v4731 = vadd.f32 %v4113, %v4730
        %v4732 = vpop.f32.mrf.mxu0
        %v4733 = vadd.f32 %v4113, %v4732
        %4734 = vdwg.mxu0
        %4735 = vmatpush.bf16.msra.mxu0 %v4503
        %4736 = vmatpush.bf16.msra.mxu0 %v4497
        %4737 = vmatpush.bf16.msra.mxu0 %v4491
        %4738 = vmatpush.bf16.msra.mxu0 %v4485
        %4739 = vmatpush.bf16.msra.mxu0 %v4479
        %4740 = vmatpush.bf16.msra.mxu0 %v4473
        %4741 = vmatpush.bf16.msra.mxu0 %v4467
        %4742 = vmatpush.bf16.msra.mxu0 %v4461
        %4743 = vmatmul.bf16.gmra.mxu0 %v4007
        %v4744 = vpop.f32.mrf.mxu0
        %v4745 = vadd.f32 %v4726, %v4744
        %v4746 = vpop.f32.mrf.mxu0
        %v4747 = vadd.f32 %v4728, %v4746
        %4748 = vmatmul.bf16.gmra.mxu0 %v4009
        %v4749 = vpop.f32.mrf.mxu0
        %v4750 = vadd.f32 %v4731, %v4749
        %v4751 = vpop.f32.mrf.mxu0
        %v4752 = vadd.f32 %v4733, %v4751
        %4753 = vdwg.mxu0
        %4754 = vmatpush.bf16.msra.mxu0 %v4456
        %4755 = vmatpush.bf16.msra.mxu0 %v4450
        %4756 = vmatpush.bf16.msra.mxu0 %v4444
        %4757 = vmatpush.bf16.msra.mxu0 %v4438
        %4758 = vmatpush.bf16.msra.mxu0 %v4432
        %4759 = vmatpush.bf16.msra.mxu0 %v4426
        %4760 = vmatpush.bf16.msra.mxu0 %v4420
        %4761 = vmatpush.bf16.msra.mxu0 %v4414
        %4762 = vmatmul.bf16.gmra.mxu0 %v4006
        %v4763 = vpop.f32.mrf.mxu0
        %v4764 = vadd.f32 %v4114, %v4763
        %v4765 = vpop.f32.mrf.mxu0
        %v4766 = vadd.f32 %v4114, %v4765
        %4767 = vmatmul.bf16.gmra.mxu0 %v4008
        %v4768 = vpop.f32.mrf.mxu0
        %v4769 = vadd.f32 %v4114, %v4768
        %v4770 = vpop.f32.mrf.mxu0
        %v4771 = vadd.f32 %v4114, %v4770
        %4772 = vdwg.mxu0
        %4773 = vmatpush.bf16.msra.mxu0 %v4504
        %4774 = vmatpush.bf16.msra.mxu0 %v4498
        %4775 = vmatpush.bf16.msra.mxu0 %v4492
        %4776 = vmatpush.bf16.msra.mxu0 %v4486
        %4777 = vmatpush.bf16.msra.mxu0 %v4480
        %4778 = vmatpush.bf16.msra.mxu0 %v4474
        %4779 = vmatpush.bf16.msra.mxu0 %v4468
        %4780 = vmatpush.bf16.msra.mxu0 %v4462
        %4781 = vmatmul.bf16.gmra.mxu0 %v4007
        %v4782 = vpop.f32.mrf.mxu0
        %v4783 = vadd.f32 %v4764, %v4782
        %v4784 = vpop.f32.mrf.mxu0
        %v4785 = vadd.f32 %v4766, %v4784
        %4786 = vmatmul.bf16.gmra.mxu0 %v4009
        %v4787 = vpop.f32.mrf.mxu0
        %v4788 = vadd.f32 %v4769, %v4787
        %v4789 = vpop.f32.mrf.mxu0
        %v4790 = vadd.f32 %v4771, %v4789
        %4791 = vdwg.mxu0
        %4792 = vmatpush.bf16.msra.mxu0 %v4457
        %4793 = vmatpush.bf16.msra.mxu0 %v4451
        %4794 = vmatpush.bf16.msra.mxu0 %v4445
        %4795 = vmatpush.bf16.msra.mxu0 %v4439
        %4796 = vmatpush.bf16.msra.mxu0 %v4433
        %4797 = vmatpush.bf16.msra.mxu0 %v4427
        %4798 = vmatpush.bf16.msra.mxu0 %v4421
        %4799 = vmatpush.bf16.msra.mxu0 %v4415
        %4800 = vmatmul.bf16.gmra.mxu0 %v4006
        %v4801 = vpop.f32.mrf.mxu0
        %v4802 = vadd.f32 %v4115, %v4801
        %v4803 = vpop.f32.mrf.mxu0
        %v4804 = vadd.f32 %v4115, %v4803
        %4805 = vmatmul.bf16.gmra.mxu0 %v4008
        %v4806 = vpop.f32.mrf.mxu0
        %v4807 = vadd.f32 %v4115, %v4806
        %v4808 = vpop.f32.mrf.mxu0
        %v4809 = vadd.f32 %v4115, %v4808
        %4810 = vdwg.mxu0
        %4811 = vmatpush.bf16.msra.mxu0 %v4505
        %4812 = vmatpush.bf16.msra.mxu0 %v4499
        %4813 = vmatpush.bf16.msra.mxu0 %v4493
        %4814 = vmatpush.bf16.msra.mxu0 %v4487
        %4815 = vmatpush.bf16.msra.mxu0 %v4481
        %4816 = vmatpush.bf16.msra.mxu0 %v4475
        %4817 = vmatpush.bf16.msra.mxu0 %v4469
        %4818 = vmatpush.bf16.msra.mxu0 %v4463
        %4819 = vmatmul.bf16.gmra.mxu0 %v4007
        %v4820 = vpop.f32.mrf.mxu0
        %v4821 = vadd.f32 %v4802, %v4820
        %v4822 = vpop.f32.mrf.mxu0
        %v4823 = vadd.f32 %v4804, %v4822
        %4824 = vmatmul.bf16.gmra.mxu0 %v4009
        %v4825 = vpop.f32.mrf.mxu0
        %v4826 = vadd.f32 %v4807, %v4825
        %v4827 = vpop.f32.mrf.mxu0
        %v4828 = vadd.f32 %v4809, %v4827
        %4829 = vdwg.mxu0
        %v4830 = vpack.c.bf16 %v4631, %v4631
        %v4831 = vpack.c.bf16 %v4633, %v4633
        %v4832 = vpack.c.bf16 %v4636, %v4636
        %v4833 = vpack.c.bf16 %v4638, %v4638
        %v4834 = vpack.c.bf16 %v4707, %v4707
        %v4835 = vpack.c.bf16 %v4709, %v4709
        %v4836 = vpack.c.bf16 %v4712, %v4712
        %v4837 = vpack.c.bf16 %v4714, %v4714
        %v4838 = vpack.c.bf16 %v4783, %v4783
        %v4839 = vpack.c.bf16 %v4785, %v4785
        %v4840 = vpack.c.bf16 %v4788, %v4788
        %v4841 = vpack.c.bf16 %v4790, %v4790
        %v4843 = vsel %vm922, %v4830, 0
        %v4846 = vsel %vm922, %v4834, 0
        %4848 = vmatpush.bf16.xpose.msra.mxu0 0
        %4849 = vmatpush.bf16.xpose.msra.mxu0 0
        %4850 = vmatpush.bf16.xpose.msra.mxu0 0
        %4851 = vmatpush.bf16.xpose.msra.mxu0 0
        %4852 = vmatpush.bf16.xpose.msra.mxu0 0
        %4853 = vmatpush.bf16.xpose.msra.mxu0 0
        %4854 = vmatpush.bf16.xpose.msra.mxu0 0
        %4855 = vmatpush.bf16.xpose.msra.mxu0 %v4846
        %4856 = vmatmul.bf16.gmra.mxu0 %v4843
        %v4857 = vpop.f32.mrf.mxu0
        %v4858 = vadd.f32 0.0, %v4857
        %v4859 = vpop.f32.mrf.mxu0
        %4860 = vdwg.mxu0
        %v4862 = vsel %vm922, %v4831, 0
        %v4865 = vsel %vm922, %v4835, 0
        %4867 = vmatpush.bf16.xpose.msra.mxu0 0
        %4868 = vmatpush.bf16.xpose.msra.mxu0 0
        %4869 = vmatpush.bf16.xpose.msra.mxu0 0
        %4870 = vmatpush.bf16.xpose.msra.mxu0 0
        %4871 = vmatpush.bf16.xpose.msra.mxu0 0
        %4872 = vmatpush.bf16.xpose.msra.mxu0 0
        %4873 = vmatpush.bf16.xpose.msra.mxu0 0
        %4874 = vmatpush.bf16.xpose.msra.mxu0 %v4865
        %4875 = vmatmul.bf16.gmra.mxu0 %v4862
        %v4876 = vpop.f32.mrf.mxu0
        %v4877 = vadd.f32 0.0, %v4876
        %v4878 = vpop.f32.mrf.mxu0
        %4879 = vdwg.mxu0
        %v4881 = vsel %vm922, %v4832, 0
        %v4884 = vsel %vm922, %v4836, 0
        %4886 = vmatpush.bf16.xpose.msra.mxu0 0
        %4887 = vmatpush.bf16.xpose.msra.mxu0 0
        %4888 = vmatpush.bf16.xpose.msra.mxu0 0
        %4889 = vmatpush.bf16.xpose.msra.mxu0 0
        %4890 = vmatpush.bf16.xpose.msra.mxu0 0
        %4891 = vmatpush.bf16.xpose.msra.mxu0 0
        %4892 = vmatpush.bf16.xpose.msra.mxu0 0
        %4893 = vmatpush.bf16.xpose.msra.mxu0 %v4884
        %4894 = vmatmul.bf16.gmra.mxu0 %v4881
        %v4895 = vpop.f32.mrf.mxu0
        %v4896 = vadd.f32 0.0, %v4895
        %v4897 = vpop.f32.mrf.mxu0
        %4898 = vdwg.mxu0
        %v4900 = vsel %vm922, %v4833, 0
        %v4903 = vsel %vm922, %v4837, 0
        %4905 = vmatpush.bf16.xpose.msra.mxu0 0
        %4906 = vmatpush.bf16.xpose.msra.mxu0 0
        %4907 = vmatpush.bf16.xpose.msra.mxu0 0
        %4908 = vmatpush.bf16.xpose.msra.mxu0 0
        %4909 = vmatpush.bf16.xpose.msra.mxu0 0
        %4910 = vmatpush.bf16.xpose.msra.mxu0 0
        %4911 = vmatpush.bf16.xpose.msra.mxu0 0
        %4912 = vmatpush.bf16.xpose.msra.mxu0 %v4903
        %4913 = vmatmul.bf16.gmra.mxu0 %v4900
        %v4914 = vpop.f32.mrf.mxu0
        %v4915 = vadd.f32 0.0, %v4914
        %v4916 = vpop.f32.mrf.mxu0
        %4917 = vdwg.mxu0
        %v4918 = vmul.f32 %v4858, 0.125
        %v4919 = vmul.f32 %v4877, 0.125
        %v4920 = vmul.f32 %v4896, 0.125
        %v4921 = vmul.f32 %v4915, 0.125
        %v4922 = vsel %vm1024, %v4918, -1000000.0
        %v4923 = vsel %vm1025, %v4919, -1000000.0
        %v4924 = vsel %vm1026, %v4920, -1000000.0
        %v4925 = vsel %vm1027, %v4921, -1000000.0
        %v4926 = vsel %vm1946, %v4922, -inf
        %4927 = vmax.xlane.f32.xlu0 %v4926
        %v4928 = vpop.xlane.xlu0 %4927
        %v4929 = vsel %vm1946, %v4923, -inf
        %4930 = vmax.xlane.f32.xlu0 %v4929
        %v4931 = vpop.xlane.xlu0 %4930
        %v4932 = vsel %vm1946, %v4924, -inf
        %4933 = vmax.xlane.f32.xlu0 %v4932
        %v4934 = vpop.xlane.xlu0 %4933
        %v4935 = vsel %vm1946, %v4925, -inf
        %4936 = vmax.xlane.f32.xlu0 %v4935
        %v4937 = vpop.xlane.xlu0 %4936
        %v4938 = vsub.f32 %v4922, %v4928
        %v4939 = vsub.f32 %v4923, %v4931
        %v4940 = vsub.f32 %v4924, %v4934
        %v4941 = vsub.f32 %v4925, %v4937
        %v4942 = vmul.f32 %v4938, 1.442695
        %v4943 = vpow.pop %v4942
        %v4944 = vmul.f32 %v4939, 1.442695
        %v4945 = vpow.pop %v4944
        %v4946 = vmul.f32 %v4940, 1.442695
        %v4947 = vpow.pop %v4946
        %v4948 = vmul.f32 %v4941, 1.442695
        %v4949 = vpow.pop %v4948
        %v4950 = vsel %vm1946, %v4943, 0.0
        %4951 = vadd.xlane.f32.xlu0 %v4950
        %v4952 = vpop.xlane.xlu0 %4951
        %v4953 = vsel %vm1946, %v4945, 0.0
        %4954 = vadd.xlane.f32.xlu0 %v4953
        %v4955 = vpop.xlane.xlu0 %4954
        %v4956 = vsel %vm1946, %v4947, 0.0
        %4957 = vadd.xlane.f32.xlu0 %v4956
        %v4958 = vpop.xlane.xlu0 %4957
        %v4959 = vsel %vm1946, %v4949, 0.0
        %4960 = vadd.xlane.f32.xlu0 %v4959
        %v4961 = vpop.xlane.xlu0 %4960
        %v4962 = vrcp.pop %v4952
        %v4963 = vrcp.pop %v4955
        %v4964 = vrcp.pop %v4958
        %v4965 = vrcp.pop %v4961
        %v4966 = vmul.f32 %v4943, %v4962
        %v4967 = vmul.f32 %v4945, %v4963
        %v4968 = vmul.f32 %v4947, %v4964
        %v4969 = vmul.f32 %v4949, %v4965
        %v4970 = vpack.c.bf16 %v4966, %v4966
        %v4971 = vpack.c.bf16 %v4967, %v4967
        %v4972 = vpack.c.bf16 %v4968, %v4968
        %v4973 = vpack.c.bf16 %v4969, %v4969
        %v4975 = vsel %vm1946, %v4970, 0
        %v4978 = vsel %vm1998, %v4838, 0
        %4980 = vmatpush.bf16.msra.mxu0 0
        %4981 = vmatpush.bf16.msra.mxu0 0
        %4982 = vmatpush.bf16.msra.mxu0 0
        %4983 = vmatpush.bf16.msra.mxu0 0
        %4984 = vmatpush.bf16.msra.mxu0 0
        %4985 = vmatpush.bf16.msra.mxu0 0
        %4986 = vmatpush.bf16.msra.mxu0 0
        %4987 = vmatpush.bf16.msra.mxu0 %v4978
        %4988 = vmatmul.bf16.gmra.mxu0 %v4975
        %v4989 = vpop.f32.mrf.mxu0
        %v4990 = vadd.f32 0.0, %v4989
        %v4991 = vpop.f32.mrf.mxu0
        %4992 = vdwg.mxu0
        %v4994 = vsel %vm1946, %v4971, 0
        %v4997 = vsel %vm1998, %v4839, 0
        %4999 = vmatpush.bf16.msra.mxu0 0
        %5000 = vmatpush.bf16.msra.mxu0 0
        %5001 = vmatpush.bf16.msra.mxu0 0
        %5002 = vmatpush.bf16.msra.mxu0 0
        %5003 = vmatpush.bf16.msra.mxu0 0
        %5004 = vmatpush.bf16.msra.mxu0 0
        %5005 = vmatpush.bf16.msra.mxu0 0
        %5006 = vmatpush.bf16.msra.mxu0 %v4997
        %5007 = vmatmul.bf16.gmra.mxu0 %v4994
        %v5008 = vpop.f32.mrf.mxu0
        %v5009 = vadd.f32 0.0, %v5008
        %v5010 = vpop.f32.mrf.mxu0
        %5011 = vdwg.mxu0
        %v5013 = vsel %vm1946, %v4972, 0
        %v5016 = vsel %vm1998, %v4840, 0
        %5018 = vmatpush.bf16.msra.mxu0 0
        %5019 = vmatpush.bf16.msra.mxu0 0
        %5020 = vmatpush.bf16.msra.mxu0 0
        %5021 = vmatpush.bf16.msra.mxu0 0
        %5022 = vmatpush.bf16.msra.mxu0 0
        %5023 = vmatpush.bf16.msra.mxu0 0
        %5024 = vmatpush.bf16.msra.mxu0 0
        %5025 = vmatpush.bf16.msra.mxu0 %v5016
        %5026 = vmatmul.bf16.gmra.mxu0 %v5013
        %v5027 = vpop.f32.mrf.mxu0
        %v5028 = vadd.f32 0.0, %v5027
        %v5029 = vpop.f32.mrf.mxu0
        %5030 = vdwg.mxu0
        %v5032 = vsel %vm1946, %v4973, 0
        %v5035 = vsel %vm1998, %v4841, 0
        %5037 = vmatpush.bf16.msra.mxu0 0
        %5038 = vmatpush.bf16.msra.mxu0 0
        %5039 = vmatpush.bf16.msra.mxu0 0
        %5040 = vmatpush.bf16.msra.mxu0 0
        %5041 = vmatpush.bf16.msra.mxu0 0
        %5042 = vmatpush.bf16.msra.mxu0 0
        %5043 = vmatpush.bf16.msra.mxu0 0
        %5044 = vmatpush.bf16.msra.mxu0 %v5035
        %5045 = vmatmul.bf16.gmra.mxu0 %v5032
        %v5046 = vpop.f32.mrf.mxu0
        %v5047 = vadd.f32 0.0, %v5046
        %v5048 = vpop.f32.mrf.mxu0
        %5049 = vdwg.mxu0
        %5050 = vst.msk [vmem:[#allocation2] sm:$0xff] %vm922, %v4990
        %5051 = vst.msk [vmem:[#allocation2 + $0x10] sm:$0xff] %vm922, %v5009
        %5052 = vst.msk [vmem:[#allocation2 + $0x20] sm:$0xff] %vm922, %v5028
        %5053 = vst.msk [vmem:[#allocation2 + $0x30] sm:$0xff] %vm922, %v5047
        %v5055 = vunpack.c.l.b16 %v4830
        %v5056 = vpack.c.b16 %v5055, %v5055
        %5057 = vrot.lane.b32.xlu0 %v5056, 64
        %v5058 = vpop.permute.xlu0 %5057
        %v5060 = vunpack.c.l.b16 %v4834
        %v5061 = vpack.c.b16 %v5060, %v5060
        %5062 = vrot.lane.b32.xlu0 %v5061, 64
        %v5063 = vpop.permute.xlu0 %5062
        %v5065 = vsel %vm922, %v5058, 0
        %v5068 = vsel %vm922, %v5063, 0
        %5070 = vmatpush.bf16.xpose.msra.mxu0 0
        %5071 = vmatpush.bf16.xpose.msra.mxu0 0
        %5072 = vmatpush.bf16.xpose.msra.mxu0 0
        %5073 = vmatpush.bf16.xpose.msra.mxu0 0
        %5074 = vmatpush.bf16.xpose.msra.mxu0 0
        %5075 = vmatpush.bf16.xpose.msra.mxu0 0
        %5076 = vmatpush.bf16.xpose.msra.mxu0 0
        %5077 = vmatpush.bf16.xpose.msra.mxu0 %v5068
        %5078 = vmatmul.bf16.gmra.mxu0 %v5065
        %v5079 = vpop.f32.mrf.mxu0
        %v5080 = vadd.f32 0.0, %v5079
        %v5081 = vpop.f32.mrf.mxu0
        %5082 = vdwg.mxu0
        %v5084 = vunpack.c.l.b16 %v4831
        %v5085 = vpack.c.b16 %v5084, %v5084
        %5086 = vrot.lane.b32.xlu0 %v5085, 64
        %v5087 = vpop.permute.xlu0 %5086
        %v5089 = vunpack.c.l.b16 %v4835
        %v5090 = vpack.c.b16 %v5089, %v5089
        %5091 = vrot.lane.b32.xlu0 %v5090, 64
        %v5092 = vpop.permute.xlu0 %5091
        %v5094 = vsel %vm922, %v5087, 0
        %v5097 = vsel %vm922, %v5092, 0
        %5099 = vmatpush.bf16.xpose.msra.mxu0 0
        %5100 = vmatpush.bf16.xpose.msra.mxu0 0
        %5101 = vmatpush.bf16.xpose.msra.mxu0 0
        %5102 = vmatpush.bf16.xpose.msra.mxu0 0
        %5103 = vmatpush.bf16.xpose.msra.mxu0 0
        %5104 = vmatpush.bf16.xpose.msra.mxu0 0
        %5105 = vmatpush.bf16.xpose.msra.mxu0 0
        %5106 = vmatpush.bf16.xpose.msra.mxu0 %v5097
        %5107 = vmatmul.bf16.gmra.mxu0 %v5094
        %v5108 = vpop.f32.mrf.mxu0
        %v5109 = vadd.f32 0.0, %v5108
        %v5110 = vpop.f32.mrf.mxu0
        %5111 = vdwg.mxu0
        %v5113 = vunpack.c.l.b16 %v4832
        %v5114 = vpack.c.b16 %v5113, %v5113
        %5115 = vrot.lane.b32.xlu0 %v5114, 64
        %v5116 = vpop.permute.xlu0 %5115
        %v5118 = vunpack.c.l.b16 %v4836
        %v5119 = vpack.c.b16 %v5118, %v5118
        %5120 = vrot.lane.b32.xlu0 %v5119, 64
        %v5121 = vpop.permute.xlu0 %5120
        %v5123 = vsel %vm922, %v5116, 0
        %v5126 = vsel %vm922, %v5121, 0
        %5128 = vmatpush.bf16.xpose.msra.mxu0 0
        %5129 = vmatpush.bf16.xpose.msra.mxu0 0
        %5130 = vmatpush.bf16.xpose.msra.mxu0 0
        %5131 = vmatpush.bf16.xpose.msra.mxu0 0
        %5132 = vmatpush.bf16.xpose.msra.mxu0 0
        %5133 = vmatpush.bf16.xpose.msra.mxu0 0
        %5134 = vmatpush.bf16.xpose.msra.mxu0 0
        %5135 = vmatpush.bf16.xpose.msra.mxu0 %v5126
        %5136 = vmatmul.bf16.gmra.mxu0 %v5123
        %v5137 = vpop.f32.mrf.mxu0
        %v5138 = vadd.f32 0.0, %v5137
        %v5139 = vpop.f32.mrf.mxu0
        %5140 = vdwg.mxu0
        %v5142 = vunpack.c.l.b16 %v4833
        %v5143 = vpack.c.b16 %v5142, %v5142
        %5144 = vrot.lane.b32.xlu0 %v5143, 64
        %v5145 = vpop.permute.xlu0 %5144
        %v5147 = vunpack.c.l.b16 %v4837
        %v5148 = vpack.c.b16 %v5147, %v5147
        %5149 = vrot.lane.b32.xlu0 %v5148, 64
        %v5150 = vpop.permute.xlu0 %5149
        %v5152 = vsel %vm922, %v5145, 0
        %v5155 = vsel %vm922, %v5150, 0
        %5157 = vmatpush.bf16.xpose.msra.mxu0 0
        %5158 = vmatpush.bf16.xpose.msra.mxu0 0
        %5159 = vmatpush.bf16.xpose.msra.mxu0 0
        %5160 = vmatpush.bf16.xpose.msra.mxu0 0
        %5161 = vmatpush.bf16.xpose.msra.mxu0 0
        %5162 = vmatpush.bf16.xpose.msra.mxu0 0
        %5163 = vmatpush.bf16.xpose.msra.mxu0 0
        %5164 = vmatpush.bf16.xpose.msra.mxu0 %v5155
        %5165 = vmatmul.bf16.gmra.mxu0 %v5152
        %v5166 = vpop.f32.mrf.mxu0
        %v5167 = vadd.f32 0.0, %v5166
        %v5168 = vpop.f32.mrf.mxu0
        %5169 = vdwg.mxu0
        %v5170 = vmul.f32 %v5080, 0.125
        %v5171 = vmul.f32 %v5109, 0.125
        %v5172 = vmul.f32 %v5138, 0.125
        %v5173 = vmul.f32 %v5167, 0.125
        %v5174 = vsel %vm1024, %v5170, -1000000.0
        %v5175 = vsel %vm1025, %v5171, -1000000.0
        %v5176 = vsel %vm1026, %v5172, -1000000.0
        %v5177 = vsel %vm1027, %v5173, -1000000.0
        %v5178 = vsel %vm1946, %v5174, -inf
        %5179 = vmax.xlane.f32.xlu0 %v5178
        %v5180 = vpop.xlane.xlu0 %5179
        %v5181 = vsel %vm1946, %v5175, -inf
        %5182 = vmax.xlane.f32.xlu0 %v5181
        %v5183 = vpop.xlane.xlu0 %5182
        %v5184 = vsel %vm1946, %v5176, -inf
        %5185 = vmax.xlane.f32.xlu0 %v5184
        %v5186 = vpop.xlane.xlu0 %5185
        %v5187 = vsel %vm1946, %v5177, -inf
        %5188 = vmax.xlane.f32.xlu0 %v5187
        %v5189 = vpop.xlane.xlu0 %5188
        %v5190 = vsub.f32 %v5174, %v5180
        %v5191 = vsub.f32 %v5175, %v5183
        %v5192 = vsub.f32 %v5176, %v5186
        %v5193 = vsub.f32 %v5177, %v5189
        %v5194 = vmul.f32 %v5190, 1.442695
        %v5195 = vpow.pop %v5194
        %v5196 = vmul.f32 %v5191, 1.442695
        %v5197 = vpow.pop %v5196
        %v5198 = vmul.f32 %v5192, 1.442695
        %v5199 = vpow.pop %v5198
        %v5200 = vmul.f32 %v5193, 1.442695
        %v5201 = vpow.pop %v5200
        %v5202 = vsel %vm1946, %v5195, 0.0
        %5203 = vadd.xlane.f32.xlu0 %v5202
        %v5204 = vpop.xlane.xlu0 %5203
        %v5205 = vsel %vm1946, %v5197, 0.0
        %5206 = vadd.xlane.f32.xlu0 %v5205
        %v5207 = vpop.xlane.xlu0 %5206
        %v5208 = vsel %vm1946, %v5199, 0.0
        %5209 = vadd.xlane.f32.xlu0 %v5208
        %v5210 = vpop.xlane.xlu0 %5209
        %v5211 = vsel %vm1946, %v5201, 0.0
        %5212 = vadd.xlane.f32.xlu0 %v5211
        %v5213 = vpop.xlane.xlu0 %5212
        %v5214 = vrcp.pop %v5204
        %v5215 = vrcp.pop %v5207
        %v5216 = vrcp.pop %v5210
        %v5217 = vrcp.pop %v5213
        %v5218 = vmul.f32 %v5195, %v5214
        %v5219 = vmul.f32 %v5197, %v5215
        %v5220 = vmul.f32 %v5199, %v5216
        %v5221 = vmul.f32 %v5201, %v5217
        %v5222 = vpack.c.bf16 %v5218, %v5218
        %v5223 = vpack.c.bf16 %v5219, %v5219
        %v5224 = vpack.c.bf16 %v5220, %v5220
        %v5225 = vpack.c.bf16 %v5221, %v5221
        %v5227 = vunpack.c.l.b16 %v4838
        %v5228 = vpack.c.b16 %v5227, %v5227
        %5229 = vrot.lane.b32.xlu0 %v5228, 64
        %v5230 = vpop.permute.xlu0 %5229
        %v5232 = vsel %vm1946, %v5222, 0
        %v5235 = vsel %vm1998, %v5230, 0
        %5237 = vmatpush.bf16.msra.mxu0 0
        %5238 = vmatpush.bf16.msra.mxu0 0
        %5239 = vmatpush.bf16.msra.mxu0 0
        %5240 = vmatpush.bf16.msra.mxu0 0
        %5241 = vmatpush.bf16.msra.mxu0 0
        %5242 = vmatpush.bf16.msra.mxu0 0
        %5243 = vmatpush.bf16.msra.mxu0 0
        %5244 = vmatpush.bf16.msra.mxu0 %v5235
        %5245 = vmatmul.bf16.gmra.mxu0 %v5232
        %v5246 = vpop.f32.mrf.mxu0
        %v5247 = vadd.f32 0.0, %v5246
        %v5248 = vpop.f32.mrf.mxu0
        %5249 = vdwg.mxu0
        %v5251 = vunpack.c.l.b16 %v4839
        %v5252 = vpack.c.b16 %v5251, %v5251
        %5253 = vrot.lane.b32.xlu0 %v5252, 64
        %v5254 = vpop.permute.xlu0 %5253
        %v5256 = vsel %vm1946, %v5223, 0
        %v5259 = vsel %vm1998, %v5254, 0
        %5261 = vmatpush.bf16.msra.mxu0 0
        %5262 = vmatpush.bf16.msra.mxu0 0
        %5263 = vmatpush.bf16.msra.mxu0 0
        %5264 = vmatpush.bf16.msra.mxu0 0
        %5265 = vmatpush.bf16.msra.mxu0 0
        %5266 = vmatpush.bf16.msra.mxu0 0
        %5267 = vmatpush.bf16.msra.mxu0 0
        %5268 = vmatpush.bf16.msra.mxu0 %v5259
        %5269 = vmatmul.bf16.gmra.mxu0 %v5256
        %v5270 = vpop.f32.mrf.mxu0
        %v5271 = vadd.f32 0.0, %v5270
        %v5272 = vpop.f32.mrf.mxu0
        %5273 = vdwg.mxu0
        %v5275 = vunpack.c.l.b16 %v4840
        %v5276 = vpack.c.b16 %v5275, %v5275
        %5277 = vrot.lane.b32.xlu0 %v5276, 64
        %v5278 = vpop.permute.xlu0 %5277
        %v5280 = vsel %vm1946, %v5224, 0
        %v5283 = vsel %vm1998, %v5278, 0
        %5285 = vmatpush.bf16.msra.mxu0 0
        %5286 = vmatpush.bf16.msra.mxu0 0
        %5287 = vmatpush.bf16.msra.mxu0 0
        %5288 = vmatpush.bf16.msra.mxu0 0
        %5289 = vmatpush.bf16.msra.mxu0 0
        %5290 = vmatpush.bf16.msra.mxu0 0
        %5291 = vmatpush.bf16.msra.mxu0 0
        %5292 = vmatpush.bf16.msra.mxu0 %v5283
        %5293 = vmatmul.bf16.gmra.mxu0 %v5280
        %v5294 = vpop.f32.mrf.mxu0
        %v5295 = vadd.f32 0.0, %v5294
        %v5296 = vpop.f32.mrf.mxu0
        %5297 = vdwg.mxu0
        %v5299 = vunpack.c.l.b16 %v4841
        %v5300 = vpack.c.b16 %v5299, %v5299
        %5301 = vrot.lane.b32.xlu0 %v5300, 64
        %v5302 = vpop.permute.xlu0 %5301
        %v5304 = vsel %vm1946, %v5225, 0
        %v5307 = vsel %vm1998, %v5302, 0
        %5309 = vmatpush.bf16.msra.mxu0 0
        %5310 = vmatpush.bf16.msra.mxu0 0
        %5311 = vmatpush.bf16.msra.mxu0 0
        %5312 = vmatpush.bf16.msra.mxu0 0
        %5313 = vmatpush.bf16.msra.mxu0 0
        %5314 = vmatpush.bf16.msra.mxu0 0
        %5315 = vmatpush.bf16.msra.mxu0 0
        %5316 = vmatpush.bf16.msra.mxu0 %v5307
        %5317 = vmatmul.bf16.gmra.mxu0 %v5304
        %v5318 = vpop.f32.mrf.mxu0
        %v5319 = vadd.f32 0.0, %v5318
        %v5320 = vpop.f32.mrf.mxu0
        %5321 = vdwg.mxu0
        %5326 = vrot.lane.b32.xlu0 %v5247, 64
        %v5327 = vpop.permute.xlu0 %5326
        %5328 = vrot.lane.b32.xlu0 %v5271, 64
        %v5329 = vpop.permute.xlu0 %5328
        %5330 = vrot.lane.b32.xlu0 %v5295, 64
        %v5331 = vpop.permute.xlu0 %5330
        %5332 = vrot.lane.b32.xlu0 %v5319, 64
        %v5333 = vpop.permute.xlu0 %5332
        %5338 = vst.msk [vmem:[#allocation2] sm:$0xff] %vm2360, %v5327
        %5339 = vst.msk [vmem:[#allocation2 + $0x10] sm:$0xff] %vm2360, %v5329
        %5340 = vst.msk [vmem:[#allocation2 + $0x20] sm:$0xff] %vm2360, %v5331
        %5341 = vst.msk [vmem:[#allocation2 + $0x30] sm:$0xff] %vm2360, %v5333
        %v5342 = vpack.c.bf16 %v4669, %v4669
        %v5343 = vpack.c.bf16 %v4671, %v4671
        %v5344 = vpack.c.bf16 %v4674, %v4674
        %v5345 = vpack.c.bf16 %v4676, %v4676
        %v5346 = vpack.c.bf16 %v4745, %v4745
        %v5347 = vpack.c.bf16 %v4747, %v4747
        %v5348 = vpack.c.bf16 %v4750, %v4750
        %v5349 = vpack.c.bf16 %v4752, %v4752
        %v5350 = vpack.c.bf16 %v4821, %v4821
        %v5351 = vpack.c.bf16 %v4823, %v4823
        %v5352 = vpack.c.bf16 %v4826, %v4826
        %v5353 = vpack.c.bf16 %v4828, %v4828
        %v5355 = vsel %vm922, %v5342, 0
        %v5358 = vsel %vm922, %v5346, 0
        %5360 = vmatpush.bf16.xpose.msra.mxu0 0
        %5361 = vmatpush.bf16.xpose.msra.mxu0 0
        %5362 = vmatpush.bf16.xpose.msra.mxu0 0
        %5363 = vmatpush.bf16.xpose.msra.mxu0 0
        %5364 = vmatpush.bf16.xpose.msra.mxu0 0
        %5365 = vmatpush.bf16.xpose.msra.mxu0 0
        %5366 = vmatpush.bf16.xpose.msra.mxu0 0
        %5367 = vmatpush.bf16.xpose.msra.mxu0 %v5358
        %5368 = vmatmul.bf16.gmra.mxu0 %v5355
        %v5369 = vpop.f32.mrf.mxu0
        %v5370 = vadd.f32 0.0, %v5369
        %v5371 = vpop.f32.mrf.mxu0
        %5372 = vdwg.mxu0
        %v5374 = vsel %vm922, %v5343, 0
        %v5377 = vsel %vm922, %v5347, 0
        %5379 = vmatpush.bf16.xpose.msra.mxu0 0
        %5380 = vmatpush.bf16.xpose.msra.mxu0 0
        %5381 = vmatpush.bf16.xpose.msra.mxu0 0
        %5382 = vmatpush.bf16.xpose.msra.mxu0 0
        %5383 = vmatpush.bf16.xpose.msra.mxu0 0
        %5384 = vmatpush.bf16.xpose.msra.mxu0 0
        %5385 = vmatpush.bf16.xpose.msra.mxu0 0
        %5386 = vmatpush.bf16.xpose.msra.mxu0 %v5377
        %5387 = vmatmul.bf16.gmra.mxu0 %v5374
        %v5388 = vpop.f32.mrf.mxu0
        %v5389 = vadd.f32 0.0, %v5388
        %v5390 = vpop.f32.mrf.mxu0
        %5391 = vdwg.mxu0
        %v5393 = vsel %vm922, %v5344, 0
        %v5396 = vsel %vm922, %v5348, 0
        %5398 = vmatpush.bf16.xpose.msra.mxu0 0
        %5399 = vmatpush.bf16.xpose.msra.mxu0 0
        %5400 = vmatpush.bf16.xpose.msra.mxu0 0
        %5401 = vmatpush.bf16.xpose.msra.mxu0 0
        %5402 = vmatpush.bf16.xpose.msra.mxu0 0
        %5403 = vmatpush.bf16.xpose.msra.mxu0 0
        %5404 = vmatpush.bf16.xpose.msra.mxu0 0
        %5405 = vmatpush.bf16.xpose.msra.mxu0 %v5396
        %5406 = vmatmul.bf16.gmra.mxu0 %v5393
        %v5407 = vpop.f32.mrf.mxu0
        %v5408 = vadd.f32 0.0, %v5407
        %v5409 = vpop.f32.mrf.mxu0
        %5410 = vdwg.mxu0
        %v5412 = vsel %vm922, %v5345, 0
        %v5415 = vsel %vm922, %v5349, 0
        %5417 = vmatpush.bf16.xpose.msra.mxu0 0
        %5418 = vmatpush.bf16.xpose.msra.mxu0 0
        %5419 = vmatpush.bf16.xpose.msra.mxu0 0
        %5420 = vmatpush.bf16.xpose.msra.mxu0 0
        %5421 = vmatpush.bf16.xpose.msra.mxu0 0
        %5422 = vmatpush.bf16.xpose.msra.mxu0 0
        %5423 = vmatpush.bf16.xpose.msra.mxu0 0
        %5424 = vmatpush.bf16.xpose.msra.mxu0 %v5415
        %5425 = vmatmul.bf16.gmra.mxu0 %v5412
        %v5426 = vpop.f32.mrf.mxu0
        %v5427 = vadd.f32 0.0, %v5426
        %v5428 = vpop.f32.mrf.mxu0
        %5429 = vdwg.mxu0
        %v5430 = vmul.f32 %v5370, 0.125
        %v5431 = vmul.f32 %v5389, 0.125
        %v5432 = vmul.f32 %v5408, 0.125
        %v5433 = vmul.f32 %v5427, 0.125
        %v5434 = vsel %vm1024, %v5430, -1000000.0
        %v5435 = vsel %vm1025, %v5431, -1000000.0
        %v5436 = vsel %vm1026, %v5432, -1000000.0
        %v5437 = vsel %vm1027, %v5433, -1000000.0
        %v5438 = vsel %vm1946, %v5434, -inf
        %5439 = vmax.xlane.f32.xlu0 %v5438
        %v5440 = vpop.xlane.xlu0 %5439
        %v5441 = vsel %vm1946, %v5435, -inf
        %5442 = vmax.xlane.f32.xlu0 %v5441
        %v5443 = vpop.xlane.xlu0 %5442
        %v5444 = vsel %vm1946, %v5436, -inf
        %5445 = vmax.xlane.f32.xlu0 %v5444
        %v5446 = vpop.xlane.xlu0 %5445
        %v5447 = vsel %vm1946, %v5437, -inf
        %5448 = vmax.xlane.f32.xlu0 %v5447
        %v5449 = vpop.xlane.xlu0 %5448
        %v5450 = vsub.f32 %v5434, %v5440
        %v5451 = vsub.f32 %v5435, %v5443
        %v5452 = vsub.f32 %v5436, %v5446
        %v5453 = vsub.f32 %v5437, %v5449
        %v5454 = vmul.f32 %v5450, 1.442695
        %v5455 = vpow.pop %v5454
        %v5456 = vmul.f32 %v5451, 1.442695
        %v5457 = vpow.pop %v5456
        %v5458 = vmul.f32 %v5452, 1.442695
        %v5459 = vpow.pop %v5458
        %v5460 = vmul.f32 %v5453, 1.442695
        %v5461 = vpow.pop %v5460
        %v5462 = vsel %vm1946, %v5455, 0.0
        %5463 = vadd.xlane.f32.xlu0 %v5462
        %v5464 = vpop.xlane.xlu0 %5463
        %v5465 = vsel %vm1946, %v5457, 0.0
        %5466 = vadd.xlane.f32.xlu0 %v5465
        %v5467 = vpop.xlane.xlu0 %5466
        %v5468 = vsel %vm1946, %v5459, 0.0
        %5469 = vadd.xlane.f32.xlu0 %v5468
        %v5470 = vpop.xlane.xlu0 %5469
        %v5471 = vsel %vm1946, %v5461, 0.0
        %5472 = vadd.xlane.f32.xlu0 %v5471
        %v5473 = vpop.xlane.xlu0 %5472
        %v5474 = vrcp.pop %v5464
        %v5475 = vrcp.pop %v5467
        %v5476 = vrcp.pop %v5470
        %v5477 = vrcp.pop %v5473
        %v5478 = vmul.f32 %v5455, %v5474
        %v5479 = vmul.f32 %v5457, %v5475
        %v5480 = vmul.f32 %v5459, %v5476
        %v5481 = vmul.f32 %v5461, %v5477
        %v5482 = vpack.c.bf16 %v5478, %v5478
        %v5483 = vpack.c.bf16 %v5479, %v5479
        %v5484 = vpack.c.bf16 %v5480, %v5480
        %v5485 = vpack.c.bf16 %v5481, %v5481
        %v5487 = vsel %vm1946, %v5482, 0
        %v5490 = vsel %vm1998, %v5350, 0
        %5492 = vmatpush.bf16.msra.mxu0 0
        %5493 = vmatpush.bf16.msra.mxu0 0
        %5494 = vmatpush.bf16.msra.mxu0 0
        %5495 = vmatpush.bf16.msra.mxu0 0
        %5496 = vmatpush.bf16.msra.mxu0 0
        %5497 = vmatpush.bf16.msra.mxu0 0
        %5498 = vmatpush.bf16.msra.mxu0 0
        %5499 = vmatpush.bf16.msra.mxu0 %v5490
        %5500 = vmatmul.bf16.gmra.mxu0 %v5487
        %v5501 = vpop.f32.mrf.mxu0
        %v5502 = vadd.f32 0.0, %v5501
        %v5503 = vpop.f32.mrf.mxu0
        %5504 = vdwg.mxu0
        %v5506 = vsel %vm1946, %v5483, 0
        %v5509 = vsel %vm1998, %v5351, 0
        %5511 = vmatpush.bf16.msra.mxu0 0
        %5512 = vmatpush.bf16.msra.mxu0 0
        %5513 = vmatpush.bf16.msra.mxu0 0
        %5514 = vmatpush.bf16.msra.mxu0 0
        %5515 = vmatpush.bf16.msra.mxu0 0
        %5516 = vmatpush.bf16.msra.mxu0 0
        %5517 = vmatpush.bf16.msra.mxu0 0
        %5518 = vmatpush.bf16.msra.mxu0 %v5509
        %5519 = vmatmul.bf16.gmra.mxu0 %v5506
        %v5520 = vpop.f32.mrf.mxu0
        %v5521 = vadd.f32 0.0, %v5520
        %v5522 = vpop.f32.mrf.mxu0
        %5523 = vdwg.mxu0
        %v5525 = vsel %vm1946, %v5484, 0
        %v5528 = vsel %vm1998, %v5352, 0
        %5530 = vmatpush.bf16.msra.mxu0 0
        %5531 = vmatpush.bf16.msra.mxu0 0
        %5532 = vmatpush.bf16.msra.mxu0 0
        %5533 = vmatpush.bf16.msra.mxu0 0
        %5534 = vmatpush.bf16.msra.mxu0 0
        %5535 = vmatpush.bf16.msra.mxu0 0
        %5536 = vmatpush.bf16.msra.mxu0 0
        %5537 = vmatpush.bf16.msra.mxu0 %v5528
        %5538 = vmatmul.bf16.gmra.mxu0 %v5525
        %v5539 = vpop.f32.mrf.mxu0
        %v5540 = vadd.f32 0.0, %v5539
        %v5541 = vpop.f32.mrf.mxu0
        %5542 = vdwg.mxu0
        %v5544 = vsel %vm1946, %v5485, 0
        %v5547 = vsel %vm1998, %v5353, 0
        %5549 = vmatpush.bf16.msra.mxu0 0
        %5550 = vmatpush.bf16.msra.mxu0 0
        %5551 = vmatpush.bf16.msra.mxu0 0
        %5552 = vmatpush.bf16.msra.mxu0 0
        %5553 = vmatpush.bf16.msra.mxu0 0
        %5554 = vmatpush.bf16.msra.mxu0 0
        %5555 = vmatpush.bf16.msra.mxu0 0
        %5556 = vmatpush.bf16.msra.mxu0 %v5547
        %5557 = vmatmul.bf16.gmra.mxu0 %v5544
        %v5558 = vpop.f32.mrf.mxu0
        %v5559 = vadd.f32 0.0, %v5558
        %v5560 = vpop.f32.mrf.mxu0
        %5561 = vdwg.mxu0
        %5562 = vst.msk [vmem:[#allocation2 + $0x8] sm:$0xff] %vm922, %v5502
        %5563 = vst.msk [vmem:[#allocation2 + $0x18] sm:$0xff] %vm922, %v5521
        %5564 = vst.msk [vmem:[#allocation2 + $0x28] sm:$0xff] %vm922, %v5540
        %5565 = vst.msk [vmem:[#allocation2 + $0x38] sm:$0xff] %vm922, %v5559
        %v5567 = vunpack.c.l.b16 %v5342
        %v5568 = vpack.c.b16 %v5567, %v5567
        %5569 = vrot.lane.b32.xlu0 %v5568, 64
        %v5570 = vpop.permute.xlu0 %5569
        %v5572 = vunpack.c.l.b16 %v5346
        %v5573 = vpack.c.b16 %v5572, %v5572
        %5574 = vrot.lane.b32.xlu0 %v5573, 64
        %v5575 = vpop.permute.xlu0 %5574
        %v5577 = vsel %vm922, %v5570, 0
        %v5580 = vsel %vm922, %v5575, 0
        %5582 = vmatpush.bf16.xpose.msra.mxu0 0
        %5583 = vmatpush.bf16.xpose.msra.mxu0 0
        %5584 = vmatpush.bf16.xpose.msra.mxu0 0
        %5585 = vmatpush.bf16.xpose.msra.mxu0 0
        %5586 = vmatpush.bf16.xpose.msra.mxu0 0
        %5587 = vmatpush.bf16.xpose.msra.mxu0 0
        %5588 = vmatpush.bf16.xpose.msra.mxu0 0
        %5589 = vmatpush.bf16.xpose.msra.mxu0 %v5580
        %5590 = vmatmul.bf16.gmra.mxu0 %v5577
        %v5591 = vpop.f32.mrf.mxu0
        %v5592 = vadd.f32 0.0, %v5591
        %v5593 = vpop.f32.mrf.mxu0
        %5594 = vdwg.mxu0
        %v5596 = vunpack.c.l.b16 %v5343
        %v5597 = vpack.c.b16 %v5596, %v5596
        %5598 = vrot.lane.b32.xlu0 %v5597, 64
        %v5599 = vpop.permute.xlu0 %5598
        %v5601 = vunpack.c.l.b16 %v5347
        %v5602 = vpack.c.b16 %v5601, %v5601
        %5603 = vrot.lane.b32.xlu0 %v5602, 64
        %v5604 = vpop.permute.xlu0 %5603
        %v5606 = vsel %vm922, %v5599, 0
        %v5609 = vsel %vm922, %v5604, 0
        %5611 = vmatpush.bf16.xpose.msra.mxu0 0
        %5612 = vmatpush.bf16.xpose.msra.mxu0 0
        %5613 = vmatpush.bf16.xpose.msra.mxu0 0
        %5614 = vmatpush.bf16.xpose.msra.mxu0 0
        %5615 = vmatpush.bf16.xpose.msra.mxu0 0
        %5616 = vmatpush.bf16.xpose.msra.mxu0 0
        %5617 = vmatpush.bf16.xpose.msra.mxu0 0
        %5618 = vmatpush.bf16.xpose.msra.mxu0 %v5609
        %5619 = vmatmul.bf16.gmra.mxu0 %v5606
        %v5620 = vpop.f32.mrf.mxu0
        %v5621 = vadd.f32 0.0, %v5620
        %v5622 = vpop.f32.mrf.mxu0
        %5623 = vdwg.mxu0
        %v5625 = vunpack.c.l.b16 %v5344
        %v5626 = vpack.c.b16 %v5625, %v5625
        %5627 = vrot.lane.b32.xlu0 %v5626, 64
        %v5628 = vpop.permute.xlu0 %5627
        %v5630 = vunpack.c.l.b16 %v5348
        %v5631 = vpack.c.b16 %v5630, %v5630
        %5632 = vrot.lane.b32.xlu0 %v5631, 64
        %v5633 = vpop.permute.xlu0 %5632
        %v5635 = vsel %vm922, %v5628, 0
        %v5638 = vsel %vm922, %v5633, 0
        %5640 = vmatpush.bf16.xpose.msra.mxu0 0
        %5641 = vmatpush.bf16.xpose.msra.mxu0 0
        %5642 = vmatpush.bf16.xpose.msra.mxu0 0
        %5643 = vmatpush.bf16.xpose.msra.mxu0 0
        %5644 = vmatpush.bf16.xpose.msra.mxu0 0
        %5645 = vmatpush.bf16.xpose.msra.mxu0 0
        %5646 = vmatpush.bf16.xpose.msra.mxu0 0
        %5647 = vmatpush.bf16.xpose.msra.mxu0 %v5638
        %5648 = vmatmul.bf16.gmra.mxu0 %v5635
        %v5649 = vpop.f32.mrf.mxu0
        %v5650 = vadd.f32 0.0, %v5649
        %v5651 = vpop.f32.mrf.mxu0
        %5652 = vdwg.mxu0
        %v5654 = vunpack.c.l.b16 %v5345
        %v5655 = vpack.c.b16 %v5654, %v5654
        %5656 = vrot.lane.b32.xlu0 %v5655, 64
        %v5657 = vpop.permute.xlu0 %5656
        %v5659 = vunpack.c.l.b16 %v5349
        %v5660 = vpack.c.b16 %v5659, %v5659
        %5661 = vrot.lane.b32.xlu0 %v5660, 64
        %v5662 = vpop.permute.xlu0 %5661
        %v5664 = vsel %vm922, %v5657, 0
        %v5667 = vsel %vm922, %v5662, 0
        %5669 = vmatpush.bf16.xpose.msra.mxu0 0
        %5670 = vmatpush.bf16.xpose.msra.mxu0 0
        %5671 = vmatpush.bf16.xpose.msra.mxu0 0
        %5672 = vmatpush.bf16.xpose.msra.mxu0 0
        %5673 = vmatpush.bf16.xpose.msra.mxu0 0
        %5674 = vmatpush.bf16.xpose.msra.mxu0 0
        %5675 = vmatpush.bf16.xpose.msra.mxu0 0
        %5676 = vmatpush.bf16.xpose.msra.mxu0 %v5667
        %5677 = vmatmul.bf16.gmra.mxu0 %v5664
        %v5678 = vpop.f32.mrf.mxu0
        %v5679 = vadd.f32 0.0, %v5678
        %v5680 = vpop.f32.mrf.mxu0
        %5681 = vdwg.mxu0
        %v5682 = vmul.f32 %v5592, 0.125
        %v5683 = vmul.f32 %v5621, 0.125
        %v5684 = vmul.f32 %v5650, 0.125
        %v5685 = vmul.f32 %v5679, 0.125
        %v5686 = vsel %vm1024, %v5682, -1000000.0
        %v5687 = vsel %vm1025, %v5683, -1000000.0
        %v5688 = vsel %vm1026, %v5684, -1000000.0
        %v5689 = vsel %vm1027, %v5685, -1000000.0
        %v5690 = vsel %vm1946, %v5686, -inf
        %5691 = vmax.xlane.f32.xlu0 %v5690
        %v5692 = vpop.xlane.xlu0 %5691
        %v5693 = vsel %vm1946, %v5687, -inf
        %5694 = vmax.xlane.f32.xlu0 %v5693
        %v5695 = vpop.xlane.xlu0 %5694
        %v5696 = vsel %vm1946, %v5688, -inf
        %5697 = vmax.xlane.f32.xlu0 %v5696
        %v5698 = vpop.xlane.xlu0 %5697
        %v5699 = vsel %vm1946, %v5689, -inf
        %5700 = vmax.xlane.f32.xlu0 %v5699
        %v5701 = vpop.xlane.xlu0 %5700
        %v5702 = vsub.f32 %v5686, %v5692
        %v5703 = vsub.f32 %v5687, %v5695
        %v5704 = vsub.f32 %v5688, %v5698
        %v5705 = vsub.f32 %v5689, %v5701
        %v5706 = vmul.f32 %v5702, 1.442695
        %v5707 = vpow.pop %v5706
        %v5708 = vmul.f32 %v5703, 1.442695
        %v5709 = vpow.pop %v5708
        %v5710 = vmul.f32 %v5704, 1.442695
        %v5711 = vpow.pop %v5710
        %v5712 = vmul.f32 %v5705, 1.442695
        %v5713 = vpow.pop %v5712
        %v5714 = vsel %vm1946, %v5707, 0.0
        %5715 = vadd.xlane.f32.xlu0 %v5714
        %v5716 = vpop.xlane.xlu0 %5715
        %v5717 = vsel %vm1946, %v5709, 0.0
        %5718 = vadd.xlane.f32.xlu0 %v5717
        %v5719 = vpop.xlane.xlu0 %5718
        %v5720 = vsel %vm1946, %v5711, 0.0
        %5721 = vadd.xlane.f32.xlu0 %v5720
        %v5722 = vpop.xlane.xlu0 %5721
        %v5723 = vsel %vm1946, %v5713, 0.0
        %5724 = vadd.xlane.f32.xlu0 %v5723
        %v5725 = vpop.xlane.xlu0 %5724
        %v5726 = vrcp.pop %v5716
        %v5727 = vrcp.pop %v5719
        %v5728 = vrcp.pop %v5722
        %v5729 = vrcp.pop %v5725
        %v5730 = vmul.f32 %v5707, %v5726
        %v5731 = vmul.f32 %v5709, %v5727
        %v5732 = vmul.f32 %v5711, %v5728
        %v5733 = vmul.f32 %v5713, %v5729
        %v5734 = vpack.c.bf16 %v5730, %v5730
        %v5735 = vpack.c.bf16 %v5731, %v5731
        %v5736 = vpack.c.bf16 %v5732, %v5732
        %v5737 = vpack.c.bf16 %v5733, %v5733
        %v5739 = vunpack.c.l.b16 %v5350
        %v5740 = vpack.c.b16 %v5739, %v5739
        %5741 = vrot.lane.b32.xlu0 %v5740, 64
        %v5742 = vpop.permute.xlu0 %5741
        %v5744 = vsel %vm1946, %v5734, 0
        %v5747 = vsel %vm1998, %v5742, 0
        %5749 = vmatpush.bf16.msra.mxu0 0
        %5750 = vmatpush.bf16.msra.mxu0 0
        %5751 = vmatpush.bf16.msra.mxu0 0
        %5752 = vmatpush.bf16.msra.mxu0 0
        %5753 = vmatpush.bf16.msra.mxu0 0
        %5754 = vmatpush.bf16.msra.mxu0 0
        %5755 = vmatpush.bf16.msra.mxu0 0
        %5756 = vmatpush.bf16.msra.mxu0 %v5747
        %5757 = vmatmul.bf16.gmra.mxu0 %v5744
        %v5758 = vpop.f32.mrf.mxu0
        %v5759 = vadd.f32 0.0, %v5758
        %v5760 = vpop.f32.mrf.mxu0
        %5761 = vdwg.mxu0
        %v5763 = vunpack.c.l.b16 %v5351
        %v5764 = vpack.c.b16 %v5763, %v5763
        %5765 = vrot.lane.b32.xlu0 %v5764, 64
        %v5766 = vpop.permute.xlu0 %5765
        %v5768 = vsel %vm1946, %v5735, 0
        %v5771 = vsel %vm1998, %v5766, 0
        %5773 = vmatpush.bf16.msra.mxu0 0
        %5774 = vmatpush.bf16.msra.mxu0 0
        %5775 = vmatpush.bf16.msra.mxu0 0
        %5776 = vmatpush.bf16.msra.mxu0 0
        %5777 = vmatpush.bf16.msra.mxu0 0
        %5778 = vmatpush.bf16.msra.mxu0 0
        %5779 = vmatpush.bf16.msra.mxu0 0
        %5780 = vmatpush.bf16.msra.mxu0 %v5771
        %5781 = vmatmul.bf16.gmra.mxu0 %v5768
        %v5782 = vpop.f32.mrf.mxu0
        %v5783 = vadd.f32 0.0, %v5782
        %v5784 = vpop.f32.mrf.mxu0
        %5785 = vdwg.mxu0
        %v5787 = vunpack.c.l.b16 %v5352
        %v5788 = vpack.c.b16 %v5787, %v5787
        %5789 = vrot.lane.b32.xlu0 %v5788, 64
        %v5790 = vpop.permute.xlu0 %5789
        %v5792 = vsel %vm1946, %v5736, 0
        %v5795 = vsel %vm1998, %v5790, 0
        %5797 = vmatpush.bf16.msra.mxu0 0
        %5798 = vmatpush.bf16.msra.mxu0 0
        %5799 = vmatpush.bf16.msra.mxu0 0
        %5800 = vmatpush.bf16.msra.mxu0 0
        %5801 = vmatpush.bf16.msra.mxu0 0
        %5802 = vmatpush.bf16.msra.mxu0 0
        %5803 = vmatpush.bf16.msra.mxu0 0
        %5804 = vmatpush.bf16.msra.mxu0 %v5795
        %5805 = vmatmul.bf16.gmra.mxu0 %v5792
        %v5806 = vpop.f32.mrf.mxu0
        %v5807 = vadd.f32 0.0, %v5806
        %v5808 = vpop.f32.mrf.mxu0
        %5809 = vdwg.mxu0
        %v5811 = vunpack.c.l.b16 %v5353
        %v5812 = vpack.c.b16 %v5811, %v5811
        %5813 = vrot.lane.b32.xlu0 %v5812, 64
        %v5814 = vpop.permute.xlu0 %5813
        %v5816 = vsel %vm1946, %v5737, 0
        %v5819 = vsel %vm1998, %v5814, 0
        %5821 = vmatpush.bf16.msra.mxu0 0
        %5822 = vmatpush.bf16.msra.mxu0 0
        %5823 = vmatpush.bf16.msra.mxu0 0
        %5824 = vmatpush.bf16.msra.mxu0 0
        %5825 = vmatpush.bf16.msra.mxu0 0
        %5826 = vmatpush.bf16.msra.mxu0 0
        %5827 = vmatpush.bf16.msra.mxu0 0
        %5828 = vmatpush.bf16.msra.mxu0 %v5819
        %5829 = vmatmul.bf16.gmra.mxu0 %v5816
        %v5830 = vpop.f32.mrf.mxu0
        %v5831 = vadd.f32 0.0, %v5830
        %v5832 = vpop.f32.mrf.mxu0
        %5833 = vdwg.mxu0
        %5838 = vrot.lane.b32.xlu0 %v5759, 64
        %v5839 = vpop.permute.xlu0 %5838
        %5840 = vrot.lane.b32.xlu0 %v5783, 64
        %v5841 = vpop.permute.xlu0 %5840
        %5842 = vrot.lane.b32.xlu0 %v5807, 64
        %v5843 = vpop.permute.xlu0 %5842
        %5844 = vrot.lane.b32.xlu0 %v5831, 64
        %v5845 = vpop.permute.xlu0 %5844
        %5850 = vst.msk [vmem:[#allocation2 + $0x8] sm:$0xff] %vm2360, %v5839
        %5851 = vst.msk [vmem:[#allocation2 + $0x18] sm:$0xff] %vm2360, %v5841
        %5852 = vst.msk [vmem:[#allocation2 + $0x28] sm:$0xff] %vm2360, %v5843
        %5853 = vst.msk [vmem:[#allocation2 + $0x38] sm:$0xff] %vm2360, %v5845
        %v5854 = vld [vmem:[#allocation2] sm:$0xff]
        %v5855 = vld [vmem:[#allocation2 + $0x8] sm:$0xff]
        %v5856 = vld [vmem:[#allocation2 + $0x10] sm:$0xff]
        %v5857 = vld [vmem:[#allocation2 + $0x18] sm:$0xff]
        %v5858 = vld [vmem:[#allocation2 + $0x20] sm:$0xff]
        %v5859 = vld [vmem:[#allocation2 + $0x28] sm:$0xff]
        %v5860 = vld [vmem:[#allocation2 + $0x30] sm:$0xff]
        %v5861 = vld [vmem:[#allocation2 + $0x38] sm:$0xff]
        %v5862 = vpack.c.bf16 %v5856, %v5854
        %v5863 = vpack.c.bf16 %v5857, %v5855
        %v5864 = vpack.c.bf16 %v5860, %v5858
        %v5865 = vpack.c.bf16 %v5861, %v5859
        %s5866 = scalar_lea.vmem [#allocation5], 256
        %v5867 = vld [vmem:[%s5866] sm:$0xff]
        %v5868 = vld [vmem:[%s5866 + $0x8] sm:$0xff]
        %v5869 = vld [vmem:[%s5866 + $0x10] sm:$0xff]
        %v5870 = vld [vmem:[%s5866 + $0x18] sm:$0xff]
        %v5871 = vld [vmem:[%s5866 + $0x20] sm:$0xff]
        %v5872 = vld [vmem:[%s5866 + $0x28] sm:$0xff]
        %v5873 = vld [vmem:[%s5866 + $0x30] sm:$0xff]
        %v5874 = vld [vmem:[%s5866 + $0x38] sm:$0xff]
        %v5875 = vld [vmem:[%s5866 + $0x40] sm:$0xff]
        %v5876 = vld [vmem:[%s5866 + $0x48] sm:$0xff]
        %v5877 = vld [vmem:[%s5866 + $0x50] sm:$0xff]
        %v5878 = vld [vmem:[%s5866 + $0x58] sm:$0xff]
        %v5879 = vld [vmem:[%s5866 + $0x60] sm:$0xff]
        %v5880 = vld [vmem:[%s5866 + $0x68] sm:$0xff]
        %v5881 = vld [vmem:[%s5866 + $0x70] sm:$0xff]
        %v5882 = vld [vmem:[%s5866 + $0x78] sm:$0xff]
        %v5883 = vld [vmem:[%s5866 + $0x80] sm:$0xff]
        %v5884 = vld [vmem:[%s5866 + $0x88] sm:$0xff]
        %v5885 = vld [vmem:[%s5866 + $0x90] sm:$0xff]
        %v5886 = vld [vmem:[%s5866 + $0x98] sm:$0xff]
        %v5887 = vld [vmem:[%s5866 + $0xa0] sm:$0xff]
        %v5888 = vld [vmem:[%s5866 + $0xa8] sm:$0xff]
        %v5889 = vld [vmem:[%s5866 + $0xb0] sm:$0xff]
        %v5890 = vld [vmem:[%s5866 + $0xb8] sm:$0xff]
        %v5891 = vld [vmem:[%s5866 + $0xc0] sm:$0xff]
        %v5892 = vld [vmem:[%s5866 + $0xc8] sm:$0xff]
        %v5893 = vld [vmem:[%s5866 + $0xd0] sm:$0xff]
        %v5894 = vld [vmem:[%s5866 + $0xd8] sm:$0xff]
        %v5895 = vld [vmem:[%s5866 + $0xe0] sm:$0xff]
        %v5896 = vld [vmem:[%s5866 + $0xe8] sm:$0xff]
        %v5897 = vld [vmem:[%s5866 + $0xf0] sm:$0xff]
        %v5898 = vld [vmem:[%s5866 + $0xf8] sm:$0xff]
        %s5899 = scalar_lea.vmem %s9, 2
        %v5900 = vld [vmem:[%s5899] sm:$0x3]
        %v5902 = vperm.slane %v5900, 0
        %v5903 = vperm.slane %v5900, 1
        %v5938 = vunpack.c.l.b16 %v5867
        %v5939 = vunpack.c.h.b16 %v5867
        %v5940 = vunpack.c.l.b16 %v5868
        %v5941 = vunpack.c.h.b16 %v5868
        %v5942 = vunpack.c.l.b16 %v5869
        %v5943 = vunpack.c.h.b16 %v5869
        %v5944 = vunpack.c.l.b16 %v5870
        %v5945 = vunpack.c.h.b16 %v5870
        %v5946 = vunpack.c.l.b16 %v5871
        %v5947 = vunpack.c.h.b16 %v5871
        %v5948 = vunpack.c.l.b16 %v5872
        %v5949 = vunpack.c.h.b16 %v5872
        %v5950 = vunpack.c.l.b16 %v5873
        %v5951 = vunpack.c.h.b16 %v5873
        %v5952 = vunpack.c.l.b16 %v5874
        %v5953 = vunpack.c.h.b16 %v5874
        %v5954 = vunpack.c.l.b16 %v5875
        %v5955 = vunpack.c.h.b16 %v5875
        %v5956 = vunpack.c.l.b16 %v5876
        %v5957 = vunpack.c.h.b16 %v5876
        %v5958 = vunpack.c.l.b16 %v5877
        %v5959 = vunpack.c.h.b16 %v5877
        %v5960 = vunpack.c.l.b16 %v5878
        %v5961 = vunpack.c.h.b16 %v5878
        %v5962 = vunpack.c.l.b16 %v5879
        %v5963 = vunpack.c.h.b16 %v5879
        %v5964 = vunpack.c.l.b16 %v5880
        %v5965 = vunpack.c.h.b16 %v5880
        %v5966 = vunpack.c.l.b16 %v5881
        %v5967 = vunpack.c.h.b16 %v5881
        %v5968 = vunpack.c.l.b16 %v5882
        %v5969 = vunpack.c.h.b16 %v5882
        %v5970 = vunpack.c.l.b16 %v5883
        %v5971 = vunpack.c.h.b16 %v5883
        %v5972 = vunpack.c.l.b16 %v5884
        %v5973 = vunpack.c.h.b16 %v5884
        %v5974 = vunpack.c.l.b16 %v5885
        %v5975 = vunpack.c.h.b16 %v5885
        %v5976 = vunpack.c.l.b16 %v5886
        %v5977 = vunpack.c.h.b16 %v5886
        %v5978 = vunpack.c.l.b16 %v5887
        %v5979 = vunpack.c.h.b16 %v5887
        %v5980 = vunpack.c.l.b16 %v5888
        %v5981 = vunpack.c.h.b16 %v5888
        %v5982 = vunpack.c.l.b16 %v5889
        %v5983 = vunpack.c.h.b16 %v5889
        %v5984 = vunpack.c.l.b16 %v5890
        %v5985 = vunpack.c.h.b16 %v5890
        %v5986 = vunpack.c.l.b16 %v5891
        %v5987 = vunpack.c.h.b16 %v5891
        %v5988 = vunpack.c.l.b16 %v5892
        %v5989 = vunpack.c.h.b16 %v5892
        %v5990 = vunpack.c.l.b16 %v5893
        %v5991 = vunpack.c.h.b16 %v5893
        %v5992 = vunpack.c.l.b16 %v5894
        %v5993 = vunpack.c.h.b16 %v5894
        %v5994 = vunpack.c.l.b16 %v5895
        %v5995 = vunpack.c.h.b16 %v5895
        %v5996 = vunpack.c.l.b16 %v5896
        %v5997 = vunpack.c.h.b16 %v5896
        %v5998 = vunpack.c.l.b16 %v5897
        %v5999 = vunpack.c.h.b16 %v5897
        %v6000 = vunpack.c.l.b16 %v5898
        %v6001 = vunpack.c.h.b16 %v5898
        %v6002 = vpack.c.b16 %v5940, %v5938
        %v6003 = vpack.c.b16 %v5941, %v5939
        %v6004 = vpack.c.b16 %v5944, %v5942
        %v6005 = vpack.c.b16 %v5945, %v5943
        %v6006 = vpack.c.b16 %v5948, %v5946
        %v6007 = vpack.c.b16 %v5949, %v5947
        %v6008 = vpack.c.b16 %v5952, %v5950
        %v6009 = vpack.c.b16 %v5953, %v5951
        %v6010 = vpack.c.b16 %v5956, %v5954
        %v6011 = vpack.c.b16 %v5957, %v5955
        %v6012 = vpack.c.b16 %v5960, %v5958
        %v6013 = vpack.c.b16 %v5961, %v5959
        %v6014 = vpack.c.b16 %v5964, %v5962
        %v6015 = vpack.c.b16 %v5965, %v5963
        %v6016 = vpack.c.b16 %v5968, %v5966
        %v6017 = vpack.c.b16 %v5969, %v5967
        %v6018 = vpack.c.b16 %v5972, %v5970
        %v6019 = vpack.c.b16 %v5973, %v5971
        %v6020 = vpack.c.b16 %v5976, %v5974
        %v6021 = vpack.c.b16 %v5977, %v5975
        %v6022 = vpack.c.b16 %v5980, %v5978
        %v6023 = vpack.c.b16 %v5981, %v5979
        %v6024 = vpack.c.b16 %v5984, %v5982
        %v6025 = vpack.c.b16 %v5985, %v5983
        %v6026 = vpack.c.b16 %v5988, %v5986
        %v6027 = vpack.c.b16 %v5989, %v5987
        %v6028 = vpack.c.b16 %v5992, %v5990
        %v6029 = vpack.c.b16 %v5993, %v5991
        %v6030 = vpack.c.b16 %v5996, %v5994
        %v6031 = vpack.c.b16 %v5997, %v5995
        %v6032 = vpack.c.b16 %v6000, %v5998
        %v6033 = vpack.c.b16 %v6001, %v5999
        %6066 = vmatpush.bf16.msra.mxu0 %v6016
        %6067 = vmatpush.bf16.msra.mxu0 %v6014
        %6068 = vmatpush.bf16.msra.mxu0 %v6012
        %6069 = vmatpush.bf16.msra.mxu0 %v6010
        %6070 = vmatpush.bf16.msra.mxu0 %v6008
        %6071 = vmatpush.bf16.msra.mxu0 %v6006
        %6072 = vmatpush.bf16.msra.mxu0 %v6004
        %6073 = vmatpush.bf16.msra.mxu0 %v6002
        %6074 = vmatmul.bf16.gmra.mxu0 %v5862
        %v6075 = vpop.f32.mrf.mxu0
        %v6076 = vadd.f32 %v5902, %v6075
        %v6077 = vpop.f32.mrf.mxu0
        %v6078 = vadd.f32 %v5902, %v6077
        %6079 = vmatmul.bf16.gmra.mxu0 %v5864
        %v6080 = vpop.f32.mrf.mxu0
        %v6081 = vadd.f32 %v5902, %v6080
        %v6082 = vpop.f32.mrf.mxu0
        %v6083 = vadd.f32 %v5902, %v6082
        %6084 = vdwg.mxu0
        %6085 = vmatpush.bf16.msra.mxu0 %v6032
        %6086 = vmatpush.bf16.msra.mxu0 %v6030
        %6087 = vmatpush.bf16.msra.mxu0 %v6028
        %6088 = vmatpush.bf16.msra.mxu0 %v6026
        %6089 = vmatpush.bf16.msra.mxu0 %v6024
        %6090 = vmatpush.bf16.msra.mxu0 %v6022
        %6091 = vmatpush.bf16.msra.mxu0 %v6020
        %6092 = vmatpush.bf16.msra.mxu0 %v6018
        %6093 = vmatmul.bf16.gmra.mxu0 %v5863
        %v6094 = vpop.f32.mrf.mxu0
        %v6095 = vadd.f32 %v6076, %v6094
        %v6096 = vpop.f32.mrf.mxu0
        %v6097 = vadd.f32 %v6078, %v6096
        %6098 = vmatmul.bf16.gmra.mxu0 %v5865
        %v6099 = vpop.f32.mrf.mxu0
        %v6100 = vadd.f32 %v6081, %v6099
        %v6101 = vpop.f32.mrf.mxu0
        %v6102 = vadd.f32 %v6083, %v6101
        %6103 = vdwg.mxu0
        %6104 = vmatpush.bf16.msra.mxu0 %v6017
        %6105 = vmatpush.bf16.msra.mxu0 %v6015
        %6106 = vmatpush.bf16.msra.mxu0 %v6013
        %6107 = vmatpush.bf16.msra.mxu0 %v6011
        %6108 = vmatpush.bf16.msra.mxu0 %v6009
        %6109 = vmatpush.bf16.msra.mxu0 %v6007
        %6110 = vmatpush.bf16.msra.mxu0 %v6005
        %6111 = vmatpush.bf16.msra.mxu0 %v6003
        %6112 = vmatmul.bf16.gmra.mxu0 %v5862
        %v6113 = vpop.f32.mrf.mxu0
        %v6114 = vadd.f32 %v5903, %v6113
        %v6115 = vpop.f32.mrf.mxu0
        %v6116 = vadd.f32 %v5903, %v6115
        %6117 = vmatmul.bf16.gmra.mxu0 %v5864
        %v6118 = vpop.f32.mrf.mxu0
        %v6119 = vadd.f32 %v5903, %v6118
        %v6120 = vpop.f32.mrf.mxu0
        %v6121 = vadd.f32 %v5903, %v6120
        %6122 = vdwg.mxu0
        %6123 = vmatpush.bf16.msra.mxu0 %v6033
        %6124 = vmatpush.bf16.msra.mxu0 %v6031
        %6125 = vmatpush.bf16.msra.mxu0 %v6029
        %6126 = vmatpush.bf16.msra.mxu0 %v6027
        %6127 = vmatpush.bf16.msra.mxu0 %v6025
        %6128 = vmatpush.bf16.msra.mxu0 %v6023
        %6129 = vmatpush.bf16.msra.mxu0 %v6021
        %6130 = vmatpush.bf16.msra.mxu0 %v6019
        %6131 = vmatmul.bf16.gmra.mxu0 %v5863
        %v6132 = vpop.f32.mrf.mxu0
        %v6133 = vadd.f32 %v6114, %v6132
        %v6134 = vpop.f32.mrf.mxu0
        %v6135 = vadd.f32 %v6116, %v6134
        %6136 = vmatmul.bf16.gmra.mxu0 %v5865
        %v6137 = vpop.f32.mrf.mxu0
        %v6138 = vadd.f32 %v6119, %v6137
        %v6139 = vpop.f32.mrf.mxu0
        %v6140 = vadd.f32 %v6121, %v6139
        %6141 = vdwg.mxu0
        %v6142 = vadd.f32 %v3998, %v6095
        %v6143 = vadd.f32 %v3999, %v6133
        %v6144 = vadd.f32 %v4000, %v6097
        %v6145 = vadd.f32 %v4001, %v6135
        %v6146 = vadd.f32 %v4002, %v6100
        %v6147 = vadd.f32 %v4003, %v6138
        %v6148 = vadd.f32 %v4004, %v6102
        %v6149 = vadd.f32 %v4005, %v6140
        %s6150 = scalar_lea.vmem %s10, 2
        %v6151 = vld [vmem:[%s6150] sm:$0x3]
        %s6152 = scalar_lea.vmem %s11, 2
        %v6153 = vld [vmem:[%s6152] sm:$0x3]
        %v6154 = vadd.f32 %v6142, %v6143
        %6155 = vadd.xlane.f32.xlu0 %v6154
        %v6156 = vpop.xlane.xlu0 %6155
        %v6157 = vadd.f32 %v6144, %v6145
        %6158 = vadd.xlane.f32.xlu0 %v6157
        %v6159 = vpop.xlane.xlu0 %6158
        %v6160 = vadd.f32 %v6146, %v6147
        %6161 = vadd.xlane.f32.xlu0 %v6160
        %v6162 = vpop.xlane.xlu0 %6161
        %v6163 = vadd.f32 %v6148, %v6149
        %6164 = vadd.xlane.f32.xlu0 %v6163
        %v6165 = vpop.xlane.xlu0 %6164
        %v6166 = vmul.f32 %v6156, %v3191
        %v6167 = vmul.f32 %v6159, %v3191
        %v6168 = vmul.f32 %v6162, %v3191
        %v6169 = vmul.f32 %v6165, %v3191
        %v6170 = vsub.f32 %v6142, %v6166
        %v6171 = vsub.f32 %v6143, %v6166
        %v6172 = vsub.f32 %v6144, %v6167
        %v6173 = vsub.f32 %v6145, %v6167
        %v6174 = vsub.f32 %v6146, %v6168
        %v6175 = vsub.f32 %v6147, %v6168
        %v6176 = vsub.f32 %v6148, %v6169
        %v6177 = vsub.f32 %v6149, %v6169
        %v6178 = vmul.f32 %v6170, %v6170
        %v6179 = vmul.f32 %v6171, %v6171
        %v6180 = vmul.f32 %v6172, %v6172
        %v6181 = vmul.f32 %v6173, %v6173
        %v6182 = vmul.f32 %v6174, %v6174
        %v6183 = vmul.f32 %v6175, %v6175
        %v6184 = vmul.f32 %v6176, %v6176
        %v6185 = vmul.f32 %v6177, %v6177
        %v6186 = vadd.f32 %v6178, %v6179
        %6187 = vadd.xlane.f32.xlu0 %v6186
        %v6188 = vpop.xlane.xlu0 %6187
        %v6189 = vadd.f32 %v6180, %v6181
        %6190 = vadd.xlane.f32.xlu0 %v6189
        %v6191 = vpop.xlane.xlu0 %6190
        %v6192 = vadd.f32 %v6182, %v6183
        %6193 = vadd.xlane.f32.xlu0 %v6192
        %v6194 = vpop.xlane.xlu0 %6193
        %v6195 = vadd.f32 %v6184, %v6185
        %6196 = vadd.xlane.f32.xlu0 %v6195
        %v6197 = vpop.xlane.xlu0 %6196
        %v6198 = vmul.f32 %v6188, %v3191
        %v6199 = vmul.f32 %v6191, %v3191
        %v6200 = vmul.f32 %v6194, %v3191
        %v6201 = vmul.f32 %v6197, %v3191
        %v6202 = vadd.f32 %v6198, 1e-05
        %v6203 = vadd.f32 %v6199, 1e-05
        %v6204 = vadd.f32 %v6200, 1e-05
        %v6205 = vadd.f32 %v6201, 1e-05
        %v6206 = vrsqrt.pop %v6202
        %v6207 = vmul.f32 %v6206, %v6202
        %v6208 = vmul.f32 %v6207, %v6206
        %v6209 = vmul.f32 0.5, %v6208
        %v6210 = vsub.f32 1.5, %v6209
        %v6211 = vmul.f32 %v6206, %v6210
        %vm6212 = vweird.f32 %v6202
        %vm6213 = vweird.f32 %v6206
        %vm6214 = vmor %vm6212, %vm6213
        %v6215 = vsel %vm6214, %v6206, %v6211
        %v6216 = vrsqrt.pop %v6203
        %v6217 = vmul.f32 %v6216, %v6203
        %v6218 = vmul.f32 %v6217, %v6216
        %v6219 = vmul.f32 0.5, %v6218
        %v6220 = vsub.f32 1.5, %v6219
        %v6221 = vmul.f32 %v6216, %v6220
        %vm6222 = vweird.f32 %v6203
        %vm6223 = vweird.f32 %v6216
        %vm6224 = vmor %vm6222, %vm6223
        %v6225 = vsel %vm6224, %v6216, %v6221
        %v6226 = vrsqrt.pop %v6204
        %v6227 = vmul.f32 %v6226, %v6204
        %v6228 = vmul.f32 %v6227, %v6226
        %v6229 = vmul.f32 0.5, %v6228
        %v6230 = vsub.f32 1.5, %v6229
        %v6231 = vmul.f32 %v6226, %v6230
        %vm6232 = vweird.f32 %v6204
        %vm6233 = vweird.f32 %v6226
        %vm6234 = vmor %vm6232, %vm6233
        %v6235 = vsel %vm6234, %v6226, %v6231
        %v6236 = vrsqrt.pop %v6205
        %v6237 = vmul.f32 %v6236, %v6205
        %v6238 = vmul.f32 %v6237, %v6236
        %v6239 = vmul.f32 0.5, %v6238
        %v6240 = vsub.f32 1.5, %v6239
        %v6241 = vmul.f32 %v6236, %v6240
        %vm6242 = vweird.f32 %v6205
        %vm6243 = vweird.f32 %v6236
        %vm6244 = vmor %vm6242, %vm6243
        %v6245 = vsel %vm6244, %v6236, %v6241
        %v6246 = vmul.f32 %v6170, %v6215
        %v6247 = vmul.f32 %v6171, %v6215
        %v6248 = vmul.f32 %v6172, %v6225
        %v6249 = vmul.f32 %v6173, %v6225
        %v6250 = vmul.f32 %v6174, %v6235
        %v6251 = vmul.f32 %v6175, %v6235
        %v6252 = vmul.f32 %v6176, %v6245
        %v6253 = vmul.f32 %v6177, %v6245
        %v6255 = vperm.slane %v6151, 0
        %v6256 = vperm.slane %v6151, 1
        %v6259 = vmul.f32 %v6246, %v6255
        %v6260 = vmul.f32 %v6247, %v6256
        %v6261 = vmul.f32 %v6248, %v6255
        %v6262 = vmul.f32 %v6249, %v6256
        %v6263 = vmul.f32 %v6250, %v6255
        %v6264 = vmul.f32 %v6251, %v6256
        %v6265 = vmul.f32 %v6252, %v6255
        %v6266 = vmul.f32 %v6253, %v6256
        %v6268 = vperm.slane %v6153, 0
        %v6269 = vperm.slane %v6153, 1
        %v6272 = vadd.f32 %v6259, %v6268
        %v6273 = vadd.f32 %v6260, %v6269
        %v6274 = vadd.f32 %v6261, %v6268
        %v6275 = vadd.f32 %v6262, %v6269
        %v6276 = vadd.f32 %v6263, %v6268
        %v6277 = vadd.f32 %v6264, %v6269
        %v6278 = vadd.f32 %v6265, %v6268
        %v6279 = vadd.f32 %v6266, %v6269
        %v6280 = vpack.c.bf16 %v6274, %v6272
        %v6281 = vpack.c.bf16 %v6275, %v6273
        %v6282 = vpack.c.bf16 %v6278, %v6276
        %v6283 = vpack.c.bf16 %v6279, %v6277
        %s6284 = scalar_lea.vmem [#allocation7], 256
        %v6285 = vld [vmem:[%s6284] sm:$0xff]
        %v6286 = vld [vmem:[%s6284 + $0x8] sm:$0xff]
        %v6287 = vld [vmem:[%s6284 + $0x10] sm:$0xff]
        %v6288 = vld [vmem:[%s6284 + $0x18] sm:$0xff]
        %v6289 = vld [vmem:[%s6284 + $0x20] sm:$0xff]
        %v6290 = vld [vmem:[%s6284 + $0x28] sm:$0xff]
        %v6291 = vld [vmem:[%s6284 + $0x30] sm:$0xff]
        %v6292 = vld [vmem:[%s6284 + $0x38] sm:$0xff]
        %v6293 = vld [vmem:[%s6284 + $0x40] sm:$0xff]
        %v6294 = vld [vmem:[%s6284 + $0x48] sm:$0xff]
        %v6295 = vld [vmem:[%s6284 + $0x50] sm:$0xff]
        %v6296 = vld [vmem:[%s6284 + $0x58] sm:$0xff]
        %v6297 = vld [vmem:[%s6284 + $0x60] sm:$0xff]
        %v6298 = vld [vmem:[%s6284 + $0x68] sm:$0xff]
        %v6299 = vld [vmem:[%s6284 + $0x70] sm:$0xff]
        %v6300 = vld [vmem:[%s6284 + $0x78] sm:$0xff]
        %v6301 = vld [vmem:[%s6284 + $0x80] sm:$0xff]
        %v6302 = vld [vmem:[%s6284 + $0x88] sm:$0xff]
        %v6303 = vld [vmem:[%s6284 + $0x90] sm:$0xff]
        %v6304 = vld [vmem:[%s6284 + $0x98] sm:$0xff]
        %v6305 = vld [vmem:[%s6284 + $0xa0] sm:$0xff]
        %v6306 = vld [vmem:[%s6284 + $0xa8] sm:$0xff]
        %v6307 = vld [vmem:[%s6284 + $0xb0] sm:$0xff]
        %v6308 = vld [vmem:[%s6284 + $0xb8] sm:$0xff]
        %v6309 = vld [vmem:[%s6284 + $0xc0] sm:$0xff]
        %v6310 = vld [vmem:[%s6284 + $0xc8] sm:$0xff]
        %v6311 = vld [vmem:[%s6284 + $0xd0] sm:$0xff]
        %v6312 = vld [vmem:[%s6284 + $0xd8] sm:$0xff]
        %v6313 = vld [vmem:[%s6284 + $0xe0] sm:$0xff]
        %v6314 = vld [vmem:[%s6284 + $0xe8] sm:$0xff]
        %v6315 = vld [vmem:[%s6284 + $0xf0] sm:$0xff]
        %v6316 = vld [vmem:[%s6284 + $0xf8] sm:$0xff]
        %s6317 = scalar_lea.vmem %s13, 2
        %v6318 = vld [vmem:[%s6317] sm:$0x3]
        %v6320 = vperm.slane %v6318, 0
        %v6321 = vperm.slane %v6318, 1
        %v6356 = vunpack.c.l.b16 %v6285
        %v6357 = vunpack.c.h.b16 %v6285
        %v6358 = vunpack.c.l.b16 %v6286
        %v6359 = vunpack.c.h.b16 %v6286
        %v6360 = vunpack.c.l.b16 %v6287
        %v6361 = vunpack.c.h.b16 %v6287
        %v6362 = vunpack.c.l.b16 %v6288
        %v6363 = vunpack.c.h.b16 %v6288
        %v6364 = vunpack.c.l.b16 %v6289
        %v6365 = vunpack.c.h.b16 %v6289
        %v6366 = vunpack.c.l.b16 %v6290
        %v6367 = vunpack.c.h.b16 %v6290
        %v6368 = vunpack.c.l.b16 %v6291
        %v6369 = vunpack.c.h.b16 %v6291
        %v6370 = vunpack.c.l.b16 %v6292
        %v6371 = vunpack.c.h.b16 %v6292
        %v6372 = vunpack.c.l.b16 %v6293
        %v6373 = vunpack.c.h.b16 %v6293
        %v6374 = vunpack.c.l.b16 %v6294
        %v6375 = vunpack.c.h.b16 %v6294
        %v6376 = vunpack.c.l.b16 %v6295
        %v6377 = vunpack.c.h.b16 %v6295
        %v6378 = vunpack.c.l.b16 %v6296
        %v6379 = vunpack.c.h.b16 %v6296
        %v6380 = vunpack.c.l.b16 %v6297
        %v6381 = vunpack.c.h.b16 %v6297
        %v6382 = vunpack.c.l.b16 %v6298
        %v6383 = vunpack.c.h.b16 %v6298
        %v6384 = vunpack.c.l.b16 %v6299
        %v6385 = vunpack.c.h.b16 %v6299
        %v6386 = vunpack.c.l.b16 %v6300
        %v6387 = vunpack.c.h.b16 %v6300
        %v6388 = vunpack.c.l.b16 %v6301
        %v6389 = vunpack.c.h.b16 %v6301
        %v6390 = vunpack.c.l.b16 %v6302
        %v6391 = vunpack.c.h.b16 %v6302
        %v6392 = vunpack.c.l.b16 %v6303
        %v6393 = vunpack.c.h.b16 %v6303
        %v6394 = vunpack.c.l.b16 %v6304
        %v6395 = vunpack.c.h.b16 %v6304
        %v6396 = vunpack.c.l.b16 %v6305
        %v6397 = vunpack.c.h.b16 %v6305
        %v6398 = vunpack.c.l.b16 %v6306
        %v6399 = vunpack.c.h.b16 %v6306
        %v6400 = vunpack.c.l.b16 %v6307
        %v6401 = vunpack.c.h.b16 %v6307
        %v6402 = vunpack.c.l.b16 %v6308
        %v6403 = vunpack.c.h.b16 %v6308
        %v6404 = vunpack.c.l.b16 %v6309
        %v6405 = vunpack.c.h.b16 %v6309
        %v6406 = vunpack.c.l.b16 %v6310
        %v6407 = vunpack.c.h.b16 %v6310
        %v6408 = vunpack.c.l.b16 %v6311
        %v6409 = vunpack.c.h.b16 %v6311
        %v6410 = vunpack.c.l.b16 %v6312
        %v6411 = vunpack.c.h.b16 %v6312
        %v6412 = vunpack.c.l.b16 %v6313
        %v6413 = vunpack.c.h.b16 %v6313
        %v6414 = vunpack.c.l.b16 %v6314
        %v6415 = vunpack.c.h.b16 %v6314
        %v6416 = vunpack.c.l.b16 %v6315
        %v6417 = vunpack.c.h.b16 %v6315
        %v6418 = vunpack.c.l.b16 %v6316
        %v6419 = vunpack.c.h.b16 %v6316
        %v6420 = vpack.c.b16 %v6358, %v6356
        %v6421 = vpack.c.b16 %v6359, %v6357
        %v6422 = vpack.c.b16 %v6362, %v6360
        %v6423 = vpack.c.b16 %v6363, %v6361
        %v6424 = vpack.c.b16 %v6366, %v6364
        %v6425 = vpack.c.b16 %v6367, %v6365
        %v6426 = vpack.c.b16 %v6370, %v6368
        %v6427 = vpack.c.b16 %v6371, %v6369
        %v6428 = vpack.c.b16 %v6374, %v6372
        %v6429 = vpack.c.b16 %v6375, %v6373
        %v6430 = vpack.c.b16 %v6378, %v6376
        %v6431 = vpack.c.b16 %v6379, %v6377
        %v6432 = vpack.c.b16 %v6382, %v6380
        %v6433 = vpack.c.b16 %v6383, %v6381
        %v6434 = vpack.c.b16 %v6386, %v6384
        %v6435 = vpack.c.b16 %v6387, %v6385
        %v6436 = vpack.c.b16 %v6390, %v6388
        %v6437 = vpack.c.b16 %v6391, %v6389
        %v6438 = vpack.c.b16 %v6394, %v6392
        %v6439 = vpack.c.b16 %v6395, %v6393
        %v6440 = vpack.c.b16 %v6398, %v6396
        %v6441 = vpack.c.b16 %v6399, %v6397
        %v6442 = vpack.c.b16 %v6402, %v6400
        %v6443 = vpack.c.b16 %v6403, %v6401
        %v6444 = vpack.c.b16 %v6406, %v6404
        %v6445 = vpack.c.b16 %v6407, %v6405
        %v6446 = vpack.c.b16 %v6410, %v6408
        %v6447 = vpack.c.b16 %v6411, %v6409
        %v6448 = vpack.c.b16 %v6414, %v6412
        %v6449 = vpack.c.b16 %v6415, %v6413
        %v6450 = vpack.c.b16 %v6418, %v6416
        %v6451 = vpack.c.b16 %v6419, %v6417
        %6484 = vmatpush.bf16.msra.mxu0 %v6434
        %6485 = vmatpush.bf16.msra.mxu0 %v6432
        %6486 = vmatpush.bf16.msra.mxu0 %v6430
        %6487 = vmatpush.bf16.msra.mxu0 %v6428
        %6488 = vmatpush.bf16.msra.mxu0 %v6426
        %6489 = vmatpush.bf16.msra.mxu0 %v6424
        %6490 = vmatpush.bf16.msra.mxu0 %v6422
        %6491 = vmatpush.bf16.msra.mxu0 %v6420
        %6492 = vmatmul.bf16.gmra.mxu0 %v6280
        %v6493 = vpop.f32.mrf.mxu0
        %v6494 = vadd.f32 %v6320, %v6493
        %v6495 = vpop.f32.mrf.mxu0
        %v6496 = vadd.f32 %v6320, %v6495
        %6497 = vmatmul.bf16.gmra.mxu0 %v6282
        %v6498 = vpop.f32.mrf.mxu0
        %v6499 = vadd.f32 %v6320, %v6498
        %v6500 = vpop.f32.mrf.mxu0
        %v6501 = vadd.f32 %v6320, %v6500
        %6502 = vdwg.mxu0
        %6503 = vmatpush.bf16.msra.mxu0 %v6450
        %6504 = vmatpush.bf16.msra.mxu0 %v6448
        %6505 = vmatpush.bf16.msra.mxu0 %v6446
        %6506 = vmatpush.bf16.msra.mxu0 %v6444
        %6507 = vmatpush.bf16.msra.mxu0 %v6442
        %6508 = vmatpush.bf16.msra.mxu0 %v6440
        %6509 = vmatpush.bf16.msra.mxu0 %v6438
        %6510 = vmatpush.bf16.msra.mxu0 %v6436
        %6511 = vmatmul.bf16.gmra.mxu0 %v6281
        %v6512 = vpop.f32.mrf.mxu0
        %v6513 = vadd.f32 %v6494, %v6512
        %v6514 = vpop.f32.mrf.mxu0
        %v6515 = vadd.f32 %v6496, %v6514
        %6516 = vmatmul.bf16.gmra.mxu0 %v6283
        %v6517 = vpop.f32.mrf.mxu0
        %v6518 = vadd.f32 %v6499, %v6517
        %v6519 = vpop.f32.mrf.mxu0
        %v6520 = vadd.f32 %v6501, %v6519
        %6521 = vdwg.mxu0
        %6522 = vmatpush.bf16.msra.mxu0 %v6435
        %6523 = vmatpush.bf16.msra.mxu0 %v6433
        %6524 = vmatpush.bf16.msra.mxu0 %v6431
        %6525 = vmatpush.bf16.msra.mxu0 %v6429
        %6526 = vmatpush.bf16.msra.mxu0 %v6427
        %6527 = vmatpush.bf16.msra.mxu0 %v6425
        %6528 = vmatpush.bf16.msra.mxu0 %v6423
        %6529 = vmatpush.bf16.msra.mxu0 %v6421
        %6530 = vmatmul.bf16.gmra.mxu0 %v6280
        %v6531 = vpop.f32.mrf.mxu0
        %v6532 = vadd.f32 %v6321, %v6531
        %v6533 = vpop.f32.mrf.mxu0
        %v6534 = vadd.f32 %v6321, %v6533
        %6535 = vmatmul.bf16.gmra.mxu0 %v6282
        %v6536 = vpop.f32.mrf.mxu0
        %v6537 = vadd.f32 %v6321, %v6536
        %v6538 = vpop.f32.mrf.mxu0
        %v6539 = vadd.f32 %v6321, %v6538
        %6540 = vdwg.mxu0
        %6541 = vmatpush.bf16.msra.mxu0 %v6451
        %6542 = vmatpush.bf16.msra.mxu0 %v6449
        %6543 = vmatpush.bf16.msra.mxu0 %v6447
        %6544 = vmatpush.bf16.msra.mxu0 %v6445
        %6545 = vmatpush.bf16.msra.mxu0 %v6443
        %6546 = vmatpush.bf16.msra.mxu0 %v6441
        %6547 = vmatpush.bf16.msra.mxu0 %v6439
        %6548 = vmatpush.bf16.msra.mxu0 %v6437
        %6549 = vmatmul.bf16.gmra.mxu0 %v6281
        %v6550 = vpop.f32.mrf.mxu0
        %v6551 = vadd.f32 %v6532, %v6550
        %v6552 = vpop.f32.mrf.mxu0
        %v6553 = vadd.f32 %v6534, %v6552
        %6554 = vmatmul.bf16.gmra.mxu0 %v6283
        %v6555 = vpop.f32.mrf.mxu0
        %v6556 = vadd.f32 %v6537, %v6555
        %v6557 = vpop.f32.mrf.mxu0
        %v6558 = vadd.f32 %v6539, %v6557
        %6559 = vdwg.mxu0
        %v6560 = vmax.f32 %v6513, 0.0
        %v6561 = vmax.f32 %v6551, 0.0
        %v6562 = vmax.f32 %v6515, 0.0
        %v6563 = vmax.f32 %v6553, 0.0
        %v6564 = vmax.f32 %v6518, 0.0
        %v6565 = vmax.f32 %v6556, 0.0
        %v6566 = vmax.f32 %v6520, 0.0
        %v6567 = vmax.f32 %v6558, 0.0
        %v6568 = vpack.c.bf16 %v6562, %v6560
        %v6569 = vpack.c.bf16 %v6563, %v6561
        %v6570 = vpack.c.bf16 %v6566, %v6564
        %v6571 = vpack.c.bf16 %v6567, %v6565
        %s6572 = scalar_lea.vmem [#allocation8], 256
        %v6573 = vld [vmem:[%s6572] sm:$0xff]
        %v6574 = vld [vmem:[%s6572 + $0x8] sm:$0xff]
        %v6575 = vld [vmem:[%s6572 + $0x10] sm:$0xff]
        %v6576 = vld [vmem:[%s6572 + $0x18] sm:$0xff]
        %v6577 = vld [vmem:[%s6572 + $0x20] sm:$0xff]
        %v6578 = vld [vmem:[%s6572 + $0x28] sm:$0xff]
        %v6579 = vld [vmem:[%s6572 + $0x30] sm:$0xff]
        %v6580 = vld [vmem:[%s6572 + $0x38] sm:$0xff]
        %v6581 = vld [vmem:[%s6572 + $0x40] sm:$0xff]
        %v6582 = vld [vmem:[%s6572 + $0x48] sm:$0xff]
        %v6583 = vld [vmem:[%s6572 + $0x50] sm:$0xff]
        %v6584 = vld [vmem:[%s6572 + $0x58] sm:$0xff]
        %v6585 = vld [vmem:[%s6572 + $0x60] sm:$0xff]
        %v6586 = vld [vmem:[%s6572 + $0x68] sm:$0xff]
        %v6587 = vld [vmem:[%s6572 + $0x70] sm:$0xff]
        %v6588 = vld [vmem:[%s6572 + $0x78] sm:$0xff]
        %v6589 = vld [vmem:[%s6572 + $0x80] sm:$0xff]
        %v6590 = vld [vmem:[%s6572 + $0x88] sm:$0xff]
        %v6591 = vld [vmem:[%s6572 + $0x90] sm:$0xff]
        %v6592 = vld [vmem:[%s6572 + $0x98] sm:$0xff]
        %v6593 = vld [vmem:[%s6572 + $0xa0] sm:$0xff]
        %v6594 = vld [vmem:[%s6572 + $0xa8] sm:$0xff]
        %v6595 = vld [vmem:[%s6572 + $0xb0] sm:$0xff]
        %v6596 = vld [vmem:[%s6572 + $0xb8] sm:$0xff]
        %v6597 = vld [vmem:[%s6572 + $0xc0] sm:$0xff]
        %v6598 = vld [vmem:[%s6572 + $0xc8] sm:$0xff]
        %v6599 = vld [vmem:[%s6572 + $0xd0] sm:$0xff]
        %v6600 = vld [vmem:[%s6572 + $0xd8] sm:$0xff]
        %v6601 = vld [vmem:[%s6572 + $0xe0] sm:$0xff]
        %v6602 = vld [vmem:[%s6572 + $0xe8] sm:$0xff]
        %v6603 = vld [vmem:[%s6572 + $0xf0] sm:$0xff]
        %v6604 = vld [vmem:[%s6572 + $0xf8] sm:$0xff]
        %s6605 = scalar_lea.vmem %s15, 2
        %v6606 = vld [vmem:[%s6605] sm:$0x3]
        %v6608 = vperm.slane %v6606, 0
        %v6609 = vperm.slane %v6606, 1
        %v6644 = vunpack.c.l.b16 %v6573
        %v6645 = vunpack.c.h.b16 %v6573
        %v6646 = vunpack.c.l.b16 %v6574
        %v6647 = vunpack.c.h.b16 %v6574
        %v6648 = vunpack.c.l.b16 %v6575
        %v6649 = vunpack.c.h.b16 %v6575
        %v6650 = vunpack.c.l.b16 %v6576
        %v6651 = vunpack.c.h.b16 %v6576
        %v6652 = vunpack.c.l.b16 %v6577
        %v6653 = vunpack.c.h.b16 %v6577
        %v6654 = vunpack.c.l.b16 %v6578
        %v6655 = vunpack.c.h.b16 %v6578
        %v6656 = vunpack.c.l.b16 %v6579
        %v6657 = vunpack.c.h.b16 %v6579
        %v6658 = vunpack.c.l.b16 %v6580
        %v6659 = vunpack.c.h.b16 %v6580
        %v6660 = vunpack.c.l.b16 %v6581
        %v6661 = vunpack.c.h.b16 %v6581
        %v6662 = vunpack.c.l.b16 %v6582
        %v6663 = vunpack.c.h.b16 %v6582
        %v6664 = vunpack.c.l.b16 %v6583
        %v6665 = vunpack.c.h.b16 %v6583
        %v6666 = vunpack.c.l.b16 %v6584
        %v6667 = vunpack.c.h.b16 %v6584
        %v6668 = vunpack.c.l.b16 %v6585
        %v6669 = vunpack.c.h.b16 %v6585
        %v6670 = vunpack.c.l.b16 %v6586
        %v6671 = vunpack.c.h.b16 %v6586
        %v6672 = vunpack.c.l.b16 %v6587
        %v6673 = vunpack.c.h.b16 %v6587
        %v6674 = vunpack.c.l.b16 %v6588
        %v6675 = vunpack.c.h.b16 %v6588
        %v6676 = vunpack.c.l.b16 %v6589
        %v6677 = vunpack.c.h.b16 %v6589
        %v6678 = vunpack.c.l.b16 %v6590
        %v6679 = vunpack.c.h.b16 %v6590
        %v6680 = vunpack.c.l.b16 %v6591
        %v6681 = vunpack.c.h.b16 %v6591
        %v6682 = vunpack.c.l.b16 %v6592
        %v6683 = vunpack.c.h.b16 %v6592
        %v6684 = vunpack.c.l.b16 %v6593
        %v6685 = vunpack.c.h.b16 %v6593
        %v6686 = vunpack.c.l.b16 %v6594
        %v6687 = vunpack.c.h.b16 %v6594
        %v6688 = vunpack.c.l.b16 %v6595
        %v6689 = vunpack.c.h.b16 %v6595
        %v6690 = vunpack.c.l.b16 %v6596
        %v6691 = vunpack.c.h.b16 %v6596
        %v6692 = vunpack.c.l.b16 %v6597
        %v6693 = vunpack.c.h.b16 %v6597
        %v6694 = vunpack.c.l.b16 %v6598
        %v6695 = vunpack.c.h.b16 %v6598
        %v6696 = vunpack.c.l.b16 %v6599
        %v6697 = vunpack.c.h.b16 %v6599
        %v6698 = vunpack.c.l.b16 %v6600
        %v6699 = vunpack.c.h.b16 %v6600
        %v6700 = vunpack.c.l.b16 %v6601
        %v6701 = vunpack.c.h.b16 %v6601
        %v6702 = vunpack.c.l.b16 %v6602
        %v6703 = vunpack.c.h.b16 %v6602
        %v6704 = vunpack.c.l.b16 %v6603
        %v6705 = vunpack.c.h.b16 %v6603
        %v6706 = vunpack.c.l.b16 %v6604
        %v6707 = vunpack.c.h.b16 %v6604
        %v6708 = vpack.c.b16 %v6646, %v6644
        %v6709 = vpack.c.b16 %v6647, %v6645
        %v6710 = vpack.c.b16 %v6650, %v6648
        %v6711 = vpack.c.b16 %v6651, %v6649
        %v6712 = vpack.c.b16 %v6654, %v6652
        %v6713 = vpack.c.b16 %v6655, %v6653
        %v6714 = vpack.c.b16 %v6658, %v6656
        %v6715 = vpack.c.b16 %v6659, %v6657
        %v6716 = vpack.c.b16 %v6662, %v6660
        %v6717 = vpack.c.b16 %v6663, %v6661
        %v6718 = vpack.c.b16 %v6666, %v6664
        %v6719 = vpack.c.b16 %v6667, %v6665
        %v6720 = vpack.c.b16 %v6670, %v6668
        %v6721 = vpack.c.b16 %v6671, %v6669
        %v6722 = vpack.c.b16 %v6674, %v6672
        %v6723 = vpack.c.b16 %v6675, %v6673
        %v6724 = vpack.c.b16 %v6678, %v6676
        %v6725 = vpack.c.b16 %v6679, %v6677
        %v6726 = vpack.c.b16 %v6682, %v6680
        %v6727 = vpack.c.b16 %v6683, %v6681
        %v6728 = vpack.c.b16 %v6686, %v6684
        %v6729 = vpack.c.b16 %v6687, %v6685
        %v6730 = vpack.c.b16 %v6690, %v6688
        %v6731 = vpack.c.b16 %v6691, %v6689
        %v6732 = vpack.c.b16 %v6694, %v6692
        %v6733 = vpack.c.b16 %v6695, %v6693
        %v6734 = vpack.c.b16 %v6698, %v6696
        %v6735 = vpack.c.b16 %v6699, %v6697
        %v6736 = vpack.c.b16 %v6702, %v6700
        %v6737 = vpack.c.b16 %v6703, %v6701
        %v6738 = vpack.c.b16 %v6706, %v6704
        %v6739 = vpack.c.b16 %v6707, %v6705
        %6772 = vmatpush.bf16.msra.mxu0 %v6722
        %6773 = vmatpush.bf16.msra.mxu0 %v6720
        %6774 = vmatpush.bf16.msra.mxu0 %v6718
        %6775 = vmatpush.bf16.msra.mxu0 %v6716
        %6776 = vmatpush.bf16.msra.mxu0 %v6714
        %6777 = vmatpush.bf16.msra.mxu0 %v6712
        %6778 = vmatpush.bf16.msra.mxu0 %v6710
        %6779 = vmatpush.bf16.msra.mxu0 %v6708
        %6780 = vmatmul.bf16.gmra.mxu0 %v6568
        %v6781 = vpop.f32.mrf.mxu0
        %v6782 = vadd.f32 %v6608, %v6781
        %v6783 = vpop.f32.mrf.mxu0
        %v6784 = vadd.f32 %v6608, %v6783
        %6785 = vmatmul.bf16.gmra.mxu0 %v6570
        %v6786 = vpop.f32.mrf.mxu0
        %v6787 = vadd.f32 %v6608, %v6786
        %v6788 = vpop.f32.mrf.mxu0
        %v6789 = vadd.f32 %v6608, %v6788
        %6790 = vdwg.mxu0
        %6791 = vmatpush.bf16.msra.mxu0 %v6738
        %6792 = vmatpush.bf16.msra.mxu0 %v6736
        %6793 = vmatpush.bf16.msra.mxu0 %v6734
        %6794 = vmatpush.bf16.msra.mxu0 %v6732
        %6795 = vmatpush.bf16.msra.mxu0 %v6730
        %6796 = vmatpush.bf16.msra.mxu0 %v6728
        %6797 = vmatpush.bf16.msra.mxu0 %v6726
        %6798 = vmatpush.bf16.msra.mxu0 %v6724
        %6799 = vmatmul.bf16.gmra.mxu0 %v6569
        %v6800 = vpop.f32.mrf.mxu0
        %v6801 = vadd.f32 %v6782, %v6800
        %v6802 = vpop.f32.mrf.mxu0
        %v6803 = vadd.f32 %v6784, %v6802
        %6804 = vmatmul.bf16.gmra.mxu0 %v6571
        %v6805 = vpop.f32.mrf.mxu0
        %v6806 = vadd.f32 %v6787, %v6805
        %v6807 = vpop.f32.mrf.mxu0
        %v6808 = vadd.f32 %v6789, %v6807
        %6809 = vdwg.mxu0
        %6810 = vmatpush.bf16.msra.mxu0 %v6723
        %6811 = vmatpush.bf16.msra.mxu0 %v6721
        %6812 = vmatpush.bf16.msra.mxu0 %v6719
        %6813 = vmatpush.bf16.msra.mxu0 %v6717
        %6814 = vmatpush.bf16.msra.mxu0 %v6715
        %6815 = vmatpush.bf16.msra.mxu0 %v6713
        %6816 = vmatpush.bf16.msra.mxu0 %v6711
        %6817 = vmatpush.bf16.msra.mxu0 %v6709
        %6818 = vmatmul.bf16.gmra.mxu0 %v6568
        %v6819 = vpop.f32.mrf.mxu0
        %v6820 = vadd.f32 %v6609, %v6819
        %v6821 = vpop.f32.mrf.mxu0
        %v6822 = vadd.f32 %v6609, %v6821
        %6823 = vmatmul.bf16.gmra.mxu0 %v6570
        %v6824 = vpop.f32.mrf.mxu0
        %v6825 = vadd.f32 %v6609, %v6824
        %v6826 = vpop.f32.mrf.mxu0
        %v6827 = vadd.f32 %v6609, %v6826
        %6828 = vdwg.mxu0
        %6829 = vmatpush.bf16.msra.mxu0 %v6739
        %6830 = vmatpush.bf16.msra.mxu0 %v6737
        %6831 = vmatpush.bf16.msra.mxu0 %v6735
        %6832 = vmatpush.bf16.msra.mxu0 %v6733
        %6833 = vmatpush.bf16.msra.mxu0 %v6731
        %6834 = vmatpush.bf16.msra.mxu0 %v6729
        %6835 = vmatpush.bf16.msra.mxu0 %v6727
        %6836 = vmatpush.bf16.msra.mxu0 %v6725
        %6837 = vmatmul.bf16.gmra.mxu0 %v6569
        %v6838 = vpop.f32.mrf.mxu0
        %v6839 = vadd.f32 %v6820, %v6838
        %v6840 = vpop.f32.mrf.mxu0
        %v6841 = vadd.f32 %v6822, %v6840
        %6842 = vmatmul.bf16.gmra.mxu0 %v6571
        %v6843 = vpop.f32.mrf.mxu0
        %v6844 = vadd.f32 %v6825, %v6843
        %v6845 = vpop.f32.mrf.mxu0
        %v6846 = vadd.f32 %v6827, %v6845
        %6847 = vdwg.mxu0
        %v6848 = vadd.f32 %v6272, %v6801
        %v6849 = vadd.f32 %v6273, %v6839
        %v6850 = vadd.f32 %v6274, %v6803
        %v6851 = vadd.f32 %v6275, %v6841
        %v6852 = vadd.f32 %v6276, %v6806
        %v6853 = vadd.f32 %v6277, %v6844
        %v6854 = vadd.f32 %v6278, %v6808
        %v6855 = vadd.f32 %v6279, %v6846
        %s6856 = scalar_lea.vmem %s16, 2
        %v6857 = vld [vmem:[%s6856] sm:$0x3]
        %s6858 = scalar_lea.vmem %s17, 2
        %v6859 = vld [vmem:[%s6858] sm:$0x3]
        %v6860 = vadd.f32 %v6848, %v6849
        %6861 = vadd.xlane.f32.xlu0 %v6860
        %v6862 = vpop.xlane.xlu0 %6861
        %v6863 = vadd.f32 %v6850, %v6851
        %6864 = vadd.xlane.f32.xlu0 %v6863
        %v6865 = vpop.xlane.xlu0 %6864
        %v6866 = vadd.f32 %v6852, %v6853
        %6867 = vadd.xlane.f32.xlu0 %v6866
        %v6868 = vpop.xlane.xlu0 %6867
        %v6869 = vadd.f32 %v6854, %v6855
        %6870 = vadd.xlane.f32.xlu0 %v6869
        %v6871 = vpop.xlane.xlu0 %6870
        %v6872 = vmul.f32 %v6862, %v3191
        %v6873 = vmul.f32 %v6865, %v3191
        %v6874 = vmul.f32 %v6868, %v3191
        %v6875 = vmul.f32 %v6871, %v3191
        %v6876 = vsub.f32 %v6848, %v6872
        %v6877 = vsub.f32 %v6849, %v6872
        %v6878 = vsub.f32 %v6850, %v6873
        %v6879 = vsub.f32 %v6851, %v6873
        %v6880 = vsub.f32 %v6852, %v6874
        %v6881 = vsub.f32 %v6853, %v6874
        %v6882 = vsub.f32 %v6854, %v6875
        %v6883 = vsub.f32 %v6855, %v6875
        %v6884 = vmul.f32 %v6876, %v6876
        %v6885 = vmul.f32 %v6877, %v6877
        %v6886 = vmul.f32 %v6878, %v6878
        %v6887 = vmul.f32 %v6879, %v6879
        %v6888 = vmul.f32 %v6880, %v6880
        %v6889 = vmul.f32 %v6881, %v6881
        %v6890 = vmul.f32 %v6882, %v6882
        %v6891 = vmul.f32 %v6883, %v6883
        %v6892 = vadd.f32 %v6884, %v6885
        %6893 = vadd.xlane.f32.xlu0 %v6892
        %v6894 = vpop.xlane.xlu0 %6893
        %v6895 = vadd.f32 %v6886, %v6887
        %6896 = vadd.xlane.f32.xlu0 %v6895
        %v6897 = vpop.xlane.xlu0 %6896
        %v6898 = vadd.f32 %v6888, %v6889
        %6899 = vadd.xlane.f32.xlu0 %v6898
        %v6900 = vpop.xlane.xlu0 %6899
        %v6901 = vadd.f32 %v6890, %v6891
        %6902 = vadd.xlane.f32.xlu0 %v6901
        %v6903 = vpop.xlane.xlu0 %6902
        %v6904 = vmul.f32 %v6894, %v3191
        %v6905 = vmul.f32 %v6897, %v3191
        %v6906 = vmul.f32 %v6900, %v3191
        %v6907 = vmul.f32 %v6903, %v3191
        %v6908 = vadd.f32 %v6904, 1e-05
        %v6909 = vadd.f32 %v6905, 1e-05
        %v6910 = vadd.f32 %v6906, 1e-05
        %v6911 = vadd.f32 %v6907, 1e-05
        %v6912 = vrsqrt.pop %v6908
        %v6913 = vmul.f32 %v6912, %v6908
        %v6914 = vmul.f32 %v6913, %v6912
        %v6915 = vmul.f32 0.5, %v6914
        %v6916 = vsub.f32 1.5, %v6915
        %v6917 = vmul.f32 %v6912, %v6916
        %vm6918 = vweird.f32 %v6908
        %vm6919 = vweird.f32 %v6912
        %vm6920 = vmor %vm6918, %vm6919
        %v6921 = vsel %vm6920, %v6912, %v6917
        %v6922 = vrsqrt.pop %v6909
        %v6923 = vmul.f32 %v6922, %v6909
        %v6924 = vmul.f32 %v6923, %v6922
        %v6925 = vmul.f32 0.5, %v6924
        %v6926 = vsub.f32 1.5, %v6925
        %v6927 = vmul.f32 %v6922, %v6926
        %vm6928 = vweird.f32 %v6909
        %vm6929 = vweird.f32 %v6922
        %vm6930 = vmor %vm6928, %vm6929
        %v6931 = vsel %vm6930, %v6922, %v6927
        %v6932 = vrsqrt.pop %v6910
        %v6933 = vmul.f32 %v6932, %v6910
        %v6934 = vmul.f32 %v6933, %v6932
        %v6935 = vmul.f32 0.5, %v6934
        %v6936 = vsub.f32 1.5, %v6935
        %v6937 = vmul.f32 %v6932, %v6936
        %vm6938 = vweird.f32 %v6910
        %vm6939 = vweird.f32 %v6932
        %vm6940 = vmor %vm6938, %vm6939
        %v6941 = vsel %vm6940, %v6932, %v6937
        %v6942 = vrsqrt.pop %v6911
        %v6943 = vmul.f32 %v6942, %v6911
        %v6944 = vmul.f32 %v6943, %v6942
        %v6945 = vmul.f32 0.5, %v6944
        %v6946 = vsub.f32 1.5, %v6945
        %v6947 = vmul.f32 %v6942, %v6946
        %vm6948 = vweird.f32 %v6911
        %vm6949 = vweird.f32 %v6942
        %vm6950 = vmor %vm6948, %vm6949
        %v6951 = vsel %vm6950, %v6942, %v6947
        %v6952 = vmul.f32 %v6876, %v6921
        %v6953 = vmul.f32 %v6877, %v6921
        %v6954 = vmul.f32 %v6878, %v6931
        %v6955 = vmul.f32 %v6879, %v6931
        %v6956 = vmul.f32 %v6880, %v6941
        %v6957 = vmul.f32 %v6881, %v6941
        %v6958 = vmul.f32 %v6882, %v6951
        %v6959 = vmul.f32 %v6883, %v6951
        %v6961 = vperm.slane %v6857, 0
        %v6962 = vperm.slane %v6857, 1
        %v6965 = vmul.f32 %v6952, %v6961
        %v6966 = vmul.f32 %v6953, %v6962
        %v6967 = vmul.f32 %v6954, %v6961
        %v6968 = vmul.f32 %v6955, %v6962
        %v6969 = vmul.f32 %v6956, %v6961
        %v6970 = vmul.f32 %v6957, %v6962
        %v6971 = vmul.f32 %v6958, %v6961
        %v6972 = vmul.f32 %v6959, %v6962
        %v6974 = vperm.slane %v6859, 0
        %v6975 = vperm.slane %v6859, 1
        %v6978 = vadd.f32 %v6965, %v6974
        %v6979 = vadd.f32 %v6966, %v6975
        %v6980 = vadd.f32 %v6967, %v6974
        %v6981 = vadd.f32 %v6968, %v6975
        %v6982 = vadd.f32 %v6969, %v6974
        %v6983 = vadd.f32 %v6970, %v6975
        %v6984 = vadd.f32 %v6971, %v6974
        %v6985 = vadd.f32 %v6972, %v6975
        %v6986 = vpack.c.bf16 %v6978, %v6978
        %v6987 = vpack.c.bf16 %v6979, %v6979
        %v6988 = vpack.c.bf16 %v6980, %v6980
        %v6989 = vpack.c.bf16 %v6981, %v6981
        %v6990 = vpack.c.bf16 %v6982, %v6982
        %v6991 = vpack.c.bf16 %v6983, %v6983
        %v6992 = vpack.c.bf16 %v6984, %v6984
        %v6993 = vpack.c.bf16 %v6985, %v6985
        %v6994 = vld [vmem:[%s18] sm:$0xff]
        %v6995 = vld [vmem:[%s18 + $0x8] sm:$0xff]
        %v6996 = vld [vmem:[%s18 + $0x10] sm:$0xff]
        %v6997 = vld [vmem:[%s18 + $0x18] sm:$0xff]
        %v6998 = vld [vmem:[%s18 + $0x20] sm:$0xff]
        %v6999 = vld [vmem:[%s18 + $0x28] sm:$0xff]
        %v7000 = vld [vmem:[%s18 + $0x30] sm:$0xff]
        %v7001 = vld [vmem:[%s18 + $0x38] sm:$0xff]
        %v7002 = vld [vmem:[%s18 + $0x40] sm:$0xff]
        %v7003 = vld [vmem:[%s18 + $0x48] sm:$0xff]
        %v7004 = vld [vmem:[%s18 + $0x50] sm:$0xff]
        %v7005 = vld [vmem:[%s18 + $0x58] sm:$0xff]
        %v7006 = vld [vmem:[%s18 + $0x60] sm:$0xff]
        %v7007 = vld [vmem:[%s18 + $0x68] sm:$0xff]
        %v7008 = vld [vmem:[%s18 + $0x70] sm:$0xff]
        %v7009 = vld [vmem:[%s18 + $0x78] sm:$0xff]
        %v7010 = vld [vmem:[%s18 + $0x80] sm:$0xff]
        %v7011 = vld [vmem:[%s18 + $0x88] sm:$0xff]
        %v7012 = vld [vmem:[%s18 + $0x90] sm:$0xff]
        %v7013 = vld [vmem:[%s18 + $0x98] sm:$0xff]
        %v7014 = vld [vmem:[%s18 + $0xa0] sm:$0xff]
        %v7015 = vld [vmem:[%s18 + $0xa8] sm:$0xff]
        %v7016 = vld [vmem:[%s18 + $0xb0] sm:$0xff]
        %v7017 = vld [vmem:[%s18 + $0xb8] sm:$0xff]
        %v7018 = vld [vmem:[%s18 + $0xc0] sm:$0xff]
        %v7019 = vld [vmem:[%s18 + $0xc8] sm:$0xff]
        %v7020 = vld [vmem:[%s18 + $0xd0] sm:$0xff]
        %v7021 = vld [vmem:[%s18 + $0xd8] sm:$0xff]
        %v7022 = vld [vmem:[%s18 + $0xe0] sm:$0xff]
        %v7023 = vld [vmem:[%s18 + $0xe8] sm:$0xff]
        %v7024 = vld [vmem:[%s18 + $0xf0] sm:$0xff]
        %v7025 = vld [vmem:[%s18 + $0xf8] sm:$0xff]
        %v7026 = vld [vmem:[%s19] sm:$0x3]
        %v7028 = vperm.slane %v7026, 0
        %v7029 = vperm.slane %v7026, 1
        %v7040 = vunpack.c.l.b16 %v6986
        %v7041 = vunpack.c.l.b16 %v6987
        %v7042 = vunpack.c.l.b16 %v6988
        %v7043 = vunpack.c.l.b16 %v6989
        %v7044 = vunpack.c.l.b16 %v6990
        %v7045 = vunpack.c.l.b16 %v6991
        %v7046 = vunpack.c.l.b16 %v6992
        %v7047 = vunpack.c.l.b16 %v6993
        %v7048 = vrot.slane %v7042, 7
        %vm7049 = vcmask 1041409
        %v7050 = vsel %vm7049, %v7048, %v7040
        %v7051 = vrot.slane %v7044, 6
        %vm7052 = vcmask 1042434
        %v7053 = vsel %vm7052, %v7051, %v7050
        %v7054 = vrot.slane %v7046, 5
        %vm7055 = vcmask 1043459
        %v7056 = vsel %vm7055, %v7054, %v7053
        %v7057 = vrot.slane %v7043, 7
        %v7058 = vsel %vm7049, %v7057, %v7041
        %v7059 = vrot.slane %v7045, 6
        %v7060 = vsel %vm7052, %v7059, %v7058
        %v7061 = vrot.slane %v7047, 5
        %v7062 = vsel %vm7055, %v7061, %v7060
        %v7063 = vpack.c.b16 %v7056, %v7056
        %v7064 = vpack.c.b16 %v7062, %v7062
        %v7099 = vunpack.c.l.b16 %v6994
        %v7100 = vunpack.c.h.b16 %v6994
        %v7101 = vunpack.c.l.b16 %v6995
        %v7102 = vunpack.c.h.b16 %v6995
        %v7103 = vunpack.c.l.b16 %v6996
        %v7104 = vunpack.c.h.b16 %v6996
        %v7105 = vunpack.c.l.b16 %v6997
        %v7106 = vunpack.c.h.b16 %v6997
        %v7107 = vunpack.c.l.b16 %v6998
        %v7108 = vunpack.c.h.b16 %v6998
        %v7109 = vunpack.c.l.b16 %v6999
        %v7110 = vunpack.c.h.b16 %v6999
        %v7111 = vunpack.c.l.b16 %v7000
        %v7112 = vunpack.c.h.b16 %v7000
        %v7113 = vunpack.c.l.b16 %v7001
        %v7114 = vunpack.c.h.b16 %v7001
        %v7115 = vunpack.c.l.b16 %v7002
        %v7116 = vunpack.c.h.b16 %v7002
        %v7117 = vunpack.c.l.b16 %v7003
        %v7118 = vunpack.c.h.b16 %v7003
        %v7119 = vunpack.c.l.b16 %v7004
        %v7120 = vunpack.c.h.b16 %v7004
        %v7121 = vunpack.c.l.b16 %v7005
        %v7122 = vunpack.c.h.b16 %v7005
        %v7123 = vunpack.c.l.b16 %v7006
        %v7124 = vunpack.c.h.b16 %v7006
        %v7125 = vunpack.c.l.b16 %v7007
        %v7126 = vunpack.c.h.b16 %v7007
        %v7127 = vunpack.c.l.b16 %v7008
        %v7128 = vunpack.c.h.b16 %v7008
        %v7129 = vunpack.c.l.b16 %v7009
        %v7130 = vunpack.c.h.b16 %v7009
        %v7131 = vunpack.c.l.b16 %v7010
        %v7132 = vunpack.c.h.b16 %v7010
        %v7133 = vunpack.c.l.b16 %v7011
        %v7134 = vunpack.c.h.b16 %v7011
        %v7135 = vunpack.c.l.b16 %v7012
        %v7136 = vunpack.c.h.b16 %v7012
        %v7137 = vunpack.c.l.b16 %v7013
        %v7138 = vunpack.c.h.b16 %v7013
        %v7139 = vunpack.c.l.b16 %v7014
        %v7140 = vunpack.c.h.b16 %v7014
        %v7141 = vunpack.c.l.b16 %v7015
        %v7142 = vunpack.c.h.b16 %v7015
        %v7143 = vunpack.c.l.b16 %v7016
        %v7144 = vunpack.c.h.b16 %v7016
        %v7145 = vunpack.c.l.b16 %v7017
        %v7146 = vunpack.c.h.b16 %v7017
        %v7147 = vunpack.c.l.b16 %v7018
        %v7148 = vunpack.c.h.b16 %v7018
        %v7149 = vunpack.c.l.b16 %v7019
        %v7150 = vunpack.c.h.b16 %v7019
        %v7151 = vunpack.c.l.b16 %v7020
        %v7152 = vunpack.c.h.b16 %v7020
        %v7153 = vunpack.c.l.b16 %v7021
        %v7154 = vunpack.c.h.b16 %v7021
        %v7155 = vunpack.c.l.b16 %v7022
        %v7156 = vunpack.c.h.b16 %v7022
        %v7157 = vunpack.c.l.b16 %v7023
        %v7158 = vunpack.c.h.b16 %v7023
        %v7159 = vunpack.c.l.b16 %v7024
        %v7160 = vunpack.c.h.b16 %v7024
        %v7161 = vunpack.c.l.b16 %v7025
        %v7162 = vunpack.c.h.b16 %v7025
        %v7163 = vpack.c.b16 %v7101, %v7099
        %v7164 = vpack.c.b16 %v7102, %v7100
        %v7165 = vpack.c.b16 %v7105, %v7103
        %v7166 = vpack.c.b16 %v7106, %v7104
        %v7167 = vpack.c.b16 %v7109, %v7107
        %v7168 = vpack.c.b16 %v7110, %v7108
        %v7169 = vpack.c.b16 %v7113, %v7111
        %v7170 = vpack.c.b16 %v7114, %v7112
        %v7171 = vpack.c.b16 %v7117, %v7115
        %v7172 = vpack.c.b16 %v7118, %v7116
        %v7173 = vpack.c.b16 %v7121, %v7119
        %v7174 = vpack.c.b16 %v7122, %v7120
        %v7175 = vpack.c.b16 %v7125, %v7123
        %v7176 = vpack.c.b16 %v7126, %v7124
        %v7177 = vpack.c.b16 %v7129, %v7127
        %v7178 = vpack.c.b16 %v7130, %v7128
        %v7179 = vpack.c.b16 %v7133, %v7131
        %v7180 = vpack.c.b16 %v7134, %v7132
        %v7181 = vpack.c.b16 %v7137, %v7135
        %v7182 = vpack.c.b16 %v7138, %v7136
        %v7183 = vpack.c.b16 %v7141, %v7139
        %v7184 = vpack.c.b16 %v7142, %v7140
        %v7185 = vpack.c.b16 %v7145, %v7143
        %v7186 = vpack.c.b16 %v7146, %v7144
        %v7187 = vpack.c.b16 %v7149, %v7147
        %v7188 = vpack.c.b16 %v7150, %v7148
        %v7189 = vpack.c.b16 %v7153, %v7151
        %v7190 = vpack.c.b16 %v7154, %v7152
        %v7191 = vpack.c.b16 %v7157, %v7155
        %v7192 = vpack.c.b16 %v7158, %v7156
        %v7193 = vpack.c.b16 %v7161, %v7159
        %v7194 = vpack.c.b16 %v7162, %v7160
        %7227 = vmatpush.bf16.msra.mxu0 %v7177
        %7228 = vmatpush.bf16.msra.mxu0 %v7175
        %7229 = vmatpush.bf16.msra.mxu0 %v7173
        %7230 = vmatpush.bf16.msra.mxu0 %v7171
        %7231 = vmatpush.bf16.msra.mxu0 %v7169
        %7232 = vmatpush.bf16.msra.mxu0 %v7167
        %7233 = vmatpush.bf16.msra.mxu0 %v7165
        %7234 = vmatpush.bf16.msra.mxu0 %v7163
        %7235 = vmatmul.bf16.gmra.mxu0 %v7063
        %v7236 = vpop.f32.mrf.mxu0
        %v7237 = vadd.f32 %v7028, %v7236
        %v7238 = vpop.f32.mrf.mxu0
        %7239 = vdwg.mxu0
        %7240 = vmatpush.bf16.msra.mxu0 %v7193
        %7241 = vmatpush.bf16.msra.mxu0 %v7191
        %7242 = vmatpush.bf16.msra.mxu0 %v7189
        %7243 = vmatpush.bf16.msra.mxu0 %v7187
        %7244 = vmatpush.bf16.msra.mxu0 %v7185
        %7245 = vmatpush.bf16.msra.mxu0 %v7183
        %7246 = vmatpush.bf16.msra.mxu0 %v7181
        %7247 = vmatpush.bf16.msra.mxu0 %v7179
        %7248 = vmatmul.bf16.gmra.mxu0 %v7064
        %v7249 = vpop.f32.mrf.mxu0
        %v7250 = vadd.f32 %v7237, %v7249
        %v7251 = vpop.f32.mrf.mxu0
        %7252 = vdwg.mxu0
        %7253 = vmatpush.bf16.msra.mxu0 %v7178
        %7254 = vmatpush.bf16.msra.mxu0 %v7176
        %7255 = vmatpush.bf16.msra.mxu0 %v7174
        %7256 = vmatpush.bf16.msra.mxu0 %v7172
        %7257 = vmatpush.bf16.msra.mxu0 %v7170
        %7258 = vmatpush.bf16.msra.mxu0 %v7168
        %7259 = vmatpush.bf16.msra.mxu0 %v7166
        %7260 = vmatpush.bf16.msra.mxu0 %v7164
        %7261 = vmatmul.bf16.gmra.mxu0 %v7063
        %v7262 = vpop.f32.mrf.mxu0
        %v7263 = vadd.f32 %v7029, %v7262
        %v7264 = vpop.f32.mrf.mxu0
        %7265 = vdwg.mxu0
        %7266 = vmatpush.bf16.msra.mxu0 %v7194
        %7267 = vmatpush.bf16.msra.mxu0 %v7192
        %7268 = vmatpush.bf16.msra.mxu0 %v7190
        %7269 = vmatpush.bf16.msra.mxu0 %v7188
        %7270 = vmatpush.bf16.msra.mxu0 %v7186
        %7271 = vmatpush.bf16.msra.mxu0 %v7184
        %7272 = vmatpush.bf16.msra.mxu0 %v7182
        %7273 = vmatpush.bf16.msra.mxu0 %v7180
        %7274 = vmatmul.bf16.gmra.mxu0 %v7064
        %v7275 = vpop.f32.mrf.mxu0
        %v7276 = vadd.f32 %v7263, %v7275
        %v7277 = vpop.f32.mrf.mxu0
        %7278 = vdwg.mxu0
        %v7279 = vtanh.pop %v7250
        %v7280 = vtanh.pop %v7276
        %v7281 = vpack.c.bf16 %v7279, %v7279
        %v7282 = vpack.c.bf16 %v7280, %v7280
        %v7283 = vld [vmem:[%s20] sm:$0xf]
        %v7284 = vld [vmem:[%s20 + $0x4] sm:$0xf]
        %v7285 = vld [vmem:[%s20 + $0x8] sm:$0xf]
        %v7286 = vld [vmem:[%s20 + $0xc] sm:$0xf]
        %v7287 = vld [vmem:[%s20 + $0x10] sm:$0xf]
        %v7288 = vld [vmem:[%s20 + $0x14] sm:$0xf]
        %v7289 = vld [vmem:[%s20 + $0x18] sm:$0xf]
        %v7290 = vld [vmem:[%s20 + $0x1c] sm:$0xf]
        %v7291 = vld [vmem:[%s20 + $0x20] sm:$0xf]
        %v7292 = vld [vmem:[%s20 + $0x24] sm:$0xf]
        %v7293 = vld [vmem:[%s20 + $0x28] sm:$0xf]
        %v7294 = vld [vmem:[%s20 + $0x2c] sm:$0xf]
        %v7295 = vld [vmem:[%s20 + $0x30] sm:$0xf]
        %v7296 = vld [vmem:[%s20 + $0x34] sm:$0xf]
        %v7297 = vld [vmem:[%s20 + $0x38] sm:$0xf]
        %v7298 = vld [vmem:[%s20 + $0x3c] sm:$0xf]
        %v7299 = vld [vmem:[%s20 + $0x40] sm:$0xf]
        %v7300 = vld [vmem:[%s20 + $0x44] sm:$0xf]
        %v7301 = vld [vmem:[%s20 + $0x48] sm:$0xf]
        %v7302 = vld [vmem:[%s20 + $0x4c] sm:$0xf]
        %v7303 = vld [vmem:[%s20 + $0x50] sm:$0xf]
        %v7304 = vld [vmem:[%s20 + $0x54] sm:$0xf]
        %v7305 = vld [vmem:[%s20 + $0x58] sm:$0xf]
        %v7306 = vld [vmem:[%s20 + $0x5c] sm:$0xf]
        %v7307 = vld [vmem:[%s20 + $0x60] sm:$0xf]
        %v7308 = vld [vmem:[%s20 + $0x64] sm:$0xf]
        %v7309 = vld [vmem:[%s20 + $0x68] sm:$0xf]
        %v7310 = vld [vmem:[%s20 + $0x6c] sm:$0xf]
        %v7311 = vld [vmem:[%s20 + $0x70] sm:$0xf]
        %v7312 = vld [vmem:[%s20 + $0x74] sm:$0xf]
        %v7313 = vld [vmem:[%s20 + $0x78] sm:$0xf]
        %v7314 = vld [vmem:[%s20 + $0x7c] sm:$0xf]
        %v7315 = vld [vmem:[%s21] sm:$0x1]
        %v7317 = vperm.slane %v7315, 0
        %v7351 = vunpack.c.l.b16 %v7283
        %v7352 = vunpack.c.l.b16 %v7284
        %v7353 = vunpack.c.l.b16 %v7285
        %v7354 = vunpack.c.l.b16 %v7286
        %v7355 = vunpack.c.l.b16 %v7287
        %v7356 = vunpack.c.l.b16 %v7288
        %v7357 = vunpack.c.l.b16 %v7289
        %v7358 = vunpack.c.l.b16 %v7290
        %v7359 = vunpack.c.l.b16 %v7291
        %v7360 = vunpack.c.l.b16 %v7292
        %v7361 = vunpack.c.l.b16 %v7293
        %v7362 = vunpack.c.l.b16 %v7294
        %v7363 = vunpack.c.l.b16 %v7295
        %v7364 = vunpack.c.l.b16 %v7296
        %v7365 = vunpack.c.l.b16 %v7297
        %v7366 = vunpack.c.l.b16 %v7298
        %v7367 = vunpack.c.l.b16 %v7299
        %v7368 = vunpack.c.l.b16 %v7300
        %v7369 = vunpack.c.l.b16 %v7301
        %v7370 = vunpack.c.l.b16 %v7302
        %v7371 = vunpack.c.l.b16 %v7303
        %v7372 = vunpack.c.l.b16 %v7304
        %v7373 = vunpack.c.l.b16 %v7305
        %v7374 = vunpack.c.l.b16 %v7306
        %v7375 = vunpack.c.l.b16 %v7307
        %v7376 = vunpack.c.l.b16 %v7308
        %v7377 = vunpack.c.l.b16 %v7309
        %v7378 = vunpack.c.l.b16 %v7310
        %v7379 = vunpack.c.l.b16 %v7311
        %v7380 = vunpack.c.l.b16 %v7312
        %v7381 = vunpack.c.l.b16 %v7313
        %v7382 = vunpack.c.l.b16 %v7314
        %v7383 = vpack.c.b16 %v7352, %v7351
        %v7384 = vpack.c.b16 %v7354, %v7353
        %v7385 = vpack.c.b16 %v7356, %v7355
        %v7386 = vpack.c.b16 %v7358, %v7357
        %v7387 = vpack.c.b16 %v7360, %v7359
        %v7388 = vpack.c.b16 %v7362, %v7361
        %v7389 = vpack.c.b16 %v7364, %v7363
        %v7390 = vpack.c.b16 %v7366, %v7365
        %v7391 = vpack.c.b16 %v7368, %v7367
        %v7392 = vpack.c.b16 %v7370, %v7369
        %v7393 = vpack.c.b16 %v7372, %v7371
        %v7394 = vpack.c.b16 %v7374, %v7373
        %v7395 = vpack.c.b16 %v7376, %v7375
        %v7396 = vpack.c.b16 %v7378, %v7377
        %v7397 = vpack.c.b16 %v7380, %v7379
        %v7398 = vpack.c.b16 %v7382, %v7381
        %7415 = vmatpush.bf16.msra.mxu0 %v7390
        %7416 = vmatpush.bf16.msra.mxu0 %v7389
        %7417 = vmatpush.bf16.msra.mxu0 %v7388
        %7418 = vmatpush.bf16.msra.mxu0 %v7387
        %7419 = vmatpush.bf16.msra.mxu0 %v7386
        %7420 = vmatpush.bf16.msra.mxu0 %v7385
        %7421 = vmatpush.bf16.msra.mxu0 %v7384
        %7422 = vmatpush.bf16.msra.mxu0 %v7383
        %7423 = vmatmul.bf16.gmra.mxu0 %v7281
        %v7424 = vpop.f32.mrf.mxu0
        %v7425 = vadd.f32 %v7317, %v7424
        %v7426 = vpop.f32.mrf.mxu0
        %7427 = vdwg.mxu0
        %7428 = vmatpush.bf16.msra.mxu0 %v7398
        %7429 = vmatpush.bf16.msra.mxu0 %v7397
        %7430 = vmatpush.bf16.msra.mxu0 %v7396
        %7431 = vmatpush.bf16.msra.mxu0 %v7395
        %7432 = vmatpush.bf16.msra.mxu0 %v7394
        %7433 = vmatpush.bf16.msra.mxu0 %v7393
        %7434 = vmatpush.bf16.msra.mxu0 %v7392
        %7435 = vmatpush.bf16.msra.mxu0 %v7391
        %7436 = vmatmul.bf16.gmra.mxu0 %v7282
        %v7437 = vpop.f32.mrf.mxu0
        %v7438 = vadd.f32 %v7425, %v7437
        %v7439 = vpop.f32.mrf.mxu0
        %7440 = vdwg.mxu0
        %7441 = vst [vmem:[%s794] sm:$0xf] %v7438
        %p7442 = scmp.lt.s32.totalorder %s36, 1
        %s7443 = scalar_select %p7442, %s36, 1
        %s7444 = smul.addr %s7443, 4
        %s7445 = scalar_lea.vmem %s22, %s7444
        // Predicated region
        $region125: #{bert_classifier_forward.1} parent=107 // pred_check
          %p7446 = pneg %p531
        $region126: #{bert_classifier_forward.1} parent=107 // pred_check_branch
          %7448 = sbr.rel (%p7446) target = $region128
        $region127: #{bert_classifier_forward.1} parent=107 // pred_region
          _
        $region128: #{bert_classifier_forward.1} parent=107 // pred_fallthru
          _
      $region108: #{bert_classifier_forward.1} parent=5 // pred_fallthru
        _
      %p7449 = scmp.le.s32.totalorder 2, %s31
      // Predicated region
      $region129: #{bert_classifier_forward.1} parent=5 // pred_check
        %p7450 = pneg %p7449
      $region130: #{bert_classifier_forward.1} parent=5 // pred_check_branch
        %7452 = sbr.rel (%p7450) target = $region132
      $region131: #{bert_classifier_forward.1} parent=5 // pred_region
        %s7453 = ssub.s32 %s31, 2
        // Predicated region
        $region133: #{bert_classifier_forward.1} parent=131 // pred_check
          %p7454 = pneg %p537
        $region134: #{bert_classifier_forward.1} parent=131 // pred_check_branch
          %7456 = sbr.rel (%p7454) target = $region136
        $region135: #{bert_classifier_forward.1} parent=131 // pred_region
          %p7457 = scmp.lt.s32.totalorder %s37, 1
          %s7458 = scalar_select %p7457, %s37, 1
          %s7459 = smul.addr %s7458, 4
          %s7460 = scalar_lea.vmem %s22, %s7459
        $region136: #{bert_classifier_forward.1} parent=131 // pred_fallthru
          _
      $region132: #{bert_classifier_forward.1} parent=5 // pred_fallthru
        _
    $region6: #{bert_classifier_forward.1} parent=1 // loop_footer
      %s35 = sadd.s32 1, %s31
    $region7: #{bert_classifier_forward.1} parent=1 // loop_footer_branch
      %30 = sbr.rel target = $region3
    $region8: #{bert_classifier_forward.1} parent=1 // loop_exit
      _
    %7461 = vsyncpa [#allocation4], 1
    %s7462 = scalar_lea.sflag [#allocation4], 1
    %7463 = vsyncpa %s7462, 1
    %7464 = vsyncpa [#allocation6], 1
    %7465 = vsyncpa [#allocation9], 1

</llo_original>
